<compile_context>
chip_gen: v5e
topology: v5e:2x2
jax: 0.10.0
libtpu: 0.0.40
codegen_flags: <defaults>
</compile_context>

<pallas_src>
import jax
import jax.numpy as jnp
import numpy as np
from jax.experimental import pallas as pl
from jax.experimental.pallas import tpu as pltpu

B      = 2
N      = 16                  # num_patches (perfect square, required by FeedForward)
WSP    = 4                   # sqrt(N)
DIM    = 32
DEPTH  = 2
HEADS  = 4
DH     = 16                  # dim_head
INNER  = HEADS * DH          # 64
HN     = HEADS * N           # 64
SCALE  = DH ** -0.5
FF1    = 256
FF2    = 512
LN_EPS = 1e-5
BN_EPS = 1e-5
BF16   = jnp.bfloat16

# ------------------------------------------------ packed-buffer row layouts (static)
# shared constants, bf16, shape (C_ROWS, C_COLS)
C_SM1  = 0                    # (N, N)   row-shift -1
C_SP1  = C_SM1 + N            # (N, N)   row-shift +1
C_DM1  = C_SP1 + N            # (DIM, DIM)
C_DP1  = C_DM1 + DIM          # (DIM, DIM)
C_T    = C_DP1 + DIM          # (HN, N)   vstack of identities
C_R    = C_T + HN             # (N, HN)   hstack of identities
C_MK   = C_R + N              # (INNER, HN) block-diag 0/1 mask
C_MV   = C_MK + INNER         # (HN, INNER) block-diag 0/1 mask
C_ONES = C_MV + HN            # (HN, HN)  block-diag ones
C_PCAT = C_ONES + HN          # (9N, N)   depthwise spatial-shift matrices stacked
C_ROWS = C_PCAT + 9 * N       # 512
C_COLS = HN                   # 64

# per-layer 1-D params, f32, shape (DEPTH, NV, VWIDTH)
(V_LN1G, V_LN1B, V_BOUT, V_BSPEC, V_SCONVB, V_SPECB,
 V_LN2G, V_LN2B, V_DWB, V_PWB, V_B1, V_B2) = range(12)
NV = 12
VWIDTH = FF2

# per-layer weight matrices, bf16, grouped by lane width
WW_W1, WW_PW, WW_QV = 0, FF1, FF1 + DIM       # width FF2 buffer: (DEPTH, 320, 512)
WW_ROWS = FF1 + 2 * DIM

WM_ROWS = 3 * HN                               # width HN buffer:  (DEPTH, 192, 64)

WN_K    = 0                                    # width DIM buffer: (DEPTH, 896, 32)
WN_OUT  = INNER
WN_SPEC = 2 * INNER
WN_D    = 2 * INNER + N
WN_W2   = WN_D + 3 * DIM
WN_DWS  = WN_W2 + FF2
WN_ROWS = WN_DWS + 9 * N


# ------------------------------------------------ in-kernel helpers
def _mxu(a, b):
    # a, b are already bf16; accumulate in f32 on the MXU.
    return jnp.dot(a, b, preferred_element_type=jnp.float32)


def _b(x):
    return x.astype(BF16)


def _layernorm(x, g, b):
    mu = jnp.mean(x, axis=-1, keepdims=True)
    var = jnp.mean((x - mu) ** 2, axis=-1, keepdims=True)
    return (x - mu) * jax.lax.rsqrt(var + LN_EPS) * g + b


def _erf(x):
    # Abramowitz & Stegun 7.1.26 polynomial, |err| < 1.5e-7 (f32-exact in practice).
    a1, a2, a3, a4, a5 = 0.254829592, -0.284496736, 1.421413741, -1.453152027, 1.061405429
    p = 0.3275911
    s = jnp.where(x >= 0.0, 1.0, -1.0)
    ax = jnp.abs(x)
    t = 1.0 / (1.0 + p * ax)
    poly = ((((a5 * t + a4) * t + a3) * t + a2) * t + a1) * t
    return s * (1.0 - poly * jnp.exp(-ax * ax))


def _gelu(x):
    # PyTorch nn.GELU() default = exact (erf-based) GELU; exp goes to the EUP, the short
    # polynomial stays on the VPU (kept instead of tanh-approx to preserve semantics).
    return 0.5 * x * (1.0 + _erf(x * 0.7071067811865475))


# ------------------------------------------------ fused transformer kernel
def _transformer_kernel(x_ref, vec_ref, cmat_ref, wwide_ref, wmid_ref, wnar_ref, o_ref):
    x = x_ref[0]                                                    # (N, DIM) f32

    for l in range(DEPTH):                                          # static unroll (DEPTH=2)
        # ---------------- PreNorm + Attention (+ residual) ----------------
        xn = _layernorm(x, vec_ref[l, V_LN1G:V_LN1G + 1, :DIM],
                        vec_ref[l, V_LN1B:V_LN1B + 1, :DIM])        # (N, DIM) f32
        xnb = _b(xn)
        xt = xn.T                                                   # (DIM, N) f32 (k / spectral)

        # q (pre-scaled by SCALE host-side) and v, all heads packed along lanes
        qv = _mxu(xnb, wwide_ref[l, WW_QV:WW_QV + DIM, :2 * INNER])  # (N, 2*INNER)
        q, v = qv[:, :INNER], qv[:, INNER:]
        # k^T directly (PyTorch weight orientation), no in-kernel transpose of k
        kT = _mxu(wnar_ref[l, WN_K:WN_K + INNER, :DIM], _b(xt))      # (INNER, N)

        # block-diagonalised K: K_bd[c, h*N+j] = k[j, c] when c belongs to head h, else 0
        rmat = cmat_ref[C_R:C_R + N, :HN]
        mk = cmat_ref[C_MK:C_MK + INNER, :HN]
        k_bd = _b(_mxu(_b(kT), rmat)) * mk                           # (INNER, HN) bf16

        # all-head scaled q·k^T in one matmul, lane-packed by head
        s = _mxu(_b(q), k_bd)                                        # (N, HN)

        # per-head softmax on the slab: shift by the global row max (valid for any per-row
        # constant; head score spreads here are tiny so no underflow risk), block-wise
        # denominators via one block-diagonal-ones matmul, EUP reciprocal.
        e = jnp.exp(s - jnp.max(s, axis=-1, keepdims=True))
        ones_bd = cmat_ref[C_ONES:C_ONES + HN, :HN]
        attn = e * pl.reciprocal(_mxu(_b(e), ones_bd), approx=True)  # (N, HN)
        attn_b = _b(attn)

        # spatial Conv2d(heads, heads, 3, padding=1): 3 banded matmuls + 2 row-shift matmuls
        band0 = _mxu(attn_b, wmid_ref[l, 0:HN, :])
        band1 = _mxu(attn_b, wmid_ref[l, HN:2 * HN, :])
        band2 = _mxu(attn_b, wmid_ref[l, 2 * HN:3 * HN, :])
        s_m1 = cmat_ref[C_SM1:C_SM1 + N, :N]
        s_p1 = cmat_ref[C_SP1:C_SP1 + N, :N]
        conv = (_mxu(s_m1, _b(band0)) + band1 + _mxu(s_p1, _b(band2))
                + vec_ref[l, V_SCONVB:V_SCONVB + 1, :HN])            # (N, HN)

        # conv_attn @ v (all heads at once, via block-diagonalised V) then to_out projection
        tmat = cmat_ref[C_T:C_T + HN, :N]
        mv = cmat_ref[C_MV:C_MV + HN, :INNER]
        v_bd = _b(_mxu(tmat, _b(v))) * mv                            # (HN, INNER) bf16
        out_cat = _mxu(_b(conv), v_bd)                               # (N, INNER)
        output = (_mxu(_b(out_cat), wnar_ref[l, WN_OUT:WN_OUT + INNER, :DIM])
                  + vec_ref[l, V_BOUT:V_BOUT + 1, :DIM])             # (N, DIM)

        # spectral branch on xn^T (v_spec of to_qkv_spec is never used by the forward)
        qk_s = (_mxu(_b(xt), wnar_ref[l, WN_SPEC:WN_SPEC + N, :2 * N])
                + vec_ref[l, V_BSPEC:V_BSPEC + 1, :2 * N])           # (DIM, 2N), q pre-scaled
        dots_s = _mxu(_b(qk_s[:, :N]), _b(qk_s[:, N:2 * N].T))       # (DIM, DIM)
        e_s = jnp.exp(dots_s - jnp.max(dots_s, axis=-1, keepdims=True))
        a_s = e_s * pl.reciprocal(jnp.sum(e_s, axis=-1, keepdims=True), approx=True)
        a_sb = _b(a_s)
        c0 = _mxu(a_sb, wnar_ref[l, WN_D:WN_D + DIM, :DIM])
        c1 = _mxu(a_sb, wnar_ref[l, WN_D + DIM:WN_D + 2 * DIM, :DIM])
        c2 = _mxu(a_sb, wnar_ref[l, WN_D + 2 * DIM:WN_D + 3 * DIM, :DIM])
        d_m1 = cmat_ref[C_DM1:C_DM1 + DIM, :DIM]
        d_p1 = cmat_ref[C_DP1:C_DP1 + DIM, :DIM]
        conv_s = (_mxu(d_m1, _b(c0)) + c1 + _mxu(d_p1, _b(c2))
                  + vec_ref[l, V_SPECB:V_SPECB + 1, 0:1])            # (DIM, DIM)

        x = _mxu(_b(output), _b(conv_s)) + x                         # attention residual

        # ---------------- PreNorm + FeedForward (+ residual) ----------------
        xn2 = _layernorm(x, vec_ref[l, V_LN2G:V_LN2G + 1, :DIM],
                         vec_ref[l, V_LN2B:V_LN2B + 1, :DIM])
        xn2b = _b(xn2)

        # depthwise 3x3 conv on the WSPxWSP token grid: one stacked-shift matmul,
        # per-(tap, channel) scale, then sum of the 9 row blocks (no halo scratch).
        p_cat = cmat_ref[C_PCAT:C_PCAT + 9 * N, :N]
        shifted = _mxu(p_cat, xn2b) * wnar_ref[l, WN_DWS:WN_DWS + 9 * N, :DIM]  # (9N, DIM)
        acc = vec_ref[l, V_DWB:V_DWB + 1, :DIM] + shifted[0:N, :]
        for kk in range(1, 9):
            acc = acc + shifted[kk * N:(kk + 1) * N, :]

        # pointwise 1x1 DIM->256 (eval-mode BatchNorm2d folded in host-side),
        # 1x1 256->512, GELU, 1x1 512->DIM, GELU.
        # TODO(synk): training-mode BatchNorm (batch statistics) would need a cross-batch
        # reduction; eval-mode running stats are folded into the pointwise conv instead.
        h1 = (_mxu(_b(acc), wwide_ref[l, WW_PW:WW_PW + DIM, :FF1])
              + vec_ref[l, V_PWB:V_PWB + 1, :FF1])
        h2 = _gelu(_mxu(_b(h1), wwide_ref[l, WW_W1:WW_W1 + FF1, :FF2])
                   + vec_ref[l, V_B1:V_B1 + 1, :FF2])
        h3 = _gelu(_mxu(_b(h2), wnar_ref[l, WN_W2:WN_W2 + FF2, :DIM])
                   + vec_ref[l, V_B2:V_B2 + 1, :DIM])

        # FF-internal residual (xn2 + net(xn2)) plus the outer residual (+ x), as in PyTorch.
        x = x + xn2 + h3
        o_ref[l, 0] = x.astype(o_ref.dtype)


# ------------------------------------------------ pallas_call wrapper
def transformer_forward(x, packed):
    stacked = pl.pallas_call(
        _transformer_kernel,
        out_shape=jax.ShapeDtypeStruct((DEPTH, B, N, DIM), x.dtype),
        grid=(B,),
        in_specs=[
            pl.BlockSpec((1, N, DIM), lambda b: (b, 0, 0)),
            pl.BlockSpec((DEPTH, NV, VWIDTH), lambda b: (0, 0, 0)),
            pl.BlockSpec((C_ROWS, C_COLS), lambda b: (0, 0)),
            pl.BlockSpec((DEPTH, WW_ROWS, FF2), lambda b: (0, 0, 0)),
            pl.BlockSpec((DEPTH, WM_ROWS, HN), lambda b: (0, 0, 0)),
            pl.BlockSpec((DEPTH, WN_ROWS, DIM), lambda b: (0, 0, 0)),
        ],
        out_specs=pl.BlockSpec((DEPTH, 1, N, DIM), lambda b: (0, b, 0, 0)),
        compiler_params=pltpu.CompilerParams(dimension_semantics=("parallel",)),
    )(x, packed["vecs"], packed["cmat"], packed["wwide"], packed["wmid"], packed["wnar"])
    outputs = [stacked[l] for l in range(DEPTH)]
    return outputs[-1], outputs


# ------------------------------------------------ host-side weight preparation
def _spatial_conv_to_banded(w):
    """Conv2d(HEADS, HEADS, 3, padding=1) weight (ho, hi, 3, 3) -> 3 banded (HN, HN) matrices
    so that conv(attn_slab) = S_-1 @ A @ G0 + A @ G1 + S_+1 @ A @ G2."""
    w = np.asarray(w, np.float32)
    g = np.zeros((3, HN, HN), np.float32)
    for ki in range(3):
        for kj in range(3):
            off = kj - 1
            for jo in range(N):
                ji = jo + off
                if 0 <= ji < N:
                    g[ki, ji::N, jo::N] = w[:, :, ki, kj].T   # [hi, ho] block
    return g


def _spectral_conv_to_banded(w):
    """Conv2d(1, 1, 3, padding=1) weight (3, 3) -> 3 tridiagonal (DIM, DIM) matrices."""
    w = np.asarray(w, np.float32)
    g = np.zeros((3, DIM, DIM), np.float32)
    for ki in range(3):
        for kj in range(3):
            off = kj - 1
            for jo in range(DIM):
                ji = jo + off
                if 0 <= ji < DIM:
                    g[ki, ji, jo] = w[ki, kj]
    return g


def _pack_params(layers):
    # ---- shared 0/1 constants (exact in bf16) ----
    cmat = np.zeros((C_ROWS, C_COLS), np.float32)
    cmat[C_SM1:C_SM1 + N, :N] = np.eye(N, k=-1)
    cmat[C_SP1:C_SP1 + N, :N] = np.eye(N, k=1)
    cmat[C_DM1:C_DM1 + DIM, :DIM] = np.eye(DIM, k=-1)
    cmat[C_DP1:C_DP1 + DIM, :DIM] = np.eye(DIM, k=1)
    cmat[C_T:C_T + HN, :N] = np.tile(np.eye(N, dtype=np.float32), (HEADS, 1))
    cmat[C_R:C_R + N, :HN] = np.tile(np.eye(N, dtype=np.float32), (1, HEADS))
    mk = np.zeros((INNER, HN), np.float32)
    ones_bd = np.zeros((HN, HN), np.float32)
    for h in range(HEADS):
        mk[h * DH:(h + 1) * DH, h * N:(h + 1) * N] = 1.0
        ones_bd[h * N:(h + 1) * N, h * N:(h + 1) * N] = 1.0
    cmat[C_MK:C_MK + INNER, :HN] = mk
    cmat[C_MV:C_MV + HN, :INNER] = mk.T
    cmat[C_ONES:C_ONES + HN, :HN] = ones_bd
    for ki in range(3):
        for kj in range(3):
            kidx = ki * 3 + kj
            blk = np.zeros((N, N), np.float32)
            for po in range(N):
                ii, jj = po // WSP + ki - 1, po % WSP + kj - 1
                if 0 <= ii < WSP and 0 <= jj < WSP:
                    blk[po, ii * WSP + jj] = 1.0
            cmat[C_PCAT + kidx * N:C_PCAT + (kidx + 1) * N, :N] = blk

    vecs = np.zeros((DEPTH, NV, VWIDTH), np.float32)
    wwide = np.zeros((DEPTH, WW_ROWS, FF2), np.float32)
    wmid = np.zeros((DEPTH, WM_ROWS, HN), np.float32)
    wnar = np.zeros((DEPTH, WN_ROWS, DIM), np.float32)

    for l, layer in enumerate(layers):
        p = {k: np.asarray(v, np.float32) for k, v in layer.items()}

        # eval-mode BatchNorm2d folded into the pointwise 1x1 conv
        bn_scale = p["bn_g"] / np.sqrt(p["bn_rv"] + BN_EPS)
        bn_shift = p["bn_b"] - p["bn_rm"] * bn_scale

        vecs[l, V_LN1G, :DIM] = p["ln1_g"]
        vecs[l, V_LN1B, :DIM] = p["ln1_b"]
        vecs[l, V_BOUT, :DIM] = p["b_out"]
        vecs[l, V_BSPEC, :N] = p["b_spec"][:N] * SCALE        # q-bias pre-scaled
        vecs[l, V_BSPEC, N:2 * N] = p["b_spec"][N:2 * N]
        vecs[l, V_SCONVB, :HN] = np.repeat(p["sconv_b"], N)
        vecs[l, V_SPECB, 0] = float(p["specc_b"])
        vecs[l, V_LN2G, :DIM] = p["ln2_g"]
        vecs[l, V_LN2B, :DIM] = p["ln2_b"]
        vecs[l, V_DWB, :DIM] = p["dw_b"]
        vecs[l, V_PWB, :FF1] = p["pw_b"] * bn_scale + bn_shift
        vecs[l, V_B1, :FF2] = p["b1"]
        vecs[l, V_B2, :DIM] = p["b2"]

        wqkv = p["w_qkv"]                                     # (DIM, 3*INNER) = weight.T
        wwide[l, WW_W1:WW_W1 + FF1, :FF2] = p["w1"]
        wwide[l, WW_PW:WW_PW + DIM, :FF1] = p["pw_w"] * bn_scale[None, :]
        wwide[l, WW_QV:WW_QV + DIM, :INNER] = wqkv[:, :INNER] * SCALE   # fold the attn scale
        wwide[l, WW_QV:WW_QV + DIM, INNER:2 * INNER] = wqkv[:, 2 * INNER:]

        g = _spatial_conv_to_banded(p["sconv_w"])             # (3, HN, HN)
        for ki in range(3):
            wmid[l, ki * HN:(ki + 1) * HN, :] = g[ki]

        wnar[l, WN_K:WN_K + INNER, :DIM] = wqkv[:, INNER:2 * INNER].T   # k in (out,in) layout
        wnar[l, WN_OUT:WN_OUT + INNER, :DIM] = p["w_out"]
        wspec = p["w_spec"]                                   # (N, 3N) = weight.T
        wnar[l, WN_SPEC:WN_SPEC + N, :N] = wspec[:, :N] * SCALE
        wnar[l, WN_SPEC:WN_SPEC + N, N:2 * N] = wspec[:, N:2 * N]        # v_spec never used
        d = _spectral_conv_to_banded(p["specc_w"])            # (3, DIM, DIM)
        for ki in range(3):
            wnar[l, WN_D + ki * DIM:WN_D + (ki + 1) * DIM, :DIM] = d[ki]
        wnar[l, WN_W2:WN_W2 + FF2, :DIM] = p["w2"]
        taps = p["dw_w"].transpose(1, 2, 0).reshape(9, DIM)   # (9, DIM) depthwise taps
        wnar[l, WN_DWS:WN_DWS + 9 * N, :DIM] = np.repeat(taps, N, axis=0)

    return {
        "vecs": jnp.asarray(vecs, jnp.float32),
        "cmat": jnp.asarray(cmat, BF16),
        "wwide": jnp.asarray(wwide, BF16),
        "wmid": jnp.asarray(wmid, BF16),
        "wnar": jnp.asarray(wnar, BF16),
    }


# ------------------------------------------------ deterministic parameter init
def _init_layer(key):
    ks = jax.random.split(key, 25)

    def nrm(k, shape, fan_in):
        return jax.random.normal(k, shape, jnp.float32) / (fan_in ** 0.5)

    p = {}
    # --- PreNorm + Attention ---
    p["ln1_g"] = 1.0 + 0.02 * jax.random.normal(ks[0], (DIM,), jnp.float32)
    p["ln1_b"] = 0.02 * jax.random.normal(ks[1], (DIM,), jnp.float32)
    p["w_qkv"] = nrm(ks[2], (DIM, 3 * INNER), DIM)              # Linear(dim, 3*inner).weight.T
    p["w_out"] = nrm(ks[3], (INNER, DIM), INNER)                # Linear(inner, dim).weight.T
    p["b_out"] = 0.02 * jax.random.normal(ks[4], (DIM,), jnp.float32)
    p["w_spec"] = nrm(ks[5], (N, 3 * N), N)                     # Linear(n, 3n).weight.T
    p["b_spec"] = 0.02 * jax.random.normal(ks[6], (3 * N,), jnp.float32)
    p["sconv_w"] = nrm(ks[7], (HEADS, HEADS, 3, 3), HEADS * 9)  # Conv2d(h, h, 3) weight
    p["sconv_b"] = 0.02 * jax.random.normal(ks[8], (HEADS,), jnp.float32)
    p["specc_w"] = nrm(ks[9], (3, 3), 9)                        # Conv2d(1, 1, 3) weight
    p["specc_b"] = 0.02 * jax.random.normal(ks[10], (), jnp.float32)
    # --- PreNorm + FeedForward ---
    p["ln2_g"] = 1.0 + 0.02 * jax.random.normal(ks[11], (DIM,), jnp.float32)
    p["ln2_b"] = 0.02 * jax.random.normal(ks[12], (DIM,), jnp.float32)
    p["dw_w"] = nrm(ks[13], (DIM, 3, 3), 9)                     # depthwise Conv2d(dim,dim,3,g=dim)
    p["dw_b"] = 0.02 * jax.random.normal(ks[14], (DIM,), jnp.float32)
    p["pw_w"] = nrm(ks[15], (DIM, FF1), DIM)                    # Conv2d(dim, 256, 1) as matmul
    p["pw_b"] = 0.02 * jax.random.normal(ks[16], (FF1,), jnp.float32)
    p["bn_g"] = 1.0 + 0.02 * jax.random.normal(ks[17], (FF1,), jnp.float32)
    p["bn_b"] = 0.02 * jax.random.normal(ks[18], (FF1,), jnp.float32)
    p["bn_rm"] = 0.02 * jax.random.normal(ks[19], (FF1,), jnp.float32)
    p["bn_rv"] = 1.0 + 0.1 * jnp.abs(jax.random.normal(ks[20], (FF1,), jnp.float32))
    p["w1"] = nrm(ks[21], (FF1, FF2), FF1)                      # Conv2d(256, 512, 1) as matmul
    p["b1"] = 0.02 * jax.random.normal(ks[22], (FF2,), jnp.float32)
    p["w2"] = nrm(ks[23], (FF2, DIM), FF2)                      # Conv2d(512, dim, 1) as matmul
    p["b2"] = 0.02 * jax.random.normal(ks[24], (DIM,), jnp.float32)
    return p


if __name__ == "__main__":
    key = jax.random.PRNGKey(0)
    kx, kp = jax.random.split(key)
    x = jax.random.normal(kx, (B, N, DIM), jnp.float32)
    layers = [_init_layer(k) for k in jax.random.split(kp, DEPTH)]
    packed = _pack_params(layers)

    y, outs = transformer_forward(x, packed)
    jax.block_until_ready(y)
    for o in outs:
        jax.block_until_ready(o)
    assert y.shape == (B, N, DIM) and len(outs) == DEPTH
    assert bool(jnp.all(jnp.isfinite(y)))
    print("KERNEL_OK")
</pallas_src>

<mosaic_0001>
module attributes {stable_mosaic.version = 11 : i64} {
  func.func @_transformer_kernel(%arg0: i32, %arg1: memref<1x16x32xf32, #tpu.memory_space<vmem>>, %arg2: memref<2x12x512xf32, #tpu.memory_space<vmem>>, %arg3: memref<512x64xbf16, #tpu.memory_space<vmem>>, %arg4: memref<2x320x512xbf16, #tpu.memory_space<vmem>>, %arg5: memref<2x192x64xbf16, #tpu.memory_space<vmem>>, %arg6: memref<2x896x32xbf16, #tpu.memory_space<vmem>>, %arg7: memref<2x1x16x32xf32, #tpu.memory_space<vmem>>) attributes {dimension_semantics = [#tpu.dimension_semantics<parallel>], iteration_bounds = array<i64: 2>, scalar_prefetch = 0 : i64, scratch_operands = 0 : i64, tpu.core_type = #tpu.core_type<tc>, window_params = [{transform_indices = @transform_0, window_bounds = array<i64: 1, 16, 32>}, {pipeline_mode = #tpu.pipeline_mode<synchronous>, transform_indices = @transform_1, window_bounds = array<i64: 2, 12, 512>}, {pipeline_mode = #tpu.pipeline_mode<synchronous>, transform_indices = @transform_2, window_bounds = array<i64: 512, 64>}, {pipeline_mode = #tpu.pipeline_mode<synchronous>, transform_indices = @transform_3, window_bounds = array<i64: 2, 320, 512>}, {pipeline_mode = #tpu.pipeline_mode<synchronous>, transform_indices = @transform_4, window_bounds = array<i64: 2, 192, 64>}, {pipeline_mode = #tpu.pipeline_mode<synchronous>, transform_indices = @transform_5, window_bounds = array<i64: 2, 896, 32>}, {transform_indices = @transform_6, window_bounds = array<i64: 2, 1, 16, 32>}]} {
    %c0 = arith.constant 0 : index
    %c0_0 = arith.constant 0 : index
    %c0_1 = arith.constant 0 : index
    %0 = vector.load %arg1[%c0, %c0_0, %c0_1] : memref<1x16x32xf32, #tpu.memory_space<vmem>>, vector<1x16x32xf32>
    %1 = vector.shape_cast %0 : vector<1x16x32xf32> to vector<16x32xf32>
    %c0_2 = arith.constant 0 : index
    %c0_3 = arith.constant 0 : index
    %c0_4 = arith.constant 0 : index
    %2 = vector.load %arg2[%c0_2, %c0_3, %c0_4] : memref<2x12x512xf32, #tpu.memory_space<vmem>>, vector<1x1x32xf32>
    %3 = vector.shape_cast %2 : vector<1x1x32xf32> to vector<1x32xf32>
    %c0_5 = arith.constant 0 : index
    %c1 = arith.constant 1 : index
    %c0_6 = arith.constant 0 : index
    %4 = vector.load %arg2[%c0_5, %c1, %c0_6] : memref<2x12x512xf32, #tpu.memory_space<vmem>>, vector<1x1x32xf32>
    %5 = vector.shape_cast %4 : vector<1x1x32xf32> to vector<1x32xf32>
    %cst = arith.constant dense<0.000000e+00> : vector<16xf32>
    %6 = vector.multi_reduction <add>, %1, %cst [1] : vector<16x32xf32> to vector<16xf32>
    %7 = vector.shape_cast %6 : vector<16xf32> to vector<16x1xf32>
    %cst_7 = arith.constant 3.200000e+01 : f32
    %8 = vector.broadcast %cst_7 : f32 to vector<16x1xf32>
    %9 = arith.divf %7, %8 : vector<16x1xf32>
    %10 = vector.broadcast %9 : vector<16x1xf32> to vector<16x32xf32>
    %11 = arith.subf %1, %10 : vector<16x32xf32>
    %12 = arith.mulf %11, %11 : vector<16x32xf32>
    %cst_8 = arith.constant dense<0.000000e+00> : vector<16xf32>
    %13 = vector.multi_reduction <add>, %12, %cst_8 [1] : vector<16x32xf32> to vector<16xf32>
    %14 = vector.shape_cast %13 : vector<16xf32> to vector<16x1xf32>
    %cst_9 = arith.constant 3.200000e+01 : f32
    %15 = vector.broadcast %cst_9 : f32 to vector<16x1xf32>
    %16 = arith.divf %14, %15 : vector<16x1xf32>
    %17 = vector.broadcast %9 : vector<16x1xf32> to vector<16x32xf32>
    %18 = arith.subf %1, %17 : vector<16x32xf32>
    %cst_10 = arith.constant 9.99999974E-6 : f32
    %19 = vector.broadcast %cst_10 : f32 to vector<16x1xf32>
    %20 = arith.addf %16, %19 : vector<16x1xf32>
    %21 = math.rsqrt %20 : vector<16x1xf32>
    %22 = vector.broadcast %21 : vector<16x1xf32> to vector<16x32xf32>
    %23 = arith.mulf %18, %22 : vector<16x32xf32>
    %24 = vector.broadcast %3 : vector<1x32xf32> to vector<16x32xf32>
    %25 = arith.mulf %23, %24 : vector<16x32xf32>
    %26 = vector.broadcast %5 : vector<1x32xf32> to vector<16x32xf32>
    %27 = arith.addf %25, %26 : vector<16x32xf32>
    %28 = arith.truncf %27 : vector<16x32xf32> to vector<16x32xbf16>
    %29 = tpu.transpose %27, [1, 0] : vector<16x32xf32> -> vector<32x16xf32>
    %c0_11 = arith.constant 0 : index
    %c288 = arith.constant 288 : index
    %c0_12 = arith.constant 0 : index
    %30 = vector.load %arg4[%c0_11, %c288, %c0_12] : memref<2x320x512xbf16, #tpu.memory_space<vmem>>, vector<1x32x128xbf16>
    %31 = vector.shape_cast %30 : vector<1x32x128xbf16> to vector<32x128xbf16>
    %cst_13 = arith.constant dense<0.000000e+00> : vector<16x128xf32>
    %32 = tpu.matmul %28, %31, %cst_13 {dimension_numbers = #tpu.dot_dimension_numbers<[1], [0], [0], [1], [0, 0, 1, 1], [], []>} : vector<16x32xbf16>, vector<32x128xbf16>, vector<16x128xf32> -> vector<16x128xf32>
    %33 = vector.extract_strided_slice %32 {offsets = [0, 0], sizes = [16, 64], strides = [1, 1]} : vector<16x128xf32> to vector<16x64xf32>
    %34 = vector.extract_strided_slice %32 {offsets = [0, 64], sizes = [16, 64], strides = [1, 1]} : vector<16x128xf32> to vector<16x64xf32>
    %c0_14 = arith.constant 0 : index
    %c0_15 = arith.constant 0 : index
    %c0_16 = arith.constant 0 : index
    %35 = vector.load %arg6[%c0_14, %c0_15, %c0_16] : memref<2x896x32xbf16, #tpu.memory_space<vmem>>, vector<1x64x32xbf16>
    %36 = vector.shape_cast %35 : vector<1x64x32xbf16> to vector<64x32xbf16>
    %37 = arith.truncf %29 : vector<32x16xf32> to vector<32x16xbf16>
    %cst_17 = arith.constant dense<0.000000e+00> : vector<64x16xf32>
    %38 = tpu.matmul %36, %37, %cst_17 {dimension_numbers = #tpu.dot_dimension_numbers<[1], [0], [0], [1], [0, 0, 1, 1], [], []>} : vector<64x32xbf16>, vector<32x16xbf16>, vector<64x16xf32> -> vector<64x16xf32>
    %c160 = arith.constant 160 : index
    %c0_18 = arith.constant 0 : index
    %39 = vector.load %arg3[%c160, %c0_18] : memref<512x64xbf16, #tpu.memory_space<vmem>>, vector<16x64xbf16>
    %c176 = arith.constant 176 : index
    %c0_19 = arith.constant 0 : index
    %40 = vector.load %arg3[%c176, %c0_19] : memref<512x64xbf16, #tpu.memory_space<vmem>>, vector<64x64xbf16>
    %41 = arith.truncf %38 : vector<64x16xf32> to vector<64x16xbf16>
    %cst_20 = arith.constant dense<0.000000e+00> : vector<64x64xf32>
    %42 = tpu.matmul %41, %39, %cst_20 {dimension_numbers = #tpu.dot_dimension_numbers<[1], [0], [0], [1], [0, 0, 1, 1], [], []>} : vector<64x16xbf16>, vector<16x64xbf16>, vector<64x64xf32> -> vector<64x64xf32>
    %43 = arith.truncf %42 : vector<64x64xf32> to vector<64x64xbf16>
    %44 = arith.mulf %43, %40 : vector<64x64xbf16>
    %45 = arith.truncf %33 : vector<16x64xf32> to vector<16x64xbf16>
    %cst_21 = arith.constant dense<0.000000e+00> : vector<16x64xf32>
    %46 = tpu.matmul %45, %44, %cst_21 {dimension_numbers = #tpu.dot_dimension_numbers<[1], [0], [0], [1], [0, 0, 1, 1], [], []>} : vector<16x64xbf16>, vector<64x64xbf16>, vector<16x64xf32> -> vector<16x64xf32>
    %cst_22 = arith.constant dense<0xFF800000> : vector<16xf32>
    %47 = vector.multi_reduction <maximumf>, %46, %cst_22 [1] : vector<16x64xf32> to vector<16xf32>
    %48 = vector.shape_cast %47 : vector<16xf32> to vector<16x1xf32>
    %49 = vector.broadcast %48 : vector<16x1xf32> to vector<16x64xf32>
    %50 = arith.subf %46, %49 : vector<16x64xf32>
    %51 = math.exp %50 : vector<16x64xf32>
    %c304 = arith.constant 304 : index
    %c0_23 = arith.constant 0 : index
    %52 = vector.load %arg3[%c304, %c0_23] : memref<512x64xbf16, #tpu.memory_space<vmem>>, vector<64x64xbf16>
    %53 = arith.truncf %51 : vector<16x64xf32> to vector<16x64xbf16>
    %cst_24 = arith.constant dense<0.000000e+00> : vector<16x64xf32>
    %54 = tpu.matmul %53, %52, %cst_24 {dimension_numbers = #tpu.dot_dimension_numbers<[1], [0], [0], [1], [0, 0, 1, 1], [], []>} : vector<16x64xbf16>, vector<64x64xbf16>, vector<16x64xf32> -> vector<16x64xf32>
    %55 = tpu.reciprocal %54 {approx = true} : vector<16x64xf32> -> vector<16x64xf32>
    %56 = arith.mulf %51, %55 : vector<16x64xf32>
    %57 = arith.truncf %56 : vector<16x64xf32> to vector<16x64xbf16>
    %c0_25 = arith.constant 0 : index
    %c0_26 = arith.constant 0 : index
    %c0_27 = arith.constant 0 : index
    %58 = vector.load %arg5[%c0_25, %c0_26, %c0_27] : memref<2x192x64xbf16, #tpu.memory_space<vmem>>, vector<1x64x64xbf16>
    %59 = vector.shape_cast %58 : vector<1x64x64xbf16> to vector<64x64xbf16>
    %cst_28 = arith.constant dense<0.000000e+00> : vector<16x64xf32>
    %60 = tpu.matmul %57, %59, %cst_28 {dimension_numbers = #tpu.dot_dimension_numbers<[1], [0], [0], [1], [0, 0, 1, 1], [], []>} : vector<16x64xbf16>, vector<64x64xbf16>, vector<16x64xf32> -> vector<16x64xf32>
    %c0_29 = arith.constant 0 : index
    %c64 = arith.constant 64 : index
    %c0_30 = arith.constant 0 : index
    %61 = vector.load %arg5[%c0_29, %c64, %c0_30] : memref<2x192x64xbf16, #tpu.memory_space<vmem>>, vector<1x64x64xbf16>
    %62 = vector.shape_cast %61 : vector<1x64x64xbf16> to vector<64x64xbf16>
    %cst_31 = arith.constant dense<0.000000e+00> : vector<16x64xf32>
    %63 = tpu.matmul %57, %62, %cst_31 {dimension_numbers = #tpu.dot_dimension_numbers<[1], [0], [0], [1], [0, 0, 1, 1], [], []>} : vector<16x64xbf16>, vector<64x64xbf16>, vector<16x64xf32> -> vector<16x64xf32>
    %c0_32 = arith.constant 0 : index
    %c128 = arith.constant 128 : index
    %c0_33 = arith.constant 0 : index
    %64 = vector.load %arg5[%c0_32, %c128, %c0_33] : memref<2x192x64xbf16, #tpu.memory_space<vmem>>, vector<1x64x64xbf16>
    %65 = vector.shape_cast %64 : vector<1x64x64xbf16> to vector<64x64xbf16>
    %cst_34 = arith.constant dense<0.000000e+00> : vector<16x64xf32>
    %66 = tpu.matmul %57, %65, %cst_34 {dimension_numbers = #tpu.dot_dimension_numbers<[1], [0], [0], [1], [0, 0, 1, 1], [], []>} : vector<16x64xbf16>, vector<64x64xbf16>, vector<16x64xf32> -> vector<16x64xf32>
    %c0_35 = arith.constant 0 : index
    %c0_36 = arith.constant 0 : index
    %67 = vector.load %arg3[%c0_35, %c0_36] : memref<512x64xbf16, #tpu.memory_space<vmem>>, vector<16x16xbf16>
    %c16 = arith.constant 16 : index
    %c0_37 = arith.constant 0 : index
    %68 = vector.load %arg3[%c16, %c0_37] : memref<512x64xbf16, #tpu.memory_space<vmem>>, vector<16x16xbf16>
    %69 = arith.truncf %60 : vector<16x64xf32> to vector<16x64xbf16>
    %cst_38 = arith.constant dense<0.000000e+00> : vector<16x64xf32>
    %70 = tpu.matmul %67, %69, %cst_38 {dimension_numbers = #tpu.dot_dimension_numbers<[1], [0], [0], [1], [0, 0, 1, 1], [], []>} : vector<16x16xbf16>, vector<16x64xbf16>, vector<16x64xf32> -> vector<16x64xf32>
    %71 = arith.addf %70, %63 : vector<16x64xf32>
    %72 = arith.truncf %66 : vector<16x64xf32> to vector<16x64xbf16>
    %cst_39 = arith.constant dense<0.000000e+00> : vector<16x64xf32>
    %73 = tpu.matmul %68, %72, %cst_39 {dimension_numbers = #tpu.dot_dimension_numbers<[1], [0], [0], [1], [0, 0, 1, 1], [], []>} : vector<16x16xbf16>, vector<16x64xbf16>, vector<16x64xf32> -> vector<16x64xf32>
    %74 = arith.addf %71, %73 : vector<16x64xf32>
    %c0_40 = arith.constant 0 : index
    %c4 = arith.constant 4 : index
    %c0_41 = arith.constant 0 : index
    %75 = vector.load %arg2[%c0_40, %c4, %c0_41] : memref<2x12x512xf32, #tpu.memory_space<vmem>>, vector<1x1x64xf32>
    %76 = vector.shape_cast %75 : vector<1x1x64xf32> to vector<1x64xf32>
    %77 = vector.broadcast %76 : vector<1x64xf32> to vector<16x64xf32>
    %78 = arith.addf %74, %77 : vector<16x64xf32>
    %c96 = arith.constant 96 : index
    %c0_42 = arith.constant 0 : index
    %79 = vector.load %arg3[%c96, %c0_42] : memref<512x64xbf16, #tpu.memory_space<vmem>>, vector<64x16xbf16>
    %c240 = arith.constant 240 : index
    %c0_43 = arith.constant 0 : index
    %80 = vector.load %arg3[%c240, %c0_43] : memref<512x64xbf16, #tpu.memory_space<vmem>>, vector<64x64xbf16>
    %81 = arith.truncf %34 : vector<16x64xf32> to vector<16x64xbf16>
    %cst_44 = arith.constant dense<0.000000e+00> : vector<64x64xf32>
    %82 = tpu.matmul %79, %81, %cst_44 {dimension_numbers = #tpu.dot_dimension_numbers<[1], [0], [0], [1], [0, 0, 1, 1], [], []>} : vector<64x16xbf16>, vector<16x64xbf16>, vector<64x64xf32> -> vector<64x64xf32>
    %83 = arith.truncf %82 : vector<64x64xf32> to vector<64x64xbf16>
    %84 = arith.mulf %83, %80 : vector<64x64xbf16>
    %85 = arith.truncf %78 : vector<16x64xf32> to vector<16x64xbf16>
    %cst_45 = arith.constant dense<0.000000e+00> : vector<16x64xf32>
    %86 = tpu.matmul %85, %84, %cst_45 {dimension_numbers = #tpu.dot_dimension_numbers<[1], [0], [0], [1], [0, 0, 1, 1], [], []>} : vector<16x64xbf16>, vector<64x64xbf16>, vector<16x64xf32> -> vector<16x64xf32>
    %87 = arith.truncf %86 : vector<16x64xf32> to vector<16x64xbf16>
    %c0_46 = arith.constant 0 : index
    %c64_47 = arith.constant 64 : index
    %c0_48 = arith.constant 0 : index
    %88 = vector.load %arg6[%c0_46, %c64_47, %c0_48] : memref<2x896x32xbf16, #tpu.memory_space<vmem>>, vector<1x64x32xbf16>
    %89 = vector.shape_cast %88 : vector<1x64x32xbf16> to vector<64x32xbf16>
    %cst_49 = arith.constant dense<0.000000e+00> : vector<16x32xf32>
    %90 = tpu.matmul %87, %89, %cst_49 {dimension_numbers = #tpu.dot_dimension_numbers<[1], [0], [0], [1], [0, 0, 1, 1], [], []>} : vector<16x64xbf16>, vector<64x32xbf16>, vector<16x32xf32> -> vector<16x32xf32>
    %c0_50 = arith.constant 0 : index
    %c2 = arith.constant 2 : index
    %c0_51 = arith.constant 0 : index
    %91 = vector.load %arg2[%c0_50, %c2, %c0_51] : memref<2x12x512xf32, #tpu.memory_space<vmem>>, vector<1x1x32xf32>
    %92 = vector.shape_cast %91 : vector<1x1x32xf32> to vector<1x32xf32>
    %93 = vector.broadcast %92 : vector<1x32xf32> to vector<16x32xf32>
    %94 = arith.addf %90, %93 : vector<16x32xf32>
    %95 = arith.truncf %29 : vector<32x16xf32> to vector<32x16xbf16>
    %c0_52 = arith.constant 0 : index
    %c128_53 = arith.constant 128 : index
    %c0_54 = arith.constant 0 : index
    %96 = vector.load %arg6[%c0_52, %c128_53, %c0_54] : memref<2x896x32xbf16, #tpu.memory_space<vmem>>, vector<1x16x32xbf16>
    %97 = vector.shape_cast %96 : vector<1x16x32xbf16> to vector<16x32xbf16>
    %cst_55 = arith.constant dense<0.000000e+00> : vector<32x32xf32>
    %98 = tpu.matmul %95, %97, %cst_55 {dimension_numbers = #tpu.dot_dimension_numbers<[1], [0], [0], [1], [0, 0, 1, 1], [], []>} : vector<32x16xbf16>, vector<16x32xbf16>, vector<32x32xf32> -> vector<32x32xf32>
    %c0_56 = arith.constant 0 : index
    %c3 = arith.constant 3 : index
    %c0_57 = arith.constant 0 : index
    %99 = vector.load %arg2[%c0_56, %c3, %c0_57] : memref<2x12x512xf32, #tpu.memory_space<vmem>>, vector<1x1x32xf32>
    %100 = vector.shape_cast %99 : vector<1x1x32xf32> to vector<1x32xf32>
    %101 = vector.broadcast %100 : vector<1x32xf32> to vector<32x32xf32>
    %102 = arith.addf %98, %101 : vector<32x32xf32>
    %103 = vector.extract_strided_slice %102 {offsets = [0, 0], sizes = [32, 16], strides = [1, 1]} : vector<32x32xf32> to vector<32x16xf32>
    %104 = arith.truncf %103 : vector<32x16xf32> to vector<32x16xbf16>
    %105 = vector.extract_strided_slice %102 {offsets = [0, 16], sizes = [32, 16], strides = [1, 1]} : vector<32x32xf32> to vector<32x16xf32>
    %106 = tpu.transpose %105, [1, 0] : vector<32x16xf32> -> vector<16x32xf32>
    %107 = arith.truncf %106 : vector<16x32xf32> to vector<16x32xbf16>
    %cst_58 = arith.constant dense<0.000000e+00> : vector<32x32xf32>
    %108 = tpu.matmul %104, %107, %cst_58 {dimension_numbers = #tpu.dot_dimension_numbers<[1], [0], [0], [1], [0, 0, 1, 1], [], []>} : vector<32x16xbf16>, vector<16x32xbf16>, vector<32x32xf32> -> vector<32x32xf32>
    %cst_59 = arith.constant dense<0xFF800000> : vector<32xf32>
    %109 = vector.multi_reduction <maximumf>, %108, %cst_59 [1] : vector<32x32xf32> to vector<32xf32>
    %110 = vector.shape_cast %109 : vector<32xf32> to vector<32x1xf32>
    %111 = vector.broadcast %110 : vector<32x1xf32> to vector<32x32xf32>
    %112 = arith.subf %108, %111 : vector<32x32xf32>
    %113 = math.exp %112 : vector<32x32xf32>
    %cst_60 = arith.constant dense<0.000000e+00> : vector<32xf32>
    %114 = vector.multi_reduction <add>, %113, %cst_60 [1] : vector<32x32xf32> to vector<32xf32>
    %115 = vector.shape_cast %114 : vector<32xf32> to vector<32x1xf32>
    %116 = tpu.reciprocal %115 {approx = true} : vector<32x1xf32> -> vector<32x1xf32>
    %117 = vector.broadcast %116 : vector<32x1xf32> to vector<32x32xf32>
    %118 = arith.mulf %113, %117 : vector<32x32xf32>
    %119 = arith.truncf %118 : vector<32x32xf32> to vector<32x32xbf16>
    %c0_61 = arith.constant 0 : index
    %c144 = arith.constant 144 : index
    %c0_62 = arith.constant 0 : index
    %120 = vector.load %arg6[%c0_61, %c144, %c0_62] : memref<2x896x32xbf16, #tpu.memory_space<vmem>>, vector<1x32x32xbf16>
    %121 = vector.shape_cast %120 : vector<1x32x32xbf16> to vector<32x32xbf16>
    %cst_63 = arith.constant dense<0.000000e+00> : vector<32x32xf32>
    %122 = tpu.matmul %119, %121, %cst_63 {dimension_numbers = #tpu.dot_dimension_numbers<[1], [0], [0], [1], [0, 0, 1, 1], [], []>} : vector<32x32xbf16>, vector<32x32xbf16>, vector<32x32xf32> -> vector<32x32xf32>
    %c0_64 = arith.constant 0 : index
    %c176_65 = arith.constant 176 : index
    %c0_66 = arith.constant 0 : index
    %123 = vector.load %arg6[%c0_64, %c176_65, %c0_66] : memref<2x896x32xbf16, #tpu.memory_space<vmem>>, vector<1x32x32xbf16>
    %124 = vector.shape_cast %123 : vector<1x32x32xbf16> to vector<32x32xbf16>
    %cst_67 = arith.constant dense<0.000000e+00> : vector<32x32xf32>
    %125 = tpu.matmul %119, %124, %cst_67 {dimension_numbers = #tpu.dot_dimension_numbers<[1], [0], [0], [1], [0, 0, 1, 1], [], []>} : vector<32x32xbf16>, vector<32x32xbf16>, vector<32x32xf32> -> vector<32x32xf32>
    %c0_68 = arith.constant 0 : index
    %c208 = arith.constant 208 : index
    %c0_69 = arith.constant 0 : index
    %126 = vector.load %arg6[%c0_68, %c208, %c0_69] : memref<2x896x32xbf16, #tpu.memory_space<vmem>>, vector<1x32x32xbf16>
    %127 = vector.shape_cast %126 : vector<1x32x32xbf16> to vector<32x32xbf16>
    %cst_70 = arith.constant dense<0.000000e+00> : vector<32x32xf32>
    %128 = tpu.matmul %119, %127, %cst_70 {dimension_numbers = #tpu.dot_dimension_numbers<[1], [0], [0], [1], [0, 0, 1, 1], [], []>} : vector<32x32xbf16>, vector<32x32xbf16>, vector<32x32xf32> -> vector<32x32xf32>
    %c32 = arith.constant 32 : index
    %c0_71 = arith.constant 0 : index
    %129 = vector.load %arg3[%c32, %c0_71] : memref<512x64xbf16, #tpu.memory_space<vmem>>, vector<32x32xbf16>
    %c64_72 = arith.constant 64 : index
    %c0_73 = arith.constant 0 : index
    %130 = vector.load %arg3[%c64_72, %c0_73] : memref<512x64xbf16, #tpu.memory_space<vmem>>, vector<32x32xbf16>
    %131 = arith.truncf %122 : vector<32x32xf32> to vector<32x32xbf16>
    %cst_74 = arith.constant dense<0.000000e+00> : vector<32x32xf32>
    %132 = tpu.matmul %129, %131, %cst_74 {dimension_numbers = #tpu.dot_dimension_numbers<[1], [0], [0], [1], [0, 0, 1, 1], [], []>} : vector<32x32xbf16>, vector<32x32xbf16>, vector<32x32xf32> -> vector<32x32xf32>
    %133 = arith.addf %132, %125 : vector<32x32xf32>
    %134 = arith.truncf %128 : vector<32x32xf32> to vector<32x32xbf16>
    %cst_75 = arith.constant dense<0.000000e+00> : vector<32x32xf32>
    %135 = tpu.matmul %130, %134, %cst_75 {dimension_numbers = #tpu.dot_dimension_numbers<[1], [0], [0], [1], [0, 0, 1, 1], [], []>} : vector<32x32xbf16>, vector<32x32xbf16>, vector<32x32xf32> -> vector<32x32xf32>
    %136 = arith.addf %133, %135 : vector<32x32xf32>
    %c0_76 = arith.constant 0 : index
    %c5 = arith.constant 5 : index
    %c0_77 = arith.constant 0 : index
    %137 = vector.load %arg2[%c0_76, %c5, %c0_77] : memref<2x12x512xf32, #tpu.memory_space<vmem>>, vector<1x1x1xf32>
    %138 = vector.shape_cast %137 : vector<1x1x1xf32> to vector<1x1xf32>
    %139 = vector.broadcast %138 : vector<1x1xf32> to vector<32x32xf32>
    %140 = arith.addf %136, %139 : vector<32x32xf32>
    %141 = arith.truncf %94 : vector<16x32xf32> to vector<16x32xbf16>
    %142 = arith.truncf %140 : vector<32x32xf32> to vector<32x32xbf16>
    %cst_78 = arith.constant dense<0.000000e+00> : vector<16x32xf32>
    %143 = tpu.matmul %141, %142, %cst_78 {dimension_numbers = #tpu.dot_dimension_numbers<[1], [0], [0], [1], [0, 0, 1, 1], [], []>} : vector<16x32xbf16>, vector<32x32xbf16>, vector<16x32xf32> -> vector<16x32xf32>
    %144 = arith.addf %143, %1 : vector<16x32xf32>
    %c0_79 = arith.constant 0 : index
    %c6 = arith.constant 6 : index
    %c0_80 = arith.constant 0 : index
    %145 = vector.load %arg2[%c0_79, %c6, %c0_80] : memref<2x12x512xf32, #tpu.memory_space<vmem>>, vector<1x1x32xf32>
    %146 = vector.shape_cast %145 : vector<1x1x32xf32> to vector<1x32xf32>
    %c0_81 = arith.constant 0 : index
    %c7 = arith.constant 7 : index
    %c0_82 = arith.constant 0 : index
    %147 = vector.load %arg2[%c0_81, %c7, %c0_82] : memref<2x12x512xf32, #tpu.memory_space<vmem>>, vector<1x1x32xf32>
    %148 = vector.shape_cast %147 : vector<1x1x32xf32> to vector<1x32xf32>
    %cst_83 = arith.constant dense<0.000000e+00> : vector<16xf32>
    %149 = vector.multi_reduction <add>, %144, %cst_83 [1] : vector<16x32xf32> to vector<16xf32>
    %150 = vector.shape_cast %149 : vector<16xf32> to vector<16x1xf32>
    %cst_84 = arith.constant 3.200000e+01 : f32
    %151 = vector.broadcast %cst_84 : f32 to vector<16x1xf32>
    %152 = arith.divf %150, %151 : vector<16x1xf32>
    %153 = vector.broadcast %152 : vector<16x1xf32> to vector<16x32xf32>
    %154 = arith.subf %144, %153 : vector<16x32xf32>
    %155 = arith.mulf %154, %154 : vector<16x32xf32>
    %cst_85 = arith.constant dense<0.000000e+00> : vector<16xf32>
    %156 = vector.multi_reduction <add>, %155, %cst_85 [1] : vector<16x32xf32> to vector<16xf32>
    %157 = vector.shape_cast %156 : vector<16xf32> to vector<16x1xf32>
    %cst_86 = arith.constant 3.200000e+01 : f32
    %158 = vector.broadcast %cst_86 : f32 to vector<16x1xf32>
    %159 = arith.divf %157, %158 : vector<16x1xf32>
    %160 = vector.broadcast %152 : vector<16x1xf32> to vector<16x32xf32>
    %161 = arith.subf %144, %160 : vector<16x32xf32>
    %cst_87 = arith.constant 9.99999974E-6 : f32
    %162 = vector.broadcast %cst_87 : f32 to vector<16x1xf32>
    %163 = arith.addf %159, %162 : vector<16x1xf32>
    %164 = math.rsqrt %163 : vector<16x1xf32>
    %165 = vector.broadcast %164 : vector<16x1xf32> to vector<16x32xf32>
    %166 = arith.mulf %161, %165 : vector<16x32xf32>
    %167 = vector.broadcast %146 : vector<1x32xf32> to vector<16x32xf32>
    %168 = arith.mulf %166, %167 : vector<16x32xf32>
    %169 = vector.broadcast %148 : vector<1x32xf32> to vector<16x32xf32>
    %170 = arith.addf %168, %169 : vector<16x32xf32>
    %171 = arith.truncf %170 : vector<16x32xf32> to vector<16x32xbf16>
    %c368 = arith.constant 368 : index
    %c0_88 = arith.constant 0 : index
    %172 = vector.load %arg3[%c368, %c0_88] : memref<512x64xbf16, #tpu.memory_space<vmem>>, vector<144x16xbf16>
    %cst_89 = arith.constant dense<0.000000e+00> : vector<144x32xf32>
    %173 = tpu.matmul %172, %171, %cst_89 {dimension_numbers = #tpu.dot_dimension_numbers<[1], [0], [0], [1], [0, 0, 1, 1], [], []>} : vector<144x16xbf16>, vector<16x32xbf16>, vector<144x32xf32> -> vector<144x32xf32>
    %c0_90 = arith.constant 0 : index
    %c752 = arith.constant 752 : index
    %c0_91 = arith.constant 0 : index
    %174 = vector.load %arg6[%c0_90, %c752, %c0_91] : memref<2x896x32xbf16, #tpu.memory_space<vmem>>, vector<1x144x32xbf16>
    %175 = vector.shape_cast %174 : vector<1x144x32xbf16> to vector<144x32xbf16>
    %176 = arith.extf %175 : vector<144x32xbf16> to vector<144x32xf32>
    %177 = arith.mulf %173, %176 : vector<144x32xf32>
    %c0_92 = arith.constant 0 : index
    %c8 = arith.constant 8 : index
    %c0_93 = arith.constant 0 : index
    %178 = vector.load %arg2[%c0_92, %c8, %c0_93] : memref<2x12x512xf32, #tpu.memory_space<vmem>>, vector<1x1x32xf32>
    %179 = vector.shape_cast %178 : vector<1x1x32xf32> to vector<1x32xf32>
    %180 = vector.extract_strided_slice %177 {offsets = [0, 0], sizes = [16, 32], strides = [1, 1]} : vector<144x32xf32> to vector<16x32xf32>
    %181 = vector.broadcast %179 : vector<1x32xf32> to vector<16x32xf32>
    %182 = arith.addf %181, %180 : vector<16x32xf32>
    %183 = vector.extract_strided_slice %177 {offsets = [16, 0], sizes = [16, 32], strides = [1, 1]} : vector<144x32xf32> to vector<16x32xf32>
    %184 = arith.addf %182, %183 : vector<16x32xf32>
    %185 = vector.extract_strided_slice %177 {offsets = [32, 0], sizes = [16, 32], strides = [1, 1]} : vector<144x32xf32> to vector<16x32xf32>
    %186 = arith.addf %184, %185 : vector<16x32xf32>
    %187 = vector.extract_strided_slice %177 {offsets = [48, 0], sizes = [16, 32], strides = [1, 1]} : vector<144x32xf32> to vector<16x32xf32>
    %188 = arith.addf %186, %187 : vector<16x32xf32>
    %189 = vector.extract_strided_slice %177 {offsets = [64, 0], sizes = [16, 32], strides = [1, 1]} : vector<144x32xf32> to vector<16x32xf32>
    %190 = arith.addf %188, %189 : vector<16x32xf32>
    %191 = vector.extract_strided_slice %177 {offsets = [80, 0], sizes = [16, 32], strides = [1, 1]} : vector<144x32xf32> to vector<16x32xf32>
    %192 = arith.addf %190, %191 : vector<16x32xf32>
    %193 = vector.extract_strided_slice %177 {offsets = [96, 0], sizes = [16, 32], strides = [1, 1]} : vector<144x32xf32> to vector<16x32xf32>
    %194 = arith.addf %192, %193 : vector<16x32xf32>
    %195 = vector.extract_strided_slice %177 {offsets = [112, 0], sizes = [16, 32], strides = [1, 1]} : vector<144x32xf32> to vector<16x32xf32>
    %196 = arith.addf %194, %195 : vector<16x32xf32>
    %197 = vector.extract_strided_slice %177 {offsets = [128, 0], sizes = [16, 32], strides = [1, 1]} : vector<144x32xf32> to vector<16x32xf32>
    %198 = arith.addf %196, %197 : vector<16x32xf32>
    %199 = arith.truncf %198 : vector<16x32xf32> to vector<16x32xbf16>
    %c0_94 = arith.constant 0 : index
    %c256 = arith.constant 256 : index
    %c0_95 = arith.constant 0 : index
    %200 = vector.load %arg4[%c0_94, %c256, %c0_95] : memref<2x320x512xbf16, #tpu.memory_space<vmem>>, vector<1x32x256xbf16>
    %201 = vector.shape_cast %200 : vector<1x32x256xbf16> to vector<32x256xbf16>
    %cst_96 = arith.constant dense<0.000000e+00> : vector<16x256xf32>
    %202 = tpu.matmul %199, %201, %cst_96 {dimension_numbers = #tpu.dot_dimension_numbers<[1], [0], [0], [1], [0, 0, 1, 1], [], []>} : vector<16x32xbf16>, vector<32x256xbf16>, vector<16x256xf32> -> vector<16x256xf32>
    %c0_97 = arith.constant 0 : index
    %c9 = arith.constant 9 : index
    %c0_98 = arith.constant 0 : index
    %203 = vector.load %arg2[%c0_97, %c9, %c0_98] : memref<2x12x512xf32, #tpu.memory_space<vmem>>, vector<1x1x256xf32>
    %204 = vector.shape_cast %203 : vector<1x1x256xf32> to vector<1x256xf32>
    %205 = vector.broadcast %204 : vector<1x256xf32> to vector<16x256xf32>
    %206 = arith.addf %202, %205 : vector<16x256xf32>
    %207 = arith.truncf %206 : vector<16x256xf32> to vector<16x256xbf16>
    %c0_99 = arith.constant 0 : index
    %c0_100 = arith.constant 0 : index
    %c0_101 = arith.constant 0 : index
    %208 = vector.load %arg4[%c0_99, %c0_100, %c0_101] : memref<2x320x512xbf16, #tpu.memory_space<vmem>>, vector<1x256x512xbf16>
    %209 = vector.shape_cast %208 : vector<1x256x512xbf16> to vector<256x512xbf16>
    %cst_102 = arith.constant dense<0.000000e+00> : vector<16x512xf32>
    %210 = tpu.matmul %207, %209, %cst_102 {dimension_numbers = #tpu.dot_dimension_numbers<[1], [0], [0], [1], [0, 0, 1, 1], [], []>} : vector<16x256xbf16>, vector<256x512xbf16>, vector<16x512xf32> -> vector<16x512xf32>
    %c0_103 = arith.constant 0 : index
    %c10 = arith.constant 10 : index
    %c0_104 = arith.constant 0 : index
    %211 = vector.load %arg2[%c0_103, %c10, %c0_104] : memref<2x12x512xf32, #tpu.memory_space<vmem>>, vector<1x1x512xf32>
    %212 = vector.shape_cast %211 : vector<1x1x512xf32> to vector<1x512xf32>
    %213 = vector.broadcast %212 : vector<1x512xf32> to vector<16x512xf32>
    %214 = arith.addf %210, %213 : vector<16x512xf32>
    %cst_105 = arith.constant 5.000000e-01 : f32
    %215 = vector.broadcast %cst_105 : f32 to vector<16x512xf32>
    %216 = arith.mulf %215, %214 : vector<16x512xf32>
    %cst_106 = arith.constant 0.707106769 : f32
    %217 = vector.broadcast %cst_106 : f32 to vector<16x512xf32>
    %218 = arith.mulf %214, %217 : vector<16x512xf32>
    %cst_107 = arith.constant 0.000000e+00 : f32
    %219 = vector.broadcast %cst_107 : f32 to vector<16x512xf32>
    %220 = arith.cmpf oge, %218, %219 : vector<16x512xf32>
    %cst_108 = arith.constant 1.000000e+00 : f32
    %cst_109 = arith.constant -1.000000e+00 : f32
    %221 = vector.broadcast %cst_108 : f32 to vector<16x512xf32>
    %222 = vector.broadcast %cst_109 : f32 to vector<16x512xf32>
    %223 = arith.select %220, %221, %222 : vector<16x512xi1>, vector<16x512xf32>
    %224 = math.absf %218 : vector<16x512xf32>
    %cst_110 = arith.constant 0.327591091 : f32
    %225 = vector.broadcast %cst_110 : f32 to vector<16x512xf32>
    %226 = arith.mulf %225, %224 : vector<16x512xf32>
    %cst_111 = arith.constant 1.000000e+00 : f32
    %227 = vector.broadcast %cst_111 : f32 to vector<16x512xf32>
    %228 = arith.addf %227, %226 : vector<16x512xf32>
    %cst_112 = arith.constant 1.000000e+00 : f32
    %229 = vector.broadcast %cst_112 : f32 to vector<16x512xf32>
    %230 = arith.divf %229, %228 : vector<16x512xf32>
    %cst_113 = arith.constant 1.06140542 : f32
    %231 = vector.broadcast %cst_113 : f32 to vector<16x512xf32>
    %232 = arith.mulf %231, %230 : vector<16x512xf32>
    %cst_114 = arith.constant -1.45315206 : f32
    %233 = vector.broadcast %cst_114 : f32 to vector<16x512xf32>
    %234 = arith.addf %232, %233 : vector<16x512xf32>
    %235 = arith.mulf %234, %230 : vector<16x512xf32>
    %cst_115 = arith.constant 1.42141378 : f32
    %236 = vector.broadcast %cst_115 : f32 to vector<16x512xf32>
    %237 = arith.addf %235, %236 : vector<16x512xf32>
    %238 = arith.mulf %237, %230 : vector<16x512xf32>
    %cst_116 = arith.constant -0.284496725 : f32
    %239 = vector.broadcast %cst_116 : f32 to vector<16x512xf32>
    %240 = arith.addf %238, %239 : vector<16x512xf32>
    %241 = arith.mulf %240, %230 : vector<16x512xf32>
    %cst_117 = arith.constant 0.254829586 : f32
    %242 = vector.broadcast %cst_117 : f32 to vector<16x512xf32>
    %243 = arith.addf %241, %242 : vector<16x512xf32>
    %244 = arith.mulf %243, %230 : vector<16x512xf32>
    %cst_118 = arith.constant 0.000000e+00 : f32
    %245 = vector.broadcast %cst_118 : f32 to vector<16x512xf32>
    %246 = arith.subf %245, %224 : vector<16x512xf32>
    %247 = arith.mulf %246, %224 : vector<16x512xf32>
    %248 = math.exp %247 : vector<16x512xf32>
    %249 = arith.mulf %244, %248 : vector<16x512xf32>
    %cst_119 = arith.constant 1.000000e+00 : f32
    %250 = vector.broadcast %cst_119 : f32 to vector<16x512xf32>
    %251 = arith.subf %250, %249 : vector<16x512xf32>
    %252 = arith.mulf %223, %251 : vector<16x512xf32>
    %cst_120 = arith.constant 1.000000e+00 : f32
    %253 = vector.broadcast %cst_120 : f32 to vector<16x512xf32>
    %254 = arith.addf %253, %252 : vector<16x512xf32>
    %255 = arith.mulf %216, %254 : vector<16x512xf32>
    %256 = arith.truncf %255 : vector<16x512xf32> to vector<16x512xbf16>
    %c0_121 = arith.constant 0 : index
    %c240_122 = arith.constant 240 : index
    %c0_123 = arith.constant 0 : index
    %257 = vector.load %arg6[%c0_121, %c240_122, %c0_123] : memref<2x896x32xbf16, #tpu.memory_space<vmem>>, vector<1x512x32xbf16>
    %258 = vector.shape_cast %257 : vector<1x512x32xbf16> to vector<512x32xbf16>
    %cst_124 = arith.constant dense<0.000000e+00> : vector<16x32xf32>
    %259 = tpu.matmul %256, %258, %cst_124 {dimension_numbers = #tpu.dot_dimension_numbers<[1], [0], [0], [1], [0, 0, 1, 1], [], []>} : vector<16x512xbf16>, vector<512x32xbf16>, vector<16x32xf32> -> vector<16x32xf32>
    %c0_125 = arith.constant 0 : index
    %c11 = arith.constant 11 : index
    %c0_126 = arith.constant 0 : index
    %260 = vector.load %arg2[%c0_125, %c11, %c0_126] : memref<2x12x512xf32, #tpu.memory_space<vmem>>, vector<1x1x32xf32>
    %261 = vector.shape_cast %260 : vector<1x1x32xf32> to vector<1x32xf32>
    %262 = vector.broadcast %261 : vector<1x32xf32> to vector<16x32xf32>
    %263 = arith.addf %259, %262 : vector<16x32xf32>
    %cst_127 = arith.constant 5.000000e-01 : f32
    %264 = vector.broadcast %cst_127 : f32 to vector<16x32xf32>
    %265 = arith.mulf %264, %263 : vector<16x32xf32>
    %cst_128 = arith.constant 0.707106769 : f32
    %266 = vector.broadcast %cst_128 : f32 to vector<16x32xf32>
    %267 = arith.mulf %263, %266 : vector<16x32xf32>
    %cst_129 = arith.constant 0.000000e+00 : f32
    %268 = vector.broadcast %cst_129 : f32 to vector<16x32xf32>
    %269 = arith.cmpf oge, %267, %268 : vector<16x32xf32>
    %cst_130 = arith.constant 1.000000e+00 : f32
    %cst_131 = arith.constant -1.000000e+00 : f32
    %270 = vector.broadcast %cst_130 : f32 to vector<16x32xf32>
    %271 = vector.broadcast %cst_131 : f32 to vector<16x32xf32>
    %272 = arith.select %269, %270, %271 : vector<16x32xi1>, vector<16x32xf32>
    %273 = math.absf %267 : vector<16x32xf32>
    %cst_132 = arith.constant 0.327591091 : f32
    %274 = vector.broadcast %cst_132 : f32 to vector<16x32xf32>
    %275 = arith.mulf %274, %273 : vector<16x32xf32>
    %cst_133 = arith.constant 1.000000e+00 : f32
    %276 = vector.broadcast %cst_133 : f32 to vector<16x32xf32>
    %277 = arith.addf %276, %275 : vector<16x32xf32>
    %cst_134 = arith.constant 1.000000e+00 : f32
    %278 = vector.broadcast %cst_134 : f32 to vector<16x32xf32>
    %279 = arith.divf %278, %277 : vector<16x32xf32>
    %cst_135 = arith.constant 1.06140542 : f32
    %280 = vector.broadcast %cst_135 : f32 to vector<16x32xf32>
    %281 = arith.mulf %280, %279 : vector<16x32xf32>
    %cst_136 = arith.constant -1.45315206 : f32
    %282 = vector.broadcast %cst_136 : f32 to vector<16x32xf32>
    %283 = arith.addf %281, %282 : vector<16x32xf32>
    %284 = arith.mulf %283, %279 : vector<16x32xf32>
    %cst_137 = arith.constant 1.42141378 : f32
    %285 = vector.broadcast %cst_137 : f32 to vector<16x32xf32>
    %286 = arith.addf %284, %285 : vector<16x32xf32>
    %287 = arith.mulf %286, %279 : vector<16x32xf32>
    %cst_138 = arith.constant -0.284496725 : f32
    %288 = vector.broadcast %cst_138 : f32 to vector<16x32xf32>
    %289 = arith.addf %287, %288 : vector<16x32xf32>
    %290 = arith.mulf %289, %279 : vector<16x32xf32>
    %cst_139 = arith.constant 0.254829586 : f32
    %291 = vector.broadcast %cst_139 : f32 to vector<16x32xf32>
    %292 = arith.addf %290, %291 : vector<16x32xf32>
    %293 = arith.mulf %292, %279 : vector<16x32xf32>
    %cst_140 = arith.constant 0.000000e+00 : f32
    %294 = vector.broadcast %cst_140 : f32 to vector<16x32xf32>
    %295 = arith.subf %294, %273 : vector<16x32xf32>
    %296 = arith.mulf %295, %273 : vector<16x32xf32>
    %297 = math.exp %296 : vector<16x32xf32>
    %298 = arith.mulf %293, %297 : vector<16x32xf32>
    %cst_141 = arith.constant 1.000000e+00 : f32
    %299 = vector.broadcast %cst_141 : f32 to vector<16x32xf32>
    %300 = arith.subf %299, %298 : vector<16x32xf32>
    %301 = arith.mulf %272, %300 : vector<16x32xf32>
    %cst_142 = arith.constant 1.000000e+00 : f32
    %302 = vector.broadcast %cst_142 : f32 to vector<16x32xf32>
    %303 = arith.addf %302, %301 : vector<16x32xf32>
    %304 = arith.mulf %265, %303 : vector<16x32xf32>
    %305 = arith.addf %144, %170 : vector<16x32xf32>
    %306 = arith.addf %305, %304 : vector<16x32xf32>
    %c0_143 = arith.constant 0 : index
    %c0_144 = arith.constant 0 : index
    %c0_145 = arith.constant 0 : index
    %c0_146 = arith.constant 0 : index
    %307 = vector.load %arg7[%c0_143, %c0_144, %c0_145, %c0_146] : memref<2x1x16x32xf32, #tpu.memory_space<vmem>>, vector<1x1x16x32xf32>
    %308 = vector.shape_cast %307 : vector<1x1x16x32xf32> to vector<16x32xf32>
    %309 = vector.shape_cast %306 : vector<16x32xf32> to vector<1x1x16x32xf32>
    tpu.vector_store %arg7[%c0_143, %c0_144, %c0_145, %c0_146], %309 {strides = array<i32>} : memref<2x1x16x32xf32, #tpu.memory_space<vmem>>, vector<1x1x16x32xf32>,
    %c1_147 = arith.constant 1 : index
    %c0_148 = arith.constant 0 : index
    %c0_149 = arith.constant 0 : index
    %310 = vector.load %arg2[%c1_147, %c0_148, %c0_149] : memref<2x12x512xf32, #tpu.memory_space<vmem>>, vector<1x1x32xf32>
    %311 = vector.shape_cast %310 : vector<1x1x32xf32> to vector<1x32xf32>
    %c1_150 = arith.constant 1 : index
    %c1_151 = arith.constant 1 : index
    %c0_152 = arith.constant 0 : index
    %312 = vector.load %arg2[%c1_150, %c1_151, %c0_152] : memref<2x12x512xf32, #tpu.memory_space<vmem>>, vector<1x1x32xf32>
    %313 = vector.shape_cast %312 : vector<1x1x32xf32> to vector<1x32xf32>
    %cst_153 = arith.constant dense<0.000000e+00> : vector<16xf32>
    %314 = vector.multi_reduction <add>, %306, %cst_153 [1] : vector<16x32xf32> to vector<16xf32>
    %315 = vector.shape_cast %314 : vector<16xf32> to vector<16x1xf32>
    %cst_154 = arith.constant 3.200000e+01 : f32
    %316 = vector.broadcast %cst_154 : f32 to vector<16x1xf32>
    %317 = arith.divf %315, %316 : vector<16x1xf32>
    %318 = vector.broadcast %317 : vector<16x1xf32> to vector<16x32xf32>
    %319 = arith.subf %306, %318 : vector<16x32xf32>
    %320 = arith.mulf %319, %319 : vector<16x32xf32>
    %cst_155 = arith.constant dense<0.000000e+00> : vector<16xf32>
    %321 = vector.multi_reduction <add>, %320, %cst_155 [1] : vector<16x32xf32> to vector<16xf32>
    %322 = vector.shape_cast %321 : vector<16xf32> to vector<16x1xf32>
    %cst_156 = arith.constant 3.200000e+01 : f32
    %323 = vector.broadcast %cst_156 : f32 to vector<16x1xf32>
    %324 = arith.divf %322, %323 : vector<16x1xf32>
    %325 = vector.broadcast %317 : vector<16x1xf32> to vector<16x32xf32>
    %326 = arith.subf %306, %325 : vector<16x32xf32>
    %cst_157 = arith.constant 9.99999974E-6 : f32
    %327 = vector.broadcast %cst_157 : f32 to vector<16x1xf32>
    %328 = arith.addf %324, %327 : vector<16x1xf32>
    %329 = math.rsqrt %328 : vector<16x1xf32>
    %330 = vector.broadcast %329 : vector<16x1xf32> to vector<16x32xf32>
    %331 = arith.mulf %326, %330 : vector<16x32xf32>
    %332 = vector.broadcast %311 : vector<1x32xf32> to vector<16x32xf32>
    %333 = arith.mulf %331, %332 : vector<16x32xf32>
    %334 = vector.broadcast %313 : vector<1x32xf32> to vector<16x32xf32>
    %335 = arith.addf %333, %334 : vector<16x32xf32>
    %336 = arith.truncf %335 : vector<16x32xf32> to vector<16x32xbf16>
    %337 = tpu.transpose %335, [1, 0] : vector<16x32xf32> -> vector<32x16xf32>
    %c1_158 = arith.constant 1 : index
    %c288_159 = arith.constant 288 : index
    %c0_160 = arith.constant 0 : index
    %338 = vector.load %arg4[%c1_158, %c288_159, %c0_160] : memref<2x320x512xbf16, #tpu.memory_space<vmem>>, vector<1x32x128xbf16>
    %339 = vector.shape_cast %338 : vector<1x32x128xbf16> to vector<32x128xbf16>
    %cst_161 = arith.constant dense<0.000000e+00> : vector<16x128xf32>
    %340 = tpu.matmul %336, %339, %cst_161 {dimension_numbers = #tpu.dot_dimension_numbers<[1], [0], [0], [1], [0, 0, 1, 1], [], []>} : vector<16x32xbf16>, vector<32x128xbf16>, vector<16x128xf32> -> vector<16x128xf32>
    %341 = vector.extract_strided_slice %340 {offsets = [0, 0], sizes = [16, 64], strides = [1, 1]} : vector<16x128xf32> to vector<16x64xf32>
    %342 = vector.extract_strided_slice %340 {offsets = [0, 64], sizes = [16, 64], strides = [1, 1]} : vector<16x128xf32> to vector<16x64xf32>
    %c1_162 = arith.constant 1 : index
    %c0_163 = arith.constant 0 : index
    %c0_164 = arith.constant 0 : index
    %343 = vector.load %arg6[%c1_162, %c0_163, %c0_164] : memref<2x896x32xbf16, #tpu.memory_space<vmem>>, vector<1x64x32xbf16>
    %344 = vector.shape_cast %343 : vector<1x64x32xbf16> to vector<64x32xbf16>
    %345 = arith.truncf %337 : vector<32x16xf32> to vector<32x16xbf16>
    %cst_165 = arith.constant dense<0.000000e+00> : vector<64x16xf32>
    %346 = tpu.matmul %344, %345, %cst_165 {dimension_numbers = #tpu.dot_dimension_numbers<[1], [0], [0], [1], [0, 0, 1, 1], [], []>} : vector<64x32xbf16>, vector<32x16xbf16>, vector<64x16xf32> -> vector<64x16xf32>
    %c160_166 = arith.constant 160 : index
    %c0_167 = arith.constant 0 : index
    %347 = vector.load %arg3[%c160_166, %c0_167] : memref<512x64xbf16, #tpu.memory_space<vmem>>, vector<16x64xbf16>
    %c176_168 = arith.constant 176 : index
    %c0_169 = arith.constant 0 : index
    %348 = vector.load %arg3[%c176_168, %c0_169] : memref<512x64xbf16, #tpu.memory_space<vmem>>, vector<64x64xbf16>
    %349 = arith.truncf %346 : vector<64x16xf32> to vector<64x16xbf16>
    %cst_170 = arith.constant dense<0.000000e+00> : vector<64x64xf32>
    %350 = tpu.matmul %349, %347, %cst_170 {dimension_numbers = #tpu.dot_dimension_numbers<[1], [0], [0], [1], [0, 0, 1, 1], [], []>} : vector<64x16xbf16>, vector<16x64xbf16>, vector<64x64xf32> -> vector<64x64xf32>
    %351 = arith.truncf %350 : vector<64x64xf32> to vector<64x64xbf16>
    %352 = arith.mulf %351, %348 : vector<64x64xbf16>
    %353 = arith.truncf %341 : vector<16x64xf32> to vector<16x64xbf16>
    %cst_171 = arith.constant dense<0.000000e+00> : vector<16x64xf32>
    %354 = tpu.matmul %353, %352, %cst_171 {dimension_numbers = #tpu.dot_dimension_numbers<[1], [0], [0], [1], [0, 0, 1, 1], [], []>} : vector<16x64xbf16>, vector<64x64xbf16>, vector<16x64xf32> -> vector<16x64xf32>
    %cst_172 = arith.constant dense<0xFF800000> : vector<16xf32>
    %355 = vector.multi_reduction <maximumf>, %354, %cst_172 [1] : vector<16x64xf32> to vector<16xf32>
    %356 = vector.shape_cast %355 : vector<16xf32> to vector<16x1xf32>
    %357 = vector.broadcast %356 : vector<16x1xf32> to vector<16x64xf32>
    %358 = arith.subf %354, %357 : vector<16x64xf32>
    %359 = math.exp %358 : vector<16x64xf32>
    %c304_173 = arith.constant 304 : index
    %c0_174 = arith.constant 0 : index
    %360 = vector.load %arg3[%c304_173, %c0_174] : memref<512x64xbf16, #tpu.memory_space<vmem>>, vector<64x64xbf16>
    %361 = arith.truncf %359 : vector<16x64xf32> to vector<16x64xbf16>
    %cst_175 = arith.constant dense<0.000000e+00> : vector<16x64xf32>
    %362 = tpu.matmul %361, %360, %cst_175 {dimension_numbers = #tpu.dot_dimension_numbers<[1], [0], [0], [1], [0, 0, 1, 1], [], []>} : vector<16x64xbf16>, vector<64x64xbf16>, vector<16x64xf32> -> vector<16x64xf32>
    %363 = tpu.reciprocal %362 {approx = true} : vector<16x64xf32> -> vector<16x64xf32>
    %364 = arith.mulf %359, %363 : vector<16x64xf32>
    %365 = arith.truncf %364 : vector<16x64xf32> to vector<16x64xbf16>
    %c1_176 = arith.constant 1 : index
    %c0_177 = arith.constant 0 : index
    %c0_178 = arith.constant 0 : index
    %366 = vector.load %arg5[%c1_176, %c0_177, %c0_178] : memref<2x192x64xbf16, #tpu.memory_space<vmem>>, vector<1x64x64xbf16>
    %367 = vector.shape_cast %366 : vector<1x64x64xbf16> to vector<64x64xbf16>
    %cst_179 = arith.constant dense<0.000000e+00> : vector<16x64xf32>
    %368 = tpu.matmul %365, %367, %cst_179 {dimension_numbers = #tpu.dot_dimension_numbers<[1], [0], [0], [1], [0, 0, 1, 1], [], []>} : vector<16x64xbf16>, vector<64x64xbf16>, vector<16x64xf32> -> vector<16x64xf32>
    %c1_180 = arith.constant 1 : index
    %c64_181 = arith.constant 64 : index
    %c0_182 = arith.constant 0 : index
    %369 = vector.load %arg5[%c1_180, %c64_181, %c0_182] : memref<2x192x64xbf16, #tpu.memory_space<vmem>>, vector<1x64x64xbf16>
    %370 = vector.shape_cast %369 : vector<1x64x64xbf16> to vector<64x64xbf16>
    %cst_183 = arith.constant dense<0.000000e+00> : vector<16x64xf32>
    %371 = tpu.matmul %365, %370, %cst_183 {dimension_numbers = #tpu.dot_dimension_numbers<[1], [0], [0], [1], [0, 0, 1, 1], [], []>} : vector<16x64xbf16>, vector<64x64xbf16>, vector<16x64xf32> -> vector<16x64xf32>
    %c1_184 = arith.constant 1 : index
    %c128_185 = arith.constant 128 : index
    %c0_186 = arith.constant 0 : index
    %372 = vector.load %arg5[%c1_184, %c128_185, %c0_186] : memref<2x192x64xbf16, #tpu.memory_space<vmem>>, vector<1x64x64xbf16>
    %373 = vector.shape_cast %372 : vector<1x64x64xbf16> to vector<64x64xbf16>
    %cst_187 = arith.constant dense<0.000000e+00> : vector<16x64xf32>
    %374 = tpu.matmul %365, %373, %cst_187 {dimension_numbers = #tpu.dot_dimension_numbers<[1], [0], [0], [1], [0, 0, 1, 1], [], []>} : vector<16x64xbf16>, vector<64x64xbf16>, vector<16x64xf32> -> vector<16x64xf32>
    %c0_188 = arith.constant 0 : index
    %c0_189 = arith.constant 0 : index
    %375 = vector.load %arg3[%c0_188, %c0_189] : memref<512x64xbf16, #tpu.memory_space<vmem>>, vector<16x16xbf16>
    %c16_190 = arith.constant 16 : index
    %c0_191 = arith.constant 0 : index
    %376 = vector.load %arg3[%c16_190, %c0_191] : memref<512x64xbf16, #tpu.memory_space<vmem>>, vector<16x16xbf16>
    %377 = arith.truncf %368 : vector<16x64xf32> to vector<16x64xbf16>
    %cst_192 = arith.constant dense<0.000000e+00> : vector<16x64xf32>
    %378 = tpu.matmul %375, %377, %cst_192 {dimension_numbers = #tpu.dot_dimension_numbers<[1], [0], [0], [1], [0, 0, 1, 1], [], []>} : vector<16x16xbf16>, vector<16x64xbf16>, vector<16x64xf32> -> vector<16x64xf32>
    %379 = arith.addf %378, %371 : vector<16x64xf32>
    %380 = arith.truncf %374 : vector<16x64xf32> to vector<16x64xbf16>
    %cst_193 = arith.constant dense<0.000000e+00> : vector<16x64xf32>
    %381 = tpu.matmul %376, %380, %cst_193 {dimension_numbers = #tpu.dot_dimension_numbers<[1], [0], [0], [1], [0, 0, 1, 1], [], []>} : vector<16x16xbf16>, vector<16x64xbf16>, vector<16x64xf32> -> vector<16x64xf32>
    %382 = arith.addf %379, %381 : vector<16x64xf32>
    %c1_194 = arith.constant 1 : index
    %c4_195 = arith.constant 4 : index
    %c0_196 = arith.constant 0 : index
    %383 = vector.load %arg2[%c1_194, %c4_195, %c0_196] : memref<2x12x512xf32, #tpu.memory_space<vmem>>, vector<1x1x64xf32>
    %384 = vector.shape_cast %383 : vector<1x1x64xf32> to vector<1x64xf32>
    %385 = vector.broadcast %384 : vector<1x64xf32> to vector<16x64xf32>
    %386 = arith.addf %382, %385 : vector<16x64xf32>
    %c96_197 = arith.constant 96 : index
    %c0_198 = arith.constant 0 : index
    %387 = vector.load %arg3[%c96_197, %c0_198] : memref<512x64xbf16, #tpu.memory_space<vmem>>, vector<64x16xbf16>
    %c240_199 = arith.constant 240 : index
    %c0_200 = arith.constant 0 : index
    %388 = vector.load %arg3[%c240_199, %c0_200] : memref<512x64xbf16, #tpu.memory_space<vmem>>, vector<64x64xbf16>
    %389 = arith.truncf %342 : vector<16x64xf32> to vector<16x64xbf16>
    %cst_201 = arith.constant dense<0.000000e+00> : vector<64x64xf32>
    %390 = tpu.matmul %387, %389, %cst_201 {dimension_numbers = #tpu.dot_dimension_numbers<[1], [0], [0], [1], [0, 0, 1, 1], [], []>} : vector<64x16xbf16>, vector<16x64xbf16>, vector<64x64xf32> -> vector<64x64xf32>
    %391 = arith.truncf %390 : vector<64x64xf32> to vector<64x64xbf16>
    %392 = arith.mulf %391, %388 : vector<64x64xbf16>
    %393 = arith.truncf %386 : vector<16x64xf32> to vector<16x64xbf16>
    %cst_202 = arith.constant dense<0.000000e+00> : vector<16x64xf32>
    %394 = tpu.matmul %393, %392, %cst_202 {dimension_numbers = #tpu.dot_dimension_numbers<[1], [0], [0], [1], [0, 0, 1, 1], [], []>} : vector<16x64xbf16>, vector<64x64xbf16>, vector<16x64xf32> -> vector<16x64xf32>
    %395 = arith.truncf %394 : vector<16x64xf32> to vector<16x64xbf16>
    %c1_203 = arith.constant 1 : index
    %c64_204 = arith.constant 64 : index
    %c0_205 = arith.constant 0 : index
    %396 = vector.load %arg6[%c1_203, %c64_204, %c0_205] : memref<2x896x32xbf16, #tpu.memory_space<vmem>>, vector<1x64x32xbf16>
    %397 = vector.shape_cast %396 : vector<1x64x32xbf16> to vector<64x32xbf16>
    %cst_206 = arith.constant dense<0.000000e+00> : vector<16x32xf32>
    %398 = tpu.matmul %395, %397, %cst_206 {dimension_numbers = #tpu.dot_dimension_numbers<[1], [0], [0], [1], [0, 0, 1, 1], [], []>} : vector<16x64xbf16>, vector<64x32xbf16>, vector<16x32xf32> -> vector<16x32xf32>
    %c1_207 = arith.constant 1 : index
    %c2_208 = arith.constant 2 : index
    %c0_209 = arith.constant 0 : index
    %399 = vector.load %arg2[%c1_207, %c2_208, %c0_209] : memref<2x12x512xf32, #tpu.memory_space<vmem>>, vector<1x1x32xf32>
    %400 = vector.shape_cast %399 : vector<1x1x32xf32> to vector<1x32xf32>
    %401 = vector.broadcast %400 : vector<1x32xf32> to vector<16x32xf32>
    %402 = arith.addf %398, %401 : vector<16x32xf32>
    %403 = arith.truncf %337 : vector<32x16xf32> to vector<32x16xbf16>
    %c1_210 = arith.constant 1 : index
    %c128_211 = arith.constant 128 : index
    %c0_212 = arith.constant 0 : index
    %404 = vector.load %arg6[%c1_210, %c128_211, %c0_212] : memref<2x896x32xbf16, #tpu.memory_space<vmem>>, vector<1x16x32xbf16>
    %405 = vector.shape_cast %404 : vector<1x16x32xbf16> to vector<16x32xbf16>
    %cst_213 = arith.constant dense<0.000000e+00> : vector<32x32xf32>
    %406 = tpu.matmul %403, %405, %cst_213 {dimension_numbers = #tpu.dot_dimension_numbers<[1], [0], [0], [1], [0, 0, 1, 1], [], []>} : vector<32x16xbf16>, vector<16x32xbf16>, vector<32x32xf32> -> vector<32x32xf32>
    %c1_214 = arith.constant 1 : index
    %c3_215 = arith.constant 3 : index
    %c0_216 = arith.constant 0 : index
    %407 = vector.load %arg2[%c1_214, %c3_215, %c0_216] : memref<2x12x512xf32, #tpu.memory_space<vmem>>, vector<1x1x32xf32>
    %408 = vector.shape_cast %407 : vector<1x1x32xf32> to vector<1x32xf32>
    %409 = vector.broadcast %408 : vector<1x32xf32> to vector<32x32xf32>
    %410 = arith.addf %406, %409 : vector<32x32xf32>
    %411 = vector.extract_strided_slice %410 {offsets = [0, 0], sizes = [32, 16], strides = [1, 1]} : vector<32x32xf32> to vector<32x16xf32>
    %412 = arith.truncf %411 : vector<32x16xf32> to vector<32x16xbf16>
    %413 = vector.extract_strided_slice %410 {offsets = [0, 16], sizes = [32, 16], strides = [1, 1]} : vector<32x32xf32> to vector<32x16xf32>
    %414 = tpu.transpose %413, [1, 0] : vector<32x16xf32> -> vector<16x32xf32>
    %415 = arith.truncf %414 : vector<16x32xf32> to vector<16x32xbf16>
    %cst_217 = arith.constant dense<0.000000e+00> : vector<32x32xf32>
    %416 = tpu.matmul %412, %415, %cst_217 {dimension_numbers = #tpu.dot_dimension_numbers<[1], [0], [0], [1], [0, 0, 1, 1], [], []>} : vector<32x16xbf16>, vector<16x32xbf16>, vector<32x32xf32> -> vector<32x32xf32>
    %cst_218 = arith.constant dense<0xFF800000> : vector<32xf32>
    %417 = vector.multi_reduction <maximumf>, %416, %cst_218 [1] : vector<32x32xf32> to vector<32xf32>
    %418 = vector.shape_cast %417 : vector<32xf32> to vector<32x1xf32>
    %419 = vector.broadcast %418 : vector<32x1xf32> to vector<32x32xf32>
    %420 = arith.subf %416, %419 : vector<32x32xf32>
    %421 = math.exp %420 : vector<32x32xf32>
    %cst_219 = arith.constant dense<0.000000e+00> : vector<32xf32>
    %422 = vector.multi_reduction <add>, %421, %cst_219 [1] : vector<32x32xf32> to vector<32xf32>
    %423 = vector.shape_cast %422 : vector<32xf32> to vector<32x1xf32>
    %424 = tpu.reciprocal %423 {approx = true} : vector<32x1xf32> -> vector<32x1xf32>
    %425 = vector.broadcast %424 : vector<32x1xf32> to vector<32x32xf32>
    %426 = arith.mulf %421, %425 : vector<32x32xf32>
    %427 = arith.truncf %426 : vector<32x32xf32> to vector<32x32xbf16>
    %c1_220 = arith.constant 1 : index
    %c144_221 = arith.constant 144 : index
    %c0_222 = arith.constant 0 : index
    %428 = vector.load %arg6[%c1_220, %c144_221, %c0_222] : memref<2x896x32xbf16, #tpu.memory_space<vmem>>, vector<1x32x32xbf16>
    %429 = vector.shape_cast %428 : vector<1x32x32xbf16> to vector<32x32xbf16>
    %cst_223 = arith.constant dense<0.000000e+00> : vector<32x32xf32>
    %430 = tpu.matmul %427, %429, %cst_223 {dimension_numbers = #tpu.dot_dimension_numbers<[1], [0], [0], [1], [0, 0, 1, 1], [], []>} : vector<32x32xbf16>, vector<32x32xbf16>, vector<32x32xf32> -> vector<32x32xf32>
    %c1_224 = arith.constant 1 : index
    %c176_225 = arith.constant 176 : index
    %c0_226 = arith.constant 0 : index
    %431 = vector.load %arg6[%c1_224, %c176_225, %c0_226] : memref<2x896x32xbf16, #tpu.memory_space<vmem>>, vector<1x32x32xbf16>
    %432 = vector.shape_cast %431 : vector<1x32x32xbf16> to vector<32x32xbf16>
    %cst_227 = arith.constant dense<0.000000e+00> : vector<32x32xf32>
    %433 = tpu.matmul %427, %432, %cst_227 {dimension_numbers = #tpu.dot_dimension_numbers<[1], [0], [0], [1], [0, 0, 1, 1], [], []>} : vector<32x32xbf16>, vector<32x32xbf16>, vector<32x32xf32> -> vector<32x32xf32>
    %c1_228 = arith.constant 1 : index
    %c208_229 = arith.constant 208 : index
    %c0_230 = arith.constant 0 : index
    %434 = vector.load %arg6[%c1_228, %c208_229, %c0_230] : memref<2x896x32xbf16, #tpu.memory_space<vmem>>, vector<1x32x32xbf16>
    %435 = vector.shape_cast %434 : vector<1x32x32xbf16> to vector<32x32xbf16>
    %cst_231 = arith.constant dense<0.000000e+00> : vector<32x32xf32>
    %436 = tpu.matmul %427, %435, %cst_231 {dimension_numbers = #tpu.dot_dimension_numbers<[1], [0], [0], [1], [0, 0, 1, 1], [], []>} : vector<32x32xbf16>, vector<32x32xbf16>, vector<32x32xf32> -> vector<32x32xf32>
    %c32_232 = arith.constant 32 : index
    %c0_233 = arith.constant 0 : index
    %437 = vector.load %arg3[%c32_232, %c0_233] : memref<512x64xbf16, #tpu.memory_space<vmem>>, vector<32x32xbf16>
    %c64_234 = arith.constant 64 : index
    %c0_235 = arith.constant 0 : index
    %438 = vector.load %arg3[%c64_234, %c0_235] : memref<512x64xbf16, #tpu.memory_space<vmem>>, vector<32x32xbf16>
    %439 = arith.truncf %430 : vector<32x32xf32> to vector<32x32xbf16>
    %cst_236 = arith.constant dense<0.000000e+00> : vector<32x32xf32>
    %440 = tpu.matmul %437, %439, %cst_236 {dimension_numbers = #tpu.dot_dimension_numbers<[1], [0], [0], [1], [0, 0, 1, 1], [], []>} : vector<32x32xbf16>, vector<32x32xbf16>, vector<32x32xf32> -> vector<32x32xf32>
    %441 = arith.addf %440, %433 : vector<32x32xf32>
    %442 = arith.truncf %436 : vector<32x32xf32> to vector<32x32xbf16>
    %cst_237 = arith.constant dense<0.000000e+00> : vector<32x32xf32>
    %443 = tpu.matmul %438, %442, %cst_237 {dimension_numbers = #tpu.dot_dimension_numbers<[1], [0], [0], [1], [0, 0, 1, 1], [], []>} : vector<32x32xbf16>, vector<32x32xbf16>, vector<32x32xf32> -> vector<32x32xf32>
    %444 = arith.addf %441, %443 : vector<32x32xf32>
    %c1_238 = arith.constant 1 : index
    %c5_239 = arith.constant 5 : index
    %c0_240 = arith.constant 0 : index
    %445 = vector.load %arg2[%c1_238, %c5_239, %c0_240] : memref<2x12x512xf32, #tpu.memory_space<vmem>>, vector<1x1x1xf32>
    %446 = vector.shape_cast %445 : vector<1x1x1xf32> to vector<1x1xf32>
    %447 = vector.broadcast %446 : vector<1x1xf32> to vector<32x32xf32>
    %448 = arith.addf %444, %447 : vector<32x32xf32>
    %449 = arith.truncf %402 : vector<16x32xf32> to vector<16x32xbf16>
    %450 = arith.truncf %448 : vector<32x32xf32> to vector<32x32xbf16>
    %cst_241 = arith.constant dense<0.000000e+00> : vector<16x32xf32>
    %451 = tpu.matmul %449, %450, %cst_241 {dimension_numbers = #tpu.dot_dimension_numbers<[1], [0], [0], [1], [0, 0, 1, 1], [], []>} : vector<16x32xbf16>, vector<32x32xbf16>, vector<16x32xf32> -> vector<16x32xf32>
    %452 = arith.addf %451, %306 : vector<16x32xf32>
    %c1_242 = arith.constant 1 : index
    %c6_243 = arith.constant 6 : index
    %c0_244 = arith.constant 0 : index
    %453 = vector.load %arg2[%c1_242, %c6_243, %c0_244] : memref<2x12x512xf32, #tpu.memory_space<vmem>>, vector<1x1x32xf32>
    %454 = vector.shape_cast %453 : vector<1x1x32xf32> to vector<1x32xf32>
    %c1_245 = arith.constant 1 : index
    %c7_246 = arith.constant 7 : index
    %c0_247 = arith.constant 0 : index
    %455 = vector.load %arg2[%c1_245, %c7_246, %c0_247] : memref<2x12x512xf32, #tpu.memory_space<vmem>>, vector<1x1x32xf32>
    %456 = vector.shape_cast %455 : vector<1x1x32xf32> to vector<1x32xf32>
    %cst_248 = arith.constant dense<0.000000e+00> : vector<16xf32>
    %457 = vector.multi_reduction <add>, %452, %cst_248 [1] : vector<16x32xf32> to vector<16xf32>
    %458 = vector.shape_cast %457 : vector<16xf32> to vector<16x1xf32>
    %cst_249 = arith.constant 3.200000e+01 : f32
    %459 = vector.broadcast %cst_249 : f32 to vector<16x1xf32>
    %460 = arith.divf %458, %459 : vector<16x1xf32>
    %461 = vector.broadcast %460 : vector<16x1xf32> to vector<16x32xf32>
    %462 = arith.subf %452, %461 : vector<16x32xf32>
    %463 = arith.mulf %462, %462 : vector<16x32xf32>
    %cst_250 = arith.constant dense<0.000000e+00> : vector<16xf32>
    %464 = vector.multi_reduction <add>, %463, %cst_250 [1] : vector<16x32xf32> to vector<16xf32>
    %465 = vector.shape_cast %464 : vector<16xf32> to vector<16x1xf32>
    %cst_251 = arith.constant 3.200000e+01 : f32
    %466 = vector.broadcast %cst_251 : f32 to vector<16x1xf32>
    %467 = arith.divf %465, %466 : vector<16x1xf32>
    %468 = vector.broadcast %460 : vector<16x1xf32> to vector<16x32xf32>
    %469 = arith.subf %452, %468 : vector<16x32xf32>
    %cst_252 = arith.constant 9.99999974E-6 : f32
    %470 = vector.broadcast %cst_252 : f32 to vector<16x1xf32>
    %471 = arith.addf %467, %470 : vector<16x1xf32>
    %472 = math.rsqrt %471 : vector<16x1xf32>
    %473 = vector.broadcast %472 : vector<16x1xf32> to vector<16x32xf32>
    %474 = arith.mulf %469, %473 : vector<16x32xf32>
    %475 = vector.broadcast %454 : vector<1x32xf32> to vector<16x32xf32>
    %476 = arith.mulf %474, %475 : vector<16x32xf32>
    %477 = vector.broadcast %456 : vector<1x32xf32> to vector<16x32xf32>
    %478 = arith.addf %476, %477 : vector<16x32xf32>
    %479 = arith.truncf %478 : vector<16x32xf32> to vector<16x32xbf16>
    %c368_253 = arith.constant 368 : index
    %c0_254 = arith.constant 0 : index
    %480 = vector.load %arg3[%c368_253, %c0_254] : memref<512x64xbf16, #tpu.memory_space<vmem>>, vector<144x16xbf16>
    %cst_255 = arith.constant dense<0.000000e+00> : vector<144x32xf32>
    %481 = tpu.matmul %480, %479, %cst_255 {dimension_numbers = #tpu.dot_dimension_numbers<[1], [0], [0], [1], [0, 0, 1, 1], [], []>} : vector<144x16xbf16>, vector<16x32xbf16>, vector<144x32xf32> -> vector<144x32xf32>
    %c1_256 = arith.constant 1 : index
    %c752_257 = arith.constant 752 : index
    %c0_258 = arith.constant 0 : index
    %482 = vector.load %arg6[%c1_256, %c752_257, %c0_258] : memref<2x896x32xbf16, #tpu.memory_space<vmem>>, vector<1x144x32xbf16>
    %483 = vector.shape_cast %482 : vector<1x144x32xbf16> to vector<144x32xbf16>
    %484 = arith.extf %483 : vector<144x32xbf16> to vector<144x32xf32>
    %485 = arith.mulf %481, %484 : vector<144x32xf32>
    %c1_259 = arith.constant 1 : index
    %c8_260 = arith.constant 8 : index
    %c0_261 = arith.constant 0 : index
    %486 = vector.load %arg2[%c1_259, %c8_260, %c0_261] : memref<2x12x512xf32, #tpu.memory_space<vmem>>, vector<1x1x32xf32>
    %487 = vector.shape_cast %486 : vector<1x1x32xf32> to vector<1x32xf32>
    %488 = vector.extract_strided_slice %485 {offsets = [0, 0], sizes = [16, 32], strides = [1, 1]} : vector<144x32xf32> to vector<16x32xf32>
    %489 = vector.broadcast %487 : vector<1x32xf32> to vector<16x32xf32>
    %490 = arith.addf %489, %488 : vector<16x32xf32>
    %491 = vector.extract_strided_slice %485 {offsets = [16, 0], sizes = [16, 32], strides = [1, 1]} : vector<144x32xf32> to vector<16x32xf32>
    %492 = arith.addf %490, %491 : vector<16x32xf32>
    %493 = vector.extract_strided_slice %485 {offsets = [32, 0], sizes = [16, 32], strides = [1, 1]} : vector<144x32xf32> to vector<16x32xf32>
    %494 = arith.addf %492, %493 : vector<16x32xf32>
    %495 = vector.extract_strided_slice %485 {offsets = [48, 0], sizes = [16, 32], strides = [1, 1]} : vector<144x32xf32> to vector<16x32xf32>
    %496 = arith.addf %494, %495 : vector<16x32xf32>
    %497 = vector.extract_strided_slice %485 {offsets = [64, 0], sizes = [16, 32], strides = [1, 1]} : vector<144x32xf32> to vector<16x32xf32>
    %498 = arith.addf %496, %497 : vector<16x32xf32>
    %499 = vector.extract_strided_slice %485 {offsets = [80, 0], sizes = [16, 32], strides = [1, 1]} : vector<144x32xf32> to vector<16x32xf32>
    %500 = arith.addf %498, %499 : vector<16x32xf32>
    %501 = vector.extract_strided_slice %485 {offsets = [96, 0], sizes = [16, 32], strides = [1, 1]} : vector<144x32xf32> to vector<16x32xf32>
    %502 = arith.addf %500, %501 : vector<16x32xf32>
    %503 = vector.extract_strided_slice %485 {offsets = [112, 0], sizes = [16, 32], strides = [1, 1]} : vector<144x32xf32> to vector<16x32xf32>
    %504 = arith.addf %502, %503 : vector<16x32xf32>
    %505 = vector.extract_strided_slice %485 {offsets = [128, 0], sizes = [16, 32], strides = [1, 1]} : vector<144x32xf32> to vector<16x32xf32>
    %506 = arith.addf %504, %505 : vector<16x32xf32>
    %507 = arith.truncf %506 : vector<16x32xf32> to vector<16x32xbf16>
    %c1_262 = arith.constant 1 : index
    %c256_263 = arith.constant 256 : index
    %c0_264 = arith.constant 0 : index
    %508 = vector.load %arg4[%c1_262, %c256_263, %c0_264] : memref<2x320x512xbf16, #tpu.memory_space<vmem>>, vector<1x32x256xbf16>
    %509 = vector.shape_cast %508 : vector<1x32x256xbf16> to vector<32x256xbf16>
    %cst_265 = arith.constant dense<0.000000e+00> : vector<16x256xf32>
    %510 = tpu.matmul %507, %509, %cst_265 {dimension_numbers = #tpu.dot_dimension_numbers<[1], [0], [0], [1], [0, 0, 1, 1], [], []>} : vector<16x32xbf16>, vector<32x256xbf16>, vector<16x256xf32> -> vector<16x256xf32>
    %c1_266 = arith.constant 1 : index
    %c9_267 = arith.constant 9 : index
    %c0_268 = arith.constant 0 : index
    %511 = vector.load %arg2[%c1_266, %c9_267, %c0_268] : memref<2x12x512xf32, #tpu.memory_space<vmem>>, vector<1x1x256xf32>
    %512 = vector.shape_cast %511 : vector<1x1x256xf32> to vector<1x256xf32>
    %513 = vector.broadcast %512 : vector<1x256xf32> to vector<16x256xf32>
    %514 = arith.addf %510, %513 : vector<16x256xf32>
    %515 = arith.truncf %514 : vector<16x256xf32> to vector<16x256xbf16>
    %c1_269 = arith.constant 1 : index
    %c0_270 = arith.constant 0 : index
    %c0_271 = arith.constant 0 : index
    %516 = vector.load %arg4[%c1_269, %c0_270, %c0_271] : memref<2x320x512xbf16, #tpu.memory_space<vmem>>, vector<1x256x512xbf16>
    %517 = vector.shape_cast %516 : vector<1x256x512xbf16> to vector<256x512xbf16>
    %cst_272 = arith.constant dense<0.000000e+00> : vector<16x512xf32>
    %518 = tpu.matmul %515, %517, %cst_272 {dimension_numbers = #tpu.dot_dimension_numbers<[1], [0], [0], [1], [0, 0, 1, 1], [], []>} : vector<16x256xbf16>, vector<256x512xbf16>, vector<16x512xf32> -> vector<16x512xf32>
    %c1_273 = arith.constant 1 : index
    %c10_274 = arith.constant 10 : index
    %c0_275 = arith.constant 0 : index
    %519 = vector.load %arg2[%c1_273, %c10_274, %c0_275] : memref<2x12x512xf32, #tpu.memory_space<vmem>>, vector<1x1x512xf32>
    %520 = vector.shape_cast %519 : vector<1x1x512xf32> to vector<1x512xf32>
    %521 = vector.broadcast %520 : vector<1x512xf32> to vector<16x512xf32>
    %522 = arith.addf %518, %521 : vector<16x512xf32>
    %cst_276 = arith.constant 5.000000e-01 : f32
    %523 = vector.broadcast %cst_276 : f32 to vector<16x512xf32>
    %524 = arith.mulf %523, %522 : vector<16x512xf32>
    %cst_277 = arith.constant 0.707106769 : f32
    %525 = vector.broadcast %cst_277 : f32 to vector<16x512xf32>
    %526 = arith.mulf %522, %525 : vector<16x512xf32>
    %cst_278 = arith.constant 0.000000e+00 : f32
    %527 = vector.broadcast %cst_278 : f32 to vector<16x512xf32>
    %528 = arith.cmpf oge, %526, %527 : vector<16x512xf32>
    %cst_279 = arith.constant 1.000000e+00 : f32
    %cst_280 = arith.constant -1.000000e+00 : f32
    %529 = vector.broadcast %cst_279 : f32 to vector<16x512xf32>
    %530 = vector.broadcast %cst_280 : f32 to vector<16x512xf32>
    %531 = arith.select %528, %529, %530 : vector<16x512xi1>, vector<16x512xf32>
    %532 = math.absf %526 : vector<16x512xf32>
    %cst_281 = arith.constant 0.327591091 : f32
    %533 = vector.broadcast %cst_281 : f32 to vector<16x512xf32>
    %534 = arith.mulf %533, %532 : vector<16x512xf32>
    %cst_282 = arith.constant 1.000000e+00 : f32
    %535 = vector.broadcast %cst_282 : f32 to vector<16x512xf32>
    %536 = arith.addf %535, %534 : vector<16x512xf32>
    %cst_283 = arith.constant 1.000000e+00 : f32
    %537 = vector.broadcast %cst_283 : f32 to vector<16x512xf32>
    %538 = arith.divf %537, %536 : vector<16x512xf32>
    %cst_284 = arith.constant 1.06140542 : f32
    %539 = vector.broadcast %cst_284 : f32 to vector<16x512xf32>
    %540 = arith.mulf %539, %538 : vector<16x512xf32>
    %cst_285 = arith.constant -1.45315206 : f32
    %541 = vector.broadcast %cst_285 : f32 to vector<16x512xf32>
    %542 = arith.addf %540, %541 : vector<16x512xf32>
    %543 = arith.mulf %542, %538 : vector<16x512xf32>
    %cst_286 = arith.constant 1.42141378 : f32
    %544 = vector.broadcast %cst_286 : f32 to vector<16x512xf32>
    %545 = arith.addf %543, %544 : vector<16x512xf32>
    %546 = arith.mulf %545, %538 : vector<16x512xf32>
    %cst_287 = arith.constant -0.284496725 : f32
    %547 = vector.broadcast %cst_287 : f32 to vector<16x512xf32>
    %548 = arith.addf %546, %547 : vector<16x512xf32>
    %549 = arith.mulf %548, %538 : vector<16x512xf32>
    %cst_288 = arith.constant 0.254829586 : f32
    %550 = vector.broadcast %cst_288 : f32 to vector<16x512xf32>
    %551 = arith.addf %549, %550 : vector<16x512xf32>
    %552 = arith.mulf %551, %538 : vector<16x512xf32>
    %cst_289 = arith.constant 0.000000e+00 : f32
    %553 = vector.broadcast %cst_289 : f32 to vector<16x512xf32>
    %554 = arith.subf %553, %532 : vector<16x512xf32>
    %555 = arith.mulf %554, %532 : vector<16x512xf32>
    %556 = math.exp %555 : vector<16x512xf32>
    %557 = arith.mulf %552, %556 : vector<16x512xf32>
    %cst_290 = arith.constant 1.000000e+00 : f32
    %558 = vector.broadcast %cst_290 : f32 to vector<16x512xf32>
    %559 = arith.subf %558, %557 : vector<16x512xf32>
    %560 = arith.mulf %531, %559 : vector<16x512xf32>
    %cst_291 = arith.constant 1.000000e+00 : f32
    %561 = vector.broadcast %cst_291 : f32 to vector<16x512xf32>
    %562 = arith.addf %561, %560 : vector<16x512xf32>
    %563 = arith.mulf %524, %562 : vector<16x512xf32>
    %564 = arith.truncf %563 : vector<16x512xf32> to vector<16x512xbf16>
    %c1_292 = arith.constant 1 : index
    %c240_293 = arith.constant 240 : index
    %c0_294 = arith.constant 0 : index
    %565 = vector.load %arg6[%c1_292, %c240_293, %c0_294] : memref<2x896x32xbf16, #tpu.memory_space<vmem>>, vector<1x512x32xbf16>
    %566 = vector.shape_cast %565 : vector<1x512x32xbf16> to vector<512x32xbf16>
    %cst_295 = arith.constant dense<0.000000e+00> : vector<16x32xf32>
    %567 = tpu.matmul %564, %566, %cst_295 {dimension_numbers = #tpu.dot_dimension_numbers<[1], [0], [0], [1], [0, 0, 1, 1], [], []>} : vector<16x512xbf16>, vector<512x32xbf16>, vector<16x32xf32> -> vector<16x32xf32>
    %c1_296 = arith.constant 1 : index
    %c11_297 = arith.constant 11 : index
    %c0_298 = arith.constant 0 : index
    %568 = vector.load %arg2[%c1_296, %c11_297, %c0_298] : memref<2x12x512xf32, #tpu.memory_space<vmem>>, vector<1x1x32xf32>
    %569 = vector.shape_cast %568 : vector<1x1x32xf32> to vector<1x32xf32>
    %570 = vector.broadcast %569 : vector<1x32xf32> to vector<16x32xf32>
    %571 = arith.addf %567, %570 : vector<16x32xf32>
    %cst_299 = arith.constant 5.000000e-01 : f32
    %572 = vector.broadcast %cst_299 : f32 to vector<16x32xf32>
    %573 = arith.mulf %572, %571 : vector<16x32xf32>
    %cst_300 = arith.constant 0.707106769 : f32
    %574 = vector.broadcast %cst_300 : f32 to vector<16x32xf32>
    %575 = arith.mulf %571, %574 : vector<16x32xf32>
    %cst_301 = arith.constant 0.000000e+00 : f32
    %576 = vector.broadcast %cst_301 : f32 to vector<16x32xf32>
    %577 = arith.cmpf oge, %575, %576 : vector<16x32xf32>
    %cst_302 = arith.constant 1.000000e+00 : f32
    %cst_303 = arith.constant -1.000000e+00 : f32
    %578 = vector.broadcast %cst_302 : f32 to vector<16x32xf32>
    %579 = vector.broadcast %cst_303 : f32 to vector<16x32xf32>
    %580 = arith.select %577, %578, %579 : vector<16x32xi1>, vector<16x32xf32>
    %581 = math.absf %575 : vector<16x32xf32>
    %cst_304 = arith.constant 0.327591091 : f32
    %582 = vector.broadcast %cst_304 : f32 to vector<16x32xf32>
    %583 = arith.mulf %582, %581 : vector<16x32xf32>
    %cst_305 = arith.constant 1.000000e+00 : f32
    %584 = vector.broadcast %cst_305 : f32 to vector<16x32xf32>
    %585 = arith.addf %584, %583 : vector<16x32xf32>
    %cst_306 = arith.constant 1.000000e+00 : f32
    %586 = vector.broadcast %cst_306 : f32 to vector<16x32xf32>
    %587 = arith.divf %586, %585 : vector<16x32xf32>
    %cst_307 = arith.constant 1.06140542 : f32
    %588 = vector.broadcast %cst_307 : f32 to vector<16x32xf32>
    %589 = arith.mulf %588, %587 : vector<16x32xf32>
    %cst_308 = arith.constant -1.45315206 : f32
    %590 = vector.broadcast %cst_308 : f32 to vector<16x32xf32>
    %591 = arith.addf %589, %590 : vector<16x32xf32>
    %592 = arith.mulf %591, %587 : vector<16x32xf32>
    %cst_309 = arith.constant 1.42141378 : f32
    %593 = vector.broadcast %cst_309 : f32 to vector<16x32xf32>
    %594 = arith.addf %592, %593 : vector<16x32xf32>
    %595 = arith.mulf %594, %587 : vector<16x32xf32>
    %cst_310 = arith.constant -0.284496725 : f32
    %596 = vector.broadcast %cst_310 : f32 to vector<16x32xf32>
    %597 = arith.addf %595, %596 : vector<16x32xf32>
    %598 = arith.mulf %597, %587 : vector<16x32xf32>
    %cst_311 = arith.constant 0.254829586 : f32
    %599 = vector.broadcast %cst_311 : f32 to vector<16x32xf32>
    %600 = arith.addf %598, %599 : vector<16x32xf32>
    %601 = arith.mulf %600, %587 : vector<16x32xf32>
    %cst_312 = arith.constant 0.000000e+00 : f32
    %602 = vector.broadcast %cst_312 : f32 to vector<16x32xf32>
    %603 = arith.subf %602, %581 : vector<16x32xf32>
    %604 = arith.mulf %603, %581 : vector<16x32xf32>
    %605 = math.exp %604 : vector<16x32xf32>
    %606 = arith.mulf %601, %605 : vector<16x32xf32>
    %cst_313 = arith.constant 1.000000e+00 : f32
    %607 = vector.broadcast %cst_313 : f32 to vector<16x32xf32>
    %608 = arith.subf %607, %606 : vector<16x32xf32>
    %609 = arith.mulf %580, %608 : vector<16x32xf32>
    %cst_314 = arith.constant 1.000000e+00 : f32
    %610 = vector.broadcast %cst_314 : f32 to vector<16x32xf32>
    %611 = arith.addf %610, %609 : vector<16x32xf32>
    %612 = arith.mulf %573, %611 : vector<16x32xf32>
    %613 = arith.addf %452, %478 : vector<16x32xf32>
    %614 = arith.addf %613, %612 : vector<16x32xf32>
    %c1_315 = arith.constant 1 : index
    %c0_316 = arith.constant 0 : index
    %c0_317 = arith.constant 0 : index
    %c0_318 = arith.constant 0 : index
    %615 = vector.load %arg7[%c1_315, %c0_316, %c0_317, %c0_318] : memref<2x1x16x32xf32, #tpu.memory_space<vmem>>, vector<1x1x16x32xf32>
    %616 = vector.shape_cast %615 : vector<1x1x16x32xf32> to vector<16x32xf32>
    %617 = vector.shape_cast %614 : vector<16x32xf32> to vector<1x1x16x32xf32>
    tpu.vector_store %arg7[%c1_315, %c0_316, %c0_317, %c0_318], %617 {strides = array<i32>} : memref<2x1x16x32xf32, #tpu.memory_space<vmem>>, vector<1x1x16x32xf32>,
    return
  }
  func.func @transform_0(%arg0: i32) -> (i32, i32, i32) {
    %c0_i32 = arith.constant 0 : i32
    %c0_i32_0 = arith.constant 0 : i32
    %c0_i32_1 = arith.constant 0 : i32
    return %arg0, %c0_i32, %c0_i32_0 : i32, i32, i32
  }
  func.func @transform_1(%arg0: i32) -> (i32, i32, i32) {
    %c0_i32 = arith.constant 0 : i32
    %c0_i32_0 = arith.constant 0 : i32
    %c0_i32_1 = arith.constant 0 : i32
    %c0_i32_2 = arith.constant 0 : i32
    return %c0_i32, %c0_i32_0, %c0_i32_1 : i32, i32, i32
  }
  func.func @transform_2(%arg0: i32) -> (i32, i32) {
    %c0_i32 = arith.constant 0 : i32
    %c0_i32_0 = arith.constant 0 : i32
    %c0_i32_1 = arith.constant 0 : i32
    return %c0_i32, %c0_i32_0 : i32, i32
  }
  func.func @transform_3(%arg0: i32) -> (i32, i32, i32) {
    %c0_i32 = arith.constant 0 : i32
    %c0_i32_0 = arith.constant 0 : i32
    %c0_i32_1 = arith.constant 0 : i32
    %c0_i32_2 = arith.constant 0 : i32
    return %c0_i32, %c0_i32_0, %c0_i32_1 : i32, i32, i32
  }
  func.func @transform_4(%arg0: i32) -> (i32, i32, i32) {
    %c0_i32 = arith.constant 0 : i32
    %c0_i32_0 = arith.constant 0 : i32
    %c0_i32_1 = arith.constant 0 : i32
    %c0_i32_2 = arith.constant 0 : i32
    return %c0_i32, %c0_i32_0, %c0_i32_1 : i32, i32, i32
  }
  func.func @transform_5(%arg0: i32) -> (i32, i32, i32) {
    %c0_i32 = arith.constant 0 : i32
    %c0_i32_0 = arith.constant 0 : i32
    %c0_i32_1 = arith.constant 0 : i32
    %c0_i32_2 = arith.constant 0 : i32
    return %c0_i32, %c0_i32_0, %c0_i32_1 : i32, i32, i32
  }
  func.func @transform_6(%arg0: i32) -> (i32, i32, i32, i32) {
    %c0_i32 = arith.constant 0 : i32
    %c0_i32_0 = arith.constant 0 : i32
    %c0_i32_1 = arith.constant 0 : i32
    %c0_i32_2 = arith.constant 0 : i32
    return %c0_i32, %arg0, %c0_i32_0, %c0_i32_1 : i32, i32, i32, i32
  }
}

</mosaic_0001>

<llo_original>
// kernel: tpu_custom_call.1
$region0: #{tpu_custom_call.1}
  #allocation0 [shape = 'u32[]', space=smem, size = 0x4, offset = 0x4, fixed_abs, tag = 'smem constant byte address 0x4 - core index']
  #allocation1 [shape = 'u32[72,128]{1,0:T(1,128)}', space=vmem, size = 0x9000, scoped, tag = 'internal scratch']
  #allocation4 [shape = 's32[]', space=sflag, size = 0x4, offset = 0, fixed_abs, tag = 'sflag constant byte address 0x0 - dummy sync flag']
  %s0 = inlined_call_operand.vmem [shape: f32[2,16,32], index: 0, kind: input, shape index: {}]
  %s1 = inlined_call_operand.vmem [shape: f32[2,12,512], index: 1, kind: input, shape index: {}]
  %s2 = inlined_call_operand.vmem [shape: bf16[512,64], index: 2, kind: input, shape index: {}]
  %s3 = inlined_call_operand.vmem [shape: bf16[2,320,512], index: 3, kind: input, shape index: {}]
  %s4 = inlined_call_operand.vmem [shape: bf16[2,192,64], index: 4, kind: input, shape index: {}]
  %s5 = inlined_call_operand.vmem [shape: bf16[2,896,32], index: 5, kind: input, shape index: {}]
  %s6 = inlined_call_operand.hbm [shape: f32[2,2,16,32], index: 6, kind: output, shape index: {}]
  %s7 = sld [smem:[#allocation0]]
  $region57: #{tpu_custom_call.1} parent=0
    _
  %s9 = ssub.s32 1, %s7
  %s10 = scalar_select 0, %s9, %s7
  $region1: #{tpu_custom_call.1} parent=0
    #allocation2 [shape = 'u8[32768]{0}', space=vmem, size = 0x8000, scoped, tag = 'output window, operand 0']
    #allocation3 [shape = 's32[2]{0}', space=sflag, size = 0x8, scoped, tag = 'scoped memory for tpu_custom_call.1']
    %11 = vsyncpa [#allocation3], 0
    %s12 = scalar_lea.sflag [#allocation3], 1
    %13 = vsyncpa %s12, 0
    loop: start=0, step=1, limit=4
    $region2: #{tpu_custom_call.1} parent=1 // loop_pre_header
      _
    $region3: #{tpu_custom_call.1} parent=1 // loop_header
      %s15 = sphi 0, %s19
      %p16 = scmp.ge.s32.totalorder %s15, 4
      %s25 = sphi 0, %s27
      %s28 = sphi 0, %s25
      %s29 = sphi 0, %s28
      %s45 = sphi 0, %s29
      %s49 = sphi 0, %s49
      %s51 = sphi 0, %s49
      %s52 = sphi 0, %s51
      %s66 = sphi 0, %s52
      %s70 = sphi 0, %s70
      %s72 = sphi 0, %s70
      %s73 = sphi 0, %s72
      %s87 = sphi 0, %s73
      %s91 = sphi 0, %s91
      %s93 = sphi 0, %s91
      %s94 = sphi 0, %s93
      %s108 = sphi 0, %s94
      %s112 = sphi 0, %s112
      %s114 = sphi 0, %s112
      %s115 = sphi 0, %s114
      %s129 = sphi 0, %s115
      %s133 = sphi 0, %s133
      %s135 = sphi 0, %s133
      %s136 = sphi 0, %s135
      %s150 = sphi 0, %s136
      %s156 = sphi 0, %s158
      %s159 = sphi 0, %s156
      %s160 = sphi 0, %s159
      %s176 = sphi 0, %s160
    $region4: #{tpu_custom_call.1} parent=1 // loop_header_branch
      %18 = sbr.rel (%p16) target = $region8
    $region5: #{tpu_custom_call.1} parent=1 // loop_body
      %s20 = ssub.s32 %s15, 1
      %s21 = ssub.s32 %s15, 2
      %s22 = sadd.s32 %s15, 1
      %s23 = ssub.s32 %s15, %s22
      %p24 = scmp.eq.s32.totalorder %s23, 0
      %s26 = sadd.s32 %s25, 1
      %s27 = scalar_select %p24, %s25, %s26
      %p30 = pneg %p24
      %p31 = scmp.eq.s32.totalorder %s15, 1
      %p32 = por %p30, %p31
      %p33 = scmp.ne.s32.totalorder %s25, %s28
      %p34 = scmp.eq.s32.totalorder %s15, 0
      %p35 = por %p33, %p34
      %p36 = scmp.ne.s32.totalorder %s25, %s28
      %p37 = scmp.eq.s32.totalorder %s20, 1
      %p38 = por %p36, %p37
      %p39 = scmp.ne.s32.totalorder %s28, %s29
      %p40 = scmp.eq.s32.totalorder %s20, 0
      %p41 = por %p39, %p40
      %p42 = scmp.ne.s32.totalorder %s28, %s29
      %p43 = scmp.eq.s32.totalorder %s21, 1
      %p44 = por %p42, %p43
      %p46 = scmp.ne.s32.totalorder %s29, %s45
      %p47 = scmp.eq.s32.totalorder %s21, 0
      %p48 = por %p46, %p47
      %s50 = sadd.s32 %s49, 1
      %p53 = scmp.eq.s32.totalorder %s15, 1
      %p54 = scmp.ne.s32.totalorder %s49, %s51
      %p55 = scmp.eq.s32.totalorder %s15, 0
      %p56 = por %p54, %p55
      %p57 = scmp.ne.s32.totalorder %s49, %s51
      %p58 = scmp.eq.s32.totalorder %s20, 1
      %p59 = por %p57, %p58
      %p60 = scmp.ne.s32.totalorder %s51, %s52
      %p61 = scmp.eq.s32.totalorder %s20, 0
      %p62 = por %p60, %p61
      %p63 = scmp.ne.s32.totalorder %s51, %s52
      %p64 = scmp.eq.s32.totalorder %s21, 1
      %p65 = por %p63, %p64
      %p67 = scmp.ne.s32.totalorder %s52, %s66
      %p68 = scmp.eq.s32.totalorder %s21, 0
      %p69 = por %p67, %p68
      %s71 = sadd.s32 %s70, 1
      %p74 = scmp.eq.s32.totalorder %s15, 1
      %p75 = scmp.ne.s32.totalorder %s70, %s72
      %p76 = scmp.eq.s32.totalorder %s15, 0
      %p77 = por %p75, %p76
      %p78 = scmp.ne.s32.totalorder %s70, %s72
      %p79 = scmp.eq.s32.totalorder %s20, 1
      %p80 = por %p78, %p79
      %p81 = scmp.ne.s32.totalorder %s72, %s73
      %p82 = scmp.eq.s32.totalorder %s20, 0
      %p83 = por %p81, %p82
      %p84 = scmp.ne.s32.totalorder %s72, %s73
      %p85 = scmp.eq.s32.totalorder %s21, 1
      %p86 = por %p84, %p85
      %p88 = scmp.ne.s32.totalorder %s73, %s87
      %p89 = scmp.eq.s32.totalorder %s21, 0
      %p90 = por %p88, %p89
      %s92 = sadd.s32 %s91, 1
      %p95 = scmp.eq.s32.totalorder %s15, 1
      %p96 = scmp.ne.s32.totalorder %s91, %s93
      %p97 = scmp.eq.s32.totalorder %s15, 0
      %p98 = por %p96, %p97
      %p99 = scmp.ne.s32.totalorder %s91, %s93
      %p100 = scmp.eq.s32.totalorder %s20, 1
      %p101 = por %p99, %p100
      %p102 = scmp.ne.s32.totalorder %s93, %s94
      %p103 = scmp.eq.s32.totalorder %s20, 0
      %p104 = por %p102, %p103
      %p105 = scmp.ne.s32.totalorder %s93, %s94
      %p106 = scmp.eq.s32.totalorder %s21, 1
      %p107 = por %p105, %p106
      %p109 = scmp.ne.s32.totalorder %s94, %s108
      %p110 = scmp.eq.s32.totalorder %s21, 0
      %p111 = por %p109, %p110
      %s113 = sadd.s32 %s112, 1
      %p116 = scmp.eq.s32.totalorder %s15, 1
      %p117 = scmp.ne.s32.totalorder %s112, %s114
      %p118 = scmp.eq.s32.totalorder %s15, 0
      %p119 = por %p117, %p118
      %p120 = scmp.ne.s32.totalorder %s112, %s114
      %p121 = scmp.eq.s32.totalorder %s20, 1
      %p122 = por %p120, %p121
      %p123 = scmp.ne.s32.totalorder %s114, %s115
      %p124 = scmp.eq.s32.totalorder %s20, 0
      %p125 = por %p123, %p124
      %p126 = scmp.ne.s32.totalorder %s114, %s115
      %p127 = scmp.eq.s32.totalorder %s21, 1
      %p128 = por %p126, %p127
      %p130 = scmp.ne.s32.totalorder %s115, %s129
      %p131 = scmp.eq.s32.totalorder %s21, 0
      %p132 = por %p130, %p131
      %s134 = sadd.s32 %s133, 1
      %p137 = scmp.eq.s32.totalorder %s15, 1
      %p138 = scmp.ne.s32.totalorder %s133, %s135
      %p139 = scmp.eq.s32.totalorder %s15, 0
      %p140 = por %p138, %p139
      %p141 = scmp.ne.s32.totalorder %s133, %s135
      %p142 = scmp.eq.s32.totalorder %s20, 1
      %p143 = por %p141, %p142
      %p144 = scmp.ne.s32.totalorder %s135, %s136
      %p145 = scmp.eq.s32.totalorder %s20, 0
      %p146 = por %p144, %p145
      %p147 = scmp.ne.s32.totalorder %s135, %s136
      %p148 = scmp.eq.s32.totalorder %s21, 1
      %p149 = por %p147, %p148
      %p151 = scmp.ne.s32.totalorder %s136, %s150
      %p152 = scmp.eq.s32.totalorder %s21, 0
      %p153 = por %p151, %p152
      %s154 = ssub.s32 %s15, %s22
      %p155 = scmp.eq.s32.totalorder %s154, 0
      %s157 = sadd.s32 %s156, 1
      %s158 = scalar_select %p155, %s156, %s157
      %p161 = pneg %p155
      %p162 = scmp.eq.s32.totalorder %s15, 1
      %p163 = por %p161, %p162
      %p164 = scmp.ne.s32.totalorder %s156, %s159
      %p165 = scmp.eq.s32.totalorder %s15, 0
      %p166 = por %p164, %p165
      %p167 = scmp.ne.s32.totalorder %s156, %s159
      %p168 = scmp.eq.s32.totalorder %s20, 1
      %p169 = por %p167, %p168
      %p170 = scmp.ne.s32.totalorder %s159, %s160
      %p171 = scmp.eq.s32.totalorder %s20, 0
      %p172 = por %p170, %p171
      %p173 = scmp.ne.s32.totalorder %s159, %s160
      %p174 = scmp.eq.s32.totalorder %s21, 1
      %p175 = por %p173, %p174
      %p177 = scmp.ne.s32.totalorder %s160, %s176
      %p178 = scmp.eq.s32.totalorder %s21, 0
      %p179 = por %p177, %p178
      %p180 = scmp.le.s32.totalorder 1, %s15
      %p181 = scmp.lt.s32.totalorder %s15, 3
      %p182 = pnand %p180, %p181
      %p183 = pneg %p182
      // Predicated region
      $region9: #{tpu_custom_call.1} parent=5 // pred_check
        _
      $region10: #{tpu_custom_call.1} parent=5 // pred_check_branch
        %185 = sbr.rel (%p182) target = $region12
      $region11: #{tpu_custom_call.1} parent=5 // pred_region
        %s186 = ssub.s32 %s15, 1
        // Predicated region
        $region13: #{tpu_custom_call.1} parent=11 // pred_check
          %p187 = pneg %p62
        $region14: #{tpu_custom_call.1} parent=11 // pred_check_branch
          %189 = sbr.rel (%p187) target = $region16
        $region15: #{tpu_custom_call.1} parent=11 // pred_region
          _
        $region16: #{tpu_custom_call.1} parent=11 // pred_fallthru
          _
        // Predicated region
        $region17: #{tpu_custom_call.1} parent=11 // pred_check
          %p190 = pneg %p83
        $region18: #{tpu_custom_call.1} parent=11 // pred_check_branch
          %192 = sbr.rel (%p190) target = $region20
        $region19: #{tpu_custom_call.1} parent=11 // pred_region
          _
        $region20: #{tpu_custom_call.1} parent=11 // pred_fallthru
          _
        // Predicated region
        $region21: #{tpu_custom_call.1} parent=11 // pred_check
          %p193 = pneg %p104
        $region22: #{tpu_custom_call.1} parent=11 // pred_check_branch
          %195 = sbr.rel (%p193) target = $region24
        $region23: #{tpu_custom_call.1} parent=11 // pred_region
          _
        $region24: #{tpu_custom_call.1} parent=11 // pred_fallthru
          _
        // Predicated region
        $region25: #{tpu_custom_call.1} parent=11 // pred_check
          %p196 = pneg %p125
        $region26: #{tpu_custom_call.1} parent=11 // pred_check_branch
          %198 = sbr.rel (%p196) target = $region28
        $region27: #{tpu_custom_call.1} parent=11 // pred_region
          _
        $region28: #{tpu_custom_call.1} parent=11 // pred_fallthru
          _
        // Predicated region
        $region29: #{tpu_custom_call.1} parent=11 // pred_check
          %p199 = pneg %p146
        $region30: #{tpu_custom_call.1} parent=11 // pred_check_branch
          %201 = sbr.rel (%p199) target = $region32
        $region31: #{tpu_custom_call.1} parent=11 // pred_region
          _
        $region32: #{tpu_custom_call.1} parent=11 // pred_fallthru
          _
      $region12: #{tpu_custom_call.1} parent=5 // pred_fallthru
        _
      %p202 = scmp.lt.s32.totalorder %s15, 2
      // Predicated region
      $region33: #{tpu_custom_call.1} parent=5 // pred_check
        %p203 = pneg %p202
      $region34: #{tpu_custom_call.1} parent=5 // pred_check_branch
        %205 = sbr.rel (%p203) target = $region36
      $region35: #{tpu_custom_call.1} parent=5 // pred_region
        // Predicated region
        $region37: #{tpu_custom_call.1} parent=35 // pred_check
          %p206 = pneg %p35
        $region38: #{tpu_custom_call.1} parent=35 // pred_check_branch
          %208 = sbr.rel (%p206) target = $region40
        $region39: #{tpu_custom_call.1} parent=35 // pred_region
          %p209 = scmp.lt.s32.totalorder %s15, 1
          %s210 = scalar_select %p209, %s15, 1
          %s211 = smul.addr %s210, 2
          %s212 = smul.addr %s211, 8
          %s213 = scalar_lea.vmem %s0, %s212
        $region40: #{tpu_custom_call.1} parent=35 // pred_fallthru
          _
      $region36: #{tpu_custom_call.1} parent=5 // pred_fallthru
        _
      %p214 = scmp.le.s32.totalorder 1, %s15
      %p215 = scmp.lt.s32.totalorder %s15, 3
      %p216 = pnand %p214, %p215
      %p217 = pneg %p216
      // Predicated region
      $region41: #{tpu_custom_call.1} parent=5 // pred_check
        _
      $region42: #{tpu_custom_call.1} parent=5 // pred_check_branch
        %219 = sbr.rel (%p216) target = $region44
      $region43: #{tpu_custom_call.1} parent=5 // pred_region
        %s220 = ssub.s32 %s15, 1
        %p221 = scmp.lt.s32.totalorder %s20, 1
        %s222 = scalar_select %p221, %s20, 1
        %s223 = smul.addr %s222, 2
        %s224 = smul.addr %s223, 8
        %s225 = scalar_lea.vmem %s0, %s224
        %p226 = pneg %p41
        %p227 = pneg %p38
        %p228 = pneg %p62
        %p229 = pneg %p59
        %p230 = pneg %p83
        %p231 = pneg %p80
        %p232 = pneg %p104
        %p233 = pneg %p101
        %p234 = pneg %p125
        %p235 = pneg %p122
        %p236 = pneg %p146
        %p237 = pneg %p143
        %p238 = pneg %p172
        %p239 = pneg %p169
        %s240 = sand.u32 %s159, 1
        %s241 = scalar_lea.sflag [#allocation3], %s240
        %s242 = sand.u32 %s159, 1
        %s243 = smul.addr %s242, 32
        %s244 = scalar_lea.vmem [#allocation2], %s243
        %p245 = scmp.lt.s32.totalorder %s20, 1
        %s246 = scalar_select %p245, %s20, 1
        %s247 = smul.addr %s246, 2
        %s248 = smul.addr %s247, 8
        %s249 = scalar_lea.vmem %s0, %s248
        %v251 = vld [vmem:[%s249] sm:$0xff]
        %v252 = vld [vmem:[%s249 + $0x8] sm:$0xff]
        %v253 = vld [vmem:[%s1] ss:$0 sm:$0xff]
        %v254 = vld [vmem:[%s1 + $0x1] ss:$0 sm:$0xff]
        %vm255 = vcmask 261120
        %v256 = vsel %vm255, %v251, 0.0
        %257 = vadd.xlane.f32.xlu0 %v256
        %v258 = vpop.xlane.xlu0 %257
        %v259 = vsel %vm255, %v252, 0.0
        %260 = vadd.xlane.f32.xlu0 %v259
        %v261 = vpop.xlane.xlu0 %260
        %v262 = vrcp.pop 32.0
        %v263 = vmul.f32 32.0, %v262
        %v264 = vsub.f32 1.0, %v263
        %v265 = vmul.f32 %v262, %v264
        %v266 = vadd.f32 %v262, %v265
        %vm267 = vweird.f32 %v262
        %v268 = vsel %vm267, %v262, %v266
        %v269 = vmul.f32 %v258, %v268
        %v270 = vmul.f32 %v261, %v268
        %v271 = vsub.f32 %v251, %v269
        %v272 = vsub.f32 %v252, %v270
        %v273 = vmul.f32 %v271, %v271
        %v274 = vmul.f32 %v272, %v272
        %v275 = vsel %vm255, %v273, 0.0
        %276 = vadd.xlane.f32.xlu0 %v275
        %v277 = vpop.xlane.xlu0 %276
        %v278 = vsel %vm255, %v274, 0.0
        %279 = vadd.xlane.f32.xlu0 %v278
        %v280 = vpop.xlane.xlu0 %279
        %v281 = vmul.f32 %v277, %v268
        %v282 = vmul.f32 %v280, %v268
        %v283 = vadd.f32 %v281, 1e-05
        %v284 = vadd.f32 %v282, 1e-05
        %v285 = vrsqrt.pop %v283
        %v286 = vmul.f32 %v285, %v283
        %v287 = vmul.f32 %v286, %v285
        %v288 = vmul.f32 0.5, %v287
        %v289 = vsub.f32 1.5, %v288
        %v290 = vmul.f32 %v285, %v289
        %vm291 = vweird.f32 %v283
        %vm292 = vweird.f32 %v285
        %vm293 = vmor %vm291, %vm292
        %v294 = vsel %vm293, %v285, %v290
        %v295 = vrsqrt.pop %v284
        %v296 = vmul.f32 %v295, %v284
        %v297 = vmul.f32 %v296, %v295
        %v298 = vmul.f32 0.5, %v297
        %v299 = vsub.f32 1.5, %v298
        %v300 = vmul.f32 %v295, %v299
        %vm301 = vweird.f32 %v284
        %vm302 = vweird.f32 %v295
        %vm303 = vmor %vm301, %vm302
        %v304 = vsel %vm303, %v295, %v300
        %v305 = vmul.f32 %v271, %v294
        %v306 = vmul.f32 %v272, %v304
        %v307 = vmul.f32 %v305, %v253
        %v308 = vmul.f32 %v306, %v253
        %v309 = vadd.f32 %v307, %v254
        %v310 = vadd.f32 %v308, %v254
        %v311 = vpack.c.bf16 %v310, %v309
        %312 = vxpose.xlu0.b32.start [1/16] %v309, 128
        %313 = vxpose.xlu0.b32.cont [2/16] %v310, 128
        %314 = vxpose.xlu0.b32.cont [3/16] 0.0, 128
        %315 = vxpose.xlu0.b32.cont [4/16] 0.0, 128
        %316 = vxpose.xlu0.b32.cont [5/16] 0.0, 128
        %317 = vxpose.xlu0.b32.cont [6/16] 0.0, 128
        %318 = vxpose.xlu0.b32.cont [7/16] 0.0, 128
        %319 = vxpose.xlu0.b32.cont [8/16] 0.0, 128
        %320 = vxpose.xlu0.b32.cont [9/16] 0.0, 128
        %321 = vxpose.xlu0.b32.cont [10/16] 0.0, 128
        %322 = vxpose.xlu0.b32.cont [11/16] 0.0, 128
        %323 = vxpose.xlu0.b32.cont [12/16] 0.0, 128
        %324 = vxpose.xlu0.b32.cont [13/16] 0.0, 128
        %325 = vxpose.xlu0.b32.cont [14/16] 0.0, 128
        %326 = vxpose.xlu0.b32.cont [15/16] 0.0, 128
        %327 = vxpose.xlu0.b32.end [16/16] 0.0, 128
        %v328 = vpop.trf.xlu0
        %v329 = vpop.trf.xlu0
        %v330 = vpop.trf.xlu0
        %v331 = vpop.trf.xlu0
        %v332 = vpop.trf.xlu0
        %v333 = vpop.trf.xlu0
        %v334 = vpop.trf.xlu0
        %v335 = vpop.trf.xlu0
        %v336 = vpop.trf.xlu0
        %v337 = vpop.trf.xlu0
        %v338 = vpop.trf.xlu0
        %v339 = vpop.trf.xlu0
        %v340 = vpop.trf.xlu0
        %v341 = vpop.trf.xlu0
        %v342 = vpop.trf.xlu0
        %v343 = vpop.trf.xlu0
        %v344 = vld [vmem:[%s3 + $0x240] sm:$0xf]
        %v345 = vld [vmem:[%s3 + $0x250] sm:$0xf]
        %v346 = vld [vmem:[%s3 + $0x260] sm:$0xf]
        %v347 = vld [vmem:[%s3 + $0x270] sm:$0xf]
        %v352 = vunpack.c.l.b16 %v344
        %v353 = vunpack.c.l.b16 %v345
        %v354 = vunpack.c.l.b16 %v346
        %v355 = vunpack.c.l.b16 %v347
        %v356 = vpack.c.b16 %v353, %v352
        %v357 = vpack.c.b16 %v355, %v354
        %v361 = vsel %vm255, %v311, 0
        %363 = vmatpush.bf16.msra.mxu0 0
        %364 = vmatpush.bf16.msra.mxu0 0
        %365 = vmatpush.bf16.msra.mxu0 0
        %366 = vmatpush.bf16.msra.mxu0 0
        %367 = vmatpush.bf16.msra.mxu0 0
        %368 = vmatpush.bf16.msra.mxu0 0
        %369 = vmatpush.bf16.msra.mxu0 %v357
        %370 = vmatpush.bf16.msra.mxu0 %v356
        %371 = vmatmul.bf16.gmra.mxu0 %v361
        %v372 = vpop.f32.mrf.mxu0
        %v373 = vadd.f32 0.0, %v372
        %v374 = vpop.f32.mrf.mxu0
        %v375 = vadd.f32 0.0, %v374
        %376 = vdwg.mxu0
        %v377 = vld [vmem:[%s5] sm:$0xf]
        %v378 = vld [vmem:[%s5 + $0x4] sm:$0xf]
        %v379 = vld [vmem:[%s5 + $0x8] sm:$0xf]
        %v380 = vld [vmem:[%s5 + $0xc] sm:$0xf]
        %v381 = vld [vmem:[%s5 + $0x10] sm:$0xf]
        %v382 = vld [vmem:[%s5 + $0x14] sm:$0xf]
        %v383 = vld [vmem:[%s5 + $0x18] sm:$0xf]
        %v384 = vld [vmem:[%s5 + $0x1c] sm:$0xf]
        %v385 = vpack.c.bf16 %v329, %v328
        %v386 = vpack.c.bf16 %v331, %v330
        %v395 = vunpack.c.l.b16 %v377
        %v396 = vunpack.c.l.b16 %v378
        %v397 = vunpack.c.l.b16 %v379
        %v398 = vunpack.c.l.b16 %v380
        %v399 = vunpack.c.l.b16 %v381
        %v400 = vunpack.c.l.b16 %v382
        %v401 = vunpack.c.l.b16 %v383
        %v402 = vunpack.c.l.b16 %v384
        %v403 = vpack.c.b16 %v396, %v395
        %v404 = vpack.c.b16 %v398, %v397
        %v405 = vpack.c.b16 %v400, %v399
        %v406 = vpack.c.b16 %v402, %v401
        %v408 = vsel %vm255, %v403, 0
        %v411 = vsel %vm255, %v404, 0
        %v414 = vsel %vm255, %v405, 0
        %v417 = vsel %vm255, %v406, 0
        %419 = vmatpush.bf16.msra.mxu0 0
        %420 = vmatpush.bf16.msra.mxu0 0
        %421 = vmatpush.bf16.msra.mxu0 0
        %422 = vmatpush.bf16.msra.mxu0 0
        %423 = vmatpush.bf16.msra.mxu0 0
        %424 = vmatpush.bf16.msra.mxu0 0
        %425 = vmatpush.bf16.msra.mxu0 %v386
        %426 = vmatpush.bf16.msra.mxu0 %v385
        %427 = vmatmul.bf16.gmra.mxu0 %v408
        %v428 = vpop.f32.mrf.mxu0
        %v429 = vadd.f32 0.0, %v428
        %v430 = vpop.f32.mrf.mxu0
        %v431 = vadd.f32 0.0, %v430
        %432 = vmatmul.bf16.gmra.mxu0 %v411
        %v433 = vpop.f32.mrf.mxu0
        %v434 = vadd.f32 0.0, %v433
        %v435 = vpop.f32.mrf.mxu0
        %v436 = vadd.f32 0.0, %v435
        %437 = vmatmul.bf16.gmra.mxu0 %v414
        %v438 = vpop.f32.mrf.mxu0
        %v439 = vadd.f32 0.0, %v438
        %v440 = vpop.f32.mrf.mxu0
        %v441 = vadd.f32 0.0, %v440
        %442 = vmatmul.bf16.gmra.mxu0 %v417
        %v443 = vpop.f32.mrf.mxu0
        %v444 = vadd.f32 0.0, %v443
        %v445 = vpop.f32.mrf.mxu0
        %v446 = vadd.f32 0.0, %v445
        %447 = vdwg.mxu0
        %v448 = vld [vmem:[%s2 + $0x50] sm:$0xf]
        %v449 = vld [vmem:[%s2 + $0x54] sm:$0xf]
        %v450 = vld [vmem:[%s2 + $0x58] sm:$0xf]
        %v451 = vld [vmem:[%s2 + $0x5c] sm:$0xf]
        %v452 = vld [vmem:[%s2 + $0x60] sm:$0xf]
        %v453 = vld [vmem:[%s2 + $0x64] sm:$0xf]
        %v454 = vld [vmem:[%s2 + $0x68] sm:$0xf]
        %v455 = vld [vmem:[%s2 + $0x6c] sm:$0xf]
        %v456 = vld [vmem:[%s2 + $0x70] sm:$0xf]
        %v457 = vld [vmem:[%s2 + $0x74] sm:$0xf]
        %v458 = vpack.c.bf16 %v431, %v429
        %v459 = vpack.c.bf16 %v436, %v434
        %v460 = vpack.c.bf16 %v441, %v439
        %v461 = vpack.c.bf16 %v446, %v444
        %v464 = vunpack.c.l.b16 %v448
        %v465 = vunpack.c.l.b16 %v449
        %v466 = vpack.c.b16 %v465, %v464
        %vm468 = vcmask 130048
        %v470 = vsel %vm468, %v458, 0
        %v473 = vsel %vm468, %v459, 0
        %v476 = vsel %vm468, %v460, 0
        %v479 = vsel %vm468, %v461, 0
        %481 = vmatpush.bf16.msra.mxu0 0
        %482 = vmatpush.bf16.msra.mxu0 0
        %483 = vmatpush.bf16.msra.mxu0 0
        %484 = vmatpush.bf16.msra.mxu0 0
        %485 = vmatpush.bf16.msra.mxu0 0
        %486 = vmatpush.bf16.msra.mxu0 0
        %487 = vmatpush.bf16.msra.mxu0 0
        %488 = vmatpush.bf16.msra.mxu0 %v466
        %489 = vmatmul.bf16.gmra.mxu0 %v470
        %v490 = vpop.f32.mrf.mxu0
        %v491 = vadd.f32 0.0, %v490
        %v492 = vpop.f32.mrf.mxu0
        %v493 = vadd.f32 0.0, %v492
        %494 = vmatmul.bf16.gmra.mxu0 %v473
        %v495 = vpop.f32.mrf.mxu0
        %v496 = vadd.f32 0.0, %v495
        %v497 = vpop.f32.mrf.mxu0
        %v498 = vadd.f32 0.0, %v497
        %499 = vmatmul.bf16.gmra.mxu0 %v476
        %v500 = vpop.f32.mrf.mxu0
        %v501 = vadd.f32 0.0, %v500
        %v502 = vpop.f32.mrf.mxu0
        %v503 = vadd.f32 0.0, %v502
        %504 = vmatmul.bf16.gmra.mxu0 %v479
        %v505 = vpop.f32.mrf.mxu0
        %v506 = vadd.f32 0.0, %v505
        %v507 = vpop.f32.mrf.mxu0
        %v508 = vadd.f32 0.0, %v507
        %509 = vdwg.mxu0
        %v510 = vpack.c.bf16 %v491, %v491
        %v511 = vpack.c.bf16 %v493, %v493
        %v512 = vpack.c.bf16 %v496, %v496
        %v513 = vpack.c.bf16 %v498, %v498
        %v514 = vpack.c.bf16 %v501, %v501
        %v515 = vpack.c.bf16 %v503, %v503
        %v516 = vpack.c.bf16 %v506, %v506
        %v517 = vpack.c.bf16 %v508, %v508
        %v518 = vunpack.c.l.bf16 %v510
        %v519 = vunpack.c.l.bf16 %v511
        %v520 = vunpack.c.l.bf16 %v512
        %v521 = vunpack.c.l.bf16 %v513
        %v522 = vunpack.c.l.bf16 %v514
        %v523 = vunpack.c.l.bf16 %v515
        %v524 = vunpack.c.l.bf16 %v516
        %v525 = vunpack.c.l.bf16 %v517
        %v526 = vunpack.c.l.bf16 %v450
        %v527 = vunpack.c.l.bf16 %v451
        %v528 = vunpack.c.l.bf16 %v452
        %v529 = vunpack.c.l.bf16 %v453
        %v530 = vunpack.c.l.bf16 %v454
        %v531 = vunpack.c.l.bf16 %v455
        %v532 = vunpack.c.l.bf16 %v456
        %v533 = vunpack.c.l.bf16 %v457
        %v534 = vmul.f32 %v518, %v526
        %v535 = vmul.f32 %v519, %v527
        %v536 = vmul.f32 %v520, %v528
        %v537 = vmul.f32 %v521, %v529
        %v538 = vmul.f32 %v522, %v530
        %v539 = vmul.f32 %v523, %v531
        %v540 = vmul.f32 %v524, %v532
        %v541 = vmul.f32 %v525, %v533
        %v542 = vpack.c.bf16 %v535, %v534
        %v543 = vpack.c.bf16 %v537, %v536
        %v544 = vpack.c.bf16 %v539, %v538
        %v545 = vpack.c.bf16 %v541, %v540
        %v546 = vpack.c.bf16 %v375, %v373
        %vm547 = vcmask 523264
        %v549 = vsel %vm547, %v546, 0
        %551 = vmatpush.bf16.msra.mxu0 0
        %552 = vmatpush.bf16.msra.mxu0 0
        %553 = vmatpush.bf16.msra.mxu0 0
        %554 = vmatpush.bf16.msra.mxu0 0
        %555 = vmatpush.bf16.msra.mxu0 %v545
        %556 = vmatpush.bf16.msra.mxu0 %v544
        %557 = vmatpush.bf16.msra.mxu0 %v543
        %558 = vmatpush.bf16.msra.mxu0 %v542
        %559 = vmatmul.bf16.gmra.mxu0 %v549
        %v560 = vpop.f32.mrf.mxu0
        %v561 = vadd.f32 0.0, %v560
        %v562 = vpop.f32.mrf.mxu0
        %v563 = vadd.f32 0.0, %v562
        %564 = vdwg.mxu0
        %v565 = vsel %vm547, %v561, -inf
        %566 = vmax.xlane.f32.xlu0 %v565
        %v567 = vpop.xlane.xlu0 %566
        %v568 = vsel %vm547, %v563, -inf
        %569 = vmax.xlane.f32.xlu0 %v568
        %v570 = vpop.xlane.xlu0 %569
        %v571 = vsub.f32 %v561, %v567
        %v572 = vsub.f32 %v563, %v570
        %v573 = vmul.f32 %v571, 1.442695
        %v574 = vpow.pop %v573
        %v575 = vmul.f32 %v572, 1.442695
        %v576 = vpow.pop %v575
        %v577 = vld [vmem:[%s2 + $0x98] sm:$0xf]
        %v578 = vld [vmem:[%s2 + $0x9c] sm:$0xf]
        %v579 = vld [vmem:[%s2 + $0xa0] sm:$0xf]
        %v580 = vld [vmem:[%s2 + $0xa4] sm:$0xf]
        %v581 = vld [vmem:[%s2 + $0xa8] sm:$0xf]
        %v582 = vld [vmem:[%s2 + $0xac] sm:$0xf]
        %v583 = vld [vmem:[%s2 + $0xb0] sm:$0xf]
        %v584 = vld [vmem:[%s2 + $0xb4] sm:$0xf]
        %v585 = vpack.c.bf16 %v576, %v574
        %v594 = vunpack.c.l.b16 %v577
        %v595 = vunpack.c.l.b16 %v578
        %v596 = vunpack.c.l.b16 %v579
        %v597 = vunpack.c.l.b16 %v580
        %v598 = vunpack.c.l.b16 %v581
        %v599 = vunpack.c.l.b16 %v582
        %v600 = vunpack.c.l.b16 %v583
        %v601 = vunpack.c.l.b16 %v584
        %v602 = vpack.c.b16 %v595, %v594
        %v603 = vpack.c.b16 %v597, %v596
        %v604 = vpack.c.b16 %v599, %v598
        %v605 = vpack.c.b16 %v601, %v600
        %v611 = vsel %vm547, %v585, 0
        %613 = vmatpush.bf16.msra.mxu0 0
        %614 = vmatpush.bf16.msra.mxu0 0
        %615 = vmatpush.bf16.msra.mxu0 0
        %616 = vmatpush.bf16.msra.mxu0 0
        %617 = vmatpush.bf16.msra.mxu0 %v605
        %618 = vmatpush.bf16.msra.mxu0 %v604
        %619 = vmatpush.bf16.msra.mxu0 %v603
        %620 = vmatpush.bf16.msra.mxu0 %v602
        %621 = vmatmul.bf16.gmra.mxu0 %v611
        %v622 = vpop.f32.mrf.mxu0
        %v623 = vadd.f32 0.0, %v622
        %v624 = vpop.f32.mrf.mxu0
        %v625 = vadd.f32 0.0, %v624
        %626 = vdwg.mxu0
        %v627 = vrcp.pop %v623
        %v628 = vrcp.pop %v625
        %v629 = vmul.f32 %v574, %v627
        %v630 = vmul.f32 %v576, %v628
        %v631 = vpack.c.bf16 %v630, %v629
        %v632 = vld [vmem:[%s4] sm:$0xf]
        %v633 = vld [vmem:[%s4 + $0x4] sm:$0xf]
        %v634 = vld [vmem:[%s4 + $0x8] sm:$0xf]
        %v635 = vld [vmem:[%s4 + $0xc] sm:$0xf]
        %v636 = vld [vmem:[%s4 + $0x10] sm:$0xf]
        %v637 = vld [vmem:[%s4 + $0x14] sm:$0xf]
        %v638 = vld [vmem:[%s4 + $0x18] sm:$0xf]
        %v639 = vld [vmem:[%s4 + $0x1c] sm:$0xf]
        %v648 = vunpack.c.l.b16 %v632
        %v649 = vunpack.c.l.b16 %v633
        %v650 = vunpack.c.l.b16 %v634
        %v651 = vunpack.c.l.b16 %v635
        %v652 = vunpack.c.l.b16 %v636
        %v653 = vunpack.c.l.b16 %v637
        %v654 = vunpack.c.l.b16 %v638
        %v655 = vunpack.c.l.b16 %v639
        %v656 = vpack.c.b16 %v649, %v648
        %v657 = vpack.c.b16 %v651, %v650
        %v658 = vpack.c.b16 %v653, %v652
        %v659 = vpack.c.b16 %v655, %v654
        %v665 = vsel %vm547, %v631, 0
        %667 = vmatpush.bf16.msra.mxu0 0
        %668 = vmatpush.bf16.msra.mxu0 0
        %669 = vmatpush.bf16.msra.mxu0 0
        %670 = vmatpush.bf16.msra.mxu0 0
        %671 = vmatpush.bf16.msra.mxu0 %v659
        %672 = vmatpush.bf16.msra.mxu0 %v658
        %673 = vmatpush.bf16.msra.mxu0 %v657
        %674 = vmatpush.bf16.msra.mxu0 %v656
        %675 = vmatmul.bf16.gmra.mxu0 %v665
        %v676 = vpop.f32.mrf.mxu0
        %v677 = vadd.f32 0.0, %v676
        %v678 = vpop.f32.mrf.mxu0
        %v679 = vadd.f32 0.0, %v678
        %680 = vdwg.mxu0
        %v681 = vld [vmem:[%s4 + $0x20] sm:$0xf]
        %v682 = vld [vmem:[%s4 + $0x24] sm:$0xf]
        %v683 = vld [vmem:[%s4 + $0x28] sm:$0xf]
        %v684 = vld [vmem:[%s4 + $0x2c] sm:$0xf]
        %v685 = vld [vmem:[%s4 + $0x30] sm:$0xf]
        %v686 = vld [vmem:[%s4 + $0x34] sm:$0xf]
        %v687 = vld [vmem:[%s4 + $0x38] sm:$0xf]
        %v688 = vld [vmem:[%s4 + $0x3c] sm:$0xf]
        %v697 = vunpack.c.l.b16 %v681
        %v698 = vunpack.c.l.b16 %v682
        %v699 = vunpack.c.l.b16 %v683
        %v700 = vunpack.c.l.b16 %v684
        %v701 = vunpack.c.l.b16 %v685
        %v702 = vunpack.c.l.b16 %v686
        %v703 = vunpack.c.l.b16 %v687
        %v704 = vunpack.c.l.b16 %v688
        %v705 = vpack.c.b16 %v698, %v697
        %v706 = vpack.c.b16 %v700, %v699
        %v707 = vpack.c.b16 %v702, %v701
        %v708 = vpack.c.b16 %v704, %v703
        %713 = vmatpush.bf16.msra.mxu0 0
        %714 = vmatpush.bf16.msra.mxu0 0
        %715 = vmatpush.bf16.msra.mxu0 0
        %716 = vmatpush.bf16.msra.mxu0 0
        %717 = vmatpush.bf16.msra.mxu0 %v708
        %718 = vmatpush.bf16.msra.mxu0 %v707
        %719 = vmatpush.bf16.msra.mxu0 %v706
        %720 = vmatpush.bf16.msra.mxu0 %v705
        %721 = vmatmul.bf16.gmra.mxu0 %v665
        %v722 = vpop.f32.mrf.mxu0
        %v723 = vadd.f32 0.0, %v722
        %v724 = vpop.f32.mrf.mxu0
        %v725 = vadd.f32 0.0, %v724
        %726 = vdwg.mxu0
        %v727 = vld [vmem:[%s4 + $0x40] sm:$0xf]
        %v728 = vld [vmem:[%s4 + $0x44] sm:$0xf]
        %v729 = vld [vmem:[%s4 + $0x48] sm:$0xf]
        %v730 = vld [vmem:[%s4 + $0x4c] sm:$0xf]
        %v731 = vld [vmem:[%s4 + $0x50] sm:$0xf]
        %v732 = vld [vmem:[%s4 + $0x54] sm:$0xf]
        %v733 = vld [vmem:[%s4 + $0x58] sm:$0xf]
        %v734 = vld [vmem:[%s4 + $0x5c] sm:$0xf]
        %v743 = vunpack.c.l.b16 %v727
        %v744 = vunpack.c.l.b16 %v728
        %v745 = vunpack.c.l.b16 %v729
        %v746 = vunpack.c.l.b16 %v730
        %v747 = vunpack.c.l.b16 %v731
        %v748 = vunpack.c.l.b16 %v732
        %v749 = vunpack.c.l.b16 %v733
        %v750 = vunpack.c.l.b16 %v734
        %v751 = vpack.c.b16 %v744, %v743
        %v752 = vpack.c.b16 %v746, %v745
        %v753 = vpack.c.b16 %v748, %v747
        %v754 = vpack.c.b16 %v750, %v749
        %759 = vmatpush.bf16.msra.mxu0 0
        %760 = vmatpush.bf16.msra.mxu0 0
        %761 = vmatpush.bf16.msra.mxu0 0
        %762 = vmatpush.bf16.msra.mxu0 0
        %763 = vmatpush.bf16.msra.mxu0 %v754
        %764 = vmatpush.bf16.msra.mxu0 %v753
        %765 = vmatpush.bf16.msra.mxu0 %v752
        %766 = vmatpush.bf16.msra.mxu0 %v751
        %767 = vmatmul.bf16.gmra.mxu0 %v665
        %v768 = vpop.f32.mrf.mxu0
        %v769 = vadd.f32 0.0, %v768
        %v770 = vpop.f32.mrf.mxu0
        %v771 = vadd.f32 0.0, %v770
        %772 = vdwg.mxu0
        %v773 = vld [vmem:[%s2] sm:$0xf]
        %v774 = vld [vmem:[%s2 + $0x4] sm:$0xf]
        %v775 = vld [vmem:[%s2 + $0x8] sm:$0xf]
        %v776 = vld [vmem:[%s2 + $0xc] sm:$0xf]
        %v777 = vpack.c.bf16 %v679, %v677
        %v780 = vunpack.c.l.b16 %v773
        %v781 = vunpack.c.l.b16 %v774
        %v782 = vpack.c.b16 %v781, %v780
        %v784 = vsel %vm468, %v782, 0
        %786 = vmatpush.bf16.msra.mxu0 0
        %787 = vmatpush.bf16.msra.mxu0 0
        %788 = vmatpush.bf16.msra.mxu0 0
        %789 = vmatpush.bf16.msra.mxu0 0
        %790 = vmatpush.bf16.msra.mxu0 0
        %791 = vmatpush.bf16.msra.mxu0 0
        %792 = vmatpush.bf16.msra.mxu0 0
        %793 = vmatpush.bf16.msra.mxu0 %v777
        %794 = vmatmul.bf16.gmra.mxu0 %v784
        %v795 = vpop.f32.mrf.mxu0
        %v796 = vadd.f32 %v723, %v795
        %v797 = vpop.f32.mrf.mxu0
        %v798 = vadd.f32 %v725, %v797
        %799 = vdwg.mxu0
        %v800 = vpack.c.bf16 %v771, %v769
        %v803 = vunpack.c.l.b16 %v775
        %v804 = vunpack.c.l.b16 %v776
        %v805 = vpack.c.b16 %v804, %v803
        %v807 = vsel %vm468, %v805, 0
        %809 = vmatpush.bf16.msra.mxu0 0
        %810 = vmatpush.bf16.msra.mxu0 0
        %811 = vmatpush.bf16.msra.mxu0 0
        %812 = vmatpush.bf16.msra.mxu0 0
        %813 = vmatpush.bf16.msra.mxu0 0
        %814 = vmatpush.bf16.msra.mxu0 0
        %815 = vmatpush.bf16.msra.mxu0 0
        %816 = vmatpush.bf16.msra.mxu0 %v800
        %817 = vmatmul.bf16.gmra.mxu0 %v807
        %v818 = vpop.f32.mrf.mxu0
        %v819 = vadd.f32 0.0, %v818
        %v820 = vpop.f32.mrf.mxu0
        %v821 = vadd.f32 0.0, %v820
        %822 = vdwg.mxu0
        %v823 = vadd.f32 %v796, %v819
        %v824 = vadd.f32 %v798, %v821
        %v825 = vld [vmem:[%s1 + $0x4] ss:$0 sm:$0xff]
        %v826 = vadd.f32 %v823, %v825
        %v827 = vadd.f32 %v824, %v825
        %v828 = vld [vmem:[%s2 + $0x30] sm:$0xf]
        %v829 = vld [vmem:[%s2 + $0x34] sm:$0xf]
        %v830 = vld [vmem:[%s2 + $0x38] sm:$0xf]
        %v831 = vld [vmem:[%s2 + $0x3c] sm:$0xf]
        %v832 = vld [vmem:[%s2 + $0x40] sm:$0xf]
        %v833 = vld [vmem:[%s2 + $0x44] sm:$0xf]
        %v834 = vld [vmem:[%s2 + $0x48] sm:$0xf]
        %v835 = vld [vmem:[%s2 + $0x4c] sm:$0xf]
        %v836 = vld [vmem:[%s2 + $0x78] sm:$0xf]
        %v837 = vld [vmem:[%s2 + $0x7c] sm:$0xf]
        %v838 = vld [vmem:[%s2 + $0x80] sm:$0xf]
        %v839 = vld [vmem:[%s2 + $0x84] sm:$0xf]
        %v840 = vld [vmem:[%s2 + $0x88] sm:$0xf]
        %v841 = vld [vmem:[%s2 + $0x8c] sm:$0xf]
        %v842 = vld [vmem:[%s2 + $0x90] sm:$0xf]
        %v843 = vld [vmem:[%s2 + $0x94] sm:$0xf]
        %v852 = vunpack.c.l.b16 %v828
        %v853 = vunpack.c.l.b16 %v829
        %v854 = vunpack.c.l.b16 %v830
        %v855 = vunpack.c.l.b16 %v831
        %v856 = vunpack.c.l.b16 %v832
        %v857 = vunpack.c.l.b16 %v833
        %v858 = vunpack.c.l.b16 %v834
        %v859 = vunpack.c.l.b16 %v835
        %v860 = vpack.c.b16 %v853, %v852
        %v861 = vpack.c.b16 %v855, %v854
        %v862 = vpack.c.b16 %v857, %v856
        %v863 = vpack.c.b16 %v859, %v858
        %865 = vrot.lane.b32.xlu0 %v546, 64
        %v866 = vpop.permute.xlu0 %865
        %v869 = vsel %vm468, %v860, 0
        %v872 = vsel %vm468, %v861, 0
        %v875 = vsel %vm468, %v862, 0
        %v878 = vsel %vm468, %v863, 0
        %880 = vmatpush.bf16.msra.mxu0 0
        %881 = vmatpush.bf16.msra.mxu0 0
        %882 = vmatpush.bf16.msra.mxu0 0
        %883 = vmatpush.bf16.msra.mxu0 0
        %884 = vmatpush.bf16.msra.mxu0 0
        %885 = vmatpush.bf16.msra.mxu0 0
        %886 = vmatpush.bf16.msra.mxu0 0
        %887 = vmatpush.bf16.msra.mxu0 %v866
        %888 = vmatmul.bf16.gmra.mxu0 %v869
        %v889 = vpop.f32.mrf.mxu0
        %v890 = vadd.f32 0.0, %v889
        %v891 = vpop.f32.mrf.mxu0
        %v892 = vadd.f32 0.0, %v891
        %893 = vmatmul.bf16.gmra.mxu0 %v872
        %v894 = vpop.f32.mrf.mxu0
        %v895 = vadd.f32 0.0, %v894
        %v896 = vpop.f32.mrf.mxu0
        %v897 = vadd.f32 0.0, %v896
        %898 = vmatmul.bf16.gmra.mxu0 %v875
        %v899 = vpop.f32.mrf.mxu0
        %v900 = vadd.f32 0.0, %v899
        %v901 = vpop.f32.mrf.mxu0
        %v902 = vadd.f32 0.0, %v901
        %903 = vmatmul.bf16.gmra.mxu0 %v878
        %v904 = vpop.f32.mrf.mxu0
        %v905 = vadd.f32 0.0, %v904
        %v906 = vpop.f32.mrf.mxu0
        %v907 = vadd.f32 0.0, %v906
        %908 = vdwg.mxu0
        %v909 = vpack.c.bf16 %v890, %v890
        %v910 = vpack.c.bf16 %v892, %v892
        %v911 = vpack.c.bf16 %v895, %v895
        %v912 = vpack.c.bf16 %v897, %v897
        %v913 = vpack.c.bf16 %v900, %v900
        %v914 = vpack.c.bf16 %v902, %v902
        %v915 = vpack.c.bf16 %v905, %v905
        %v916 = vpack.c.bf16 %v907, %v907
        %v917 = vunpack.c.l.bf16 %v909
        %v918 = vunpack.c.l.bf16 %v910
        %v919 = vunpack.c.l.bf16 %v911
        %v920 = vunpack.c.l.bf16 %v912
        %v921 = vunpack.c.l.bf16 %v913
        %v922 = vunpack.c.l.bf16 %v914
        %v923 = vunpack.c.l.bf16 %v915
        %v924 = vunpack.c.l.bf16 %v916
        %v925 = vunpack.c.l.bf16 %v836
        %v926 = vunpack.c.l.bf16 %v837
        %v927 = vunpack.c.l.bf16 %v838
        %v928 = vunpack.c.l.bf16 %v839
        %v929 = vunpack.c.l.bf16 %v840
        %v930 = vunpack.c.l.bf16 %v841
        %v931 = vunpack.c.l.bf16 %v842
        %v932 = vunpack.c.l.bf16 %v843
        %v933 = vmul.f32 %v917, %v925
        %v934 = vmul.f32 %v918, %v926
        %v935 = vmul.f32 %v919, %v927
        %v936 = vmul.f32 %v920, %v928
        %v937 = vmul.f32 %v921, %v929
        %v938 = vmul.f32 %v922, %v930
        %v939 = vmul.f32 %v923, %v931
        %v940 = vmul.f32 %v924, %v932
        %v941 = vpack.c.bf16 %v934, %v933
        %v942 = vpack.c.bf16 %v936, %v935
        %v943 = vpack.c.bf16 %v938, %v937
        %v944 = vpack.c.bf16 %v940, %v939
        %v945 = vpack.c.bf16 %v827, %v826
        %v947 = vsel %vm547, %v945, 0
        %949 = vmatpush.bf16.msra.mxu0 0
        %950 = vmatpush.bf16.msra.mxu0 0
        %951 = vmatpush.bf16.msra.mxu0 0
        %952 = vmatpush.bf16.msra.mxu0 0
        %953 = vmatpush.bf16.msra.mxu0 %v944
        %954 = vmatpush.bf16.msra.mxu0 %v943
        %955 = vmatpush.bf16.msra.mxu0 %v942
        %956 = vmatpush.bf16.msra.mxu0 %v941
        %957 = vmatmul.bf16.gmra.mxu0 %v947
        %v958 = vpop.f32.mrf.mxu0
        %v959 = vadd.f32 0.0, %v958
        %v960 = vpop.f32.mrf.mxu0
        %v961 = vadd.f32 0.0, %v960
        %962 = vdwg.mxu0
        %v963 = vpack.c.bf16 %v961, %v959
        %v964 = vld [vmem:[%s5 + $0x20] sm:$0xf]
        %v965 = vld [vmem:[%s5 + $0x24] sm:$0xf]
        %v966 = vld [vmem:[%s5 + $0x28] sm:$0xf]
        %v967 = vld [vmem:[%s5 + $0x2c] sm:$0xf]
        %v968 = vld [vmem:[%s5 + $0x30] sm:$0xf]
        %v969 = vld [vmem:[%s5 + $0x34] sm:$0xf]
        %v970 = vld [vmem:[%s5 + $0x38] sm:$0xf]
        %v971 = vld [vmem:[%s5 + $0x3c] sm:$0xf]
        %v972 = vld [vmem:[%s1 + $0x2] ss:$0 sm:$0xff]
        %v981 = vunpack.c.l.b16 %v964
        %v982 = vunpack.c.l.b16 %v965
        %v983 = vunpack.c.l.b16 %v966
        %v984 = vunpack.c.l.b16 %v967
        %v985 = vunpack.c.l.b16 %v968
        %v986 = vunpack.c.l.b16 %v969
        %v987 = vunpack.c.l.b16 %v970
        %v988 = vunpack.c.l.b16 %v971
        %v989 = vpack.c.b16 %v982, %v981
        %v990 = vpack.c.b16 %v984, %v983
        %v991 = vpack.c.b16 %v986, %v985
        %v992 = vpack.c.b16 %v988, %v987
        %v998 = vsel %vm547, %v963, 0
        %1000 = vmatpush.bf16.msra.mxu0 0
        %1001 = vmatpush.bf16.msra.mxu0 0
        %1002 = vmatpush.bf16.msra.mxu0 0
        %1003 = vmatpush.bf16.msra.mxu0 0
        %1004 = vmatpush.bf16.msra.mxu0 %v992
        %1005 = vmatpush.bf16.msra.mxu0 %v991
        %1006 = vmatpush.bf16.msra.mxu0 %v990
        %1007 = vmatpush.bf16.msra.mxu0 %v989
        %1008 = vmatmul.bf16.gmra.mxu0 %v998
        %v1009 = vpop.f32.mrf.mxu0
        %v1010 = vadd.f32 %v972, %v1009
        %v1011 = vpop.f32.mrf.mxu0
        %v1012 = vadd.f32 %v972, %v1011
        %1013 = vdwg.mxu0
        %v1014 = vld [vmem:[%s5 + $0x40] sm:$0xf]
        %v1015 = vld [vmem:[%s5 + $0x44] sm:$0xf]
        %v1016 = vld [vmem:[%s1 + $0x3] ss:$0 sm:$0xff]
        %v1019 = vunpack.c.l.b16 %v1014
        %v1020 = vunpack.c.l.b16 %v1015
        %v1021 = vpack.c.b16 %v1020, %v1019
        %v1024 = vsel %vm468, %v385, 0
        %v1027 = vsel %vm468, %v386, 0
        %1029 = vmatpush.bf16.msra.mxu0 0
        %1030 = vmatpush.bf16.msra.mxu0 0
        %1031 = vmatpush.bf16.msra.mxu0 0
        %1032 = vmatpush.bf16.msra.mxu0 0
        %1033 = vmatpush.bf16.msra.mxu0 0
        %1034 = vmatpush.bf16.msra.mxu0 0
        %1035 = vmatpush.bf16.msra.mxu0 0
        %1036 = vmatpush.bf16.msra.mxu0 %v1021
        %1037 = vmatmul.bf16.gmra.mxu0 %v1024
        %v1038 = vpop.f32.mrf.mxu0
        %v1039 = vadd.f32 %v1016, %v1038
        %v1040 = vpop.f32.mrf.mxu0
        %v1041 = vadd.f32 %v1016, %v1040
        %1042 = vmatmul.bf16.gmra.mxu0 %v1027
        %v1043 = vpop.f32.mrf.mxu0
        %v1044 = vadd.f32 %v1016, %v1043
        %v1045 = vpop.f32.mrf.mxu0
        %v1046 = vadd.f32 %v1016, %v1045
        %1047 = vdwg.mxu0
        %v1048 = vpack.c.bf16 %v1041, %v1039
        %v1049 = vpack.c.bf16 %v1046, %v1044
        %1054 = vrot.lane.b32.xlu0 %v1039, 112
        %v1055 = vpop.permute.xlu0 %1054
        %1056 = vrot.lane.b32.xlu0 %v1041, 112
        %v1057 = vpop.permute.xlu0 %1056
        %1058 = vrot.lane.b32.xlu0 %v1044, 112
        %v1059 = vpop.permute.xlu0 %1058
        %1060 = vrot.lane.b32.xlu0 %v1046, 112
        %v1061 = vpop.permute.xlu0 %1060
        %1066 = vxpose.xlu0.b32.start [1/16] %v1055, 128
        %1067 = vxpose.xlu0.b32.cont [2/16] %v1057, 128
        %1068 = vxpose.xlu0.b32.cont [3/16] %v1059, 128
        %1069 = vxpose.xlu0.b32.cont [4/16] %v1061, 128
        %1070 = vxpose.xlu0.b32.cont [5/16] 0.0, 128
        %1071 = vxpose.xlu0.b32.cont [6/16] 0.0, 128
        %1072 = vxpose.xlu0.b32.cont [7/16] 0.0, 128
        %1073 = vxpose.xlu0.b32.cont [8/16] 0.0, 128
        %1074 = vxpose.xlu0.b32.cont [9/16] 0.0, 128
        %1075 = vxpose.xlu0.b32.cont [10/16] 0.0, 128
        %1076 = vxpose.xlu0.b32.cont [11/16] 0.0, 128
        %1077 = vxpose.xlu0.b32.cont [12/16] 0.0, 128
        %1078 = vxpose.xlu0.b32.cont [13/16] 0.0, 128
        %1079 = vxpose.xlu0.b32.cont [14/16] 0.0, 128
        %1080 = vxpose.xlu0.b32.cont [15/16] 0.0, 128
        %1081 = vxpose.xlu0.b32.end [16/16] 0.0, 128
        %v1082 = vpop.trf.xlu0
        %v1083 = vpop.trf.xlu0
        %v1084 = vpop.trf.xlu0
        %v1085 = vpop.trf.xlu0
        %v1086 = vpop.trf.xlu0
        %v1087 = vpop.trf.xlu0
        %v1088 = vpop.trf.xlu0
        %v1089 = vpop.trf.xlu0
        %v1090 = vpop.trf.xlu0
        %v1091 = vpop.trf.xlu0
        %v1092 = vpop.trf.xlu0
        %v1093 = vpop.trf.xlu0
        %v1094 = vpop.trf.xlu0
        %v1095 = vpop.trf.xlu0
        %v1096 = vpop.trf.xlu0
        %v1097 = vpop.trf.xlu0
        %v1098 = vpack.c.bf16 %v1083, %v1082
        %v1100 = vsel %vm468, %v1048, 0
        %v1103 = vsel %vm468, %v1049, 0
        %1105 = vmatpush.bf16.msra.mxu0 0
        %1106 = vmatpush.bf16.msra.mxu0 0
        %1107 = vmatpush.bf16.msra.mxu0 0
        %1108 = vmatpush.bf16.msra.mxu0 0
        %1109 = vmatpush.bf16.msra.mxu0 0
        %1110 = vmatpush.bf16.msra.mxu0 0
        %1111 = vmatpush.bf16.msra.mxu0 0
        %1112 = vmatpush.bf16.msra.mxu0 %v1098
        %1113 = vmatmul.bf16.gmra.mxu0 %v1100
        %v1114 = vpop.f32.mrf.mxu0
        %v1115 = vadd.f32 0.0, %v1114
        %v1116 = vpop.f32.mrf.mxu0
        %v1117 = vadd.f32 0.0, %v1116
        %1118 = vmatmul.bf16.gmra.mxu0 %v1103
        %v1119 = vpop.f32.mrf.mxu0
        %v1120 = vadd.f32 0.0, %v1119
        %v1121 = vpop.f32.mrf.mxu0
        %v1122 = vadd.f32 0.0, %v1121
        %1123 = vdwg.mxu0
        %v1124 = vsel %vm255, %v1115, -inf
        %1125 = vmax.xlane.f32.xlu0 %v1124
        %v1126 = vpop.xlane.xlu0 %1125
        %v1127 = vsel %vm255, %v1117, -inf
        %1128 = vmax.xlane.f32.xlu0 %v1127
        %v1129 = vpop.xlane.xlu0 %1128
        %v1130 = vsel %vm255, %v1120, -inf
        %1131 = vmax.xlane.f32.xlu0 %v1130
        %v1132 = vpop.xlane.xlu0 %1131
        %v1133 = vsel %vm255, %v1122, -inf
        %1134 = vmax.xlane.f32.xlu0 %v1133
        %v1135 = vpop.xlane.xlu0 %1134
        %v1136 = vsub.f32 %v1115, %v1126
        %v1137 = vsub.f32 %v1117, %v1129
        %v1138 = vsub.f32 %v1120, %v1132
        %v1139 = vsub.f32 %v1122, %v1135
        %v1140 = vmul.f32 %v1136, 1.442695
        %v1141 = vpow.pop %v1140
        %v1142 = vmul.f32 %v1137, 1.442695
        %v1143 = vpow.pop %v1142
        %v1144 = vmul.f32 %v1138, 1.442695
        %v1145 = vpow.pop %v1144
        %v1146 = vmul.f32 %v1139, 1.442695
        %v1147 = vpow.pop %v1146
        %v1148 = vsel %vm255, %v1141, 0.0
        %1149 = vadd.xlane.f32.xlu0 %v1148
        %v1150 = vpop.xlane.xlu0 %1149
        %v1151 = vsel %vm255, %v1143, 0.0
        %1152 = vadd.xlane.f32.xlu0 %v1151
        %v1153 = vpop.xlane.xlu0 %1152
        %v1154 = vsel %vm255, %v1145, 0.0
        %1155 = vadd.xlane.f32.xlu0 %v1154
        %v1156 = vpop.xlane.xlu0 %1155
        %v1157 = vsel %vm255, %v1147, 0.0
        %1158 = vadd.xlane.f32.xlu0 %v1157
        %v1159 = vpop.xlane.xlu0 %1158
        %v1160 = vrcp.pop %v1150
        %v1161 = vrcp.pop %v1153
        %v1162 = vrcp.pop %v1156
        %v1163 = vrcp.pop %v1159
        %v1164 = vmul.f32 %v1141, %v1160
        %v1165 = vmul.f32 %v1143, %v1161
        %v1166 = vmul.f32 %v1145, %v1162
        %v1167 = vmul.f32 %v1147, %v1163
        %v1168 = vpack.c.bf16 %v1165, %v1164
        %v1169 = vpack.c.bf16 %v1167, %v1166
        %v1170 = vld [vmem:[%s5 + $0x48] sm:$0xf]
        %v1171 = vld [vmem:[%s5 + $0x4c] sm:$0xf]
        %v1172 = vld [vmem:[%s5 + $0x50] sm:$0xf]
        %v1173 = vld [vmem:[%s5 + $0x54] sm:$0xf]
        %v1178 = vunpack.c.l.b16 %v1170
        %v1179 = vunpack.c.l.b16 %v1171
        %v1180 = vunpack.c.l.b16 %v1172
        %v1181 = vunpack.c.l.b16 %v1173
        %v1182 = vpack.c.b16 %v1179, %v1178
        %v1183 = vpack.c.b16 %v1181, %v1180
        %v1187 = vsel %vm255, %v1168, 0
        %v1190 = vsel %vm255, %v1169, 0
        %1192 = vmatpush.bf16.msra.mxu0 0
        %1193 = vmatpush.bf16.msra.mxu0 0
        %1194 = vmatpush.bf16.msra.mxu0 0
        %1195 = vmatpush.bf16.msra.mxu0 0
        %1196 = vmatpush.bf16.msra.mxu0 0
        %1197 = vmatpush.bf16.msra.mxu0 0
        %1198 = vmatpush.bf16.msra.mxu0 %v1183
        %1199 = vmatpush.bf16.msra.mxu0 %v1182
        %1200 = vmatmul.bf16.gmra.mxu0 %v1187
        %v1201 = vpop.f32.mrf.mxu0
        %v1202 = vadd.f32 0.0, %v1201
        %v1203 = vpop.f32.mrf.mxu0
        %v1204 = vadd.f32 0.0, %v1203
        %1205 = vmatmul.bf16.gmra.mxu0 %v1190
        %v1206 = vpop.f32.mrf.mxu0
        %v1207 = vadd.f32 0.0, %v1206
        %v1208 = vpop.f32.mrf.mxu0
        %v1209 = vadd.f32 0.0, %v1208
        %1210 = vdwg.mxu0
        %v1211 = vld [vmem:[%s5 + $0x58] sm:$0xf]
        %v1212 = vld [vmem:[%s5 + $0x5c] sm:$0xf]
        %v1213 = vld [vmem:[%s5 + $0x60] sm:$0xf]
        %v1214 = vld [vmem:[%s5 + $0x64] sm:$0xf]
        %v1219 = vunpack.c.l.b16 %v1211
        %v1220 = vunpack.c.l.b16 %v1212
        %v1221 = vunpack.c.l.b16 %v1213
        %v1222 = vunpack.c.l.b16 %v1214
        %v1223 = vpack.c.b16 %v1220, %v1219
        %v1224 = vpack.c.b16 %v1222, %v1221
        %1227 = vmatpush.bf16.msra.mxu0 0
        %1228 = vmatpush.bf16.msra.mxu0 0
        %1229 = vmatpush.bf16.msra.mxu0 0
        %1230 = vmatpush.bf16.msra.mxu0 0
        %1231 = vmatpush.bf16.msra.mxu0 0
        %1232 = vmatpush.bf16.msra.mxu0 0
        %1233 = vmatpush.bf16.msra.mxu0 %v1224
        %1234 = vmatpush.bf16.msra.mxu0 %v1223
        %1235 = vmatmul.bf16.gmra.mxu0 %v1187
        %v1236 = vpop.f32.mrf.mxu0
        %v1237 = vadd.f32 0.0, %v1236
        %v1238 = vpop.f32.mrf.mxu0
        %v1239 = vadd.f32 0.0, %v1238
        %1240 = vmatmul.bf16.gmra.mxu0 %v1190
        %v1241 = vpop.f32.mrf.mxu0
        %v1242 = vadd.f32 0.0, %v1241
        %v1243 = vpop.f32.mrf.mxu0
        %v1244 = vadd.f32 0.0, %v1243
        %1245 = vdwg.mxu0
        %v1246 = vld [vmem:[%s5 + $0x68] sm:$0xf]
        %v1247 = vld [vmem:[%s5 + $0x6c] sm:$0xf]
        %v1248 = vld [vmem:[%s5 + $0x70] sm:$0xf]
        %v1249 = vld [vmem:[%s5 + $0x74] sm:$0xf]
        %v1254 = vunpack.c.l.b16 %v1246
        %v1255 = vunpack.c.l.b16 %v1247
        %v1256 = vunpack.c.l.b16 %v1248
        %v1257 = vunpack.c.l.b16 %v1249
        %v1258 = vpack.c.b16 %v1255, %v1254
        %v1259 = vpack.c.b16 %v1257, %v1256
        %1262 = vmatpush.bf16.msra.mxu0 0
        %1263 = vmatpush.bf16.msra.mxu0 0
        %1264 = vmatpush.bf16.msra.mxu0 0
        %1265 = vmatpush.bf16.msra.mxu0 0
        %1266 = vmatpush.bf16.msra.mxu0 0
        %1267 = vmatpush.bf16.msra.mxu0 0
        %1268 = vmatpush.bf16.msra.mxu0 %v1259
        %1269 = vmatpush.bf16.msra.mxu0 %v1258
        %1270 = vmatmul.bf16.gmra.mxu0 %v1187
        %v1271 = vpop.f32.mrf.mxu0
        %v1272 = vadd.f32 0.0, %v1271
        %v1273 = vpop.f32.mrf.mxu0
        %v1274 = vadd.f32 0.0, %v1273
        %1275 = vmatmul.bf16.gmra.mxu0 %v1190
        %v1276 = vpop.f32.mrf.mxu0
        %v1277 = vadd.f32 0.0, %v1276
        %v1278 = vpop.f32.mrf.mxu0
        %v1279 = vadd.f32 0.0, %v1278
        %1280 = vdwg.mxu0
        %v1281 = vld [vmem:[%s2 + $0x10] sm:$0xf]
        %v1282 = vld [vmem:[%s2 + $0x14] sm:$0xf]
        %v1283 = vld [vmem:[%s2 + $0x18] sm:$0xf]
        %v1284 = vld [vmem:[%s2 + $0x1c] sm:$0xf]
        %v1285 = vld [vmem:[%s2 + $0x20] sm:$0xf]
        %v1286 = vld [vmem:[%s2 + $0x24] sm:$0xf]
        %v1287 = vld [vmem:[%s2 + $0x28] sm:$0xf]
        %v1288 = vld [vmem:[%s2 + $0x2c] sm:$0xf]
        %v1289 = vpack.c.bf16 %v1204, %v1202
        %v1290 = vpack.c.bf16 %v1209, %v1207
        %v1295 = vunpack.c.l.b16 %v1281
        %v1296 = vunpack.c.l.b16 %v1282
        %v1297 = vunpack.c.l.b16 %v1283
        %v1298 = vunpack.c.l.b16 %v1284
        %v1299 = vpack.c.b16 %v1296, %v1295
        %v1300 = vpack.c.b16 %v1298, %v1297
        %v1302 = vsel %vm255, %v1299, 0
        %v1305 = vsel %vm255, %v1300, 0
        %1307 = vmatpush.bf16.msra.mxu0 0
        %1308 = vmatpush.bf16.msra.mxu0 0
        %1309 = vmatpush.bf16.msra.mxu0 0
        %1310 = vmatpush.bf16.msra.mxu0 0
        %1311 = vmatpush.bf16.msra.mxu0 0
        %1312 = vmatpush.bf16.msra.mxu0 0
        %1313 = vmatpush.bf16.msra.mxu0 %v1290
        %1314 = vmatpush.bf16.msra.mxu0 %v1289
        %1315 = vmatmul.bf16.gmra.mxu0 %v1302
        %v1316 = vpop.f32.mrf.mxu0
        %v1317 = vadd.f32 %v1237, %v1316
        %v1318 = vpop.f32.mrf.mxu0
        %v1319 = vadd.f32 %v1239, %v1318
        %1320 = vmatmul.bf16.gmra.mxu0 %v1305
        %v1321 = vpop.f32.mrf.mxu0
        %v1322 = vadd.f32 %v1242, %v1321
        %v1323 = vpop.f32.mrf.mxu0
        %v1324 = vadd.f32 %v1244, %v1323
        %1325 = vdwg.mxu0
        %v1326 = vpack.c.bf16 %v1274, %v1272
        %v1327 = vpack.c.bf16 %v1279, %v1277
        %v1332 = vunpack.c.l.b16 %v1285
        %v1333 = vunpack.c.l.b16 %v1286
        %v1334 = vunpack.c.l.b16 %v1287
        %v1335 = vunpack.c.l.b16 %v1288
        %v1336 = vpack.c.b16 %v1333, %v1332
        %v1337 = vpack.c.b16 %v1335, %v1334
        %v1339 = vsel %vm255, %v1336, 0
        %v1342 = vsel %vm255, %v1337, 0
        %1344 = vmatpush.bf16.msra.mxu0 0
        %1345 = vmatpush.bf16.msra.mxu0 0
        %1346 = vmatpush.bf16.msra.mxu0 0
        %1347 = vmatpush.bf16.msra.mxu0 0
        %1348 = vmatpush.bf16.msra.mxu0 0
        %1349 = vmatpush.bf16.msra.mxu0 0
        %1350 = vmatpush.bf16.msra.mxu0 %v1327
        %1351 = vmatpush.bf16.msra.mxu0 %v1326
        %1352 = vmatmul.bf16.gmra.mxu0 %v1339
        %v1353 = vpop.f32.mrf.mxu0
        %v1354 = vadd.f32 0.0, %v1353
        %v1355 = vpop.f32.mrf.mxu0
        %v1356 = vadd.f32 0.0, %v1355
        %1357 = vmatmul.bf16.gmra.mxu0 %v1342
        %v1358 = vpop.f32.mrf.mxu0
        %v1359 = vadd.f32 0.0, %v1358
        %v1360 = vpop.f32.mrf.mxu0
        %v1361 = vadd.f32 0.0, %v1360
        %1362 = vdwg.mxu0
        %v1363 = vadd.f32 %v1317, %v1354
        %v1364 = vadd.f32 %v1319, %v1356
        %v1365 = vadd.f32 %v1322, %v1359
        %v1366 = vadd.f32 %v1324, %v1361
        %v1367 = vld [vmem:[%s1 + $0x5] ss:$0 sm:$0xff]
        %1369 = vset.pattern.permute.xlu0 0
        %1370 = vperm.xlu0 %1369, %v1367
        %v1371 = vpop.permute.xlu0 %1370
        %v1373 = vadd.f32 %v1363, %v1371
        %v1374 = vadd.f32 %v1364, %v1371
        %v1375 = vadd.f32 %v1365, %v1371
        %v1376 = vadd.f32 %v1366, %v1371
        %v1377 = vpack.c.bf16 %v1012, %v1010
        %v1378 = vpack.c.bf16 %v1374, %v1373
        %v1379 = vpack.c.bf16 %v1376, %v1375
        %v1381 = vsel %vm255, %v1377, 0
        %1383 = vmatpush.bf16.msra.mxu0 0
        %1384 = vmatpush.bf16.msra.mxu0 0
        %1385 = vmatpush.bf16.msra.mxu0 0
        %1386 = vmatpush.bf16.msra.mxu0 0
        %1387 = vmatpush.bf16.msra.mxu0 0
        %1388 = vmatpush.bf16.msra.mxu0 0
        %1389 = vmatpush.bf16.msra.mxu0 %v1379
        %1390 = vmatpush.bf16.msra.mxu0 %v1378
        %1391 = vmatmul.bf16.gmra.mxu0 %v1381
        %v1392 = vpop.f32.mrf.mxu0
        %v1393 = vadd.f32 %v251, %v1392
        %v1394 = vpop.f32.mrf.mxu0
        %v1395 = vadd.f32 %v252, %v1394
        %1396 = vdwg.mxu0
        %v1397 = vld [vmem:[%s1 + $0x6] ss:$0 sm:$0xff]
        %v1398 = vld [vmem:[%s1 + $0x7] ss:$0 sm:$0xff]
        %v1399 = vsel %vm255, %v1393, 0.0
        %1400 = vadd.xlane.f32.xlu0 %v1399
        %v1401 = vpop.xlane.xlu0 %1400
        %v1402 = vsel %vm255, %v1395, 0.0
        %1403 = vadd.xlane.f32.xlu0 %v1402
        %v1404 = vpop.xlane.xlu0 %1403
        %v1405 = vmul.f32 %v1401, %v268
        %v1406 = vmul.f32 %v1404, %v268
        %v1407 = vsub.f32 %v1393, %v1405
        %v1408 = vsub.f32 %v1395, %v1406
        %v1409 = vmul.f32 %v1407, %v1407
        %v1410 = vmul.f32 %v1408, %v1408
        %v1411 = vsel %vm255, %v1409, 0.0
        %1412 = vadd.xlane.f32.xlu0 %v1411
        %v1413 = vpop.xlane.xlu0 %1412
        %v1414 = vsel %vm255, %v1410, 0.0
        %1415 = vadd.xlane.f32.xlu0 %v1414
        %v1416 = vpop.xlane.xlu0 %1415
        %v1417 = vmul.f32 %v1413, %v268
        %v1418 = vmul.f32 %v1416, %v268
        %v1419 = vadd.f32 %v1417, 1e-05
        %v1420 = vadd.f32 %v1418, 1e-05
        %v1421 = vrsqrt.pop %v1419
        %v1422 = vmul.f32 %v1421, %v1419
        %v1423 = vmul.f32 %v1422, %v1421
        %v1424 = vmul.f32 0.5, %v1423
        %v1425 = vsub.f32 1.5, %v1424
        %v1426 = vmul.f32 %v1421, %v1425
        %vm1427 = vweird.f32 %v1419
        %vm1428 = vweird.f32 %v1421
        %vm1429 = vmor %vm1427, %vm1428
        %v1430 = vsel %vm1429, %v1421, %v1426
        %v1431 = vrsqrt.pop %v1420
        %v1432 = vmul.f32 %v1431, %v1420
        %v1433 = vmul.f32 %v1432, %v1431
        %v1434 = vmul.f32 0.5, %v1433
        %v1435 = vsub.f32 1.5, %v1434
        %v1436 = vmul.f32 %v1431, %v1435
        %vm1437 = vweird.f32 %v1420
        %vm1438 = vweird.f32 %v1431
        %vm1439 = vmor %vm1437, %vm1438
        %v1440 = vsel %vm1439, %v1431, %v1436
        %v1441 = vmul.f32 %v1407, %v1430
        %v1442 = vmul.f32 %v1408, %v1440
        %v1443 = vmul.f32 %v1441, %v1397
        %v1444 = vmul.f32 %v1442, %v1397
        %v1445 = vadd.f32 %v1443, %v1398
        %v1446 = vadd.f32 %v1444, %v1398
        %v1447 = vpack.c.bf16 %v1446, %v1445
        %v1448 = vld [vmem:[%s2 + $0xb8] sm:$0xf]
        %v1449 = vld [vmem:[%s2 + $0xbc] sm:$0xf]
        %v1450 = vld [vmem:[%s2 + $0xc0] sm:$0xf]
        %v1451 = vld [vmem:[%s2 + $0xc4] sm:$0xf]
        %v1452 = vld [vmem:[%s2 + $0xc8] sm:$0xf]
        %v1453 = vld [vmem:[%s2 + $0xcc] sm:$0xf]
        %v1454 = vld [vmem:[%s2 + $0xd0] sm:$0xf]
        %v1455 = vld [vmem:[%s2 + $0xd4] sm:$0xf]
        %v1456 = vld [vmem:[%s2 + $0xd8] sm:$0xf]
        %v1457 = vld [vmem:[%s2 + $0xdc] sm:$0xf]
        %v1458 = vld [vmem:[%s2 + $0xe0] sm:$0xf]
        %v1459 = vld [vmem:[%s2 + $0xe4] sm:$0xf]
        %v1460 = vld [vmem:[%s2 + $0xe8] sm:$0xf]
        %v1461 = vld [vmem:[%s2 + $0xec] sm:$0xf]
        %v1462 = vld [vmem:[%s2 + $0xf0] sm:$0xf]
        %v1463 = vld [vmem:[%s2 + $0xf4] sm:$0xf]
        %v1464 = vld [vmem:[%s2 + $0xf8] sm:$0xf]
        %v1465 = vld [vmem:[%s2 + $0xfc] sm:$0xf]
        %v1484 = vunpack.c.l.b16 %v1448
        %v1485 = vunpack.c.l.b16 %v1449
        %v1486 = vunpack.c.l.b16 %v1450
        %v1487 = vunpack.c.l.b16 %v1451
        %v1488 = vunpack.c.l.b16 %v1452
        %v1489 = vunpack.c.l.b16 %v1453
        %v1490 = vunpack.c.l.b16 %v1454
        %v1491 = vunpack.c.l.b16 %v1455
        %v1492 = vunpack.c.l.b16 %v1456
        %v1493 = vunpack.c.l.b16 %v1457
        %v1494 = vunpack.c.l.b16 %v1458
        %v1495 = vunpack.c.l.b16 %v1459
        %v1496 = vunpack.c.l.b16 %v1460
        %v1497 = vunpack.c.l.b16 %v1461
        %v1498 = vunpack.c.l.b16 %v1462
        %v1499 = vunpack.c.l.b16 %v1463
        %v1500 = vunpack.c.l.b16 %v1464
        %v1501 = vunpack.c.l.b16 %v1465
        %v1502 = vpack.c.b16 %v1485, %v1484
        %v1503 = vpack.c.b16 %v1487, %v1486
        %v1504 = vpack.c.b16 %v1489, %v1488
        %v1505 = vpack.c.b16 %v1491, %v1490
        %v1506 = vpack.c.b16 %v1493, %v1492
        %v1507 = vpack.c.b16 %v1495, %v1494
        %v1508 = vpack.c.b16 %v1497, %v1496
        %v1509 = vpack.c.b16 %v1499, %v1498
        %v1510 = vpack.c.b16 %v1501, %v1500
        %v1512 = vsel %vm468, %v1502, 0
        %v1515 = vsel %vm468, %v1503, 0
        %v1518 = vsel %vm468, %v1504, 0
        %v1521 = vsel %vm468, %v1505, 0
        %v1524 = vsel %vm468, %v1506, 0
        %v1527 = vsel %vm468, %v1507, 0
        %v1530 = vsel %vm468, %v1508, 0
        %v1533 = vsel %vm468, %v1509, 0
        %v1536 = vsel %vm468, %v1510, 0
        %1538 = vmatpush.bf16.msra.mxu0 0
        %1539 = vmatpush.bf16.msra.mxu0 0
        %1540 = vmatpush.bf16.msra.mxu0 0
        %1541 = vmatpush.bf16.msra.mxu0 0
        %1542 = vmatpush.bf16.msra.mxu0 0
        %1543 = vmatpush.bf16.msra.mxu0 0
        %1544 = vmatpush.bf16.msra.mxu0 0
        %1545 = vmatpush.bf16.msra.mxu0 %v1447
        %1546 = vmatmul.bf16.gmra.mxu0 %v1512
        %v1547 = vpop.f32.mrf.mxu0
        %v1548 = vadd.f32 0.0, %v1547
        %v1549 = vpop.f32.mrf.mxu0
        %v1550 = vadd.f32 0.0, %v1549
        %1551 = vmatmul.bf16.gmra.mxu0 %v1515
        %v1552 = vpop.f32.mrf.mxu0
        %v1553 = vadd.f32 0.0, %v1552
        %v1554 = vpop.f32.mrf.mxu0
        %v1555 = vadd.f32 0.0, %v1554
        %1556 = vmatmul.bf16.gmra.mxu0 %v1518
        %v1557 = vpop.f32.mrf.mxu0
        %v1558 = vadd.f32 0.0, %v1557
        %v1559 = vpop.f32.mrf.mxu0
        %v1560 = vadd.f32 0.0, %v1559
        %1561 = vmatmul.bf16.gmra.mxu0 %v1521
        %v1562 = vpop.f32.mrf.mxu0
        %v1563 = vadd.f32 0.0, %v1562
        %v1564 = vpop.f32.mrf.mxu0
        %v1565 = vadd.f32 0.0, %v1564
        %1566 = vmatmul.bf16.gmra.mxu0 %v1524
        %v1567 = vpop.f32.mrf.mxu0
        %v1568 = vadd.f32 0.0, %v1567
        %v1569 = vpop.f32.mrf.mxu0
        %v1570 = vadd.f32 0.0, %v1569
        %1571 = vmatmul.bf16.gmra.mxu0 %v1527
        %v1572 = vpop.f32.mrf.mxu0
        %v1573 = vadd.f32 0.0, %v1572
        %v1574 = vpop.f32.mrf.mxu0
        %v1575 = vadd.f32 0.0, %v1574
        %1576 = vmatmul.bf16.gmra.mxu0 %v1530
        %v1577 = vpop.f32.mrf.mxu0
        %v1578 = vadd.f32 0.0, %v1577
        %v1579 = vpop.f32.mrf.mxu0
        %v1580 = vadd.f32 0.0, %v1579
        %1581 = vmatmul.bf16.gmra.mxu0 %v1533
        %v1582 = vpop.f32.mrf.mxu0
        %v1583 = vadd.f32 0.0, %v1582
        %v1584 = vpop.f32.mrf.mxu0
        %v1585 = vadd.f32 0.0, %v1584
        %1586 = vmatmul.bf16.gmra.mxu0 %v1536
        %v1587 = vpop.f32.mrf.mxu0
        %v1588 = vadd.f32 0.0, %v1587
        %v1589 = vpop.f32.mrf.mxu0
        %v1590 = vadd.f32 0.0, %v1589
        %1591 = vdwg.mxu0
        %v1592 = vld [vmem:[%s5 + $0x178] sm:$0xf]
        %v1593 = vld [vmem:[%s5 + $0x17c] sm:$0xf]
        %v1594 = vld [vmem:[%s5 + $0x180] sm:$0xf]
        %v1595 = vld [vmem:[%s5 + $0x184] sm:$0xf]
        %v1596 = vld [vmem:[%s5 + $0x188] sm:$0xf]
        %v1597 = vld [vmem:[%s5 + $0x18c] sm:$0xf]
        %v1598 = vld [vmem:[%s5 + $0x190] sm:$0xf]
        %v1599 = vld [vmem:[%s5 + $0x194] sm:$0xf]
        %v1600 = vld [vmem:[%s5 + $0x198] sm:$0xf]
        %v1601 = vld [vmem:[%s5 + $0x19c] sm:$0xf]
        %v1602 = vld [vmem:[%s5 + $0x1a0] sm:$0xf]
        %v1603 = vld [vmem:[%s5 + $0x1a4] sm:$0xf]
        %v1604 = vld [vmem:[%s5 + $0x1a8] sm:$0xf]
        %v1605 = vld [vmem:[%s5 + $0x1ac] sm:$0xf]
        %v1606 = vld [vmem:[%s5 + $0x1b0] sm:$0xf]
        %v1607 = vld [vmem:[%s5 + $0x1b4] sm:$0xf]
        %v1608 = vld [vmem:[%s5 + $0x1b8] sm:$0xf]
        %v1609 = vld [vmem:[%s5 + $0x1bc] sm:$0xf]
        %v1610 = vunpack.c.l.bf16 %v1592
        %v1611 = vunpack.c.l.bf16 %v1593
        %v1612 = vunpack.c.l.bf16 %v1594
        %v1613 = vunpack.c.l.bf16 %v1595
        %v1614 = vunpack.c.l.bf16 %v1596
        %v1615 = vunpack.c.l.bf16 %v1597
        %v1616 = vunpack.c.l.bf16 %v1598
        %v1617 = vunpack.c.l.bf16 %v1599
        %v1618 = vunpack.c.l.bf16 %v1600
        %v1619 = vunpack.c.l.bf16 %v1601
        %v1620 = vunpack.c.l.bf16 %v1602
        %v1621 = vunpack.c.l.bf16 %v1603
        %v1622 = vunpack.c.l.bf16 %v1604
        %v1623 = vunpack.c.l.bf16 %v1605
        %v1624 = vunpack.c.l.bf16 %v1606
        %v1625 = vunpack.c.l.bf16 %v1607
        %v1626 = vunpack.c.l.bf16 %v1608
        %v1627 = vunpack.c.l.bf16 %v1609
        %v1628 = vmul.f32 %v1548, %v1610
        %v1629 = vmul.f32 %v1550, %v1611
        %v1630 = vmul.f32 %v1553, %v1612
        %v1631 = vmul.f32 %v1555, %v1613
        %v1632 = vmul.f32 %v1558, %v1614
        %v1633 = vmul.f32 %v1560, %v1615
        %v1634 = vmul.f32 %v1563, %v1616
        %v1635 = vmul.f32 %v1565, %v1617
        %v1636 = vmul.f32 %v1568, %v1618
        %v1637 = vmul.f32 %v1570, %v1619
        %v1638 = vmul.f32 %v1573, %v1620
        %v1639 = vmul.f32 %v1575, %v1621
        %v1640 = vmul.f32 %v1578, %v1622
        %v1641 = vmul.f32 %v1580, %v1623
        %v1642 = vmul.f32 %v1583, %v1624
        %v1643 = vmul.f32 %v1585, %v1625
        %v1644 = vmul.f32 %v1588, %v1626
        %v1645 = vmul.f32 %v1590, %v1627
        %v1646 = vld [vmem:[%s1 + $0x20] ss:$0 sm:$0xff]
        %v1647 = vadd.f32 %v1646, %v1628
        %v1648 = vadd.f32 %v1646, %v1629
        %v1649 = vadd.f32 %v1647, %v1630
        %v1650 = vadd.f32 %v1648, %v1631
        %v1651 = vadd.f32 %v1649, %v1632
        %v1652 = vadd.f32 %v1650, %v1633
        %v1653 = vadd.f32 %v1651, %v1634
        %v1654 = vadd.f32 %v1652, %v1635
        %v1655 = vadd.f32 %v1653, %v1636
        %v1656 = vadd.f32 %v1654, %v1637
        %v1657 = vadd.f32 %v1655, %v1638
        %v1658 = vadd.f32 %v1656, %v1639
        %v1659 = vadd.f32 %v1657, %v1640
        %v1660 = vadd.f32 %v1658, %v1641
        %v1661 = vadd.f32 %v1659, %v1642
        %v1662 = vadd.f32 %v1660, %v1643
        %v1663 = vadd.f32 %v1661, %v1644
        %v1664 = vadd.f32 %v1662, %v1645
        %v1665 = vpack.c.bf16 %v1664, %v1663
        %v1666 = vld [vmem:[%s3 + $0x200] sm:$0xff]
        %v1667 = vld [vmem:[%s3 + $0x210] sm:$0xff]
        %v1668 = vld [vmem:[%s3 + $0x220] sm:$0xff]
        %v1669 = vld [vmem:[%s3 + $0x230] sm:$0xff]
        %s1670 = scalar_lea.vmem %s1, 33
        %v1671 = vld [vmem:[%s1670] ss:$8 sm:$0x3]
        %v1673 = vperm.slane %v1671, 0
        %v1674 = vperm.slane %v1671, 1
        %v1681 = vunpack.c.l.b16 %v1666
        %v1682 = vunpack.c.h.b16 %v1666
        %v1683 = vunpack.c.l.b16 %v1667
        %v1684 = vunpack.c.h.b16 %v1667
        %v1685 = vunpack.c.l.b16 %v1668
        %v1686 = vunpack.c.h.b16 %v1668
        %v1687 = vunpack.c.l.b16 %v1669
        %v1688 = vunpack.c.h.b16 %v1669
        %v1689 = vpack.c.b16 %v1683, %v1681
        %v1690 = vpack.c.b16 %v1684, %v1682
        %v1691 = vpack.c.b16 %v1687, %v1685
        %v1692 = vpack.c.b16 %v1688, %v1686
        %v1698 = vsel %vm255, %v1665, 0
        %1700 = vmatpush.bf16.msra.mxu0 0
        %1701 = vmatpush.bf16.msra.mxu0 0
        %1702 = vmatpush.bf16.msra.mxu0 0
        %1703 = vmatpush.bf16.msra.mxu0 0
        %1704 = vmatpush.bf16.msra.mxu0 0
        %1705 = vmatpush.bf16.msra.mxu0 0
        %1706 = vmatpush.bf16.msra.mxu0 %v1691
        %1707 = vmatpush.bf16.msra.mxu0 %v1689
        %1708 = vmatmul.bf16.gmra.mxu0 %v1698
        %v1709 = vpop.f32.mrf.mxu0
        %v1710 = vadd.f32 %v1673, %v1709
        %v1711 = vpop.f32.mrf.mxu0
        %v1712 = vadd.f32 %v1673, %v1711
        %1713 = vdwg.mxu0
        %1714 = vmatpush.bf16.msra.mxu0 0
        %1715 = vmatpush.bf16.msra.mxu0 0
        %1716 = vmatpush.bf16.msra.mxu0 0
        %1717 = vmatpush.bf16.msra.mxu0 0
        %1718 = vmatpush.bf16.msra.mxu0 0
        %1719 = vmatpush.bf16.msra.mxu0 0
        %1720 = vmatpush.bf16.msra.mxu0 %v1692
        %1721 = vmatpush.bf16.msra.mxu0 %v1690
        %1722 = vmatmul.bf16.gmra.mxu0 %v1698
        %v1723 = vpop.f32.mrf.mxu0
        %v1724 = vadd.f32 %v1674, %v1723
        %v1725 = vpop.f32.mrf.mxu0
        %v1726 = vadd.f32 %v1674, %v1725
        %1727 = vdwg.mxu0
        %v1728 = vpack.c.bf16 %v1712, %v1710
        %v1729 = vpack.c.bf16 %v1726, %v1724
        %v1730 = vld [vmem:[%s3] sm:$0xff]
        %v1731 = vld [vmem:[%s3 + $0x8] sm:$0xff]
        %v1732 = vld [vmem:[%s3 + $0x10] sm:$0xff]
        %v1733 = vld [vmem:[%s3 + $0x18] sm:$0xff]
        %v1734 = vld [vmem:[%s3 + $0x20] sm:$0xff]
        %v1735 = vld [vmem:[%s3 + $0x28] sm:$0xff]
        %v1736 = vld [vmem:[%s3 + $0x30] sm:$0xff]
        %v1737 = vld [vmem:[%s3 + $0x38] sm:$0xff]
        %v1738 = vld [vmem:[%s3 + $0x40] sm:$0xff]
        %v1739 = vld [vmem:[%s3 + $0x48] sm:$0xff]
        %v1740 = vld [vmem:[%s3 + $0x50] sm:$0xff]
        %v1741 = vld [vmem:[%s3 + $0x58] sm:$0xff]
        %v1742 = vld [vmem:[%s3 + $0x60] sm:$0xff]
        %v1743 = vld [vmem:[%s3 + $0x68] sm:$0xff]
        %v1744 = vld [vmem:[%s3 + $0x70] sm:$0xff]
        %v1745 = vld [vmem:[%s3 + $0x78] sm:$0xff]
        %v1746 = vld [vmem:[%s3 + $0x80] sm:$0xff]
        %v1747 = vld [vmem:[%s3 + $0x88] sm:$0xff]
        %v1748 = vld [vmem:[%s3 + $0x90] sm:$0xff]
        %v1749 = vld [vmem:[%s3 + $0x98] sm:$0xff]
        %v1750 = vld [vmem:[%s3 + $0xa0] sm:$0xff]
        %v1751 = vld [vmem:[%s3 + $0xa8] sm:$0xff]
        %v1752 = vld [vmem:[%s3 + $0xb0] sm:$0xff]
        %v1753 = vld [vmem:[%s3 + $0xb8] sm:$0xff]
        %v1754 = vld [vmem:[%s3 + $0xc0] sm:$0xff]
        %v1755 = vld [vmem:[%s3 + $0xc8] sm:$0xff]
        %v1756 = vld [vmem:[%s3 + $0xd0] sm:$0xff]
        %v1757 = vld [vmem:[%s3 + $0xd8] sm:$0xff]
        %v1758 = vld [vmem:[%s3 + $0xe0] sm:$0xff]
        %v1759 = vld [vmem:[%s3 + $0xe8] sm:$0xff]
        %v1760 = vld [vmem:[%s3 + $0xf0] sm:$0xff]
        %v1761 = vld [vmem:[%s3 + $0xf8] sm:$0xff]
        %v1762 = vld [vmem:[%s3 + $0x100] sm:$0xff]
        %v1763 = vld [vmem:[%s3 + $0x108] sm:$0xff]
        %v1764 = vld [vmem:[%s3 + $0x110] sm:$0xff]
        %v1765 = vld [vmem:[%s3 + $0x118] sm:$0xff]
        %v1766 = vld [vmem:[%s3 + $0x120] sm:$0xff]
        %v1767 = vld [vmem:[%s3 + $0x128] sm:$0xff]
        %v1768 = vld [vmem:[%s3 + $0x130] sm:$0xff]
        %v1769 = vld [vmem:[%s3 + $0x138] sm:$0xff]
        %v1770 = vld [vmem:[%s3 + $0x140] sm:$0xff]
        %v1771 = vld [vmem:[%s3 + $0x148] sm:$0xff]
        %v1772 = vld [vmem:[%s3 + $0x150] sm:$0xff]
        %v1773 = vld [vmem:[%s3 + $0x158] sm:$0xff]
        %v1774 = vld [vmem:[%s3 + $0x160] sm:$0xff]
        %v1775 = vld [vmem:[%s3 + $0x168] sm:$0xff]
        %v1776 = vld [vmem:[%s3 + $0x170] sm:$0xff]
        %v1777 = vld [vmem:[%s3 + $0x178] sm:$0xff]
        %v1778 = vld [vmem:[%s3 + $0x180] sm:$0xff]
        %v1779 = vld [vmem:[%s3 + $0x188] sm:$0xff]
        %v1780 = vld [vmem:[%s3 + $0x190] sm:$0xff]
        %v1781 = vld [vmem:[%s3 + $0x198] sm:$0xff]
        %v1782 = vld [vmem:[%s3 + $0x1a0] sm:$0xff]
        %v1783 = vld [vmem:[%s3 + $0x1a8] sm:$0xff]
        %v1784 = vld [vmem:[%s3 + $0x1b0] sm:$0xff]
        %v1785 = vld [vmem:[%s3 + $0x1b8] sm:$0xff]
        %v1786 = vld [vmem:[%s3 + $0x1c0] sm:$0xff]
        %v1787 = vld [vmem:[%s3 + $0x1c8] sm:$0xff]
        %v1788 = vld [vmem:[%s3 + $0x1d0] sm:$0xff]
        %v1789 = vld [vmem:[%s3 + $0x1d8] sm:$0xff]
        %v1790 = vld [vmem:[%s3 + $0x1e0] sm:$0xff]
        %v1791 = vld [vmem:[%s3 + $0x1e8] sm:$0xff]
        %v1792 = vld [vmem:[%s3 + $0x1f0] sm:$0xff]
        %v1793 = vld [vmem:[%s3 + $0x1f8] sm:$0xff]
        %s1794 = scalar_lea.vmem %s1, 34
        %v1795 = vld [vmem:[%s1794] ss:$8 sm:$0xf]
        %v1797 = vperm.slane %v1795, 0
        %v1798 = vperm.slane %v1795, 1
        %v1799 = vperm.slane %v1795, 2
        %v1800 = vperm.slane %v1795, 3
        %v1869 = vunpack.c.l.b16 %v1730
        %v1870 = vunpack.c.h.b16 %v1730
        %v1871 = vunpack.c.l.b16 %v1731
        %v1872 = vunpack.c.h.b16 %v1731
        %v1873 = vunpack.c.l.b16 %v1732
        %v1874 = vunpack.c.h.b16 %v1732
        %v1875 = vunpack.c.l.b16 %v1733
        %v1876 = vunpack.c.h.b16 %v1733
        %v1877 = vunpack.c.l.b16 %v1734
        %v1878 = vunpack.c.h.b16 %v1734
        %v1879 = vunpack.c.l.b16 %v1735
        %v1880 = vunpack.c.h.b16 %v1735
        %v1881 = vunpack.c.l.b16 %v1736
        %v1882 = vunpack.c.h.b16 %v1736
        %v1883 = vunpack.c.l.b16 %v1737
        %v1884 = vunpack.c.h.b16 %v1737
        %v1885 = vunpack.c.l.b16 %v1738
        %v1886 = vunpack.c.h.b16 %v1738
        %v1887 = vunpack.c.l.b16 %v1739
        %v1888 = vunpack.c.h.b16 %v1739
        %v1889 = vunpack.c.l.b16 %v1740
        %v1890 = vunpack.c.h.b16 %v1740
        %v1891 = vunpack.c.l.b16 %v1741
        %v1892 = vunpack.c.h.b16 %v1741
        %v1893 = vunpack.c.l.b16 %v1742
        %v1894 = vunpack.c.h.b16 %v1742
        %v1895 = vunpack.c.l.b16 %v1743
        %v1896 = vunpack.c.h.b16 %v1743
        %v1897 = vunpack.c.l.b16 %v1744
        %v1898 = vunpack.c.h.b16 %v1744
        %v1899 = vunpack.c.l.b16 %v1745
        %v1900 = vunpack.c.h.b16 %v1745
        %v1901 = vunpack.c.l.b16 %v1746
        %v1902 = vunpack.c.h.b16 %v1746
        %v1903 = vunpack.c.l.b16 %v1747
        %v1904 = vunpack.c.h.b16 %v1747
        %v1905 = vunpack.c.l.b16 %v1748
        %v1906 = vunpack.c.h.b16 %v1748
        %v1907 = vunpack.c.l.b16 %v1749
        %v1908 = vunpack.c.h.b16 %v1749
        %v1909 = vunpack.c.l.b16 %v1750
        %v1910 = vunpack.c.h.b16 %v1750
        %v1911 = vunpack.c.l.b16 %v1751
        %v1912 = vunpack.c.h.b16 %v1751
        %v1913 = vunpack.c.l.b16 %v1752
        %v1914 = vunpack.c.h.b16 %v1752
        %v1915 = vunpack.c.l.b16 %v1753
        %v1916 = vunpack.c.h.b16 %v1753
        %v1917 = vunpack.c.l.b16 %v1754
        %v1918 = vunpack.c.h.b16 %v1754
        %v1919 = vunpack.c.l.b16 %v1755
        %v1920 = vunpack.c.h.b16 %v1755
        %v1921 = vunpack.c.l.b16 %v1756
        %v1922 = vunpack.c.h.b16 %v1756
        %v1923 = vunpack.c.l.b16 %v1757
        %v1924 = vunpack.c.h.b16 %v1757
        %v1925 = vunpack.c.l.b16 %v1758
        %v1926 = vunpack.c.h.b16 %v1758
        %v1927 = vunpack.c.l.b16 %v1759
        %v1928 = vunpack.c.h.b16 %v1759
        %v1929 = vunpack.c.l.b16 %v1760
        %v1930 = vunpack.c.h.b16 %v1760
        %v1931 = vunpack.c.l.b16 %v1761
        %v1932 = vunpack.c.h.b16 %v1761
        %v1933 = vunpack.c.l.b16 %v1762
        %v1934 = vunpack.c.h.b16 %v1762
        %v1935 = vunpack.c.l.b16 %v1763
        %v1936 = vunpack.c.h.b16 %v1763
        %v1937 = vunpack.c.l.b16 %v1764
        %v1938 = vunpack.c.h.b16 %v1764
        %v1939 = vunpack.c.l.b16 %v1765
        %v1940 = vunpack.c.h.b16 %v1765
        %v1941 = vunpack.c.l.b16 %v1766
        %v1942 = vunpack.c.h.b16 %v1766
        %v1943 = vunpack.c.l.b16 %v1767
        %v1944 = vunpack.c.h.b16 %v1767
        %v1945 = vunpack.c.l.b16 %v1768
        %v1946 = vunpack.c.h.b16 %v1768
        %v1947 = vunpack.c.l.b16 %v1769
        %v1948 = vunpack.c.h.b16 %v1769
        %v1949 = vunpack.c.l.b16 %v1770
        %v1950 = vunpack.c.h.b16 %v1770
        %v1951 = vunpack.c.l.b16 %v1771
        %v1952 = vunpack.c.h.b16 %v1771
        %v1953 = vunpack.c.l.b16 %v1772
        %v1954 = vunpack.c.h.b16 %v1772
        %v1955 = vunpack.c.l.b16 %v1773
        %v1956 = vunpack.c.h.b16 %v1773
        %v1957 = vunpack.c.l.b16 %v1774
        %v1958 = vunpack.c.h.b16 %v1774
        %v1959 = vunpack.c.l.b16 %v1775
        %v1960 = vunpack.c.h.b16 %v1775
        %v1961 = vunpack.c.l.b16 %v1776
        %v1962 = vunpack.c.h.b16 %v1776
        %v1963 = vunpack.c.l.b16 %v1777
        %v1964 = vunpack.c.h.b16 %v1777
        %v1965 = vunpack.c.l.b16 %v1778
        %v1966 = vunpack.c.h.b16 %v1778
        %v1967 = vunpack.c.l.b16 %v1779
        %v1968 = vunpack.c.h.b16 %v1779
        %v1969 = vunpack.c.l.b16 %v1780
        %v1970 = vunpack.c.h.b16 %v1780
        %v1971 = vunpack.c.l.b16 %v1781
        %v1972 = vunpack.c.h.b16 %v1781
        %v1973 = vunpack.c.l.b16 %v1782
        %v1974 = vunpack.c.h.b16 %v1782
        %v1975 = vunpack.c.l.b16 %v1783
        %v1976 = vunpack.c.h.b16 %v1783
        %v1977 = vunpack.c.l.b16 %v1784
        %v1978 = vunpack.c.h.b16 %v1784
        %v1979 = vunpack.c.l.b16 %v1785
        %v1980 = vunpack.c.h.b16 %v1785
        %v1981 = vunpack.c.l.b16 %v1786
        %v1982 = vunpack.c.h.b16 %v1786
        %v1983 = vunpack.c.l.b16 %v1787
        %v1984 = vunpack.c.h.b16 %v1787
        %v1985 = vunpack.c.l.b16 %v1788
        %v1986 = vunpack.c.h.b16 %v1788
        %v1987 = vunpack.c.l.b16 %v1789
        %v1988 = vunpack.c.h.b16 %v1789
        %v1989 = vunpack.c.l.b16 %v1790
        %v1990 = vunpack.c.h.b16 %v1790
        %v1991 = vunpack.c.l.b16 %v1791
        %v1992 = vunpack.c.h.b16 %v1791
        %v1993 = vunpack.c.l.b16 %v1792
        %v1994 = vunpack.c.h.b16 %v1792
        %v1995 = vunpack.c.l.b16 %v1793
        %v1996 = vunpack.c.h.b16 %v1793
        %v1997 = vpack.c.b16 %v1873, %v1869
        %v1998 = vpack.c.b16 %v1874, %v1870
        %v1999 = vpack.c.b16 %v1875, %v1871
        %v2000 = vpack.c.b16 %v1876, %v1872
        %v2001 = vpack.c.b16 %v1881, %v1877
        %v2002 = vpack.c.b16 %v1882, %v1878
        %v2003 = vpack.c.b16 %v1883, %v1879
        %v2004 = vpack.c.b16 %v1884, %v1880
        %v2005 = vpack.c.b16 %v1889, %v1885
        %v2006 = vpack.c.b16 %v1890, %v1886
        %v2007 = vpack.c.b16 %v1891, %v1887
        %v2008 = vpack.c.b16 %v1892, %v1888
        %v2009 = vpack.c.b16 %v1897, %v1893
        %v2010 = vpack.c.b16 %v1898, %v1894
        %v2011 = vpack.c.b16 %v1899, %v1895
        %v2012 = vpack.c.b16 %v1900, %v1896
        %v2013 = vpack.c.b16 %v1905, %v1901
        %v2014 = vpack.c.b16 %v1906, %v1902
        %v2015 = vpack.c.b16 %v1907, %v1903
        %v2016 = vpack.c.b16 %v1908, %v1904
        %v2017 = vpack.c.b16 %v1913, %v1909
        %v2018 = vpack.c.b16 %v1914, %v1910
        %v2019 = vpack.c.b16 %v1915, %v1911
        %v2020 = vpack.c.b16 %v1916, %v1912
        %v2021 = vpack.c.b16 %v1921, %v1917
        %v2022 = vpack.c.b16 %v1922, %v1918
        %v2023 = vpack.c.b16 %v1923, %v1919
        %v2024 = vpack.c.b16 %v1924, %v1920
        %v2025 = vpack.c.b16 %v1929, %v1925
        %v2026 = vpack.c.b16 %v1930, %v1926
        %v2027 = vpack.c.b16 %v1931, %v1927
        %v2028 = vpack.c.b16 %v1932, %v1928
        %v2029 = vpack.c.b16 %v1937, %v1933
        %v2030 = vpack.c.b16 %v1938, %v1934
        %v2031 = vpack.c.b16 %v1939, %v1935
        %v2032 = vpack.c.b16 %v1940, %v1936
        %v2033 = vpack.c.b16 %v1945, %v1941
        %v2034 = vpack.c.b16 %v1946, %v1942
        %v2035 = vpack.c.b16 %v1947, %v1943
        %v2036 = vpack.c.b16 %v1948, %v1944
        %v2037 = vpack.c.b16 %v1953, %v1949
        %v2038 = vpack.c.b16 %v1954, %v1950
        %v2039 = vpack.c.b16 %v1955, %v1951
        %v2040 = vpack.c.b16 %v1956, %v1952
        %v2041 = vpack.c.b16 %v1961, %v1957
        %v2042 = vpack.c.b16 %v1962, %v1958
        %v2043 = vpack.c.b16 %v1963, %v1959
        %v2044 = vpack.c.b16 %v1964, %v1960
        %v2045 = vpack.c.b16 %v1969, %v1965
        %v2046 = vpack.c.b16 %v1970, %v1966
        %v2047 = vpack.c.b16 %v1971, %v1967
        %v2048 = vpack.c.b16 %v1972, %v1968
        %v2049 = vpack.c.b16 %v1977, %v1973
        %v2050 = vpack.c.b16 %v1978, %v1974
        %v2051 = vpack.c.b16 %v1979, %v1975
        %v2052 = vpack.c.b16 %v1980, %v1976
        %v2053 = vpack.c.b16 %v1985, %v1981
        %v2054 = vpack.c.b16 %v1986, %v1982
        %v2055 = vpack.c.b16 %v1987, %v1983
        %v2056 = vpack.c.b16 %v1988, %v1984
        %v2057 = vpack.c.b16 %v1993, %v1989
        %v2058 = vpack.c.b16 %v1994, %v1990
        %v2059 = vpack.c.b16 %v1995, %v1991
        %v2060 = vpack.c.b16 %v1996, %v1992
        %2125 = vmatpush.bf16.msra.mxu0 %v2025
        %2126 = vmatpush.bf16.msra.mxu0 %v2021
        %2127 = vmatpush.bf16.msra.mxu0 %v2017
        %2128 = vmatpush.bf16.msra.mxu0 %v2013
        %2129 = vmatpush.bf16.msra.mxu0 %v2009
        %2130 = vmatpush.bf16.msra.mxu0 %v2005
        %2131 = vmatpush.bf16.msra.mxu0 %v2001
        %2132 = vmatpush.bf16.msra.mxu0 %v1997
        %2133 = vmatmul.bf16.gmra.mxu0 %v1728
        %v2134 = vpop.f32.mrf.mxu0
        %v2135 = vadd.f32 %v1797, %v2134
        %v2136 = vpop.f32.mrf.mxu0
        %v2137 = vadd.f32 %v1797, %v2136
        %2138 = vdwg.mxu0
        %2139 = vmatpush.bf16.msra.mxu0 %v2057
        %2140 = vmatpush.bf16.msra.mxu0 %v2053
        %2141 = vmatpush.bf16.msra.mxu0 %v2049
        %2142 = vmatpush.bf16.msra.mxu0 %v2045
        %2143 = vmatpush.bf16.msra.mxu0 %v2041
        %2144 = vmatpush.bf16.msra.mxu0 %v2037
        %2145 = vmatpush.bf16.msra.mxu0 %v2033
        %2146 = vmatpush.bf16.msra.mxu0 %v2029
        %2147 = vmatmul.bf16.gmra.mxu0 %v1729
        %v2148 = vpop.f32.mrf.mxu0
        %v2149 = vadd.f32 %v2135, %v2148
        %v2150 = vpop.f32.mrf.mxu0
        %v2151 = vadd.f32 %v2137, %v2150
        %2152 = vdwg.mxu0
        %2153 = vmatpush.bf16.msra.mxu0 %v2026
        %2154 = vmatpush.bf16.msra.mxu0 %v2022
        %2155 = vmatpush.bf16.msra.mxu0 %v2018
        %2156 = vmatpush.bf16.msra.mxu0 %v2014
        %2157 = vmatpush.bf16.msra.mxu0 %v2010
        %2158 = vmatpush.bf16.msra.mxu0 %v2006
        %2159 = vmatpush.bf16.msra.mxu0 %v2002
        %2160 = vmatpush.bf16.msra.mxu0 %v1998
        %2161 = vmatmul.bf16.gmra.mxu0 %v1728
        %v2162 = vpop.f32.mrf.mxu0
        %v2163 = vadd.f32 %v1798, %v2162
        %v2164 = vpop.f32.mrf.mxu0
        %v2165 = vadd.f32 %v1798, %v2164
        %2166 = vdwg.mxu0
        %2167 = vmatpush.bf16.msra.mxu0 %v2058
        %2168 = vmatpush.bf16.msra.mxu0 %v2054
        %2169 = vmatpush.bf16.msra.mxu0 %v2050
        %2170 = vmatpush.bf16.msra.mxu0 %v2046
        %2171 = vmatpush.bf16.msra.mxu0 %v2042
        %2172 = vmatpush.bf16.msra.mxu0 %v2038
        %2173 = vmatpush.bf16.msra.mxu0 %v2034
        %2174 = vmatpush.bf16.msra.mxu0 %v2030
        %2175 = vmatmul.bf16.gmra.mxu0 %v1729
        %v2176 = vpop.f32.mrf.mxu0
        %v2177 = vadd.f32 %v2163, %v2176
        %v2178 = vpop.f32.mrf.mxu0
        %v2179 = vadd.f32 %v2165, %v2178
        %2180 = vdwg.mxu0
        %2181 = vmatpush.bf16.msra.mxu0 %v2027
        %2182 = vmatpush.bf16.msra.mxu0 %v2023
        %2183 = vmatpush.bf16.msra.mxu0 %v2019
        %2184 = vmatpush.bf16.msra.mxu0 %v2015
        %2185 = vmatpush.bf16.msra.mxu0 %v2011
        %2186 = vmatpush.bf16.msra.mxu0 %v2007
        %2187 = vmatpush.bf16.msra.mxu0 %v2003
        %2188 = vmatpush.bf16.msra.mxu0 %v1999
        %2189 = vmatmul.bf16.gmra.mxu0 %v1728
        %v2190 = vpop.f32.mrf.mxu0
        %v2191 = vadd.f32 %v1799, %v2190
        %v2192 = vpop.f32.mrf.mxu0
        %v2193 = vadd.f32 %v1799, %v2192
        %2194 = vdwg.mxu0
        %2195 = vmatpush.bf16.msra.mxu0 %v2059
        %2196 = vmatpush.bf16.msra.mxu0 %v2055
        %2197 = vmatpush.bf16.msra.mxu0 %v2051
        %2198 = vmatpush.bf16.msra.mxu0 %v2047
        %2199 = vmatpush.bf16.msra.mxu0 %v2043
        %2200 = vmatpush.bf16.msra.mxu0 %v2039
        %2201 = vmatpush.bf16.msra.mxu0 %v2035
        %2202 = vmatpush.bf16.msra.mxu0 %v2031
        %2203 = vmatmul.bf16.gmra.mxu0 %v1729
        %v2204 = vpop.f32.mrf.mxu0
        %v2205 = vadd.f32 %v2191, %v2204
        %v2206 = vpop.f32.mrf.mxu0
        %v2207 = vadd.f32 %v2193, %v2206
        %2208 = vdwg.mxu0
        %2209 = vmatpush.bf16.msra.mxu0 %v2028
        %2210 = vmatpush.bf16.msra.mxu0 %v2024
        %2211 = vmatpush.bf16.msra.mxu0 %v2020
        %2212 = vmatpush.bf16.msra.mxu0 %v2016
        %2213 = vmatpush.bf16.msra.mxu0 %v2012
        %2214 = vmatpush.bf16.msra.mxu0 %v2008
        %2215 = vmatpush.bf16.msra.mxu0 %v2004
        %2216 = vmatpush.bf16.msra.mxu0 %v2000
        %2217 = vmatmul.bf16.gmra.mxu0 %v1728
        %v2218 = vpop.f32.mrf.mxu0
        %v2219 = vadd.f32 %v1800, %v2218
        %v2220 = vpop.f32.mrf.mxu0
        %v2221 = vadd.f32 %v1800, %v2220
        %2222 = vdwg.mxu0
        %2223 = vmatpush.bf16.msra.mxu0 %v2060
        %2224 = vmatpush.bf16.msra.mxu0 %v2056
        %2225 = vmatpush.bf16.msra.mxu0 %v2052
        %2226 = vmatpush.bf16.msra.mxu0 %v2048
        %2227 = vmatpush.bf16.msra.mxu0 %v2044
        %2228 = vmatpush.bf16.msra.mxu0 %v2040
        %2229 = vmatpush.bf16.msra.mxu0 %v2036
        %2230 = vmatpush.bf16.msra.mxu0 %v2032
        %2231 = vmatmul.bf16.gmra.mxu0 %v1729
        %v2232 = vpop.f32.mrf.mxu0
        %v2233 = vadd.f32 %v2219, %v2232
        %v2234 = vpop.f32.mrf.mxu0
        %v2235 = vadd.f32 %v2221, %v2234
        %2236 = vdwg.mxu0
        %v2237 = vmul.f32 %v2149, 0.5
        %v2238 = vmul.f32 %v2177, 0.5
        %v2239 = vmul.f32 %v2205, 0.5
        %v2240 = vmul.f32 %v2233, 0.5
        %v2241 = vmul.f32 %v2151, 0.5
        %v2242 = vmul.f32 %v2179, 0.5
        %v2243 = vmul.f32 %v2207, 0.5
        %v2244 = vmul.f32 %v2235, 0.5
        %v2245 = vmul.f32 %v2149, 0.70710677
        %v2246 = vmul.f32 %v2177, 0.70710677
        %v2247 = vmul.f32 %v2205, 0.70710677
        %v2248 = vmul.f32 %v2233, 0.70710677
        %v2249 = vmul.f32 %v2151, 0.70710677
        %v2250 = vmul.f32 %v2179, 0.70710677
        %v2251 = vmul.f32 %v2207, 0.70710677
        %v2252 = vmul.f32 %v2235, 0.70710677
        %vm2253 = vcmp.ge.f32.partialorder %v2245, 0.0
        %vm2254 = vcmp.ge.f32.partialorder %v2246, 0.0
        %vm2255 = vcmp.ge.f32.partialorder %v2247, 0.0
        %vm2256 = vcmp.ge.f32.partialorder %v2248, 0.0
        %vm2257 = vcmp.ge.f32.partialorder %v2249, 0.0
        %vm2258 = vcmp.ge.f32.partialorder %v2250, 0.0
        %vm2259 = vcmp.ge.f32.partialorder %v2251, 0.0
        %vm2260 = vcmp.ge.f32.partialorder %v2252, 0.0
        %v2261 = vsel %vm2253, 1.0, -1.0
        %v2262 = vsel %vm2254, 1.0, -1.0
        %v2263 = vsel %vm2255, 1.0, -1.0
        %v2264 = vsel %vm2256, 1.0, -1.0
        %v2265 = vsel %vm2257, 1.0, -1.0
        %v2266 = vsel %vm2258, 1.0, -1.0
        %v2267 = vsel %vm2259, 1.0, -1.0
        %v2268 = vsel %vm2260, 1.0, -1.0
        %v2269 = vand.u32 2147483647, %v2245
        %v2270 = vand.u32 2147483647, %v2246
        %v2271 = vand.u32 2147483647, %v2247
        %v2272 = vand.u32 2147483647, %v2248
        %v2273 = vand.u32 2147483647, %v2249
        %v2274 = vand.u32 2147483647, %v2250
        %v2275 = vand.u32 2147483647, %v2251
        %v2276 = vand.u32 2147483647, %v2252
        %v2277 = vmul.f32 %v2269, 0.3275911
        %v2278 = vmul.f32 %v2270, 0.3275911
        %v2279 = vmul.f32 %v2271, 0.3275911
        %v2280 = vmul.f32 %v2272, 0.3275911
        %v2281 = vmul.f32 %v2273, 0.3275911
        %v2282 = vmul.f32 %v2274, 0.3275911
        %v2283 = vmul.f32 %v2275, 0.3275911
        %v2284 = vmul.f32 %v2276, 0.3275911
        %v2285 = vadd.f32 %v2277, 1.0
        %v2286 = vadd.f32 %v2278, 1.0
        %v2287 = vadd.f32 %v2279, 1.0
        %v2288 = vadd.f32 %v2280, 1.0
        %v2289 = vadd.f32 %v2281, 1.0
        %v2290 = vadd.f32 %v2282, 1.0
        %v2291 = vadd.f32 %v2283, 1.0
        %v2292 = vadd.f32 %v2284, 1.0
        %v2293 = vrcp.pop %v2285
        %v2294 = vmul.f32 %v2285, %v2293
        %v2295 = vsub.f32 1.0, %v2294
        %v2296 = vmul.f32 %v2293, %v2295
        %v2297 = vadd.f32 %v2293, %v2296
        %vm2298 = vweird.f32 %v2285
        %vm2299 = vweird.f32 %v2293
        %vm2300 = vmor %vm2298, %vm2299
        %v2301 = vsel %vm2300, %v2293, %v2297
        %v2302 = vand.u32 2147483647, %v2285
        %vm2303 = vcmp.eq.f32.partialorder %v2302, 8.507059e+37
        %v2304 = vand.u32 %v2285, 2147483648
        %v2305 = vor.u32 1.1754944e-38, %v2304
        %v2306 = vsel %vm2303, %v2305, %v2301
        %v2307 = vmul.f32 1.0, %v2306
        %v2308 = vrcp.pop %v2286
        %v2309 = vmul.f32 %v2286, %v2308
        %v2310 = vsub.f32 1.0, %v2309
        %v2311 = vmul.f32 %v2308, %v2310
        %v2312 = vadd.f32 %v2308, %v2311
        %vm2313 = vweird.f32 %v2286
        %vm2314 = vweird.f32 %v2308
        %vm2315 = vmor %vm2313, %vm2314
        %v2316 = vsel %vm2315, %v2308, %v2312
        %v2317 = vand.u32 2147483647, %v2286
        %vm2318 = vcmp.eq.f32.partialorder %v2317, 8.507059e+37
        %v2319 = vand.u32 %v2286, 2147483648
        %v2320 = vor.u32 1.1754944e-38, %v2319
        %v2321 = vsel %vm2318, %v2320, %v2316
        %v2322 = vmul.f32 1.0, %v2321
        %v2323 = vrcp.pop %v2287
        %v2324 = vmul.f32 %v2287, %v2323
        %v2325 = vsub.f32 1.0, %v2324
        %v2326 = vmul.f32 %v2323, %v2325
        %v2327 = vadd.f32 %v2323, %v2326
        %vm2328 = vweird.f32 %v2287
        %vm2329 = vweird.f32 %v2323
        %vm2330 = vmor %vm2328, %vm2329
        %v2331 = vsel %vm2330, %v2323, %v2327
        %v2332 = vand.u32 2147483647, %v2287
        %vm2333 = vcmp.eq.f32.partialorder %v2332, 8.507059e+37
        %v2334 = vand.u32 %v2287, 2147483648
        %v2335 = vor.u32 1.1754944e-38, %v2334
        %v2336 = vsel %vm2333, %v2335, %v2331
        %v2337 = vmul.f32 1.0, %v2336
        %v2338 = vrcp.pop %v2288
        %v2339 = vmul.f32 %v2288, %v2338
        %v2340 = vsub.f32 1.0, %v2339
        %v2341 = vmul.f32 %v2338, %v2340
        %v2342 = vadd.f32 %v2338, %v2341
        %vm2343 = vweird.f32 %v2288
        %vm2344 = vweird.f32 %v2338
        %vm2345 = vmor %vm2343, %vm2344
        %v2346 = vsel %vm2345, %v2338, %v2342
        %v2347 = vand.u32 2147483647, %v2288
        %vm2348 = vcmp.eq.f32.partialorder %v2347, 8.507059e+37
        %v2349 = vand.u32 %v2288, 2147483648
        %v2350 = vor.u32 1.1754944e-38, %v2349
        %v2351 = vsel %vm2348, %v2350, %v2346
        %v2352 = vmul.f32 1.0, %v2351
        %v2353 = vrcp.pop %v2289
        %v2354 = vmul.f32 %v2289, %v2353
        %v2355 = vsub.f32 1.0, %v2354
        %v2356 = vmul.f32 %v2353, %v2355
        %v2357 = vadd.f32 %v2353, %v2356
        %vm2358 = vweird.f32 %v2289
        %vm2359 = vweird.f32 %v2353
        %vm2360 = vmor %vm2358, %vm2359
        %v2361 = vsel %vm2360, %v2353, %v2357
        %v2362 = vand.u32 2147483647, %v2289
        %vm2363 = vcmp.eq.f32.partialorder %v2362, 8.507059e+37
        %v2364 = vand.u32 %v2289, 2147483648
        %v2365 = vor.u32 1.1754944e-38, %v2364
        %v2366 = vsel %vm2363, %v2365, %v2361
        %v2367 = vmul.f32 1.0, %v2366
        %v2368 = vrcp.pop %v2290
        %v2369 = vmul.f32 %v2290, %v2368
        %v2370 = vsub.f32 1.0, %v2369
        %v2371 = vmul.f32 %v2368, %v2370
        %v2372 = vadd.f32 %v2368, %v2371
        %vm2373 = vweird.f32 %v2290
        %vm2374 = vweird.f32 %v2368
        %vm2375 = vmor %vm2373, %vm2374
        %v2376 = vsel %vm2375, %v2368, %v2372
        %v2377 = vand.u32 2147483647, %v2290
        %vm2378 = vcmp.eq.f32.partialorder %v2377, 8.507059e+37
        %v2379 = vand.u32 %v2290, 2147483648
        %v2380 = vor.u32 1.1754944e-38, %v2379
        %v2381 = vsel %vm2378, %v2380, %v2376
        %v2382 = vmul.f32 1.0, %v2381
        %v2383 = vrcp.pop %v2291
        %v2384 = vmul.f32 %v2291, %v2383
        %v2385 = vsub.f32 1.0, %v2384
        %v2386 = vmul.f32 %v2383, %v2385
        %v2387 = vadd.f32 %v2383, %v2386
        %vm2388 = vweird.f32 %v2291
        %vm2389 = vweird.f32 %v2383
        %vm2390 = vmor %vm2388, %vm2389
        %v2391 = vsel %vm2390, %v2383, %v2387
        %v2392 = vand.u32 2147483647, %v2291
        %vm2393 = vcmp.eq.f32.partialorder %v2392, 8.507059e+37
        %v2394 = vand.u32 %v2291, 2147483648
        %v2395 = vor.u32 1.1754944e-38, %v2394
        %v2396 = vsel %vm2393, %v2395, %v2391
        %v2397 = vmul.f32 1.0, %v2396
        %v2398 = vrcp.pop %v2292
        %v2399 = vmul.f32 %v2292, %v2398
        %v2400 = vsub.f32 1.0, %v2399
        %v2401 = vmul.f32 %v2398, %v2400
        %v2402 = vadd.f32 %v2398, %v2401
        %vm2403 = vweird.f32 %v2292
        %vm2404 = vweird.f32 %v2398
        %vm2405 = vmor %vm2403, %vm2404
        %v2406 = vsel %vm2405, %v2398, %v2402
        %v2407 = vand.u32 2147483647, %v2292
        %vm2408 = vcmp.eq.f32.partialorder %v2407, 8.507059e+37
        %v2409 = vand.u32 %v2292, 2147483648
        %v2410 = vor.u32 1.1754944e-38, %v2409
        %v2411 = vsel %vm2408, %v2410, %v2406
        %v2412 = vmul.f32 1.0, %v2411
        %v2413 = vmul.f32 %v2307, 1.0614054
        %v2414 = vmul.f32 %v2322, 1.0614054
        %v2415 = vmul.f32 %v2337, 1.0614054
        %v2416 = vmul.f32 %v2352, 1.0614054
        %v2417 = vmul.f32 %v2367, 1.0614054
        %v2418 = vmul.f32 %v2382, 1.0614054
        %v2419 = vmul.f32 %v2397, 1.0614054
        %v2420 = vmul.f32 %v2412, 1.0614054
        %v2421 = vadd.f32 %v2413, -1.4531521
        %v2422 = vadd.f32 %v2414, -1.4531521
        %v2423 = vadd.f32 %v2415, -1.4531521
        %v2424 = vadd.f32 %v2416, -1.4531521
        %v2425 = vadd.f32 %v2417, -1.4531521
        %v2426 = vadd.f32 %v2418, -1.4531521
        %v2427 = vadd.f32 %v2419, -1.4531521
        %v2428 = vadd.f32 %v2420, -1.4531521
        %v2429 = vmul.f32 %v2421, %v2307
        %v2430 = vmul.f32 %v2422, %v2322
        %v2431 = vmul.f32 %v2423, %v2337
        %v2432 = vmul.f32 %v2424, %v2352
        %v2433 = vmul.f32 %v2425, %v2367
        %v2434 = vmul.f32 %v2426, %v2382
        %v2435 = vmul.f32 %v2427, %v2397
        %v2436 = vmul.f32 %v2428, %v2412
        %v2437 = vadd.f32 %v2429, 1.4214138
        %v2438 = vadd.f32 %v2430, 1.4214138
        %v2439 = vadd.f32 %v2431, 1.4214138
        %v2440 = vadd.f32 %v2432, 1.4214138
        %v2441 = vadd.f32 %v2433, 1.4214138
        %v2442 = vadd.f32 %v2434, 1.4214138
        %v2443 = vadd.f32 %v2435, 1.4214138
        %v2444 = vadd.f32 %v2436, 1.4214138
        %v2445 = vmul.f32 %v2437, %v2307
        %v2446 = vmul.f32 %v2438, %v2322
        %v2447 = vmul.f32 %v2439, %v2337
        %v2448 = vmul.f32 %v2440, %v2352
        %v2449 = vmul.f32 %v2441, %v2367
        %v2450 = vmul.f32 %v2442, %v2382
        %v2451 = vmul.f32 %v2443, %v2397
        %v2452 = vmul.f32 %v2444, %v2412
        %v2453 = vadd.f32 %v2445, -0.28449672
        %v2454 = vadd.f32 %v2446, -0.28449672
        %v2455 = vadd.f32 %v2447, -0.28449672
        %v2456 = vadd.f32 %v2448, -0.28449672
        %v2457 = vadd.f32 %v2449, -0.28449672
        %v2458 = vadd.f32 %v2450, -0.28449672
        %v2459 = vadd.f32 %v2451, -0.28449672
        %v2460 = vadd.f32 %v2452, -0.28449672
        %v2461 = vmul.f32 %v2453, %v2307
        %v2462 = vmul.f32 %v2454, %v2322
        %v2463 = vmul.f32 %v2455, %v2337
        %v2464 = vmul.f32 %v2456, %v2352
        %v2465 = vmul.f32 %v2457, %v2367
        %v2466 = vmul.f32 %v2458, %v2382
        %v2467 = vmul.f32 %v2459, %v2397
        %v2468 = vmul.f32 %v2460, %v2412
        %v2469 = vadd.f32 %v2461, 0.2548296
        %v2470 = vadd.f32 %v2462, 0.2548296
        %v2471 = vadd.f32 %v2463, 0.2548296
        %v2472 = vadd.f32 %v2464, 0.2548296
        %v2473 = vadd.f32 %v2465, 0.2548296
        %v2474 = vadd.f32 %v2466, 0.2548296
        %v2475 = vadd.f32 %v2467, 0.2548296
        %v2476 = vadd.f32 %v2468, 0.2548296
        %v2477 = vmul.f32 %v2469, %v2307
        %v2478 = vmul.f32 %v2470, %v2322
        %v2479 = vmul.f32 %v2471, %v2337
        %v2480 = vmul.f32 %v2472, %v2352
        %v2481 = vmul.f32 %v2473, %v2367
        %v2482 = vmul.f32 %v2474, %v2382
        %v2483 = vmul.f32 %v2475, %v2397
        %v2484 = vmul.f32 %v2476, %v2412
        %v2485 = vsub.f32 0.0, %v2269
        %v2486 = vsub.f32 0.0, %v2270
        %v2487 = vsub.f32 0.0, %v2271
        %v2488 = vsub.f32 0.0, %v2272
        %v2489 = vsub.f32 0.0, %v2273
        %v2490 = vsub.f32 0.0, %v2274
        %v2491 = vsub.f32 0.0, %v2275
        %v2492 = vsub.f32 0.0, %v2276
        %v2493 = vmul.f32 %v2485, %v2269
        %v2494 = vmul.f32 %v2486, %v2270
        %v2495 = vmul.f32 %v2487, %v2271
        %v2496 = vmul.f32 %v2488, %v2272
        %v2497 = vmul.f32 %v2489, %v2273
        %v2498 = vmul.f32 %v2490, %v2274
        %v2499 = vmul.f32 %v2491, %v2275
        %v2500 = vmul.f32 %v2492, %v2276
        %v2501 = vmul.f32 %v2493, 1.442695
        %v2502 = vpow.pop %v2501
        %v2503 = vmul.f32 %v2494, 1.442695
        %v2504 = vpow.pop %v2503
        %v2505 = vmul.f32 %v2495, 1.442695
        %v2506 = vpow.pop %v2505
        %v2507 = vmul.f32 %v2496, 1.442695
        %v2508 = vpow.pop %v2507
        %v2509 = vmul.f32 %v2497, 1.442695
        %v2510 = vpow.pop %v2509
        %v2511 = vmul.f32 %v2498, 1.442695
        %v2512 = vpow.pop %v2511
        %v2513 = vmul.f32 %v2499, 1.442695
        %v2514 = vpow.pop %v2513
        %v2515 = vmul.f32 %v2500, 1.442695
        %v2516 = vpow.pop %v2515
        %v2517 = vmul.f32 %v2477, %v2502
        %v2518 = vmul.f32 %v2478, %v2504
        %v2519 = vmul.f32 %v2479, %v2506
        %v2520 = vmul.f32 %v2480, %v2508
        %v2521 = vmul.f32 %v2481, %v2510
        %v2522 = vmul.f32 %v2482, %v2512
        %v2523 = vmul.f32 %v2483, %v2514
        %v2524 = vmul.f32 %v2484, %v2516
        %v2525 = vsub.f32 1.0, %v2517
        %v2526 = vsub.f32 1.0, %v2518
        %v2527 = vsub.f32 1.0, %v2519
        %v2528 = vsub.f32 1.0, %v2520
        %v2529 = vsub.f32 1.0, %v2521
        %v2530 = vsub.f32 1.0, %v2522
        %v2531 = vsub.f32 1.0, %v2523
        %v2532 = vsub.f32 1.0, %v2524
        %v2533 = vmul.f32 %v2261, %v2525
        %v2534 = vmul.f32 %v2262, %v2526
        %v2535 = vmul.f32 %v2263, %v2527
        %v2536 = vmul.f32 %v2264, %v2528
        %v2537 = vmul.f32 %v2265, %v2529
        %v2538 = vmul.f32 %v2266, %v2530
        %v2539 = vmul.f32 %v2267, %v2531
        %v2540 = vmul.f32 %v2268, %v2532
        %v2541 = vadd.f32 %v2533, 1.0
        %v2542 = vadd.f32 %v2534, 1.0
        %v2543 = vadd.f32 %v2535, 1.0
        %v2544 = vadd.f32 %v2536, 1.0
        %v2545 = vadd.f32 %v2537, 1.0
        %v2546 = vadd.f32 %v2538, 1.0
        %v2547 = vadd.f32 %v2539, 1.0
        %v2548 = vadd.f32 %v2540, 1.0
        %v2549 = vmul.f32 %v2237, %v2541
        %v2550 = vmul.f32 %v2238, %v2542
        %v2551 = vmul.f32 %v2239, %v2543
        %v2552 = vmul.f32 %v2240, %v2544
        %v2553 = vmul.f32 %v2241, %v2545
        %v2554 = vmul.f32 %v2242, %v2546
        %v2555 = vmul.f32 %v2243, %v2547
        %v2556 = vmul.f32 %v2244, %v2548
        %v2557 = vpack.c.bf16 %v2553, %v2549
        %v2558 = vpack.c.bf16 %v2554, %v2550
        %v2559 = vpack.c.bf16 %v2555, %v2551
        %v2560 = vpack.c.bf16 %v2556, %v2552
        %v2561 = vld [vmem:[%s5 + $0x78] sm:$0xf]
        %v2562 = vld [vmem:[%s5 + $0x7c] sm:$0xf]
        %v2563 = vld [vmem:[%s5 + $0x80] sm:$0xf]
        %v2564 = vld [vmem:[%s5 + $0x84] sm:$0xf]
        %v2565 = vld [vmem:[%s5 + $0x88] sm:$0xf]
        %v2566 = vld [vmem:[%s5 + $0x8c] sm:$0xf]
        %v2567 = vld [vmem:[%s5 + $0x90] sm:$0xf]
        %v2568 = vld [vmem:[%s5 + $0x94] sm:$0xf]
        %v2569 = vld [vmem:[%s5 + $0x98] sm:$0xf]
        %v2570 = vld [vmem:[%s5 + $0x9c] sm:$0xf]
        %v2571 = vld [vmem:[%s5 + $0xa0] sm:$0xf]
        %v2572 = vld [vmem:[%s5 + $0xa4] sm:$0xf]
        %v2573 = vld [vmem:[%s5 + $0xa8] sm:$0xf]
        %v2574 = vld [vmem:[%s5 + $0xac] sm:$0xf]
        %v2575 = vld [vmem:[%s5 + $0xb0] sm:$0xf]
        %v2576 = vld [vmem:[%s5 + $0xb4] sm:$0xf]
        %v2577 = vld [vmem:[%s5 + $0xb8] sm:$0xf]
        %v2578 = vld [vmem:[%s5 + $0xbc] sm:$0xf]
        %v2579 = vld [vmem:[%s5 + $0xc0] sm:$0xf]
        %v2580 = vld [vmem:[%s5 + $0xc4] sm:$0xf]
        %v2581 = vld [vmem:[%s5 + $0xc8] sm:$0xf]
        %v2582 = vld [vmem:[%s5 + $0xcc] sm:$0xf]
        %v2583 = vld [vmem:[%s5 + $0xd0] sm:$0xf]
        %v2584 = vld [vmem:[%s5 + $0xd4] sm:$0xf]
        %v2585 = vld [vmem:[%s5 + $0xd8] sm:$0xf]
        %v2586 = vld [vmem:[%s5 + $0xdc] sm:$0xf]
        %v2587 = vld [vmem:[%s5 + $0xe0] sm:$0xf]
        %v2588 = vld [vmem:[%s5 + $0xe4] sm:$0xf]
        %v2589 = vld [vmem:[%s5 + $0xe8] sm:$0xf]
        %v2590 = vld [vmem:[%s5 + $0xec] sm:$0xf]
        %v2591 = vld [vmem:[%s5 + $0xf0] sm:$0xf]
        %v2592 = vld [vmem:[%s5 + $0xf4] sm:$0xf]
        %v2593 = vld [vmem:[%s5 + $0xf8] sm:$0xf]
        %v2594 = vld [vmem:[%s5 + $0xfc] sm:$0xf]
        %v2595 = vld [vmem:[%s5 + $0x100] sm:$0xf]
        %v2596 = vld [vmem:[%s5 + $0x104] sm:$0xf]
        %v2597 = vld [vmem:[%s5 + $0x108] sm:$0xf]
        %v2598 = vld [vmem:[%s5 + $0x10c] sm:$0xf]
        %v2599 = vld [vmem:[%s5 + $0x110] sm:$0xf]
        %v2600 = vld [vmem:[%s5 + $0x114] sm:$0xf]
        %v2601 = vld [vmem:[%s5 + $0x118] sm:$0xf]
        %v2602 = vld [vmem:[%s5 + $0x11c] sm:$0xf]
        %v2603 = vld [vmem:[%s5 + $0x120] sm:$0xf]
        %v2604 = vld [vmem:[%s5 + $0x124] sm:$0xf]
        %v2605 = vld [vmem:[%s5 + $0x128] sm:$0xf]
        %v2606 = vld [vmem:[%s5 + $0x12c] sm:$0xf]
        %v2607 = vld [vmem:[%s5 + $0x130] sm:$0xf]
        %v2608 = vld [vmem:[%s5 + $0x134] sm:$0xf]
        %v2609 = vld [vmem:[%s5 + $0x138] sm:$0xf]
        %v2610 = vld [vmem:[%s5 + $0x13c] sm:$0xf]
        %v2611 = vld [vmem:[%s5 + $0x140] sm:$0xf]
        %v2612 = vld [vmem:[%s5 + $0x144] sm:$0xf]
        %v2613 = vld [vmem:[%s5 + $0x148] sm:$0xf]
        %v2614 = vld [vmem:[%s5 + $0x14c] sm:$0xf]
        %v2615 = vld [vmem:[%s5 + $0x150] sm:$0xf]
        %v2616 = vld [vmem:[%s5 + $0x154] sm:$0xf]
        %v2617 = vld [vmem:[%s5 + $0x158] sm:$0xf]
        %v2618 = vld [vmem:[%s5 + $0x15c] sm:$0xf]
        %v2619 = vld [vmem:[%s5 + $0x160] sm:$0xf]
        %v2620 = vld [vmem:[%s5 + $0x164] sm:$0xf]
        %v2621 = vld [vmem:[%s5 + $0x168] sm:$0xf]
        %v2622 = vld [vmem:[%s5 + $0x16c] sm:$0xf]
        %v2623 = vld [vmem:[%s5 + $0x170] sm:$0xf]
        %v2624 = vld [vmem:[%s5 + $0x174] sm:$0xf]
        %v2625 = vld [vmem:[%s1 + $0x23] ss:$0 sm:$0xff]
        %v2690 = vunpack.c.l.b16 %v2561
        %v2691 = vunpack.c.l.b16 %v2562
        %v2692 = vunpack.c.l.b16 %v2563
        %v2693 = vunpack.c.l.b16 %v2564
        %v2694 = vunpack.c.l.b16 %v2565
        %v2695 = vunpack.c.l.b16 %v2566
        %v2696 = vunpack.c.l.b16 %v2567
        %v2697 = vunpack.c.l.b16 %v2568
        %v2698 = vunpack.c.l.b16 %v2569
        %v2699 = vunpack.c.l.b16 %v2570
        %v2700 = vunpack.c.l.b16 %v2571
        %v2701 = vunpack.c.l.b16 %v2572
        %v2702 = vunpack.c.l.b16 %v2573
        %v2703 = vunpack.c.l.b16 %v2574
        %v2704 = vunpack.c.l.b16 %v2575
        %v2705 = vunpack.c.l.b16 %v2576
        %v2706 = vunpack.c.l.b16 %v2577
        %v2707 = vunpack.c.l.b16 %v2578
        %v2708 = vunpack.c.l.b16 %v2579
        %v2709 = vunpack.c.l.b16 %v2580
        %v2710 = vunpack.c.l.b16 %v2581
        %v2711 = vunpack.c.l.b16 %v2582
        %v2712 = vunpack.c.l.b16 %v2583
        %v2713 = vunpack.c.l.b16 %v2584
        %v2714 = vunpack.c.l.b16 %v2585
        %v2715 = vunpack.c.l.b16 %v2586
        %v2716 = vunpack.c.l.b16 %v2587
        %v2717 = vunpack.c.l.b16 %v2588
        %v2718 = vunpack.c.l.b16 %v2589
        %v2719 = vunpack.c.l.b16 %v2590
        %v2720 = vunpack.c.l.b16 %v2591
        %v2721 = vunpack.c.l.b16 %v2592
        %v2722 = vunpack.c.l.b16 %v2593
        %v2723 = vunpack.c.l.b16 %v2594
        %v2724 = vunpack.c.l.b16 %v2595
        %v2725 = vunpack.c.l.b16 %v2596
        %v2726 = vunpack.c.l.b16 %v2597
        %v2727 = vunpack.c.l.b16 %v2598
        %v2728 = vunpack.c.l.b16 %v2599
        %v2729 = vunpack.c.l.b16 %v2600
        %v2730 = vunpack.c.l.b16 %v2601
        %v2731 = vunpack.c.l.b16 %v2602
        %v2732 = vunpack.c.l.b16 %v2603
        %v2733 = vunpack.c.l.b16 %v2604
        %v2734 = vunpack.c.l.b16 %v2605
        %v2735 = vunpack.c.l.b16 %v2606
        %v2736 = vunpack.c.l.b16 %v2607
        %v2737 = vunpack.c.l.b16 %v2608
        %v2738 = vunpack.c.l.b16 %v2609
        %v2739 = vunpack.c.l.b16 %v2610
        %v2740 = vunpack.c.l.b16 %v2611
        %v2741 = vunpack.c.l.b16 %v2612
        %v2742 = vunpack.c.l.b16 %v2613
        %v2743 = vunpack.c.l.b16 %v2614
        %v2744 = vunpack.c.l.b16 %v2615
        %v2745 = vunpack.c.l.b16 %v2616
        %v2746 = vunpack.c.l.b16 %v2617
        %v2747 = vunpack.c.l.b16 %v2618
        %v2748 = vunpack.c.l.b16 %v2619
        %v2749 = vunpack.c.l.b16 %v2620
        %v2750 = vunpack.c.l.b16 %v2621
        %v2751 = vunpack.c.l.b16 %v2622
        %v2752 = vunpack.c.l.b16 %v2623
        %v2753 = vunpack.c.l.b16 %v2624
        %v2754 = vpack.c.b16 %v2691, %v2690
        %v2755 = vpack.c.b16 %v2693, %v2692
        %v2756 = vpack.c.b16 %v2695, %v2694
        %v2757 = vpack.c.b16 %v2697, %v2696
        %v2758 = vpack.c.b16 %v2699, %v2698
        %v2759 = vpack.c.b16 %v2701, %v2700
        %v2760 = vpack.c.b16 %v2703, %v2702
        %v2761 = vpack.c.b16 %v2705, %v2704
        %v2762 = vpack.c.b16 %v2707, %v2706
        %v2763 = vpack.c.b16 %v2709, %v2708
        %v2764 = vpack.c.b16 %v2711, %v2710
        %v2765 = vpack.c.b16 %v2713, %v2712
        %v2766 = vpack.c.b16 %v2715, %v2714
        %v2767 = vpack.c.b16 %v2717, %v2716
        %v2768 = vpack.c.b16 %v2719, %v2718
        %v2769 = vpack.c.b16 %v2721, %v2720
        %v2770 = vpack.c.b16 %v2723, %v2722
        %v2771 = vpack.c.b16 %v2725, %v2724
        %v2772 = vpack.c.b16 %v2727, %v2726
        %v2773 = vpack.c.b16 %v2729, %v2728
        %v2774 = vpack.c.b16 %v2731, %v2730
        %v2775 = vpack.c.b16 %v2733, %v2732
        %v2776 = vpack.c.b16 %v2735, %v2734
        %v2777 = vpack.c.b16 %v2737, %v2736
        %v2778 = vpack.c.b16 %v2739, %v2738
        %v2779 = vpack.c.b16 %v2741, %v2740
        %v2780 = vpack.c.b16 %v2743, %v2742
        %v2781 = vpack.c.b16 %v2745, %v2744
        %v2782 = vpack.c.b16 %v2747, %v2746
        %v2783 = vpack.c.b16 %v2749, %v2748
        %v2784 = vpack.c.b16 %v2751, %v2750
        %v2785 = vpack.c.b16 %v2753, %v2752
        %2818 = vmatpush.bf16.msra.mxu0 %v2761
        %2819 = vmatpush.bf16.msra.mxu0 %v2760
        %2820 = vmatpush.bf16.msra.mxu0 %v2759
        %2821 = vmatpush.bf16.msra.mxu0 %v2758
        %2822 = vmatpush.bf16.msra.mxu0 %v2757
        %2823 = vmatpush.bf16.msra.mxu0 %v2756
        %2824 = vmatpush.bf16.msra.mxu0 %v2755
        %2825 = vmatpush.bf16.msra.mxu0 %v2754
        %2826 = vmatmul.bf16.gmra.mxu0 %v2557
        %v2827 = vpop.f32.mrf.mxu0
        %v2828 = vadd.f32 %v2625, %v2827
        %v2829 = vpop.f32.mrf.mxu0
        %v2830 = vadd.f32 %v2625, %v2829
        %2831 = vdwg.mxu0
        %2832 = vmatpush.bf16.msra.mxu0 %v2769
        %2833 = vmatpush.bf16.msra.mxu0 %v2768
        %2834 = vmatpush.bf16.msra.mxu0 %v2767
        %2835 = vmatpush.bf16.msra.mxu0 %v2766
        %2836 = vmatpush.bf16.msra.mxu0 %v2765
        %2837 = vmatpush.bf16.msra.mxu0 %v2764
        %2838 = vmatpush.bf16.msra.mxu0 %v2763
        %2839 = vmatpush.bf16.msra.mxu0 %v2762
        %2840 = vmatmul.bf16.gmra.mxu0 %v2558
        %v2841 = vpop.f32.mrf.mxu0
        %v2842 = vadd.f32 %v2828, %v2841
        %v2843 = vpop.f32.mrf.mxu0
        %v2844 = vadd.f32 %v2830, %v2843
        %2845 = vdwg.mxu0
        %2846 = vmatpush.bf16.msra.mxu0 %v2777
        %2847 = vmatpush.bf16.msra.mxu0 %v2776
        %2848 = vmatpush.bf16.msra.mxu0 %v2775
        %2849 = vmatpush.bf16.msra.mxu0 %v2774
        %2850 = vmatpush.bf16.msra.mxu0 %v2773
        %2851 = vmatpush.bf16.msra.mxu0 %v2772
        %2852 = vmatpush.bf16.msra.mxu0 %v2771
        %2853 = vmatpush.bf16.msra.mxu0 %v2770
        %2854 = vmatmul.bf16.gmra.mxu0 %v2559
        %v2855 = vpop.f32.mrf.mxu0
        %v2856 = vadd.f32 %v2842, %v2855
        %v2857 = vpop.f32.mrf.mxu0
        %v2858 = vadd.f32 %v2844, %v2857
        %2859 = vdwg.mxu0
        %2860 = vmatpush.bf16.msra.mxu0 %v2785
        %2861 = vmatpush.bf16.msra.mxu0 %v2784
        %2862 = vmatpush.bf16.msra.mxu0 %v2783
        %2863 = vmatpush.bf16.msra.mxu0 %v2782
        %2864 = vmatpush.bf16.msra.mxu0 %v2781
        %2865 = vmatpush.bf16.msra.mxu0 %v2780
        %2866 = vmatpush.bf16.msra.mxu0 %v2779
        %2867 = vmatpush.bf16.msra.mxu0 %v2778
        %2868 = vmatmul.bf16.gmra.mxu0 %v2560
        %v2869 = vpop.f32.mrf.mxu0
        %v2870 = vadd.f32 %v2856, %v2869
        %v2871 = vpop.f32.mrf.mxu0
        %v2872 = vadd.f32 %v2858, %v2871
        %2873 = vdwg.mxu0
        %v2874 = vmul.f32 %v2870, 0.5
        %v2875 = vmul.f32 %v2872, 0.5
        %v2876 = vmul.f32 %v2870, 0.70710677
        %v2877 = vmul.f32 %v2872, 0.70710677
        %vm2878 = vcmp.ge.f32.partialorder %v2876, 0.0
        %vm2879 = vcmp.ge.f32.partialorder %v2877, 0.0
        %v2880 = vsel %vm2878, 1.0, -1.0
        %v2881 = vsel %vm2879, 1.0, -1.0
        %v2882 = vand.u32 2147483647, %v2876
        %v2883 = vand.u32 2147483647, %v2877
        %v2884 = vmul.f32 %v2882, 0.3275911
        %v2885 = vmul.f32 %v2883, 0.3275911
        %v2886 = vadd.f32 %v2884, 1.0
        %v2887 = vadd.f32 %v2885, 1.0
        %v2888 = vrcp.pop %v2886
        %v2889 = vmul.f32 %v2886, %v2888
        %v2890 = vsub.f32 1.0, %v2889
        %v2891 = vmul.f32 %v2888, %v2890
        %v2892 = vadd.f32 %v2888, %v2891
        %vm2893 = vweird.f32 %v2886
        %vm2894 = vweird.f32 %v2888
        %vm2895 = vmor %vm2893, %vm2894
        %v2896 = vsel %vm2895, %v2888, %v2892
        %v2897 = vand.u32 2147483647, %v2886
        %vm2898 = vcmp.eq.f32.partialorder %v2897, 8.507059e+37
        %v2899 = vand.u32 %v2886, 2147483648
        %v2900 = vor.u32 1.1754944e-38, %v2899
        %v2901 = vsel %vm2898, %v2900, %v2896
        %v2902 = vmul.f32 1.0, %v2901
        %v2903 = vrcp.pop %v2887
        %v2904 = vmul.f32 %v2887, %v2903
        %v2905 = vsub.f32 1.0, %v2904
        %v2906 = vmul.f32 %v2903, %v2905
        %v2907 = vadd.f32 %v2903, %v2906
        %vm2908 = vweird.f32 %v2887
        %vm2909 = vweird.f32 %v2903
        %vm2910 = vmor %vm2908, %vm2909
        %v2911 = vsel %vm2910, %v2903, %v2907
        %v2912 = vand.u32 2147483647, %v2887
        %vm2913 = vcmp.eq.f32.partialorder %v2912, 8.507059e+37
        %v2914 = vand.u32 %v2887, 2147483648
        %v2915 = vor.u32 1.1754944e-38, %v2914
        %v2916 = vsel %vm2913, %v2915, %v2911
        %v2917 = vmul.f32 1.0, %v2916
        %v2918 = vmul.f32 %v2902, 1.0614054
        %v2919 = vmul.f32 %v2917, 1.0614054
        %v2920 = vadd.f32 %v2918, -1.4531521
        %v2921 = vadd.f32 %v2919, -1.4531521
        %v2922 = vmul.f32 %v2920, %v2902
        %v2923 = vmul.f32 %v2921, %v2917
        %v2924 = vadd.f32 %v2922, 1.4214138
        %v2925 = vadd.f32 %v2923, 1.4214138
        %v2926 = vmul.f32 %v2924, %v2902
        %v2927 = vmul.f32 %v2925, %v2917
        %v2928 = vadd.f32 %v2926, -0.28449672
        %v2929 = vadd.f32 %v2927, -0.28449672
        %v2930 = vmul.f32 %v2928, %v2902
        %v2931 = vmul.f32 %v2929, %v2917
        %v2932 = vadd.f32 %v2930, 0.2548296
        %v2933 = vadd.f32 %v2931, 0.2548296
        %v2934 = vmul.f32 %v2932, %v2902
        %v2935 = vmul.f32 %v2933, %v2917
        %v2936 = vsub.f32 0.0, %v2882
        %v2937 = vsub.f32 0.0, %v2883
        %v2938 = vmul.f32 %v2936, %v2882
        %v2939 = vmul.f32 %v2937, %v2883
        %v2940 = vmul.f32 %v2938, 1.442695
        %v2941 = vpow.pop %v2940
        %v2942 = vmul.f32 %v2939, 1.442695
        %v2943 = vpow.pop %v2942
        %v2944 = vmul.f32 %v2934, %v2941
        %v2945 = vmul.f32 %v2935, %v2943
        %v2946 = vsub.f32 1.0, %v2944
        %v2947 = vsub.f32 1.0, %v2945
        %v2948 = vmul.f32 %v2880, %v2946
        %v2949 = vmul.f32 %v2881, %v2947
        %v2950 = vadd.f32 %v2948, 1.0
        %v2951 = vadd.f32 %v2949, 1.0
        %v2952 = vmul.f32 %v2874, %v2950
        %v2953 = vmul.f32 %v2875, %v2951
        %v2954 = vadd.f32 %v1393, %v1445
        %v2955 = vadd.f32 %v1395, %v1446
        %v2956 = vadd.f32 %v2954, %v2952
        %v2957 = vadd.f32 %v2955, %v2953
        %2958 = vst.msk [vmem:[%s244] sm:$0xff] %vm255, %v2956
        %2959 = vst.msk [vmem:[%s244 + $0x8] sm:$0xff] %vm255, %v2957
        %s2960 = scalar_lea.vmem %s1, 64
        %v2961 = vld [vmem:[%s2960] ss:$0 sm:$0xff]
        %v2962 = vld [vmem:[%s2960 + $0x1] ss:$0 sm:$0xff]
        %v2963 = vsel %vm255, %v2956, 0.0
        %2964 = vadd.xlane.f32.xlu0 %v2963
        %v2965 = vpop.xlane.xlu0 %2964
        %v2966 = vsel %vm255, %v2957, 0.0
        %2967 = vadd.xlane.f32.xlu0 %v2966
        %v2968 = vpop.xlane.xlu0 %2967
        %v2969 = vmul.f32 %v2965, %v268
        %v2970 = vmul.f32 %v2968, %v268
        %v2971 = vsub.f32 %v2956, %v2969
        %v2972 = vsub.f32 %v2957, %v2970
        %v2973 = vmul.f32 %v2971, %v2971
        %v2974 = vmul.f32 %v2972, %v2972
        %v2975 = vsel %vm255, %v2973, 0.0
        %2976 = vadd.xlane.f32.xlu0 %v2975
        %v2977 = vpop.xlane.xlu0 %2976
        %v2978 = vsel %vm255, %v2974, 0.0
        %2979 = vadd.xlane.f32.xlu0 %v2978
        %v2980 = vpop.xlane.xlu0 %2979
        %v2981 = vmul.f32 %v2977, %v268
        %v2982 = vmul.f32 %v2980, %v268
        %v2983 = vadd.f32 %v2981, 1e-05
        %v2984 = vadd.f32 %v2982, 1e-05
        %v2985 = vrsqrt.pop %v2983
        %v2986 = vmul.f32 %v2985, %v2983
        %v2987 = vmul.f32 %v2986, %v2985
        %v2988 = vmul.f32 0.5, %v2987
        %v2989 = vsub.f32 1.5, %v2988
        %v2990 = vmul.f32 %v2985, %v2989
        %vm2991 = vweird.f32 %v2983
        %vm2992 = vweird.f32 %v2985
        %vm2993 = vmor %vm2991, %vm2992
        %v2994 = vsel %vm2993, %v2985, %v2990
        %v2995 = vrsqrt.pop %v2984
        %v2996 = vmul.f32 %v2995, %v2984
        %v2997 = vmul.f32 %v2996, %v2995
        %v2998 = vmul.f32 0.5, %v2997
        %v2999 = vsub.f32 1.5, %v2998
        %v3000 = vmul.f32 %v2995, %v2999
        %vm3001 = vweird.f32 %v2984
        %vm3002 = vweird.f32 %v2995
        %vm3003 = vmor %vm3001, %vm3002
        %v3004 = vsel %vm3003, %v2995, %v3000
        %v3005 = vmul.f32 %v2971, %v2994
        %v3006 = vmul.f32 %v2972, %v3004
        %v3007 = vmul.f32 %v3005, %v2961
        %v3008 = vmul.f32 %v3006, %v2961
        %v3009 = vadd.f32 %v3007, %v2962
        %v3010 = vadd.f32 %v3008, %v2962
        %v3011 = vpack.c.bf16 %v3010, %v3009
        %3012 = vxpose.xlu0.b32.start [1/16] %v3009, 128
        %3013 = vxpose.xlu0.b32.cont [2/16] %v3010, 128
        %3014 = vxpose.xlu0.b32.cont [3/16] 0.0, 128
        %3015 = vxpose.xlu0.b32.cont [4/16] 0.0, 128
        %3016 = vxpose.xlu0.b32.cont [5/16] 0.0, 128
        %3017 = vxpose.xlu0.b32.cont [6/16] 0.0, 128
        %3018 = vxpose.xlu0.b32.cont [7/16] 0.0, 128
        %3019 = vxpose.xlu0.b32.cont [8/16] 0.0, 128
        %3020 = vxpose.xlu0.b32.cont [9/16] 0.0, 128
        %3021 = vxpose.xlu0.b32.cont [10/16] 0.0, 128
        %3022 = vxpose.xlu0.b32.cont [11/16] 0.0, 128
        %3023 = vxpose.xlu0.b32.cont [12/16] 0.0, 128
        %3024 = vxpose.xlu0.b32.cont [13/16] 0.0, 128
        %3025 = vxpose.xlu0.b32.cont [14/16] 0.0, 128
        %3026 = vxpose.xlu0.b32.cont [15/16] 0.0, 128
        %3027 = vxpose.xlu0.b32.end [16/16] 0.0, 128
        %v3028 = vpop.trf.xlu0
        %v3029 = vpop.trf.xlu0
        %v3030 = vpop.trf.xlu0
        %v3031 = vpop.trf.xlu0
        %v3032 = vpop.trf.xlu0
        %v3033 = vpop.trf.xlu0
        %v3034 = vpop.trf.xlu0
        %v3035 = vpop.trf.xlu0
        %v3036 = vpop.trf.xlu0
        %v3037 = vpop.trf.xlu0
        %v3038 = vpop.trf.xlu0
        %v3039 = vpop.trf.xlu0
        %v3040 = vpop.trf.xlu0
        %v3041 = vpop.trf.xlu0
        %v3042 = vpop.trf.xlu0
        %v3043 = vpop.trf.xlu0
        %s3044 = scalar_lea.vmem %s3, 640
        %v3045 = vld [vmem:[%s3044 + $0x240] sm:$0xf]
        %v3046 = vld [vmem:[%s3044 + $0x250] sm:$0xf]
        %v3047 = vld [vmem:[%s3044 + $0x260] sm:$0xf]
        %v3048 = vld [vmem:[%s3044 + $0x270] sm:$0xf]
        %v3053 = vunpack.c.l.b16 %v3045
        %v3054 = vunpack.c.l.b16 %v3046
        %v3055 = vunpack.c.l.b16 %v3047
        %v3056 = vunpack.c.l.b16 %v3048
        %v3057 = vpack.c.b16 %v3054, %v3053
        %v3058 = vpack.c.b16 %v3056, %v3055
        %v3062 = vsel %vm255, %v3011, 0
        %3064 = vmatpush.bf16.msra.mxu0 0
        %3065 = vmatpush.bf16.msra.mxu0 0
        %3066 = vmatpush.bf16.msra.mxu0 0
        %3067 = vmatpush.bf16.msra.mxu0 0
        %3068 = vmatpush.bf16.msra.mxu0 0
        %3069 = vmatpush.bf16.msra.mxu0 0
        %3070 = vmatpush.bf16.msra.mxu0 %v3058
        %3071 = vmatpush.bf16.msra.mxu0 %v3057
        %3072 = vmatmul.bf16.gmra.mxu0 %v3062
        %v3073 = vpop.f32.mrf.mxu0
        %v3074 = vadd.f32 0.0, %v3073
        %v3075 = vpop.f32.mrf.mxu0
        %v3076 = vadd.f32 0.0, %v3075
        %3077 = vdwg.mxu0
        %s3078 = scalar_lea.vmem %s5, 448
        %v3079 = vld [vmem:[%s3078] sm:$0xf]
        %v3080 = vld [vmem:[%s3078 + $0x4] sm:$0xf]
        %v3081 = vld [vmem:[%s3078 + $0x8] sm:$0xf]
        %v3082 = vld [vmem:[%s3078 + $0xc] sm:$0xf]
        %v3083 = vld [vmem:[%s3078 + $0x10] sm:$0xf]
        %v3084 = vld [vmem:[%s3078 + $0x14] sm:$0xf]
        %v3085 = vld [vmem:[%s3078 + $0x18] sm:$0xf]
        %v3086 = vld [vmem:[%s3078 + $0x1c] sm:$0xf]
        %v3087 = vpack.c.bf16 %v3029, %v3028
        %v3088 = vpack.c.bf16 %v3031, %v3030
        %v3097 = vunpack.c.l.b16 %v3079
        %v3098 = vunpack.c.l.b16 %v3080
        %v3099 = vunpack.c.l.b16 %v3081
        %v3100 = vunpack.c.l.b16 %v3082
        %v3101 = vunpack.c.l.b16 %v3083
        %v3102 = vunpack.c.l.b16 %v3084
        %v3103 = vunpack.c.l.b16 %v3085
        %v3104 = vunpack.c.l.b16 %v3086
        %v3105 = vpack.c.b16 %v3098, %v3097
        %v3106 = vpack.c.b16 %v3100, %v3099
        %v3107 = vpack.c.b16 %v3102, %v3101
        %v3108 = vpack.c.b16 %v3104, %v3103
        %v3110 = vsel %vm255, %v3105, 0
        %v3113 = vsel %vm255, %v3106, 0
        %v3116 = vsel %vm255, %v3107, 0
        %v3119 = vsel %vm255, %v3108, 0
        %3121 = vmatpush.bf16.msra.mxu0 0
        %3122 = vmatpush.bf16.msra.mxu0 0
        %3123 = vmatpush.bf16.msra.mxu0 0
        %3124 = vmatpush.bf16.msra.mxu0 0
        %3125 = vmatpush.bf16.msra.mxu0 0
        %3126 = vmatpush.bf16.msra.mxu0 0
        %3127 = vmatpush.bf16.msra.mxu0 %v3088
        %3128 = vmatpush.bf16.msra.mxu0 %v3087
        %3129 = vmatmul.bf16.gmra.mxu0 %v3110
        %v3130 = vpop.f32.mrf.mxu0
        %v3131 = vadd.f32 0.0, %v3130
        %v3132 = vpop.f32.mrf.mxu0
        %v3133 = vadd.f32 0.0, %v3132
        %3134 = vmatmul.bf16.gmra.mxu0 %v3113
        %v3135 = vpop.f32.mrf.mxu0
        %v3136 = vadd.f32 0.0, %v3135
        %v3137 = vpop.f32.mrf.mxu0
        %v3138 = vadd.f32 0.0, %v3137
        %3139 = vmatmul.bf16.gmra.mxu0 %v3116
        %v3140 = vpop.f32.mrf.mxu0
        %v3141 = vadd.f32 0.0, %v3140
        %v3142 = vpop.f32.mrf.mxu0
        %v3143 = vadd.f32 0.0, %v3142
        %3144 = vmatmul.bf16.gmra.mxu0 %v3119
        %v3145 = vpop.f32.mrf.mxu0
        %v3146 = vadd.f32 0.0, %v3145
        %v3147 = vpop.f32.mrf.mxu0
        %v3148 = vadd.f32 0.0, %v3147
        %3149 = vdwg.mxu0
        %v3150 = vld [vmem:[%s2 + $0x50] sm:$0xf]
        %v3151 = vld [vmem:[%s2 + $0x54] sm:$0xf]
        %v3152 = vld [vmem:[%s2 + $0x58] sm:$0xf]
        %v3153 = vld [vmem:[%s2 + $0x5c] sm:$0xf]
        %v3154 = vld [vmem:[%s2 + $0x60] sm:$0xf]
        %v3155 = vld [vmem:[%s2 + $0x64] sm:$0xf]
        %v3156 = vld [vmem:[%s2 + $0x68] sm:$0xf]
        %v3157 = vld [vmem:[%s2 + $0x6c] sm:$0xf]
        %v3158 = vld [vmem:[%s2 + $0x70] sm:$0xf]
        %v3159 = vld [vmem:[%s2 + $0x74] sm:$0xf]
        %v3160 = vpack.c.bf16 %v3133, %v3131
        %v3161 = vpack.c.bf16 %v3138, %v3136
        %v3162 = vpack.c.bf16 %v3143, %v3141
        %v3163 = vpack.c.bf16 %v3148, %v3146
        %v3166 = vunpack.c.l.b16 %v3150
        %v3167 = vunpack.c.l.b16 %v3151
        %v3168 = vpack.c.b16 %v3167, %v3166
        %v3171 = vsel %vm468, %v3160, 0
        %v3174 = vsel %vm468, %v3161, 0
        %v3177 = vsel %vm468, %v3162, 0
        %v3180 = vsel %vm468, %v3163, 0
        %3182 = vmatpush.bf16.msra.mxu0 0
        %3183 = vmatpush.bf16.msra.mxu0 0
        %3184 = vmatpush.bf16.msra.mxu0 0
        %3185 = vmatpush.bf16.msra.mxu0 0
        %3186 = vmatpush.bf16.msra.mxu0 0
        %3187 = vmatpush.bf16.msra.mxu0 0
        %3188 = vmatpush.bf16.msra.mxu0 0
        %3189 = vmatpush.bf16.msra.mxu0 %v3168
        %3190 = vmatmul.bf16.gmra.mxu0 %v3171
        %v3191 = vpop.f32.mrf.mxu0
        %v3192 = vadd.f32 0.0, %v3191
        %v3193 = vpop.f32.mrf.mxu0
        %v3194 = vadd.f32 0.0, %v3193
        %3195 = vmatmul.bf16.gmra.mxu0 %v3174
        %v3196 = vpop.f32.mrf.mxu0
        %v3197 = vadd.f32 0.0, %v3196
        %v3198 = vpop.f32.mrf.mxu0
        %v3199 = vadd.f32 0.0, %v3198
        %3200 = vmatmul.bf16.gmra.mxu0 %v3177
        %v3201 = vpop.f32.mrf.mxu0
        %v3202 = vadd.f32 0.0, %v3201
        %v3203 = vpop.f32.mrf.mxu0
        %v3204 = vadd.f32 0.0, %v3203
        %3205 = vmatmul.bf16.gmra.mxu0 %v3180
        %v3206 = vpop.f32.mrf.mxu0
        %v3207 = vadd.f32 0.0, %v3206
        %v3208 = vpop.f32.mrf.mxu0
        %v3209 = vadd.f32 0.0, %v3208
        %3210 = vdwg.mxu0
        %v3211 = vpack.c.bf16 %v3192, %v3192
        %v3212 = vpack.c.bf16 %v3194, %v3194
        %v3213 = vpack.c.bf16 %v3197, %v3197
        %v3214 = vpack.c.bf16 %v3199, %v3199
        %v3215 = vpack.c.bf16 %v3202, %v3202
        %v3216 = vpack.c.bf16 %v3204, %v3204
        %v3217 = vpack.c.bf16 %v3207, %v3207
        %v3218 = vpack.c.bf16 %v3209, %v3209
        %v3219 = vunpack.c.l.bf16 %v3211
        %v3220 = vunpack.c.l.bf16 %v3212
        %v3221 = vunpack.c.l.bf16 %v3213
        %v3222 = vunpack.c.l.bf16 %v3214
        %v3223 = vunpack.c.l.bf16 %v3215
        %v3224 = vunpack.c.l.bf16 %v3216
        %v3225 = vunpack.c.l.bf16 %v3217
        %v3226 = vunpack.c.l.bf16 %v3218
        %v3227 = vunpack.c.l.bf16 %v3152
        %v3228 = vunpack.c.l.bf16 %v3153
        %v3229 = vunpack.c.l.bf16 %v3154
        %v3230 = vunpack.c.l.bf16 %v3155
        %v3231 = vunpack.c.l.bf16 %v3156
        %v3232 = vunpack.c.l.bf16 %v3157
        %v3233 = vunpack.c.l.bf16 %v3158
        %v3234 = vunpack.c.l.bf16 %v3159
        %v3235 = vmul.f32 %v3219, %v3227
        %v3236 = vmul.f32 %v3220, %v3228
        %v3237 = vmul.f32 %v3221, %v3229
        %v3238 = vmul.f32 %v3222, %v3230
        %v3239 = vmul.f32 %v3223, %v3231
        %v3240 = vmul.f32 %v3224, %v3232
        %v3241 = vmul.f32 %v3225, %v3233
        %v3242 = vmul.f32 %v3226, %v3234
        %v3243 = vpack.c.bf16 %v3236, %v3235
        %v3244 = vpack.c.bf16 %v3238, %v3237
        %v3245 = vpack.c.bf16 %v3240, %v3239
        %v3246 = vpack.c.bf16 %v3242, %v3241
        %v3247 = vpack.c.bf16 %v3076, %v3074
        %v3249 = vsel %vm547, %v3247, 0
        %3251 = vmatpush.bf16.msra.mxu0 0
        %3252 = vmatpush.bf16.msra.mxu0 0
        %3253 = vmatpush.bf16.msra.mxu0 0
        %3254 = vmatpush.bf16.msra.mxu0 0
        %3255 = vmatpush.bf16.msra.mxu0 %v3246
        %3256 = vmatpush.bf16.msra.mxu0 %v3245
        %3257 = vmatpush.bf16.msra.mxu0 %v3244
        %3258 = vmatpush.bf16.msra.mxu0 %v3243
        %3259 = vmatmul.bf16.gmra.mxu0 %v3249
        %v3260 = vpop.f32.mrf.mxu0
        %v3261 = vadd.f32 0.0, %v3260
        %v3262 = vpop.f32.mrf.mxu0
        %v3263 = vadd.f32 0.0, %v3262
        %3264 = vdwg.mxu0
        %v3265 = vsel %vm547, %v3261, -inf
        %3266 = vmax.xlane.f32.xlu0 %v3265
        %v3267 = vpop.xlane.xlu0 %3266
        %v3268 = vsel %vm547, %v3263, -inf
        %3269 = vmax.xlane.f32.xlu0 %v3268
        %v3270 = vpop.xlane.xlu0 %3269
        %v3271 = vsub.f32 %v3261, %v3267
        %v3272 = vsub.f32 %v3263, %v3270
        %v3273 = vmul.f32 %v3271, 1.442695
        %v3274 = vpow.pop %v3273
        %v3275 = vmul.f32 %v3272, 1.442695
        %v3276 = vpow.pop %v3275
        %v3277 = vld [vmem:[%s2 + $0x98] sm:$0xf]
        %v3278 = vld [vmem:[%s2 + $0x9c] sm:$0xf]
        %v3279 = vld [vmem:[%s2 + $0xa0] sm:$0xf]
        %v3280 = vld [vmem:[%s2 + $0xa4] sm:$0xf]
        %v3281 = vld [vmem:[%s2 + $0xa8] sm:$0xf]
        %v3282 = vld [vmem:[%s2 + $0xac] sm:$0xf]
        %v3283 = vld [vmem:[%s2 + $0xb0] sm:$0xf]
        %v3284 = vld [vmem:[%s2 + $0xb4] sm:$0xf]
        %v3285 = vpack.c.bf16 %v3276, %v3274
        %v3294 = vunpack.c.l.b16 %v3277
        %v3295 = vunpack.c.l.b16 %v3278
        %v3296 = vunpack.c.l.b16 %v3279
        %v3297 = vunpack.c.l.b16 %v3280
        %v3298 = vunpack.c.l.b16 %v3281
        %v3299 = vunpack.c.l.b16 %v3282
        %v3300 = vunpack.c.l.b16 %v3283
        %v3301 = vunpack.c.l.b16 %v3284
        %v3302 = vpack.c.b16 %v3295, %v3294
        %v3303 = vpack.c.b16 %v3297, %v3296
        %v3304 = vpack.c.b16 %v3299, %v3298
        %v3305 = vpack.c.b16 %v3301, %v3300
        %v3311 = vsel %vm547, %v3285, 0
        %3313 = vmatpush.bf16.msra.mxu0 0
        %3314 = vmatpush.bf16.msra.mxu0 0
        %3315 = vmatpush.bf16.msra.mxu0 0
        %3316 = vmatpush.bf16.msra.mxu0 0
        %3317 = vmatpush.bf16.msra.mxu0 %v3305
        %3318 = vmatpush.bf16.msra.mxu0 %v3304
        %3319 = vmatpush.bf16.msra.mxu0 %v3303
        %3320 = vmatpush.bf16.msra.mxu0 %v3302
        %3321 = vmatmul.bf16.gmra.mxu0 %v3311
        %v3322 = vpop.f32.mrf.mxu0
        %v3323 = vadd.f32 0.0, %v3322
        %v3324 = vpop.f32.mrf.mxu0
        %v3325 = vadd.f32 0.0, %v3324
        %3326 = vdwg.mxu0
        %v3327 = vrcp.pop %v3323
        %v3328 = vrcp.pop %v3325
        %v3329 = vmul.f32 %v3274, %v3327
        %v3330 = vmul.f32 %v3276, %v3328
        %v3331 = vpack.c.bf16 %v3330, %v3329
        %s3332 = scalar_lea.vmem %s4, 96
        %v3333 = vld [vmem:[%s3332] sm:$0xf]
        %v3334 = vld [vmem:[%s3332 + $0x4] sm:$0xf]
        %v3335 = vld [vmem:[%s3332 + $0x8] sm:$0xf]
        %v3336 = vld [vmem:[%s3332 + $0xc] sm:$0xf]
        %v3337 = vld [vmem:[%s3332 + $0x10] sm:$0xf]
        %v3338 = vld [vmem:[%s3332 + $0x14] sm:$0xf]
        %v3339 = vld [vmem:[%s3332 + $0x18] sm:$0xf]
        %v3340 = vld [vmem:[%s3332 + $0x1c] sm:$0xf]
        %v3349 = vunpack.c.l.b16 %v3333
        %v3350 = vunpack.c.l.b16 %v3334
        %v3351 = vunpack.c.l.b16 %v3335
        %v3352 = vunpack.c.l.b16 %v3336
        %v3353 = vunpack.c.l.b16 %v3337
        %v3354 = vunpack.c.l.b16 %v3338
        %v3355 = vunpack.c.l.b16 %v3339
        %v3356 = vunpack.c.l.b16 %v3340
        %v3357 = vpack.c.b16 %v3350, %v3349
        %v3358 = vpack.c.b16 %v3352, %v3351
        %v3359 = vpack.c.b16 %v3354, %v3353
        %v3360 = vpack.c.b16 %v3356, %v3355
        %v3366 = vsel %vm547, %v3331, 0
        %3368 = vmatpush.bf16.msra.mxu0 0
        %3369 = vmatpush.bf16.msra.mxu0 0
        %3370 = vmatpush.bf16.msra.mxu0 0
        %3371 = vmatpush.bf16.msra.mxu0 0
        %3372 = vmatpush.bf16.msra.mxu0 %v3360
        %3373 = vmatpush.bf16.msra.mxu0 %v3359
        %3374 = vmatpush.bf16.msra.mxu0 %v3358
        %3375 = vmatpush.bf16.msra.mxu0 %v3357
        %3376 = vmatmul.bf16.gmra.mxu0 %v3366
        %v3377 = vpop.f32.mrf.mxu0
        %v3378 = vadd.f32 0.0, %v3377
        %v3379 = vpop.f32.mrf.mxu0
        %v3380 = vadd.f32 0.0, %v3379
        %3381 = vdwg.mxu0
        %v3382 = vld [vmem:[%s3332 + $0x20] sm:$0xf]
        %v3383 = vld [vmem:[%s3332 + $0x24] sm:$0xf]
        %v3384 = vld [vmem:[%s3332 + $0x28] sm:$0xf]
        %v3385 = vld [vmem:[%s3332 + $0x2c] sm:$0xf]
        %v3386 = vld [vmem:[%s3332 + $0x30] sm:$0xf]
        %v3387 = vld [vmem:[%s3332 + $0x34] sm:$0xf]
        %v3388 = vld [vmem:[%s3332 + $0x38] sm:$0xf]
        %v3389 = vld [vmem:[%s3332 + $0x3c] sm:$0xf]
        %v3398 = vunpack.c.l.b16 %v3382
        %v3399 = vunpack.c.l.b16 %v3383
        %v3400 = vunpack.c.l.b16 %v3384
        %v3401 = vunpack.c.l.b16 %v3385
        %v3402 = vunpack.c.l.b16 %v3386
        %v3403 = vunpack.c.l.b16 %v3387
        %v3404 = vunpack.c.l.b16 %v3388
        %v3405 = vunpack.c.l.b16 %v3389
        %v3406 = vpack.c.b16 %v3399, %v3398
        %v3407 = vpack.c.b16 %v3401, %v3400
        %v3408 = vpack.c.b16 %v3403, %v3402
        %v3409 = vpack.c.b16 %v3405, %v3404
        %3414 = vmatpush.bf16.msra.mxu0 0
        %3415 = vmatpush.bf16.msra.mxu0 0
        %3416 = vmatpush.bf16.msra.mxu0 0
        %3417 = vmatpush.bf16.msra.mxu0 0
        %3418 = vmatpush.bf16.msra.mxu0 %v3409
        %3419 = vmatpush.bf16.msra.mxu0 %v3408
        %3420 = vmatpush.bf16.msra.mxu0 %v3407
        %3421 = vmatpush.bf16.msra.mxu0 %v3406
        %3422 = vmatmul.bf16.gmra.mxu0 %v3366
        %v3423 = vpop.f32.mrf.mxu0
        %v3424 = vadd.f32 0.0, %v3423
        %v3425 = vpop.f32.mrf.mxu0
        %v3426 = vadd.f32 0.0, %v3425
        %3427 = vdwg.mxu0
        %v3428 = vld [vmem:[%s3332 + $0x40] sm:$0xf]
        %v3429 = vld [vmem:[%s3332 + $0x44] sm:$0xf]
        %v3430 = vld [vmem:[%s3332 + $0x48] sm:$0xf]
        %v3431 = vld [vmem:[%s3332 + $0x4c] sm:$0xf]
        %v3432 = vld [vmem:[%s3332 + $0x50] sm:$0xf]
        %v3433 = vld [vmem:[%s3332 + $0x54] sm:$0xf]
        %v3434 = vld [vmem:[%s3332 + $0x58] sm:$0xf]
        %v3435 = vld [vmem:[%s3332 + $0x5c] sm:$0xf]
        %v3444 = vunpack.c.l.b16 %v3428
        %v3445 = vunpack.c.l.b16 %v3429
        %v3446 = vunpack.c.l.b16 %v3430
        %v3447 = vunpack.c.l.b16 %v3431
        %v3448 = vunpack.c.l.b16 %v3432
        %v3449 = vunpack.c.l.b16 %v3433
        %v3450 = vunpack.c.l.b16 %v3434
        %v3451 = vunpack.c.l.b16 %v3435
        %v3452 = vpack.c.b16 %v3445, %v3444
        %v3453 = vpack.c.b16 %v3447, %v3446
        %v3454 = vpack.c.b16 %v3449, %v3448
        %v3455 = vpack.c.b16 %v3451, %v3450
        %3460 = vmatpush.bf16.msra.mxu0 0
        %3461 = vmatpush.bf16.msra.mxu0 0
        %3462 = vmatpush.bf16.msra.mxu0 0
        %3463 = vmatpush.bf16.msra.mxu0 0
        %3464 = vmatpush.bf16.msra.mxu0 %v3455
        %3465 = vmatpush.bf16.msra.mxu0 %v3454
        %3466 = vmatpush.bf16.msra.mxu0 %v3453
        %3467 = vmatpush.bf16.msra.mxu0 %v3452
        %3468 = vmatmul.bf16.gmra.mxu0 %v3366
        %v3469 = vpop.f32.mrf.mxu0
        %v3470 = vadd.f32 0.0, %v3469
        %v3471 = vpop.f32.mrf.mxu0
        %v3472 = vadd.f32 0.0, %v3471
        %3473 = vdwg.mxu0
        %v3474 = vld [vmem:[%s2] sm:$0xf]
        %v3475 = vld [vmem:[%s2 + $0x4] sm:$0xf]
        %v3476 = vld [vmem:[%s2 + $0x8] sm:$0xf]
        %v3477 = vld [vmem:[%s2 + $0xc] sm:$0xf]
        %v3478 = vpack.c.bf16 %v3380, %v3378
        %v3481 = vunpack.c.l.b16 %v3474
        %v3482 = vunpack.c.l.b16 %v3475
        %v3483 = vpack.c.b16 %v3482, %v3481
        %v3485 = vsel %vm468, %v3483, 0
        %3487 = vmatpush.bf16.msra.mxu0 0
        %3488 = vmatpush.bf16.msra.mxu0 0
        %3489 = vmatpush.bf16.msra.mxu0 0
        %3490 = vmatpush.bf16.msra.mxu0 0
        %3491 = vmatpush.bf16.msra.mxu0 0
        %3492 = vmatpush.bf16.msra.mxu0 0
        %3493 = vmatpush.bf16.msra.mxu0 0
        %3494 = vmatpush.bf16.msra.mxu0 %v3478
        %3495 = vmatmul.bf16.gmra.mxu0 %v3485
        %v3496 = vpop.f32.mrf.mxu0
        %v3497 = vadd.f32 %v3424, %v3496
        %v3498 = vpop.f32.mrf.mxu0
        %v3499 = vadd.f32 %v3426, %v3498
        %3500 = vdwg.mxu0
        %v3501 = vpack.c.bf16 %v3472, %v3470
        %v3504 = vunpack.c.l.b16 %v3476
        %v3505 = vunpack.c.l.b16 %v3477
        %v3506 = vpack.c.b16 %v3505, %v3504
        %v3508 = vsel %vm468, %v3506, 0
        %3510 = vmatpush.bf16.msra.mxu0 0
        %3511 = vmatpush.bf16.msra.mxu0 0
        %3512 = vmatpush.bf16.msra.mxu0 0
        %3513 = vmatpush.bf16.msra.mxu0 0
        %3514 = vmatpush.bf16.msra.mxu0 0
        %3515 = vmatpush.bf16.msra.mxu0 0
        %3516 = vmatpush.bf16.msra.mxu0 0
        %3517 = vmatpush.bf16.msra.mxu0 %v3501
        %3518 = vmatmul.bf16.gmra.mxu0 %v3508
        %v3519 = vpop.f32.mrf.mxu0
        %v3520 = vadd.f32 0.0, %v3519
        %v3521 = vpop.f32.mrf.mxu0
        %v3522 = vadd.f32 0.0, %v3521
        %3523 = vdwg.mxu0
        %v3524 = vadd.f32 %v3497, %v3520
        %v3525 = vadd.f32 %v3499, %v3522
        %v3526 = vld [vmem:[%s2960 + $0x4] ss:$0 sm:$0xff]
        %v3527 = vadd.f32 %v3524, %v3526
        %v3528 = vadd.f32 %v3525, %v3526
        %v3529 = vld [vmem:[%s2 + $0x30] sm:$0xf]
        %v3530 = vld [vmem:[%s2 + $0x34] sm:$0xf]
        %v3531 = vld [vmem:[%s2 + $0x38] sm:$0xf]
        %v3532 = vld [vmem:[%s2 + $0x3c] sm:$0xf]
        %v3533 = vld [vmem:[%s2 + $0x40] sm:$0xf]
        %v3534 = vld [vmem:[%s2 + $0x44] sm:$0xf]
        %v3535 = vld [vmem:[%s2 + $0x48] sm:$0xf]
        %v3536 = vld [vmem:[%s2 + $0x4c] sm:$0xf]
        %v3537 = vld [vmem:[%s2 + $0x78] sm:$0xf]
        %v3538 = vld [vmem:[%s2 + $0x7c] sm:$0xf]
        %v3539 = vld [vmem:[%s2 + $0x80] sm:$0xf]
        %v3540 = vld [vmem:[%s2 + $0x84] sm:$0xf]
        %v3541 = vld [vmem:[%s2 + $0x88] sm:$0xf]
        %v3542 = vld [vmem:[%s2 + $0x8c] sm:$0xf]
        %v3543 = vld [vmem:[%s2 + $0x90] sm:$0xf]
        %v3544 = vld [vmem:[%s2 + $0x94] sm:$0xf]
        %v3553 = vunpack.c.l.b16 %v3529
        %v3554 = vunpack.c.l.b16 %v3530
        %v3555 = vunpack.c.l.b16 %v3531
        %v3556 = vunpack.c.l.b16 %v3532
        %v3557 = vunpack.c.l.b16 %v3533
        %v3558 = vunpack.c.l.b16 %v3534
        %v3559 = vunpack.c.l.b16 %v3535
        %v3560 = vunpack.c.l.b16 %v3536
        %v3561 = vpack.c.b16 %v3554, %v3553
        %v3562 = vpack.c.b16 %v3556, %v3555
        %v3563 = vpack.c.b16 %v3558, %v3557
        %v3564 = vpack.c.b16 %v3560, %v3559
        %3566 = vrot.lane.b32.xlu0 %v3247, 64
        %v3567 = vpop.permute.xlu0 %3566
        %v3570 = vsel %vm468, %v3561, 0
        %v3573 = vsel %vm468, %v3562, 0
        %v3576 = vsel %vm468, %v3563, 0
        %v3579 = vsel %vm468, %v3564, 0
        %3581 = vmatpush.bf16.msra.mxu0 0
        %3582 = vmatpush.bf16.msra.mxu0 0
        %3583 = vmatpush.bf16.msra.mxu0 0
        %3584 = vmatpush.bf16.msra.mxu0 0
        %3585 = vmatpush.bf16.msra.mxu0 0
        %3586 = vmatpush.bf16.msra.mxu0 0
        %3587 = vmatpush.bf16.msra.mxu0 0
        %3588 = vmatpush.bf16.msra.mxu0 %v3567
        %3589 = vmatmul.bf16.gmra.mxu0 %v3570
        %v3590 = vpop.f32.mrf.mxu0
        %v3591 = vadd.f32 0.0, %v3590
        %v3592 = vpop.f32.mrf.mxu0
        %v3593 = vadd.f32 0.0, %v3592
        %3594 = vmatmul.bf16.gmra.mxu0 %v3573
        %v3595 = vpop.f32.mrf.mxu0
        %v3596 = vadd.f32 0.0, %v3595
        %v3597 = vpop.f32.mrf.mxu0
        %v3598 = vadd.f32 0.0, %v3597
        %3599 = vmatmul.bf16.gmra.mxu0 %v3576
        %v3600 = vpop.f32.mrf.mxu0
        %v3601 = vadd.f32 0.0, %v3600
        %v3602 = vpop.f32.mrf.mxu0
        %v3603 = vadd.f32 0.0, %v3602
        %3604 = vmatmul.bf16.gmra.mxu0 %v3579
        %v3605 = vpop.f32.mrf.mxu0
        %v3606 = vadd.f32 0.0, %v3605
        %v3607 = vpop.f32.mrf.mxu0
        %v3608 = vadd.f32 0.0, %v3607
        %3609 = vdwg.mxu0
        %v3610 = vpack.c.bf16 %v3591, %v3591
        %v3611 = vpack.c.bf16 %v3593, %v3593
        %v3612 = vpack.c.bf16 %v3596, %v3596
        %v3613 = vpack.c.bf16 %v3598, %v3598
        %v3614 = vpack.c.bf16 %v3601, %v3601
        %v3615 = vpack.c.bf16 %v3603, %v3603
        %v3616 = vpack.c.bf16 %v3606, %v3606
        %v3617 = vpack.c.bf16 %v3608, %v3608
        %v3618 = vunpack.c.l.bf16 %v3610
        %v3619 = vunpack.c.l.bf16 %v3611
        %v3620 = vunpack.c.l.bf16 %v3612
        %v3621 = vunpack.c.l.bf16 %v3613
        %v3622 = vunpack.c.l.bf16 %v3614
        %v3623 = vunpack.c.l.bf16 %v3615
        %v3624 = vunpack.c.l.bf16 %v3616
        %v3625 = vunpack.c.l.bf16 %v3617
        %v3626 = vunpack.c.l.bf16 %v3537
        %v3627 = vunpack.c.l.bf16 %v3538
        %v3628 = vunpack.c.l.bf16 %v3539
        %v3629 = vunpack.c.l.bf16 %v3540
        %v3630 = vunpack.c.l.bf16 %v3541
        %v3631 = vunpack.c.l.bf16 %v3542
        %v3632 = vunpack.c.l.bf16 %v3543
        %v3633 = vunpack.c.l.bf16 %v3544
        %v3634 = vmul.f32 %v3618, %v3626
        %v3635 = vmul.f32 %v3619, %v3627
        %v3636 = vmul.f32 %v3620, %v3628
        %v3637 = vmul.f32 %v3621, %v3629
        %v3638 = vmul.f32 %v3622, %v3630
        %v3639 = vmul.f32 %v3623, %v3631
        %v3640 = vmul.f32 %v3624, %v3632
        %v3641 = vmul.f32 %v3625, %v3633
        %v3642 = vpack.c.bf16 %v3635, %v3634
        %v3643 = vpack.c.bf16 %v3637, %v3636
        %v3644 = vpack.c.bf16 %v3639, %v3638
        %v3645 = vpack.c.bf16 %v3641, %v3640
        %v3646 = vpack.c.bf16 %v3528, %v3527
        %v3648 = vsel %vm547, %v3646, 0
        %3650 = vmatpush.bf16.msra.mxu0 0
        %3651 = vmatpush.bf16.msra.mxu0 0
        %3652 = vmatpush.bf16.msra.mxu0 0
        %3653 = vmatpush.bf16.msra.mxu0 0
        %3654 = vmatpush.bf16.msra.mxu0 %v3645
        %3655 = vmatpush.bf16.msra.mxu0 %v3644
        %3656 = vmatpush.bf16.msra.mxu0 %v3643
        %3657 = vmatpush.bf16.msra.mxu0 %v3642
        %3658 = vmatmul.bf16.gmra.mxu0 %v3648
        %v3659 = vpop.f32.mrf.mxu0
        %v3660 = vadd.f32 0.0, %v3659
        %v3661 = vpop.f32.mrf.mxu0
        %v3662 = vadd.f32 0.0, %v3661
        %3663 = vdwg.mxu0
        %v3664 = vpack.c.bf16 %v3662, %v3660
        %v3665 = vld [vmem:[%s3078 + $0x20] sm:$0xf]
        %v3666 = vld [vmem:[%s3078 + $0x24] sm:$0xf]
        %v3667 = vld [vmem:[%s3078 + $0x28] sm:$0xf]
        %v3668 = vld [vmem:[%s3078 + $0x2c] sm:$0xf]
        %v3669 = vld [vmem:[%s3078 + $0x30] sm:$0xf]
        %v3670 = vld [vmem:[%s3078 + $0x34] sm:$0xf]
        %v3671 = vld [vmem:[%s3078 + $0x38] sm:$0xf]
        %v3672 = vld [vmem:[%s3078 + $0x3c] sm:$0xf]
        %v3673 = vld [vmem:[%s2960 + $0x2] ss:$0 sm:$0xff]
        %v3682 = vunpack.c.l.b16 %v3665
        %v3683 = vunpack.c.l.b16 %v3666
        %v3684 = vunpack.c.l.b16 %v3667
        %v3685 = vunpack.c.l.b16 %v3668
        %v3686 = vunpack.c.l.b16 %v3669
        %v3687 = vunpack.c.l.b16 %v3670
        %v3688 = vunpack.c.l.b16 %v3671
        %v3689 = vunpack.c.l.b16 %v3672
        %v3690 = vpack.c.b16 %v3683, %v3682
        %v3691 = vpack.c.b16 %v3685, %v3684
        %v3692 = vpack.c.b16 %v3687, %v3686
        %v3693 = vpack.c.b16 %v3689, %v3688
        %v3699 = vsel %vm547, %v3664, 0
        %3701 = vmatpush.bf16.msra.mxu0 0
        %3702 = vmatpush.bf16.msra.mxu0 0
        %3703 = vmatpush.bf16.msra.mxu0 0
        %3704 = vmatpush.bf16.msra.mxu0 0
        %3705 = vmatpush.bf16.msra.mxu0 %v3693
        %3706 = vmatpush.bf16.msra.mxu0 %v3692
        %3707 = vmatpush.bf16.msra.mxu0 %v3691
        %3708 = vmatpush.bf16.msra.mxu0 %v3690
        %3709 = vmatmul.bf16.gmra.mxu0 %v3699
        %v3710 = vpop.f32.mrf.mxu0
        %v3711 = vadd.f32 %v3673, %v3710
        %v3712 = vpop.f32.mrf.mxu0
        %v3713 = vadd.f32 %v3673, %v3712
        %3714 = vdwg.mxu0
        %v3715 = vld [vmem:[%s3078 + $0x40] sm:$0xf]
        %v3716 = vld [vmem:[%s3078 + $0x44] sm:$0xf]
        %v3717 = vld [vmem:[%s2960 + $0x3] ss:$0 sm:$0xff]
        %v3720 = vunpack.c.l.b16 %v3715
        %v3721 = vunpack.c.l.b16 %v3716
        %v3722 = vpack.c.b16 %v3721, %v3720
        %v3725 = vsel %vm468, %v3087, 0
        %v3728 = vsel %vm468, %v3088, 0
        %3730 = vmatpush.bf16.msra.mxu0 0
        %3731 = vmatpush.bf16.msra.mxu0 0
        %3732 = vmatpush.bf16.msra.mxu0 0
        %3733 = vmatpush.bf16.msra.mxu0 0
        %3734 = vmatpush.bf16.msra.mxu0 0
        %3735 = vmatpush.bf16.msra.mxu0 0
        %3736 = vmatpush.bf16.msra.mxu0 0
        %3737 = vmatpush.bf16.msra.mxu0 %v3722
        %3738 = vmatmul.bf16.gmra.mxu0 %v3725
        %v3739 = vpop.f32.mrf.mxu0
        %v3740 = vadd.f32 %v3717, %v3739
        %v3741 = vpop.f32.mrf.mxu0
        %v3742 = vadd.f32 %v3717, %v3741
        %3743 = vmatmul.bf16.gmra.mxu0 %v3728
        %v3744 = vpop.f32.mrf.mxu0
        %v3745 = vadd.f32 %v3717, %v3744
        %v3746 = vpop.f32.mrf.mxu0
        %v3747 = vadd.f32 %v3717, %v3746
        %3748 = vdwg.mxu0
        %v3749 = vpack.c.bf16 %v3742, %v3740
        %v3750 = vpack.c.bf16 %v3747, %v3745
        %3755 = vrot.lane.b32.xlu0 %v3740, 112
        %v3756 = vpop.permute.xlu0 %3755
        %3757 = vrot.lane.b32.xlu0 %v3742, 112
        %v3758 = vpop.permute.xlu0 %3757
        %3759 = vrot.lane.b32.xlu0 %v3745, 112
        %v3760 = vpop.permute.xlu0 %3759
        %3761 = vrot.lane.b32.xlu0 %v3747, 112
        %v3762 = vpop.permute.xlu0 %3761
        %3767 = vxpose.xlu0.b32.start [1/16] %v3756, 128
        %3768 = vxpose.xlu0.b32.cont [2/16] %v3758, 128
        %3769 = vxpose.xlu0.b32.cont [3/16] %v3760, 128
        %3770 = vxpose.xlu0.b32.cont [4/16] %v3762, 128
        %3771 = vxpose.xlu0.b32.cont [5/16] 0.0, 128
        %3772 = vxpose.xlu0.b32.cont [6/16] 0.0, 128
        %3773 = vxpose.xlu0.b32.cont [7/16] 0.0, 128
        %3774 = vxpose.xlu0.b32.cont [8/16] 0.0, 128
        %3775 = vxpose.xlu0.b32.cont [9/16] 0.0, 128
        %3776 = vxpose.xlu0.b32.cont [10/16] 0.0, 128
        %3777 = vxpose.xlu0.b32.cont [11/16] 0.0, 128
        %3778 = vxpose.xlu0.b32.cont [12/16] 0.0, 128
        %3779 = vxpose.xlu0.b32.cont [13/16] 0.0, 128
        %3780 = vxpose.xlu0.b32.cont [14/16] 0.0, 128
        %3781 = vxpose.xlu0.b32.cont [15/16] 0.0, 128
        %3782 = vxpose.xlu0.b32.end [16/16] 0.0, 128
        %v3783 = vpop.trf.xlu0
        %v3784 = vpop.trf.xlu0
        %v3785 = vpop.trf.xlu0
        %v3786 = vpop.trf.xlu0
        %v3787 = vpop.trf.xlu0
        %v3788 = vpop.trf.xlu0
        %v3789 = vpop.trf.xlu0
        %v3790 = vpop.trf.xlu0
        %v3791 = vpop.trf.xlu0
        %v3792 = vpop.trf.xlu0
        %v3793 = vpop.trf.xlu0
        %v3794 = vpop.trf.xlu0
        %v3795 = vpop.trf.xlu0
        %v3796 = vpop.trf.xlu0
        %v3797 = vpop.trf.xlu0
        %v3798 = vpop.trf.xlu0
        %v3799 = vpack.c.bf16 %v3784, %v3783
        %v3801 = vsel %vm468, %v3749, 0
        %v3804 = vsel %vm468, %v3750, 0
        %3806 = vmatpush.bf16.msra.mxu0 0
        %3807 = vmatpush.bf16.msra.mxu0 0
        %3808 = vmatpush.bf16.msra.mxu0 0
        %3809 = vmatpush.bf16.msra.mxu0 0
        %3810 = vmatpush.bf16.msra.mxu0 0
        %3811 = vmatpush.bf16.msra.mxu0 0
        %3812 = vmatpush.bf16.msra.mxu0 0
        %3813 = vmatpush.bf16.msra.mxu0 %v3799
        %3814 = vmatmul.bf16.gmra.mxu0 %v3801
        %v3815 = vpop.f32.mrf.mxu0
        %v3816 = vadd.f32 0.0, %v3815
        %v3817 = vpop.f32.mrf.mxu0
        %v3818 = vadd.f32 0.0, %v3817
        %3819 = vmatmul.bf16.gmra.mxu0 %v3804
        %v3820 = vpop.f32.mrf.mxu0
        %v3821 = vadd.f32 0.0, %v3820
        %v3822 = vpop.f32.mrf.mxu0
        %v3823 = vadd.f32 0.0, %v3822
        %3824 = vdwg.mxu0
        %v3825 = vsel %vm255, %v3816, -inf
        %3826 = vmax.xlane.f32.xlu0 %v3825
        %v3827 = vpop.xlane.xlu0 %3826
        %v3828 = vsel %vm255, %v3818, -inf
        %3829 = vmax.xlane.f32.xlu0 %v3828
        %v3830 = vpop.xlane.xlu0 %3829
        %v3831 = vsel %vm255, %v3821, -inf
        %3832 = vmax.xlane.f32.xlu0 %v3831
        %v3833 = vpop.xlane.xlu0 %3832
        %v3834 = vsel %vm255, %v3823, -inf
        %3835 = vmax.xlane.f32.xlu0 %v3834
        %v3836 = vpop.xlane.xlu0 %3835
        %v3837 = vsub.f32 %v3816, %v3827
        %v3838 = vsub.f32 %v3818, %v3830
        %v3839 = vsub.f32 %v3821, %v3833
        %v3840 = vsub.f32 %v3823, %v3836
        %v3841 = vmul.f32 %v3837, 1.442695
        %v3842 = vpow.pop %v3841
        %v3843 = vmul.f32 %v3838, 1.442695
        %v3844 = vpow.pop %v3843
        %v3845 = vmul.f32 %v3839, 1.442695
        %v3846 = vpow.pop %v3845
        %v3847 = vmul.f32 %v3840, 1.442695
        %v3848 = vpow.pop %v3847
        %v3849 = vsel %vm255, %v3842, 0.0
        %3850 = vadd.xlane.f32.xlu0 %v3849
        %v3851 = vpop.xlane.xlu0 %3850
        %v3852 = vsel %vm255, %v3844, 0.0
        %3853 = vadd.xlane.f32.xlu0 %v3852
        %v3854 = vpop.xlane.xlu0 %3853
        %v3855 = vsel %vm255, %v3846, 0.0
        %3856 = vadd.xlane.f32.xlu0 %v3855
        %v3857 = vpop.xlane.xlu0 %3856
        %v3858 = vsel %vm255, %v3848, 0.0
        %3859 = vadd.xlane.f32.xlu0 %v3858
        %v3860 = vpop.xlane.xlu0 %3859
        %v3861 = vrcp.pop %v3851
        %v3862 = vrcp.pop %v3854
        %v3863 = vrcp.pop %v3857
        %v3864 = vrcp.pop %v3860
        %v3865 = vmul.f32 %v3842, %v3861
        %v3866 = vmul.f32 %v3844, %v3862
        %v3867 = vmul.f32 %v3846, %v3863
        %v3868 = vmul.f32 %v3848, %v3864
        %v3869 = vpack.c.bf16 %v3866, %v3865
        %v3870 = vpack.c.bf16 %v3868, %v3867
        %v3871 = vld [vmem:[%s3078 + $0x48] sm:$0xf]
        %v3872 = vld [vmem:[%s3078 + $0x4c] sm:$0xf]
        %v3873 = vld [vmem:[%s3078 + $0x50] sm:$0xf]
        %v3874 = vld [vmem:[%s3078 + $0x54] sm:$0xf]
        %v3879 = vunpack.c.l.b16 %v3871
        %v3880 = vunpack.c.l.b16 %v3872
        %v3881 = vunpack.c.l.b16 %v3873
        %v3882 = vunpack.c.l.b16 %v3874
        %v3883 = vpack.c.b16 %v3880, %v3879
        %v3884 = vpack.c.b16 %v3882, %v3881
        %v3888 = vsel %vm255, %v3869, 0
        %v3891 = vsel %vm255, %v3870, 0
        %3893 = vmatpush.bf16.msra.mxu0 0
        %3894 = vmatpush.bf16.msra.mxu0 0
        %3895 = vmatpush.bf16.msra.mxu0 0
        %3896 = vmatpush.bf16.msra.mxu0 0
        %3897 = vmatpush.bf16.msra.mxu0 0
        %3898 = vmatpush.bf16.msra.mxu0 0
        %3899 = vmatpush.bf16.msra.mxu0 %v3884
        %3900 = vmatpush.bf16.msra.mxu0 %v3883
        %3901 = vmatmul.bf16.gmra.mxu0 %v3888
        %v3902 = vpop.f32.mrf.mxu0
        %v3903 = vadd.f32 0.0, %v3902
        %v3904 = vpop.f32.mrf.mxu0
        %v3905 = vadd.f32 0.0, %v3904
        %3906 = vmatmul.bf16.gmra.mxu0 %v3891
        %v3907 = vpop.f32.mrf.mxu0
        %v3908 = vadd.f32 0.0, %v3907
        %v3909 = vpop.f32.mrf.mxu0
        %v3910 = vadd.f32 0.0, %v3909
        %3911 = vdwg.mxu0
        %v3912 = vld [vmem:[%s3078 + $0x58] sm:$0xf]
        %v3913 = vld [vmem:[%s3078 + $0x5c] sm:$0xf]
        %v3914 = vld [vmem:[%s3078 + $0x60] sm:$0xf]
        %v3915 = vld [vmem:[%s3078 + $0x64] sm:$0xf]
        %v3920 = vunpack.c.l.b16 %v3912
        %v3921 = vunpack.c.l.b16 %v3913
        %v3922 = vunpack.c.l.b16 %v3914
        %v3923 = vunpack.c.l.b16 %v3915
        %v3924 = vpack.c.b16 %v3921, %v3920
        %v3925 = vpack.c.b16 %v3923, %v3922
        %3928 = vmatpush.bf16.msra.mxu0 0
        %3929 = vmatpush.bf16.msra.mxu0 0
        %3930 = vmatpush.bf16.msra.mxu0 0
        %3931 = vmatpush.bf16.msra.mxu0 0
        %3932 = vmatpush.bf16.msra.mxu0 0
        %3933 = vmatpush.bf16.msra.mxu0 0
        %3934 = vmatpush.bf16.msra.mxu0 %v3925
        %3935 = vmatpush.bf16.msra.mxu0 %v3924
        %3936 = vmatmul.bf16.gmra.mxu0 %v3888
        %v3937 = vpop.f32.mrf.mxu0
        %v3938 = vadd.f32 0.0, %v3937
        %v3939 = vpop.f32.mrf.mxu0
        %v3940 = vadd.f32 0.0, %v3939
        %3941 = vmatmul.bf16.gmra.mxu0 %v3891
        %v3942 = vpop.f32.mrf.mxu0
        %v3943 = vadd.f32 0.0, %v3942
        %v3944 = vpop.f32.mrf.mxu0
        %v3945 = vadd.f32 0.0, %v3944
        %3946 = vdwg.mxu0
        %v3947 = vld [vmem:[%s3078 + $0x68] sm:$0xf]
        %v3948 = vld [vmem:[%s3078 + $0x6c] sm:$0xf]
        %v3949 = vld [vmem:[%s3078 + $0x70] sm:$0xf]
        %v3950 = vld [vmem:[%s3078 + $0x74] sm:$0xf]
        %v3955 = vunpack.c.l.b16 %v3947
        %v3956 = vunpack.c.l.b16 %v3948
        %v3957 = vunpack.c.l.b16 %v3949
        %v3958 = vunpack.c.l.b16 %v3950
        %v3959 = vpack.c.b16 %v3956, %v3955
        %v3960 = vpack.c.b16 %v3958, %v3957
        %3963 = vmatpush.bf16.msra.mxu0 0
        %3964 = vmatpush.bf16.msra.mxu0 0
        %3965 = vmatpush.bf16.msra.mxu0 0
        %3966 = vmatpush.bf16.msra.mxu0 0
        %3967 = vmatpush.bf16.msra.mxu0 0
        %3968 = vmatpush.bf16.msra.mxu0 0
        %3969 = vmatpush.bf16.msra.mxu0 %v3960
        %3970 = vmatpush.bf16.msra.mxu0 %v3959
        %3971 = vmatmul.bf16.gmra.mxu0 %v3888
        %v3972 = vpop.f32.mrf.mxu0
        %v3973 = vadd.f32 0.0, %v3972
        %v3974 = vpop.f32.mrf.mxu0
        %v3975 = vadd.f32 0.0, %v3974
        %3976 = vmatmul.bf16.gmra.mxu0 %v3891
        %v3977 = vpop.f32.mrf.mxu0
        %v3978 = vadd.f32 0.0, %v3977
        %v3979 = vpop.f32.mrf.mxu0
        %v3980 = vadd.f32 0.0, %v3979
        %3981 = vdwg.mxu0
        %v3982 = vld [vmem:[%s2 + $0x10] sm:$0xf]
        %v3983 = vld [vmem:[%s2 + $0x14] sm:$0xf]
        %v3984 = vld [vmem:[%s2 + $0x18] sm:$0xf]
        %v3985 = vld [vmem:[%s2 + $0x1c] sm:$0xf]
        %v3986 = vld [vmem:[%s2 + $0x20] sm:$0xf]
        %v3987 = vld [vmem:[%s2 + $0x24] sm:$0xf]
        %v3988 = vld [vmem:[%s2 + $0x28] sm:$0xf]
        %v3989 = vld [vmem:[%s2 + $0x2c] sm:$0xf]
        %v3990 = vpack.c.bf16 %v3905, %v3903
        %v3991 = vpack.c.bf16 %v3910, %v3908
        %v3996 = vunpack.c.l.b16 %v3982
        %v3997 = vunpack.c.l.b16 %v3983
        %v3998 = vunpack.c.l.b16 %v3984
        %v3999 = vunpack.c.l.b16 %v3985
        %v4000 = vpack.c.b16 %v3997, %v3996
        %v4001 = vpack.c.b16 %v3999, %v3998
        %v4003 = vsel %vm255, %v4000, 0
        %v4006 = vsel %vm255, %v4001, 0
        %4008 = vmatpush.bf16.msra.mxu0 0
        %4009 = vmatpush.bf16.msra.mxu0 0
        %4010 = vmatpush.bf16.msra.mxu0 0
        %4011 = vmatpush.bf16.msra.mxu0 0
        %4012 = vmatpush.bf16.msra.mxu0 0
        %4013 = vmatpush.bf16.msra.mxu0 0
        %4014 = vmatpush.bf16.msra.mxu0 %v3991
        %4015 = vmatpush.bf16.msra.mxu0 %v3990
        %4016 = vmatmul.bf16.gmra.mxu0 %v4003
        %v4017 = vpop.f32.mrf.mxu0
        %v4018 = vadd.f32 %v3938, %v4017
        %v4019 = vpop.f32.mrf.mxu0
        %v4020 = vadd.f32 %v3940, %v4019
        %4021 = vmatmul.bf16.gmra.mxu0 %v4006
        %v4022 = vpop.f32.mrf.mxu0
        %v4023 = vadd.f32 %v3943, %v4022
        %v4024 = vpop.f32.mrf.mxu0
        %v4025 = vadd.f32 %v3945, %v4024
        %4026 = vdwg.mxu0
        %v4027 = vpack.c.bf16 %v3975, %v3973
        %v4028 = vpack.c.bf16 %v3980, %v3978
        %v4033 = vunpack.c.l.b16 %v3986
        %v4034 = vunpack.c.l.b16 %v3987
        %v4035 = vunpack.c.l.b16 %v3988
        %v4036 = vunpack.c.l.b16 %v3989
        %v4037 = vpack.c.b16 %v4034, %v4033
        %v4038 = vpack.c.b16 %v4036, %v4035
        %v4040 = vsel %vm255, %v4037, 0
        %v4043 = vsel %vm255, %v4038, 0
        %4045 = vmatpush.bf16.msra.mxu0 0
        %4046 = vmatpush.bf16.msra.mxu0 0
        %4047 = vmatpush.bf16.msra.mxu0 0
        %4048 = vmatpush.bf16.msra.mxu0 0
        %4049 = vmatpush.bf16.msra.mxu0 0
        %4050 = vmatpush.bf16.msra.mxu0 0
        %4051 = vmatpush.bf16.msra.mxu0 %v4028
        %4052 = vmatpush.bf16.msra.mxu0 %v4027
        %4053 = vmatmul.bf16.gmra.mxu0 %v4040
        %v4054 = vpop.f32.mrf.mxu0
        %v4055 = vadd.f32 0.0, %v4054
        %v4056 = vpop.f32.mrf.mxu0
        %v4057 = vadd.f32 0.0, %v4056
        %4058 = vmatmul.bf16.gmra.mxu0 %v4043
        %v4059 = vpop.f32.mrf.mxu0
        %v4060 = vadd.f32 0.0, %v4059
        %v4061 = vpop.f32.mrf.mxu0
        %v4062 = vadd.f32 0.0, %v4061
        %4063 = vdwg.mxu0
        %v4064 = vadd.f32 %v4018, %v4055
        %v4065 = vadd.f32 %v4020, %v4057
        %v4066 = vadd.f32 %v4023, %v4060
        %v4067 = vadd.f32 %v4025, %v4062
        %v4068 = vld [vmem:[%s2960 + $0x5] ss:$0 sm:$0xff]
        %4070 = vset.pattern.permute.xlu0 0
        %4071 = vperm.xlu0 %4070, %v4068
        %v4072 = vpop.permute.xlu0 %4071
        %v4074 = vadd.f32 %v4064, %v4072
        %v4075 = vadd.f32 %v4065, %v4072
        %v4076 = vadd.f32 %v4066, %v4072
        %v4077 = vadd.f32 %v4067, %v4072
        %v4078 = vpack.c.bf16 %v3713, %v3711
        %v4079 = vpack.c.bf16 %v4075, %v4074
        %v4080 = vpack.c.bf16 %v4077, %v4076
        %v4082 = vsel %vm255, %v4078, 0
        %4084 = vmatpush.bf16.msra.mxu0 0
        %4085 = vmatpush.bf16.msra.mxu0 0
        %4086 = vmatpush.bf16.msra.mxu0 0
        %4087 = vmatpush.bf16.msra.mxu0 0
        %4088 = vmatpush.bf16.msra.mxu0 0
        %4089 = vmatpush.bf16.msra.mxu0 0
        %4090 = vmatpush.bf16.msra.mxu0 %v4080
        %4091 = vmatpush.bf16.msra.mxu0 %v4079
        %4092 = vmatmul.bf16.gmra.mxu0 %v4082
        %v4093 = vpop.f32.mrf.mxu0
        %v4094 = vadd.f32 %v2956, %v4093
        %v4095 = vpop.f32.mrf.mxu0
        %v4096 = vadd.f32 %v2957, %v4095
        %4097 = vdwg.mxu0
        %v4098 = vld [vmem:[%s2960 + $0x6] ss:$0 sm:$0xff]
        %v4099 = vld [vmem:[%s2960 + $0x7] ss:$0 sm:$0xff]
        %v4100 = vsel %vm255, %v4094, 0.0
        %4101 = vadd.xlane.f32.xlu0 %v4100
        %v4102 = vpop.xlane.xlu0 %4101
        %v4103 = vsel %vm255, %v4096, 0.0
        %4104 = vadd.xlane.f32.xlu0 %v4103
        %v4105 = vpop.xlane.xlu0 %4104
        %v4106 = vmul.f32 %v4102, %v268
        %v4107 = vmul.f32 %v4105, %v268
        %v4108 = vsub.f32 %v4094, %v4106
        %v4109 = vsub.f32 %v4096, %v4107
        %v4110 = vmul.f32 %v4108, %v4108
        %v4111 = vmul.f32 %v4109, %v4109
        %v4112 = vsel %vm255, %v4110, 0.0
        %4113 = vadd.xlane.f32.xlu0 %v4112
        %v4114 = vpop.xlane.xlu0 %4113
        %v4115 = vsel %vm255, %v4111, 0.0
        %4116 = vadd.xlane.f32.xlu0 %v4115
        %v4117 = vpop.xlane.xlu0 %4116
        %v4118 = vmul.f32 %v4114, %v268
        %v4119 = vmul.f32 %v4117, %v268
        %v4120 = vadd.f32 %v4118, 1e-05
        %v4121 = vadd.f32 %v4119, 1e-05
        %v4122 = vrsqrt.pop %v4120
        %v4123 = vmul.f32 %v4122, %v4120
        %v4124 = vmul.f32 %v4123, %v4122
        %v4125 = vmul.f32 0.5, %v4124
        %v4126 = vsub.f32 1.5, %v4125
        %v4127 = vmul.f32 %v4122, %v4126
        %vm4128 = vweird.f32 %v4120
        %vm4129 = vweird.f32 %v4122
        %vm4130 = vmor %vm4128, %vm4129
        %v4131 = vsel %vm4130, %v4122, %v4127
        %v4132 = vrsqrt.pop %v4121
        %v4133 = vmul.f32 %v4132, %v4121
        %v4134 = vmul.f32 %v4133, %v4132
        %v4135 = vmul.f32 0.5, %v4134
        %v4136 = vsub.f32 1.5, %v4135
        %v4137 = vmul.f32 %v4132, %v4136
        %vm4138 = vweird.f32 %v4121
        %vm4139 = vweird.f32 %v4132
        %vm4140 = vmor %vm4138, %vm4139
        %v4141 = vsel %vm4140, %v4132, %v4137
        %v4142 = vmul.f32 %v4108, %v4131
        %v4143 = vmul.f32 %v4109, %v4141
        %v4144 = vmul.f32 %v4142, %v4098
        %v4145 = vmul.f32 %v4143, %v4098
        %v4146 = vadd.f32 %v4144, %v4099
        %v4147 = vadd.f32 %v4145, %v4099
        %v4148 = vpack.c.bf16 %v4147, %v4146
        %v4149 = vld [vmem:[%s2 + $0xb8] sm:$0xf]
        %v4150 = vld [vmem:[%s2 + $0xbc] sm:$0xf]
        %v4151 = vld [vmem:[%s2 + $0xc0] sm:$0xf]
        %v4152 = vld [vmem:[%s2 + $0xc4] sm:$0xf]
        %v4153 = vld [vmem:[%s2 + $0xc8] sm:$0xf]
        %v4154 = vld [vmem:[%s2 + $0xcc] sm:$0xf]
        %v4155 = vld [vmem:[%s2 + $0xd0] sm:$0xf]
        %v4156 = vld [vmem:[%s2 + $0xd4] sm:$0xf]
        %v4157 = vld [vmem:[%s2 + $0xd8] sm:$0xf]
        %v4158 = vld [vmem:[%s2 + $0xdc] sm:$0xf]
        %v4159 = vld [vmem:[%s2 + $0xe0] sm:$0xf]
        %v4160 = vld [vmem:[%s2 + $0xe4] sm:$0xf]
        %v4161 = vld [vmem:[%s2 + $0xe8] sm:$0xf]
        %v4162 = vld [vmem:[%s2 + $0xec] sm:$0xf]
        %v4163 = vld [vmem:[%s2 + $0xf0] sm:$0xf]
        %v4164 = vld [vmem:[%s2 + $0xf4] sm:$0xf]
        %v4165 = vld [vmem:[%s2 + $0xf8] sm:$0xf]
        %v4166 = vld [vmem:[%s2 + $0xfc] sm:$0xf]
        %v4185 = vunpack.c.l.b16 %v4149
        %v4186 = vunpack.c.l.b16 %v4150
        %v4187 = vunpack.c.l.b16 %v4151
        %v4188 = vunpack.c.l.b16 %v4152
        %v4189 = vunpack.c.l.b16 %v4153
        %v4190 = vunpack.c.l.b16 %v4154
        %v4191 = vunpack.c.l.b16 %v4155
        %v4192 = vunpack.c.l.b16 %v4156
        %v4193 = vunpack.c.l.b16 %v4157
        %v4194 = vunpack.c.l.b16 %v4158
        %v4195 = vunpack.c.l.b16 %v4159
        %v4196 = vunpack.c.l.b16 %v4160
        %v4197 = vunpack.c.l.b16 %v4161
        %v4198 = vunpack.c.l.b16 %v4162
        %v4199 = vunpack.c.l.b16 %v4163
        %v4200 = vunpack.c.l.b16 %v4164
        %v4201 = vunpack.c.l.b16 %v4165
        %v4202 = vunpack.c.l.b16 %v4166
        %v4203 = vpack.c.b16 %v4186, %v4185
        %v4204 = vpack.c.b16 %v4188, %v4187
        %v4205 = vpack.c.b16 %v4190, %v4189
        %v4206 = vpack.c.b16 %v4192, %v4191
        %v4207 = vpack.c.b16 %v4194, %v4193
        %v4208 = vpack.c.b16 %v4196, %v4195
        %v4209 = vpack.c.b16 %v4198, %v4197
        %v4210 = vpack.c.b16 %v4200, %v4199
        %v4211 = vpack.c.b16 %v4202, %v4201
        %v4213 = vsel %vm468, %v4203, 0
        %v4216 = vsel %vm468, %v4204, 0
        %v4219 = vsel %vm468, %v4205, 0
        %v4222 = vsel %vm468, %v4206, 0
        %v4225 = vsel %vm468, %v4207, 0
        %v4228 = vsel %vm468, %v4208, 0
        %v4231 = vsel %vm468, %v4209, 0
        %v4234 = vsel %vm468, %v4210, 0
        %v4237 = vsel %vm468, %v4211, 0
        %4239 = vmatpush.bf16.msra.mxu0 0
        %4240 = vmatpush.bf16.msra.mxu0 0
        %4241 = vmatpush.bf16.msra.mxu0 0
        %4242 = vmatpush.bf16.msra.mxu0 0
        %4243 = vmatpush.bf16.msra.mxu0 0
        %4244 = vmatpush.bf16.msra.mxu0 0
        %4245 = vmatpush.bf16.msra.mxu0 0
        %4246 = vmatpush.bf16.msra.mxu0 %v4148
        %4247 = vmatmul.bf16.gmra.mxu0 %v4213
        %v4248 = vpop.f32.mrf.mxu0
        %v4249 = vadd.f32 0.0, %v4248
        %v4250 = vpop.f32.mrf.mxu0
        %v4251 = vadd.f32 0.0, %v4250
        %4252 = vmatmul.bf16.gmra.mxu0 %v4216
        %v4253 = vpop.f32.mrf.mxu0
        %v4254 = vadd.f32 0.0, %v4253
        %v4255 = vpop.f32.mrf.mxu0
        %v4256 = vadd.f32 0.0, %v4255
        %4257 = vmatmul.bf16.gmra.mxu0 %v4219
        %v4258 = vpop.f32.mrf.mxu0
        %v4259 = vadd.f32 0.0, %v4258
        %v4260 = vpop.f32.mrf.mxu0
        %v4261 = vadd.f32 0.0, %v4260
        %4262 = vmatmul.bf16.gmra.mxu0 %v4222
        %v4263 = vpop.f32.mrf.mxu0
        %v4264 = vadd.f32 0.0, %v4263
        %v4265 = vpop.f32.mrf.mxu0
        %v4266 = vadd.f32 0.0, %v4265
        %4267 = vmatmul.bf16.gmra.mxu0 %v4225
        %v4268 = vpop.f32.mrf.mxu0
        %v4269 = vadd.f32 0.0, %v4268
        %v4270 = vpop.f32.mrf.mxu0
        %v4271 = vadd.f32 0.0, %v4270
        %4272 = vmatmul.bf16.gmra.mxu0 %v4228
        %v4273 = vpop.f32.mrf.mxu0
        %v4274 = vadd.f32 0.0, %v4273
        %v4275 = vpop.f32.mrf.mxu0
        %v4276 = vadd.f32 0.0, %v4275
        %4277 = vmatmul.bf16.gmra.mxu0 %v4231
        %v4278 = vpop.f32.mrf.mxu0
        %v4279 = vadd.f32 0.0, %v4278
        %v4280 = vpop.f32.mrf.mxu0
        %v4281 = vadd.f32 0.0, %v4280
        %4282 = vmatmul.bf16.gmra.mxu0 %v4234
        %v4283 = vpop.f32.mrf.mxu0
        %v4284 = vadd.f32 0.0, %v4283
        %v4285 = vpop.f32.mrf.mxu0
        %v4286 = vadd.f32 0.0, %v4285
        %4287 = vmatmul.bf16.gmra.mxu0 %v4237
        %v4288 = vpop.f32.mrf.mxu0
        %v4289 = vadd.f32 0.0, %v4288
        %v4290 = vpop.f32.mrf.mxu0
        %v4291 = vadd.f32 0.0, %v4290
        %4292 = vdwg.mxu0
        %v4293 = vld [vmem:[%s3078 + $0x178] sm:$0xf]
        %v4294 = vld [vmem:[%s3078 + $0x17c] sm:$0xf]
        %v4295 = vld [vmem:[%s3078 + $0x180] sm:$0xf]
        %v4296 = vld [vmem:[%s3078 + $0x184] sm:$0xf]
        %v4297 = vld [vmem:[%s3078 + $0x188] sm:$0xf]
        %v4298 = vld [vmem:[%s3078 + $0x18c] sm:$0xf]
        %v4299 = vld [vmem:[%s3078 + $0x190] sm:$0xf]
        %v4300 = vld [vmem:[%s3078 + $0x194] sm:$0xf]
        %v4301 = vld [vmem:[%s3078 + $0x198] sm:$0xf]
        %v4302 = vld [vmem:[%s3078 + $0x19c] sm:$0xf]
        %v4303 = vld [vmem:[%s3078 + $0x1a0] sm:$0xf]
        %v4304 = vld [vmem:[%s3078 + $0x1a4] sm:$0xf]
        %v4305 = vld [vmem:[%s3078 + $0x1a8] sm:$0xf]
        %v4306 = vld [vmem:[%s3078 + $0x1ac] sm:$0xf]
        %v4307 = vld [vmem:[%s3078 + $0x1b0] sm:$0xf]
        %v4308 = vld [vmem:[%s3078 + $0x1b4] sm:$0xf]
        %v4309 = vld [vmem:[%s3078 + $0x1b8] sm:$0xf]
        %v4310 = vld [vmem:[%s3078 + $0x1bc] sm:$0xf]
        %v4311 = vunpack.c.l.bf16 %v4293
        %v4312 = vunpack.c.l.bf16 %v4294
        %v4313 = vunpack.c.l.bf16 %v4295
        %v4314 = vunpack.c.l.bf16 %v4296
        %v4315 = vunpack.c.l.bf16 %v4297
        %v4316 = vunpack.c.l.bf16 %v4298
        %v4317 = vunpack.c.l.bf16 %v4299
        %v4318 = vunpack.c.l.bf16 %v4300
        %v4319 = vunpack.c.l.bf16 %v4301
        %v4320 = vunpack.c.l.bf16 %v4302
        %v4321 = vunpack.c.l.bf16 %v4303
        %v4322 = vunpack.c.l.bf16 %v4304
        %v4323 = vunpack.c.l.bf16 %v4305
        %v4324 = vunpack.c.l.bf16 %v4306
        %v4325 = vunpack.c.l.bf16 %v4307
        %v4326 = vunpack.c.l.bf16 %v4308
        %v4327 = vunpack.c.l.bf16 %v4309
        %v4328 = vunpack.c.l.bf16 %v4310
        %v4329 = vmul.f32 %v4249, %v4311
        %v4330 = vmul.f32 %v4251, %v4312
        %v4331 = vmul.f32 %v4254, %v4313
        %v4332 = vmul.f32 %v4256, %v4314
        %v4333 = vmul.f32 %v4259, %v4315
        %v4334 = vmul.f32 %v4261, %v4316
        %v4335 = vmul.f32 %v4264, %v4317
        %v4336 = vmul.f32 %v4266, %v4318
        %v4337 = vmul.f32 %v4269, %v4319
        %v4338 = vmul.f32 %v4271, %v4320
        %v4339 = vmul.f32 %v4274, %v4321
        %v4340 = vmul.f32 %v4276, %v4322
        %v4341 = vmul.f32 %v4279, %v4323
        %v4342 = vmul.f32 %v4281, %v4324
        %v4343 = vmul.f32 %v4284, %v4325
        %v4344 = vmul.f32 %v4286, %v4326
        %v4345 = vmul.f32 %v4289, %v4327
        %v4346 = vmul.f32 %v4291, %v4328
        %v4347 = vld [vmem:[%s2960 + $0x20] ss:$0 sm:$0xff]
        %v4348 = vadd.f32 %v4347, %v4329
        %v4349 = vadd.f32 %v4347, %v4330
        %v4350 = vadd.f32 %v4348, %v4331
        %v4351 = vadd.f32 %v4349, %v4332
        %v4352 = vadd.f32 %v4350, %v4333
        %v4353 = vadd.f32 %v4351, %v4334
        %v4354 = vadd.f32 %v4352, %v4335
        %v4355 = vadd.f32 %v4353, %v4336
        %v4356 = vadd.f32 %v4354, %v4337
        %v4357 = vadd.f32 %v4355, %v4338
        %v4358 = vadd.f32 %v4356, %v4339
        %v4359 = vadd.f32 %v4357, %v4340
        %v4360 = vadd.f32 %v4358, %v4341
        %v4361 = vadd.f32 %v4359, %v4342
        %v4362 = vadd.f32 %v4360, %v4343
        %v4363 = vadd.f32 %v4361, %v4344
        %v4364 = vadd.f32 %v4362, %v4345
        %v4365 = vadd.f32 %v4363, %v4346
        %v4366 = vpack.c.bf16 %v4365, %v4364
        %v4367 = vld [vmem:[%s3044 + $0x200] sm:$0xff]
        %v4368 = vld [vmem:[%s3044 + $0x210] sm:$0xff]
        %v4369 = vld [vmem:[%s3044 + $0x220] sm:$0xff]
        %v4370 = vld [vmem:[%s3044 + $0x230] sm:$0xff]
        %s4371 = scalar_lea.vmem %s2960, 33
        %v4372 = vld [vmem:[%s4371] ss:$8 sm:$0x3]
        %v4374 = vperm.slane %v4372, 0
        %v4375 = vperm.slane %v4372, 1
        %v4382 = vunpack.c.l.b16 %v4367
        %v4383 = vunpack.c.h.b16 %v4367
        %v4384 = vunpack.c.l.b16 %v4368
        %v4385 = vunpack.c.h.b16 %v4368
        %v4386 = vunpack.c.l.b16 %v4369
        %v4387 = vunpack.c.h.b16 %v4369
        %v4388 = vunpack.c.l.b16 %v4370
        %v4389 = vunpack.c.h.b16 %v4370
        %v4390 = vpack.c.b16 %v4384, %v4382
        %v4391 = vpack.c.b16 %v4385, %v4383
        %v4392 = vpack.c.b16 %v4388, %v4386
        %v4393 = vpack.c.b16 %v4389, %v4387
        %v4399 = vsel %vm255, %v4366, 0
        %4401 = vmatpush.bf16.msra.mxu0 0
        %4402 = vmatpush.bf16.msra.mxu0 0
        %4403 = vmatpush.bf16.msra.mxu0 0
        %4404 = vmatpush.bf16.msra.mxu0 0
        %4405 = vmatpush.bf16.msra.mxu0 0
        %4406 = vmatpush.bf16.msra.mxu0 0
        %4407 = vmatpush.bf16.msra.mxu0 %v4392
        %4408 = vmatpush.bf16.msra.mxu0 %v4390
        %4409 = vmatmul.bf16.gmra.mxu0 %v4399
        %v4410 = vpop.f32.mrf.mxu0
        %v4411 = vadd.f32 %v4374, %v4410
        %v4412 = vpop.f32.mrf.mxu0
        %v4413 = vadd.f32 %v4374, %v4412
        %4414 = vdwg.mxu0
        %4415 = vmatpush.bf16.msra.mxu0 0
        %4416 = vmatpush.bf16.msra.mxu0 0
        %4417 = vmatpush.bf16.msra.mxu0 0
        %4418 = vmatpush.bf16.msra.mxu0 0
        %4419 = vmatpush.bf16.msra.mxu0 0
        %4420 = vmatpush.bf16.msra.mxu0 0
        %4421 = vmatpush.bf16.msra.mxu0 %v4393
        %4422 = vmatpush.bf16.msra.mxu0 %v4391
        %4423 = vmatmul.bf16.gmra.mxu0 %v4399
        %v4424 = vpop.f32.mrf.mxu0
        %v4425 = vadd.f32 %v4375, %v4424
        %v4426 = vpop.f32.mrf.mxu0
        %v4427 = vadd.f32 %v4375, %v4426
        %4428 = vdwg.mxu0
        %v4429 = vpack.c.bf16 %v4413, %v4411
        %v4430 = vpack.c.bf16 %v4427, %v4425
        %v4431 = vld [vmem:[%s3044] sm:$0xff]
        %v4432 = vld [vmem:[%s3044 + $0x8] sm:$0xff]
        %v4433 = vld [vmem:[%s3044 + $0x10] sm:$0xff]
        %v4434 = vld [vmem:[%s3044 + $0x18] sm:$0xff]
        %v4435 = vld [vmem:[%s3044 + $0x20] sm:$0xff]
        %v4436 = vld [vmem:[%s3044 + $0x28] sm:$0xff]
        %v4437 = vld [vmem:[%s3044 + $0x30] sm:$0xff]
        %v4438 = vld [vmem:[%s3044 + $0x38] sm:$0xff]
        %v4439 = vld [vmem:[%s3044 + $0x40] sm:$0xff]
        %v4440 = vld [vmem:[%s3044 + $0x48] sm:$0xff]
        %v4441 = vld [vmem:[%s3044 + $0x50] sm:$0xff]
        %v4442 = vld [vmem:[%s3044 + $0x58] sm:$0xff]
        %v4443 = vld [vmem:[%s3044 + $0x60] sm:$0xff]
        %v4444 = vld [vmem:[%s3044 + $0x68] sm:$0xff]
        %v4445 = vld [vmem:[%s3044 + $0x70] sm:$0xff]
        %v4446 = vld [vmem:[%s3044 + $0x78] sm:$0xff]
        %v4447 = vld [vmem:[%s3044 + $0x80] sm:$0xff]
        %v4448 = vld [vmem:[%s3044 + $0x88] sm:$0xff]
        %v4449 = vld [vmem:[%s3044 + $0x90] sm:$0xff]
        %v4450 = vld [vmem:[%s3044 + $0x98] sm:$0xff]
        %v4451 = vld [vmem:[%s3044 + $0xa0] sm:$0xff]
        %v4452 = vld [vmem:[%s3044 + $0xa8] sm:$0xff]
        %v4453 = vld [vmem:[%s3044 + $0xb0] sm:$0xff]
        %v4454 = vld [vmem:[%s3044 + $0xb8] sm:$0xff]
        %v4455 = vld [vmem:[%s3044 + $0xc0] sm:$0xff]
        %v4456 = vld [vmem:[%s3044 + $0xc8] sm:$0xff]
        %v4457 = vld [vmem:[%s3044 + $0xd0] sm:$0xff]
        %v4458 = vld [vmem:[%s3044 + $0xd8] sm:$0xff]
        %v4459 = vld [vmem:[%s3044 + $0xe0] sm:$0xff]
        %v4460 = vld [vmem:[%s3044 + $0xe8] sm:$0xff]
        %v4461 = vld [vmem:[%s3044 + $0xf0] sm:$0xff]
        %v4462 = vld [vmem:[%s3044 + $0xf8] sm:$0xff]
        %v4463 = vld [vmem:[%s3044 + $0x100] sm:$0xff]
        %v4464 = vld [vmem:[%s3044 + $0x108] sm:$0xff]
        %v4465 = vld [vmem:[%s3044 + $0x110] sm:$0xff]
        %v4466 = vld [vmem:[%s3044 + $0x118] sm:$0xff]
        %v4467 = vld [vmem:[%s3044 + $0x120] sm:$0xff]
        %v4468 = vld [vmem:[%s3044 + $0x128] sm:$0xff]
        %v4469 = vld [vmem:[%s3044 + $0x130] sm:$0xff]
        %v4470 = vld [vmem:[%s3044 + $0x138] sm:$0xff]
        %v4471 = vld [vmem:[%s3044 + $0x140] sm:$0xff]
        %v4472 = vld [vmem:[%s3044 + $0x148] sm:$0xff]
        %v4473 = vld [vmem:[%s3044 + $0x150] sm:$0xff]
        %v4474 = vld [vmem:[%s3044 + $0x158] sm:$0xff]
        %v4475 = vld [vmem:[%s3044 + $0x160] sm:$0xff]
        %v4476 = vld [vmem:[%s3044 + $0x168] sm:$0xff]
        %v4477 = vld [vmem:[%s3044 + $0x170] sm:$0xff]
        %v4478 = vld [vmem:[%s3044 + $0x178] sm:$0xff]
        %v4479 = vld [vmem:[%s3044 + $0x180] sm:$0xff]
        %v4480 = vld [vmem:[%s3044 + $0x188] sm:$0xff]
        %v4481 = vld [vmem:[%s3044 + $0x190] sm:$0xff]
        %v4482 = vld [vmem:[%s3044 + $0x198] sm:$0xff]
        %v4483 = vld [vmem:[%s3044 + $0x1a0] sm:$0xff]
        %v4484 = vld [vmem:[%s3044 + $0x1a8] sm:$0xff]
        %v4485 = vld [vmem:[%s3044 + $0x1b0] sm:$0xff]
        %v4486 = vld [vmem:[%s3044 + $0x1b8] sm:$0xff]
        %v4487 = vld [vmem:[%s3044 + $0x1c0] sm:$0xff]
        %v4488 = vld [vmem:[%s3044 + $0x1c8] sm:$0xff]
        %v4489 = vld [vmem:[%s3044 + $0x1d0] sm:$0xff]
        %v4490 = vld [vmem:[%s3044 + $0x1d8] sm:$0xff]
        %v4491 = vld [vmem:[%s3044 + $0x1e0] sm:$0xff]
        %v4492 = vld [vmem:[%s3044 + $0x1e8] sm:$0xff]
        %v4493 = vld [vmem:[%s3044 + $0x1f0] sm:$0xff]
        %v4494 = vld [vmem:[%s3044 + $0x1f8] sm:$0xff]
        %s4495 = scalar_lea.vmem %s2960, 34
        %v4496 = vld [vmem:[%s4495] ss:$8 sm:$0xf]
        %v4498 = vperm.slane %v4496, 0
        %v4499 = vperm.slane %v4496, 1
        %v4500 = vperm.slane %v4496, 2
        %v4501 = vperm.slane %v4496, 3
        %v4570 = vunpack.c.l.b16 %v4431
        %v4571 = vunpack.c.h.b16 %v4431
        %v4572 = vunpack.c.l.b16 %v4432
        %v4573 = vunpack.c.h.b16 %v4432
        %v4574 = vunpack.c.l.b16 %v4433
        %v4575 = vunpack.c.h.b16 %v4433
        %v4576 = vunpack.c.l.b16 %v4434
        %v4577 = vunpack.c.h.b16 %v4434
        %v4578 = vunpack.c.l.b16 %v4435
        %v4579 = vunpack.c.h.b16 %v4435
        %v4580 = vunpack.c.l.b16 %v4436
        %v4581 = vunpack.c.h.b16 %v4436
        %v4582 = vunpack.c.l.b16 %v4437
        %v4583 = vunpack.c.h.b16 %v4437
        %v4584 = vunpack.c.l.b16 %v4438
        %v4585 = vunpack.c.h.b16 %v4438
        %v4586 = vunpack.c.l.b16 %v4439
        %v4587 = vunpack.c.h.b16 %v4439
        %v4588 = vunpack.c.l.b16 %v4440
        %v4589 = vunpack.c.h.b16 %v4440
        %v4590 = vunpack.c.l.b16 %v4441
        %v4591 = vunpack.c.h.b16 %v4441
        %v4592 = vunpack.c.l.b16 %v4442
        %v4593 = vunpack.c.h.b16 %v4442
        %v4594 = vunpack.c.l.b16 %v4443
        %v4595 = vunpack.c.h.b16 %v4443
        %v4596 = vunpack.c.l.b16 %v4444
        %v4597 = vunpack.c.h.b16 %v4444
        %v4598 = vunpack.c.l.b16 %v4445
        %v4599 = vunpack.c.h.b16 %v4445
        %v4600 = vunpack.c.l.b16 %v4446
        %v4601 = vunpack.c.h.b16 %v4446
        %v4602 = vunpack.c.l.b16 %v4447
        %v4603 = vunpack.c.h.b16 %v4447
        %v4604 = vunpack.c.l.b16 %v4448
        %v4605 = vunpack.c.h.b16 %v4448
        %v4606 = vunpack.c.l.b16 %v4449
        %v4607 = vunpack.c.h.b16 %v4449
        %v4608 = vunpack.c.l.b16 %v4450
        %v4609 = vunpack.c.h.b16 %v4450
        %v4610 = vunpack.c.l.b16 %v4451
        %v4611 = vunpack.c.h.b16 %v4451
        %v4612 = vunpack.c.l.b16 %v4452
        %v4613 = vunpack.c.h.b16 %v4452
        %v4614 = vunpack.c.l.b16 %v4453
        %v4615 = vunpack.c.h.b16 %v4453
        %v4616 = vunpack.c.l.b16 %v4454
        %v4617 = vunpack.c.h.b16 %v4454
        %v4618 = vunpack.c.l.b16 %v4455
        %v4619 = vunpack.c.h.b16 %v4455
        %v4620 = vunpack.c.l.b16 %v4456
        %v4621 = vunpack.c.h.b16 %v4456
        %v4622 = vunpack.c.l.b16 %v4457
        %v4623 = vunpack.c.h.b16 %v4457
        %v4624 = vunpack.c.l.b16 %v4458
        %v4625 = vunpack.c.h.b16 %v4458
        %v4626 = vunpack.c.l.b16 %v4459
        %v4627 = vunpack.c.h.b16 %v4459
        %v4628 = vunpack.c.l.b16 %v4460
        %v4629 = vunpack.c.h.b16 %v4460
        %v4630 = vunpack.c.l.b16 %v4461
        %v4631 = vunpack.c.h.b16 %v4461
        %v4632 = vunpack.c.l.b16 %v4462
        %v4633 = vunpack.c.h.b16 %v4462
        %v4634 = vunpack.c.l.b16 %v4463
        %v4635 = vunpack.c.h.b16 %v4463
        %v4636 = vunpack.c.l.b16 %v4464
        %v4637 = vunpack.c.h.b16 %v4464
        %v4638 = vunpack.c.l.b16 %v4465
        %v4639 = vunpack.c.h.b16 %v4465
        %v4640 = vunpack.c.l.b16 %v4466
        %v4641 = vunpack.c.h.b16 %v4466
        %v4642 = vunpack.c.l.b16 %v4467
        %v4643 = vunpack.c.h.b16 %v4467
        %v4644 = vunpack.c.l.b16 %v4468
        %v4645 = vunpack.c.h.b16 %v4468
        %v4646 = vunpack.c.l.b16 %v4469
        %v4647 = vunpack.c.h.b16 %v4469
        %v4648 = vunpack.c.l.b16 %v4470
        %v4649 = vunpack.c.h.b16 %v4470
        %v4650 = vunpack.c.l.b16 %v4471
        %v4651 = vunpack.c.h.b16 %v4471
        %v4652 = vunpack.c.l.b16 %v4472
        %v4653 = vunpack.c.h.b16 %v4472
        %v4654 = vunpack.c.l.b16 %v4473
        %v4655 = vunpack.c.h.b16 %v4473
        %v4656 = vunpack.c.l.b16 %v4474
        %v4657 = vunpack.c.h.b16 %v4474
        %v4658 = vunpack.c.l.b16 %v4475
        %v4659 = vunpack.c.h.b16 %v4475
        %v4660 = vunpack.c.l.b16 %v4476
        %v4661 = vunpack.c.h.b16 %v4476
        %v4662 = vunpack.c.l.b16 %v4477
        %v4663 = vunpack.c.h.b16 %v4477
        %v4664 = vunpack.c.l.b16 %v4478
        %v4665 = vunpack.c.h.b16 %v4478
        %v4666 = vunpack.c.l.b16 %v4479
        %v4667 = vunpack.c.h.b16 %v4479
        %v4668 = vunpack.c.l.b16 %v4480
        %v4669 = vunpack.c.h.b16 %v4480
        %v4670 = vunpack.c.l.b16 %v4481
        %v4671 = vunpack.c.h.b16 %v4481
        %v4672 = vunpack.c.l.b16 %v4482
        %v4673 = vunpack.c.h.b16 %v4482
        %v4674 = vunpack.c.l.b16 %v4483
        %v4675 = vunpack.c.h.b16 %v4483
        %v4676 = vunpack.c.l.b16 %v4484
        %v4677 = vunpack.c.h.b16 %v4484
        %v4678 = vunpack.c.l.b16 %v4485
        %v4679 = vunpack.c.h.b16 %v4485
        %v4680 = vunpack.c.l.b16 %v4486
        %v4681 = vunpack.c.h.b16 %v4486
        %v4682 = vunpack.c.l.b16 %v4487
        %v4683 = vunpack.c.h.b16 %v4487
        %v4684 = vunpack.c.l.b16 %v4488
        %v4685 = vunpack.c.h.b16 %v4488
        %v4686 = vunpack.c.l.b16 %v4489
        %v4687 = vunpack.c.h.b16 %v4489
        %v4688 = vunpack.c.l.b16 %v4490
        %v4689 = vunpack.c.h.b16 %v4490
        %v4690 = vunpack.c.l.b16 %v4491
        %v4691 = vunpack.c.h.b16 %v4491
        %v4692 = vunpack.c.l.b16 %v4492
        %v4693 = vunpack.c.h.b16 %v4492
        %v4694 = vunpack.c.l.b16 %v4493
        %v4695 = vunpack.c.h.b16 %v4493
        %v4696 = vunpack.c.l.b16 %v4494
        %v4697 = vunpack.c.h.b16 %v4494
        %v4698 = vpack.c.b16 %v4574, %v4570
        %v4699 = vpack.c.b16 %v4575, %v4571
        %v4700 = vpack.c.b16 %v4576, %v4572
        %v4701 = vpack.c.b16 %v4577, %v4573
        %v4702 = vpack.c.b16 %v4582, %v4578
        %v4703 = vpack.c.b16 %v4583, %v4579
        %v4704 = vpack.c.b16 %v4584, %v4580
        %v4705 = vpack.c.b16 %v4585, %v4581
        %v4706 = vpack.c.b16 %v4590, %v4586
        %v4707 = vpack.c.b16 %v4591, %v4587
        %v4708 = vpack.c.b16 %v4592, %v4588
        %v4709 = vpack.c.b16 %v4593, %v4589
        %v4710 = vpack.c.b16 %v4598, %v4594
        %v4711 = vpack.c.b16 %v4599, %v4595
        %v4712 = vpack.c.b16 %v4600, %v4596
        %v4713 = vpack.c.b16 %v4601, %v4597
        %v4714 = vpack.c.b16 %v4606, %v4602
        %v4715 = vpack.c.b16 %v4607, %v4603
        %v4716 = vpack.c.b16 %v4608, %v4604
        %v4717 = vpack.c.b16 %v4609, %v4605
        %v4718 = vpack.c.b16 %v4614, %v4610
        %v4719 = vpack.c.b16 %v4615, %v4611
        %v4720 = vpack.c.b16 %v4616, %v4612
        %v4721 = vpack.c.b16 %v4617, %v4613
        %v4722 = vpack.c.b16 %v4622, %v4618
        %v4723 = vpack.c.b16 %v4623, %v4619
        %v4724 = vpack.c.b16 %v4624, %v4620
        %v4725 = vpack.c.b16 %v4625, %v4621
        %v4726 = vpack.c.b16 %v4630, %v4626
        %v4727 = vpack.c.b16 %v4631, %v4627
        %v4728 = vpack.c.b16 %v4632, %v4628
        %v4729 = vpack.c.b16 %v4633, %v4629
        %v4730 = vpack.c.b16 %v4638, %v4634
        %v4731 = vpack.c.b16 %v4639, %v4635
        %v4732 = vpack.c.b16 %v4640, %v4636
        %v4733 = vpack.c.b16 %v4641, %v4637
        %v4734 = vpack.c.b16 %v4646, %v4642
        %v4735 = vpack.c.b16 %v4647, %v4643
        %v4736 = vpack.c.b16 %v4648, %v4644
        %v4737 = vpack.c.b16 %v4649, %v4645
        %v4738 = vpack.c.b16 %v4654, %v4650
        %v4739 = vpack.c.b16 %v4655, %v4651
        %v4740 = vpack.c.b16 %v4656, %v4652
        %v4741 = vpack.c.b16 %v4657, %v4653
        %v4742 = vpack.c.b16 %v4662, %v4658
        %v4743 = vpack.c.b16 %v4663, %v4659
        %v4744 = vpack.c.b16 %v4664, %v4660
        %v4745 = vpack.c.b16 %v4665, %v4661
        %v4746 = vpack.c.b16 %v4670, %v4666
        %v4747 = vpack.c.b16 %v4671, %v4667
        %v4748 = vpack.c.b16 %v4672, %v4668
        %v4749 = vpack.c.b16 %v4673, %v4669
        %v4750 = vpack.c.b16 %v4678, %v4674
        %v4751 = vpack.c.b16 %v4679, %v4675
        %v4752 = vpack.c.b16 %v4680, %v4676
        %v4753 = vpack.c.b16 %v4681, %v4677
        %v4754 = vpack.c.b16 %v4686, %v4682
        %v4755 = vpack.c.b16 %v4687, %v4683
        %v4756 = vpack.c.b16 %v4688, %v4684
        %v4757 = vpack.c.b16 %v4689, %v4685
        %v4758 = vpack.c.b16 %v4694, %v4690
        %v4759 = vpack.c.b16 %v4695, %v4691
        %v4760 = vpack.c.b16 %v4696, %v4692
        %v4761 = vpack.c.b16 %v4697, %v4693
        %4826 = vmatpush.bf16.msra.mxu0 %v4726
        %4827 = vmatpush.bf16.msra.mxu0 %v4722
        %4828 = vmatpush.bf16.msra.mxu0 %v4718
        %4829 = vmatpush.bf16.msra.mxu0 %v4714
        %4830 = vmatpush.bf16.msra.mxu0 %v4710
        %4831 = vmatpush.bf16.msra.mxu0 %v4706
        %4832 = vmatpush.bf16.msra.mxu0 %v4702
        %4833 = vmatpush.bf16.msra.mxu0 %v4698
        %4834 = vmatmul.bf16.gmra.mxu0 %v4429
        %v4835 = vpop.f32.mrf.mxu0
        %v4836 = vadd.f32 %v4498, %v4835
        %v4837 = vpop.f32.mrf.mxu0
        %v4838 = vadd.f32 %v4498, %v4837
        %4839 = vdwg.mxu0
        %4840 = vmatpush.bf16.msra.mxu0 %v4758
        %4841 = vmatpush.bf16.msra.mxu0 %v4754
        %4842 = vmatpush.bf16.msra.mxu0 %v4750
        %4843 = vmatpush.bf16.msra.mxu0 %v4746
        %4844 = vmatpush.bf16.msra.mxu0 %v4742
        %4845 = vmatpush.bf16.msra.mxu0 %v4738
        %4846 = vmatpush.bf16.msra.mxu0 %v4734
        %4847 = vmatpush.bf16.msra.mxu0 %v4730
        %4848 = vmatmul.bf16.gmra.mxu0 %v4430
        %v4849 = vpop.f32.mrf.mxu0
        %v4850 = vadd.f32 %v4836, %v4849
        %v4851 = vpop.f32.mrf.mxu0
        %v4852 = vadd.f32 %v4838, %v4851
        %4853 = vdwg.mxu0
        %4854 = vmatpush.bf16.msra.mxu0 %v4727
        %4855 = vmatpush.bf16.msra.mxu0 %v4723
        %4856 = vmatpush.bf16.msra.mxu0 %v4719
        %4857 = vmatpush.bf16.msra.mxu0 %v4715
        %4858 = vmatpush.bf16.msra.mxu0 %v4711
        %4859 = vmatpush.bf16.msra.mxu0 %v4707
        %4860 = vmatpush.bf16.msra.mxu0 %v4703
        %4861 = vmatpush.bf16.msra.mxu0 %v4699
        %4862 = vmatmul.bf16.gmra.mxu0 %v4429
        %v4863 = vpop.f32.mrf.mxu0
        %v4864 = vadd.f32 %v4499, %v4863
        %v4865 = vpop.f32.mrf.mxu0
        %v4866 = vadd.f32 %v4499, %v4865
        %4867 = vdwg.mxu0
        %4868 = vmatpush.bf16.msra.mxu0 %v4759
        %4869 = vmatpush.bf16.msra.mxu0 %v4755
        %4870 = vmatpush.bf16.msra.mxu0 %v4751
        %4871 = vmatpush.bf16.msra.mxu0 %v4747
        %4872 = vmatpush.bf16.msra.mxu0 %v4743
        %4873 = vmatpush.bf16.msra.mxu0 %v4739
        %4874 = vmatpush.bf16.msra.mxu0 %v4735
        %4875 = vmatpush.bf16.msra.mxu0 %v4731
        %4876 = vmatmul.bf16.gmra.mxu0 %v4430
        %v4877 = vpop.f32.mrf.mxu0
        %v4878 = vadd.f32 %v4864, %v4877
        %v4879 = vpop.f32.mrf.mxu0
        %v4880 = vadd.f32 %v4866, %v4879
        %4881 = vdwg.mxu0
        %4882 = vmatpush.bf16.msra.mxu0 %v4728
        %4883 = vmatpush.bf16.msra.mxu0 %v4724
        %4884 = vmatpush.bf16.msra.mxu0 %v4720
        %4885 = vmatpush.bf16.msra.mxu0 %v4716
        %4886 = vmatpush.bf16.msra.mxu0 %v4712
        %4887 = vmatpush.bf16.msra.mxu0 %v4708
        %4888 = vmatpush.bf16.msra.mxu0 %v4704
        %4889 = vmatpush.bf16.msra.mxu0 %v4700
        %4890 = vmatmul.bf16.gmra.mxu0 %v4429
        %v4891 = vpop.f32.mrf.mxu0
        %v4892 = vadd.f32 %v4500, %v4891
        %v4893 = vpop.f32.mrf.mxu0
        %v4894 = vadd.f32 %v4500, %v4893
        %4895 = vdwg.mxu0
        %4896 = vmatpush.bf16.msra.mxu0 %v4760
        %4897 = vmatpush.bf16.msra.mxu0 %v4756
        %4898 = vmatpush.bf16.msra.mxu0 %v4752
        %4899 = vmatpush.bf16.msra.mxu0 %v4748
        %4900 = vmatpush.bf16.msra.mxu0 %v4744
        %4901 = vmatpush.bf16.msra.mxu0 %v4740
        %4902 = vmatpush.bf16.msra.mxu0 %v4736
        %4903 = vmatpush.bf16.msra.mxu0 %v4732
        %4904 = vmatmul.bf16.gmra.mxu0 %v4430
        %v4905 = vpop.f32.mrf.mxu0
        %v4906 = vadd.f32 %v4892, %v4905
        %v4907 = vpop.f32.mrf.mxu0
        %v4908 = vadd.f32 %v4894, %v4907
        %4909 = vdwg.mxu0
        %4910 = vmatpush.bf16.msra.mxu0 %v4729
        %4911 = vmatpush.bf16.msra.mxu0 %v4725
        %4912 = vmatpush.bf16.msra.mxu0 %v4721
        %4913 = vmatpush.bf16.msra.mxu0 %v4717
        %4914 = vmatpush.bf16.msra.mxu0 %v4713
        %4915 = vmatpush.bf16.msra.mxu0 %v4709
        %4916 = vmatpush.bf16.msra.mxu0 %v4705
        %4917 = vmatpush.bf16.msra.mxu0 %v4701
        %4918 = vmatmul.bf16.gmra.mxu0 %v4429
        %v4919 = vpop.f32.mrf.mxu0
        %v4920 = vadd.f32 %v4501, %v4919
        %v4921 = vpop.f32.mrf.mxu0
        %v4922 = vadd.f32 %v4501, %v4921
        %4923 = vdwg.mxu0
        %4924 = vmatpush.bf16.msra.mxu0 %v4761
        %4925 = vmatpush.bf16.msra.mxu0 %v4757
        %4926 = vmatpush.bf16.msra.mxu0 %v4753
        %4927 = vmatpush.bf16.msra.mxu0 %v4749
        %4928 = vmatpush.bf16.msra.mxu0 %v4745
        %4929 = vmatpush.bf16.msra.mxu0 %v4741
        %4930 = vmatpush.bf16.msra.mxu0 %v4737
        %4931 = vmatpush.bf16.msra.mxu0 %v4733
        %4932 = vmatmul.bf16.gmra.mxu0 %v4430
        %v4933 = vpop.f32.mrf.mxu0
        %v4934 = vadd.f32 %v4920, %v4933
        %v4935 = vpop.f32.mrf.mxu0
        %v4936 = vadd.f32 %v4922, %v4935
        %4937 = vdwg.mxu0
        %v4938 = vmul.f32 %v4850, 0.5
        %v4939 = vmul.f32 %v4878, 0.5
        %v4940 = vmul.f32 %v4906, 0.5
        %v4941 = vmul.f32 %v4934, 0.5
        %v4942 = vmul.f32 %v4852, 0.5
        %v4943 = vmul.f32 %v4880, 0.5
        %v4944 = vmul.f32 %v4908, 0.5
        %v4945 = vmul.f32 %v4936, 0.5
        %v4946 = vmul.f32 %v4850, 0.70710677
        %v4947 = vmul.f32 %v4878, 0.70710677
        %v4948 = vmul.f32 %v4906, 0.70710677
        %v4949 = vmul.f32 %v4934, 0.70710677
        %v4950 = vmul.f32 %v4852, 0.70710677
        %v4951 = vmul.f32 %v4880, 0.70710677
        %v4952 = vmul.f32 %v4908, 0.70710677
        %v4953 = vmul.f32 %v4936, 0.70710677
        %vm4954 = vcmp.ge.f32.partialorder %v4946, 0.0
        %vm4955 = vcmp.ge.f32.partialorder %v4947, 0.0
        %vm4956 = vcmp.ge.f32.partialorder %v4948, 0.0
        %vm4957 = vcmp.ge.f32.partialorder %v4949, 0.0
        %vm4958 = vcmp.ge.f32.partialorder %v4950, 0.0
        %vm4959 = vcmp.ge.f32.partialorder %v4951, 0.0
        %vm4960 = vcmp.ge.f32.partialorder %v4952, 0.0
        %vm4961 = vcmp.ge.f32.partialorder %v4953, 0.0
        %v4962 = vsel %vm4954, 1.0, -1.0
        %v4963 = vsel %vm4955, 1.0, -1.0
        %v4964 = vsel %vm4956, 1.0, -1.0
        %v4965 = vsel %vm4957, 1.0, -1.0
        %v4966 = vsel %vm4958, 1.0, -1.0
        %v4967 = vsel %vm4959, 1.0, -1.0
        %v4968 = vsel %vm4960, 1.0, -1.0
        %v4969 = vsel %vm4961, 1.0, -1.0
        %v4970 = vand.u32 2147483647, %v4946
        %v4971 = vand.u32 2147483647, %v4947
        %v4972 = vand.u32 2147483647, %v4948
        %v4973 = vand.u32 2147483647, %v4949
        %v4974 = vand.u32 2147483647, %v4950
        %v4975 = vand.u32 2147483647, %v4951
        %v4976 = vand.u32 2147483647, %v4952
        %v4977 = vand.u32 2147483647, %v4953
        %v4978 = vmul.f32 %v4970, 0.3275911
        %v4979 = vmul.f32 %v4971, 0.3275911
        %v4980 = vmul.f32 %v4972, 0.3275911
        %v4981 = vmul.f32 %v4973, 0.3275911
        %v4982 = vmul.f32 %v4974, 0.3275911
        %v4983 = vmul.f32 %v4975, 0.3275911
        %v4984 = vmul.f32 %v4976, 0.3275911
        %v4985 = vmul.f32 %v4977, 0.3275911
        %v4986 = vadd.f32 %v4978, 1.0
        %v4987 = vadd.f32 %v4979, 1.0
        %v4988 = vadd.f32 %v4980, 1.0
        %v4989 = vadd.f32 %v4981, 1.0
        %v4990 = vadd.f32 %v4982, 1.0
        %v4991 = vadd.f32 %v4983, 1.0
        %v4992 = vadd.f32 %v4984, 1.0
        %v4993 = vadd.f32 %v4985, 1.0
        %v4994 = vrcp.pop %v4986
        %v4995 = vmul.f32 %v4986, %v4994
        %v4996 = vsub.f32 1.0, %v4995
        %v4997 = vmul.f32 %v4994, %v4996
        %v4998 = vadd.f32 %v4994, %v4997
        %vm4999 = vweird.f32 %v4986
        %vm5000 = vweird.f32 %v4994
        %vm5001 = vmor %vm4999, %vm5000
        %v5002 = vsel %vm5001, %v4994, %v4998
        %v5003 = vand.u32 2147483647, %v4986
        %vm5004 = vcmp.eq.f32.partialorder %v5003, 8.507059e+37
        %v5005 = vand.u32 %v4986, 2147483648
        %v5006 = vor.u32 1.1754944e-38, %v5005
        %v5007 = vsel %vm5004, %v5006, %v5002
        %v5008 = vmul.f32 1.0, %v5007
        %v5009 = vrcp.pop %v4987
        %v5010 = vmul.f32 %v4987, %v5009
        %v5011 = vsub.f32 1.0, %v5010
        %v5012 = vmul.f32 %v5009, %v5011
        %v5013 = vadd.f32 %v5009, %v5012
        %vm5014 = vweird.f32 %v4987
        %vm5015 = vweird.f32 %v5009
        %vm5016 = vmor %vm5014, %vm5015
        %v5017 = vsel %vm5016, %v5009, %v5013
        %v5018 = vand.u32 2147483647, %v4987
        %vm5019 = vcmp.eq.f32.partialorder %v5018, 8.507059e+37
        %v5020 = vand.u32 %v4987, 2147483648
        %v5021 = vor.u32 1.1754944e-38, %v5020
        %v5022 = vsel %vm5019, %v5021, %v5017
        %v5023 = vmul.f32 1.0, %v5022
        %v5024 = vrcp.pop %v4988
        %v5025 = vmul.f32 %v4988, %v5024
        %v5026 = vsub.f32 1.0, %v5025
        %v5027 = vmul.f32 %v5024, %v5026
        %v5028 = vadd.f32 %v5024, %v5027
        %vm5029 = vweird.f32 %v4988
        %vm5030 = vweird.f32 %v5024
        %vm5031 = vmor %vm5029, %vm5030
        %v5032 = vsel %vm5031, %v5024, %v5028
        %v5033 = vand.u32 2147483647, %v4988
        %vm5034 = vcmp.eq.f32.partialorder %v5033, 8.507059e+37
        %v5035 = vand.u32 %v4988, 2147483648
        %v5036 = vor.u32 1.1754944e-38, %v5035
        %v5037 = vsel %vm5034, %v5036, %v5032
        %v5038 = vmul.f32 1.0, %v5037
        %v5039 = vrcp.pop %v4989
        %v5040 = vmul.f32 %v4989, %v5039
        %v5041 = vsub.f32 1.0, %v5040
        %v5042 = vmul.f32 %v5039, %v5041
        %v5043 = vadd.f32 %v5039, %v5042
        %vm5044 = vweird.f32 %v4989
        %vm5045 = vweird.f32 %v5039
        %vm5046 = vmor %vm5044, %vm5045
        %v5047 = vsel %vm5046, %v5039, %v5043
        %v5048 = vand.u32 2147483647, %v4989
        %vm5049 = vcmp.eq.f32.partialorder %v5048, 8.507059e+37
        %v5050 = vand.u32 %v4989, 2147483648
        %v5051 = vor.u32 1.1754944e-38, %v5050
        %v5052 = vsel %vm5049, %v5051, %v5047
        %v5053 = vmul.f32 1.0, %v5052
        %v5054 = vrcp.pop %v4990
        %v5055 = vmul.f32 %v4990, %v5054
        %v5056 = vsub.f32 1.0, %v5055
        %v5057 = vmul.f32 %v5054, %v5056
        %v5058 = vadd.f32 %v5054, %v5057
        %vm5059 = vweird.f32 %v4990
        %vm5060 = vweird.f32 %v5054
        %vm5061 = vmor %vm5059, %vm5060
        %v5062 = vsel %vm5061, %v5054, %v5058
        %v5063 = vand.u32 2147483647, %v4990
        %vm5064 = vcmp.eq.f32.partialorder %v5063, 8.507059e+37
        %v5065 = vand.u32 %v4990, 2147483648
        %v5066 = vor.u32 1.1754944e-38, %v5065
        %v5067 = vsel %vm5064, %v5066, %v5062
        %v5068 = vmul.f32 1.0, %v5067
        %v5069 = vrcp.pop %v4991
        %v5070 = vmul.f32 %v4991, %v5069
        %v5071 = vsub.f32 1.0, %v5070
        %v5072 = vmul.f32 %v5069, %v5071
        %v5073 = vadd.f32 %v5069, %v5072
        %vm5074 = vweird.f32 %v4991
        %vm5075 = vweird.f32 %v5069
        %vm5076 = vmor %vm5074, %vm5075
        %v5077 = vsel %vm5076, %v5069, %v5073
        %v5078 = vand.u32 2147483647, %v4991
        %vm5079 = vcmp.eq.f32.partialorder %v5078, 8.507059e+37
        %v5080 = vand.u32 %v4991, 2147483648
        %v5081 = vor.u32 1.1754944e-38, %v5080
        %v5082 = vsel %vm5079, %v5081, %v5077
        %v5083 = vmul.f32 1.0, %v5082
        %v5084 = vrcp.pop %v4992
        %v5085 = vmul.f32 %v4992, %v5084
        %v5086 = vsub.f32 1.0, %v5085
        %v5087 = vmul.f32 %v5084, %v5086
        %v5088 = vadd.f32 %v5084, %v5087
        %vm5089 = vweird.f32 %v4992
        %vm5090 = vweird.f32 %v5084
        %vm5091 = vmor %vm5089, %vm5090
        %v5092 = vsel %vm5091, %v5084, %v5088
        %v5093 = vand.u32 2147483647, %v4992
        %vm5094 = vcmp.eq.f32.partialorder %v5093, 8.507059e+37
        %v5095 = vand.u32 %v4992, 2147483648
        %v5096 = vor.u32 1.1754944e-38, %v5095
        %v5097 = vsel %vm5094, %v5096, %v5092
        %v5098 = vmul.f32 1.0, %v5097
        %v5099 = vrcp.pop %v4993
        %v5100 = vmul.f32 %v4993, %v5099
        %v5101 = vsub.f32 1.0, %v5100
        %v5102 = vmul.f32 %v5099, %v5101
        %v5103 = vadd.f32 %v5099, %v5102
        %vm5104 = vweird.f32 %v4993
        %vm5105 = vweird.f32 %v5099
        %vm5106 = vmor %vm5104, %vm5105
        %v5107 = vsel %vm5106, %v5099, %v5103
        %v5108 = vand.u32 2147483647, %v4993
        %vm5109 = vcmp.eq.f32.partialorder %v5108, 8.507059e+37
        %v5110 = vand.u32 %v4993, 2147483648
        %v5111 = vor.u32 1.1754944e-38, %v5110
        %v5112 = vsel %vm5109, %v5111, %v5107
        %v5113 = vmul.f32 1.0, %v5112
        %v5114 = vmul.f32 %v5008, 1.0614054
        %v5115 = vmul.f32 %v5023, 1.0614054
        %v5116 = vmul.f32 %v5038, 1.0614054
        %v5117 = vmul.f32 %v5053, 1.0614054
        %v5118 = vmul.f32 %v5068, 1.0614054
        %v5119 = vmul.f32 %v5083, 1.0614054
        %v5120 = vmul.f32 %v5098, 1.0614054
        %v5121 = vmul.f32 %v5113, 1.0614054
        %v5122 = vadd.f32 %v5114, -1.4531521
        %v5123 = vadd.f32 %v5115, -1.4531521
        %v5124 = vadd.f32 %v5116, -1.4531521
        %v5125 = vadd.f32 %v5117, -1.4531521
        %v5126 = vadd.f32 %v5118, -1.4531521
        %v5127 = vadd.f32 %v5119, -1.4531521
        %v5128 = vadd.f32 %v5120, -1.4531521
        %v5129 = vadd.f32 %v5121, -1.4531521
        %v5130 = vmul.f32 %v5122, %v5008
        %v5131 = vmul.f32 %v5123, %v5023
        %v5132 = vmul.f32 %v5124, %v5038
        %v5133 = vmul.f32 %v5125, %v5053
        %v5134 = vmul.f32 %v5126, %v5068
        %v5135 = vmul.f32 %v5127, %v5083
        %v5136 = vmul.f32 %v5128, %v5098
        %v5137 = vmul.f32 %v5129, %v5113
        %v5138 = vadd.f32 %v5130, 1.4214138
        %v5139 = vadd.f32 %v5131, 1.4214138
        %v5140 = vadd.f32 %v5132, 1.4214138
        %v5141 = vadd.f32 %v5133, 1.4214138
        %v5142 = vadd.f32 %v5134, 1.4214138
        %v5143 = vadd.f32 %v5135, 1.4214138
        %v5144 = vadd.f32 %v5136, 1.4214138
        %v5145 = vadd.f32 %v5137, 1.4214138
        %v5146 = vmul.f32 %v5138, %v5008
        %v5147 = vmul.f32 %v5139, %v5023
        %v5148 = vmul.f32 %v5140, %v5038
        %v5149 = vmul.f32 %v5141, %v5053
        %v5150 = vmul.f32 %v5142, %v5068
        %v5151 = vmul.f32 %v5143, %v5083
        %v5152 = vmul.f32 %v5144, %v5098
        %v5153 = vmul.f32 %v5145, %v5113
        %v5154 = vadd.f32 %v5146, -0.28449672
        %v5155 = vadd.f32 %v5147, -0.28449672
        %v5156 = vadd.f32 %v5148, -0.28449672
        %v5157 = vadd.f32 %v5149, -0.28449672
        %v5158 = vadd.f32 %v5150, -0.28449672
        %v5159 = vadd.f32 %v5151, -0.28449672
        %v5160 = vadd.f32 %v5152, -0.28449672
        %v5161 = vadd.f32 %v5153, -0.28449672
        %v5162 = vmul.f32 %v5154, %v5008
        %v5163 = vmul.f32 %v5155, %v5023
        %v5164 = vmul.f32 %v5156, %v5038
        %v5165 = vmul.f32 %v5157, %v5053
        %v5166 = vmul.f32 %v5158, %v5068
        %v5167 = vmul.f32 %v5159, %v5083
        %v5168 = vmul.f32 %v5160, %v5098
        %v5169 = vmul.f32 %v5161, %v5113
        %v5170 = vadd.f32 %v5162, 0.2548296
        %v5171 = vadd.f32 %v5163, 0.2548296
        %v5172 = vadd.f32 %v5164, 0.2548296
        %v5173 = vadd.f32 %v5165, 0.2548296
        %v5174 = vadd.f32 %v5166, 0.2548296
        %v5175 = vadd.f32 %v5167, 0.2548296
        %v5176 = vadd.f32 %v5168, 0.2548296
        %v5177 = vadd.f32 %v5169, 0.2548296
        %v5178 = vmul.f32 %v5170, %v5008
        %v5179 = vmul.f32 %v5171, %v5023
        %v5180 = vmul.f32 %v5172, %v5038
        %v5181 = vmul.f32 %v5173, %v5053
        %v5182 = vmul.f32 %v5174, %v5068
        %v5183 = vmul.f32 %v5175, %v5083
        %v5184 = vmul.f32 %v5176, %v5098
        %v5185 = vmul.f32 %v5177, %v5113
        %v5186 = vsub.f32 0.0, %v4970
        %v5187 = vsub.f32 0.0, %v4971
        %v5188 = vsub.f32 0.0, %v4972
        %v5189 = vsub.f32 0.0, %v4973
        %v5190 = vsub.f32 0.0, %v4974
        %v5191 = vsub.f32 0.0, %v4975
        %v5192 = vsub.f32 0.0, %v4976
        %v5193 = vsub.f32 0.0, %v4977
        %v5194 = vmul.f32 %v5186, %v4970
        %v5195 = vmul.f32 %v5187, %v4971
        %v5196 = vmul.f32 %v5188, %v4972
        %v5197 = vmul.f32 %v5189, %v4973
        %v5198 = vmul.f32 %v5190, %v4974
        %v5199 = vmul.f32 %v5191, %v4975
        %v5200 = vmul.f32 %v5192, %v4976
        %v5201 = vmul.f32 %v5193, %v4977
        %v5202 = vmul.f32 %v5194, 1.442695
        %v5203 = vpow.pop %v5202
        %v5204 = vmul.f32 %v5195, 1.442695
        %v5205 = vpow.pop %v5204
        %v5206 = vmul.f32 %v5196, 1.442695
        %v5207 = vpow.pop %v5206
        %v5208 = vmul.f32 %v5197, 1.442695
        %v5209 = vpow.pop %v5208
        %v5210 = vmul.f32 %v5198, 1.442695
        %v5211 = vpow.pop %v5210
        %v5212 = vmul.f32 %v5199, 1.442695
        %v5213 = vpow.pop %v5212
        %v5214 = vmul.f32 %v5200, 1.442695
        %v5215 = vpow.pop %v5214
        %v5216 = vmul.f32 %v5201, 1.442695
        %v5217 = vpow.pop %v5216
        %v5218 = vmul.f32 %v5178, %v5203
        %v5219 = vmul.f32 %v5179, %v5205
        %v5220 = vmul.f32 %v5180, %v5207
        %v5221 = vmul.f32 %v5181, %v5209
        %v5222 = vmul.f32 %v5182, %v5211
        %v5223 = vmul.f32 %v5183, %v5213
        %v5224 = vmul.f32 %v5184, %v5215
        %v5225 = vmul.f32 %v5185, %v5217
        %v5226 = vsub.f32 1.0, %v5218
        %v5227 = vsub.f32 1.0, %v5219
        %v5228 = vsub.f32 1.0, %v5220
        %v5229 = vsub.f32 1.0, %v5221
        %v5230 = vsub.f32 1.0, %v5222
        %v5231 = vsub.f32 1.0, %v5223
        %v5232 = vsub.f32 1.0, %v5224
        %v5233 = vsub.f32 1.0, %v5225
        %v5234 = vmul.f32 %v4962, %v5226
        %v5235 = vmul.f32 %v4963, %v5227
        %v5236 = vmul.f32 %v4964, %v5228
        %v5237 = vmul.f32 %v4965, %v5229
        %v5238 = vmul.f32 %v4966, %v5230
        %v5239 = vmul.f32 %v4967, %v5231
        %v5240 = vmul.f32 %v4968, %v5232
        %v5241 = vmul.f32 %v4969, %v5233
        %v5242 = vadd.f32 %v5234, 1.0
        %v5243 = vadd.f32 %v5235, 1.0
        %v5244 = vadd.f32 %v5236, 1.0
        %v5245 = vadd.f32 %v5237, 1.0
        %v5246 = vadd.f32 %v5238, 1.0
        %v5247 = vadd.f32 %v5239, 1.0
        %v5248 = vadd.f32 %v5240, 1.0
        %v5249 = vadd.f32 %v5241, 1.0
        %v5250 = vmul.f32 %v4938, %v5242
        %v5251 = vmul.f32 %v4939, %v5243
        %v5252 = vmul.f32 %v4940, %v5244
        %v5253 = vmul.f32 %v4941, %v5245
        %v5254 = vmul.f32 %v4942, %v5246
        %v5255 = vmul.f32 %v4943, %v5247
        %v5256 = vmul.f32 %v4944, %v5248
        %v5257 = vmul.f32 %v4945, %v5249
        %v5258 = vpack.c.bf16 %v5254, %v5250
        %v5259 = vpack.c.bf16 %v5255, %v5251
        %v5260 = vpack.c.bf16 %v5256, %v5252
        %v5261 = vpack.c.bf16 %v5257, %v5253
        %v5262 = vld [vmem:[%s3078 + $0x78] sm:$0xf]
        %v5263 = vld [vmem:[%s3078 + $0x7c] sm:$0xf]
        %v5264 = vld [vmem:[%s3078 + $0x80] sm:$0xf]
        %v5265 = vld [vmem:[%s3078 + $0x84] sm:$0xf]
        %v5266 = vld [vmem:[%s3078 + $0x88] sm:$0xf]
        %v5267 = vld [vmem:[%s3078 + $0x8c] sm:$0xf]
        %v5268 = vld [vmem:[%s3078 + $0x90] sm:$0xf]
        %v5269 = vld [vmem:[%s3078 + $0x94] sm:$0xf]
        %v5270 = vld [vmem:[%s3078 + $0x98] sm:$0xf]
        %v5271 = vld [vmem:[%s3078 + $0x9c] sm:$0xf]
        %v5272 = vld [vmem:[%s3078 + $0xa0] sm:$0xf]
        %v5273 = vld [vmem:[%s3078 + $0xa4] sm:$0xf]
        %v5274 = vld [vmem:[%s3078 + $0xa8] sm:$0xf]
        %v5275 = vld [vmem:[%s3078 + $0xac] sm:$0xf]
        %v5276 = vld [vmem:[%s3078 + $0xb0] sm:$0xf]
        %v5277 = vld [vmem:[%s3078 + $0xb4] sm:$0xf]
        %v5278 = vld [vmem:[%s3078 + $0xb8] sm:$0xf]
        %v5279 = vld [vmem:[%s3078 + $0xbc] sm:$0xf]
        %v5280 = vld [vmem:[%s3078 + $0xc0] sm:$0xf]
        %v5281 = vld [vmem:[%s3078 + $0xc4] sm:$0xf]
        %v5282 = vld [vmem:[%s3078 + $0xc8] sm:$0xf]
        %v5283 = vld [vmem:[%s3078 + $0xcc] sm:$0xf]
        %v5284 = vld [vmem:[%s3078 + $0xd0] sm:$0xf]
        %v5285 = vld [vmem:[%s3078 + $0xd4] sm:$0xf]
        %v5286 = vld [vmem:[%s3078 + $0xd8] sm:$0xf]
        %v5287 = vld [vmem:[%s3078 + $0xdc] sm:$0xf]
        %v5288 = vld [vmem:[%s3078 + $0xe0] sm:$0xf]
        %v5289 = vld [vmem:[%s3078 + $0xe4] sm:$0xf]
        %v5290 = vld [vmem:[%s3078 + $0xe8] sm:$0xf]
        %v5291 = vld [vmem:[%s3078 + $0xec] sm:$0xf]
        %v5292 = vld [vmem:[%s3078 + $0xf0] sm:$0xf]
        %v5293 = vld [vmem:[%s3078 + $0xf4] sm:$0xf]
        %v5294 = vld [vmem:[%s3078 + $0xf8] sm:$0xf]
        %v5295 = vld [vmem:[%s3078 + $0xfc] sm:$0xf]
        %v5296 = vld [vmem:[%s3078 + $0x100] sm:$0xf]
        %v5297 = vld [vmem:[%s3078 + $0x104] sm:$0xf]
        %v5298 = vld [vmem:[%s3078 + $0x108] sm:$0xf]
        %v5299 = vld [vmem:[%s3078 + $0x10c] sm:$0xf]
        %v5300 = vld [vmem:[%s3078 + $0x110] sm:$0xf]
        %v5301 = vld [vmem:[%s3078 + $0x114] sm:$0xf]
        %v5302 = vld [vmem:[%s3078 + $0x118] sm:$0xf]
        %v5303 = vld [vmem:[%s3078 + $0x11c] sm:$0xf]
        %v5304 = vld [vmem:[%s3078 + $0x120] sm:$0xf]
        %v5305 = vld [vmem:[%s3078 + $0x124] sm:$0xf]
        %v5306 = vld [vmem:[%s3078 + $0x128] sm:$0xf]
        %v5307 = vld [vmem:[%s3078 + $0x12c] sm:$0xf]
        %v5308 = vld [vmem:[%s3078 + $0x130] sm:$0xf]
        %v5309 = vld [vmem:[%s3078 + $0x134] sm:$0xf]
        %v5310 = vld [vmem:[%s3078 + $0x138] sm:$0xf]
        %v5311 = vld [vmem:[%s3078 + $0x13c] sm:$0xf]
        %v5312 = vld [vmem:[%s3078 + $0x140] sm:$0xf]
        %v5313 = vld [vmem:[%s3078 + $0x144] sm:$0xf]
        %v5314 = vld [vmem:[%s3078 + $0x148] sm:$0xf]
        %v5315 = vld [vmem:[%s3078 + $0x14c] sm:$0xf]
        %v5316 = vld [vmem:[%s3078 + $0x150] sm:$0xf]
        %v5317 = vld [vmem:[%s3078 + $0x154] sm:$0xf]
        %v5318 = vld [vmem:[%s3078 + $0x158] sm:$0xf]
        %v5319 = vld [vmem:[%s3078 + $0x15c] sm:$0xf]
        %v5320 = vld [vmem:[%s3078 + $0x160] sm:$0xf]
        %v5321 = vld [vmem:[%s3078 + $0x164] sm:$0xf]
        %v5322 = vld [vmem:[%s3078 + $0x168] sm:$0xf]
        %v5323 = vld [vmem:[%s3078 + $0x16c] sm:$0xf]
        %v5324 = vld [vmem:[%s3078 + $0x170] sm:$0xf]
        %v5325 = vld [vmem:[%s3078 + $0x174] sm:$0xf]
        %v5326 = vld [vmem:[%s2960 + $0x23] ss:$0 sm:$0xff]
        %v5391 = vunpack.c.l.b16 %v5262
        %v5392 = vunpack.c.l.b16 %v5263
        %v5393 = vunpack.c.l.b16 %v5264
        %v5394 = vunpack.c.l.b16 %v5265
        %v5395 = vunpack.c.l.b16 %v5266
        %v5396 = vunpack.c.l.b16 %v5267
        %v5397 = vunpack.c.l.b16 %v5268
        %v5398 = vunpack.c.l.b16 %v5269
        %v5399 = vunpack.c.l.b16 %v5270
        %v5400 = vunpack.c.l.b16 %v5271
        %v5401 = vunpack.c.l.b16 %v5272
        %v5402 = vunpack.c.l.b16 %v5273
        %v5403 = vunpack.c.l.b16 %v5274
        %v5404 = vunpack.c.l.b16 %v5275
        %v5405 = vunpack.c.l.b16 %v5276
        %v5406 = vunpack.c.l.b16 %v5277
        %v5407 = vunpack.c.l.b16 %v5278
        %v5408 = vunpack.c.l.b16 %v5279
        %v5409 = vunpack.c.l.b16 %v5280
        %v5410 = vunpack.c.l.b16 %v5281
        %v5411 = vunpack.c.l.b16 %v5282
        %v5412 = vunpack.c.l.b16 %v5283
        %v5413 = vunpack.c.l.b16 %v5284
        %v5414 = vunpack.c.l.b16 %v5285
        %v5415 = vunpack.c.l.b16 %v5286
        %v5416 = vunpack.c.l.b16 %v5287
        %v5417 = vunpack.c.l.b16 %v5288
        %v5418 = vunpack.c.l.b16 %v5289
        %v5419 = vunpack.c.l.b16 %v5290
        %v5420 = vunpack.c.l.b16 %v5291
        %v5421 = vunpack.c.l.b16 %v5292
        %v5422 = vunpack.c.l.b16 %v5293
        %v5423 = vunpack.c.l.b16 %v5294
        %v5424 = vunpack.c.l.b16 %v5295
        %v5425 = vunpack.c.l.b16 %v5296
        %v5426 = vunpack.c.l.b16 %v5297
        %v5427 = vunpack.c.l.b16 %v5298
        %v5428 = vunpack.c.l.b16 %v5299
        %v5429 = vunpack.c.l.b16 %v5300
        %v5430 = vunpack.c.l.b16 %v5301
        %v5431 = vunpack.c.l.b16 %v5302
        %v5432 = vunpack.c.l.b16 %v5303
        %v5433 = vunpack.c.l.b16 %v5304
        %v5434 = vunpack.c.l.b16 %v5305
        %v5435 = vunpack.c.l.b16 %v5306
        %v5436 = vunpack.c.l.b16 %v5307
        %v5437 = vunpack.c.l.b16 %v5308
        %v5438 = vunpack.c.l.b16 %v5309
        %v5439 = vunpack.c.l.b16 %v5310
        %v5440 = vunpack.c.l.b16 %v5311
        %v5441 = vunpack.c.l.b16 %v5312
        %v5442 = vunpack.c.l.b16 %v5313
        %v5443 = vunpack.c.l.b16 %v5314
        %v5444 = vunpack.c.l.b16 %v5315
        %v5445 = vunpack.c.l.b16 %v5316
        %v5446 = vunpack.c.l.b16 %v5317
        %v5447 = vunpack.c.l.b16 %v5318
        %v5448 = vunpack.c.l.b16 %v5319
        %v5449 = vunpack.c.l.b16 %v5320
        %v5450 = vunpack.c.l.b16 %v5321
        %v5451 = vunpack.c.l.b16 %v5322
        %v5452 = vunpack.c.l.b16 %v5323
        %v5453 = vunpack.c.l.b16 %v5324
        %v5454 = vunpack.c.l.b16 %v5325
        %v5455 = vpack.c.b16 %v5392, %v5391
        %v5456 = vpack.c.b16 %v5394, %v5393
        %v5457 = vpack.c.b16 %v5396, %v5395
        %v5458 = vpack.c.b16 %v5398, %v5397
        %v5459 = vpack.c.b16 %v5400, %v5399
        %v5460 = vpack.c.b16 %v5402, %v5401
        %v5461 = vpack.c.b16 %v5404, %v5403
        %v5462 = vpack.c.b16 %v5406, %v5405
        %v5463 = vpack.c.b16 %v5408, %v5407
        %v5464 = vpack.c.b16 %v5410, %v5409
        %v5465 = vpack.c.b16 %v5412, %v5411
        %v5466 = vpack.c.b16 %v5414, %v5413
        %v5467 = vpack.c.b16 %v5416, %v5415
        %v5468 = vpack.c.b16 %v5418, %v5417
        %v5469 = vpack.c.b16 %v5420, %v5419
        %v5470 = vpack.c.b16 %v5422, %v5421
        %v5471 = vpack.c.b16 %v5424, %v5423
        %v5472 = vpack.c.b16 %v5426, %v5425
        %v5473 = vpack.c.b16 %v5428, %v5427
        %v5474 = vpack.c.b16 %v5430, %v5429
        %v5475 = vpack.c.b16 %v5432, %v5431
        %v5476 = vpack.c.b16 %v5434, %v5433
        %v5477 = vpack.c.b16 %v5436, %v5435
        %v5478 = vpack.c.b16 %v5438, %v5437
        %v5479 = vpack.c.b16 %v5440, %v5439
        %v5480 = vpack.c.b16 %v5442, %v5441
        %v5481 = vpack.c.b16 %v5444, %v5443
        %v5482 = vpack.c.b16 %v5446, %v5445
        %v5483 = vpack.c.b16 %v5448, %v5447
        %v5484 = vpack.c.b16 %v5450, %v5449
        %v5485 = vpack.c.b16 %v5452, %v5451
        %v5486 = vpack.c.b16 %v5454, %v5453
        %5519 = vmatpush.bf16.msra.mxu0 %v5462
        %5520 = vmatpush.bf16.msra.mxu0 %v5461
        %5521 = vmatpush.bf16.msra.mxu0 %v5460
        %5522 = vmatpush.bf16.msra.mxu0 %v5459
        %5523 = vmatpush.bf16.msra.mxu0 %v5458
        %5524 = vmatpush.bf16.msra.mxu0 %v5457
        %5525 = vmatpush.bf16.msra.mxu0 %v5456
        %5526 = vmatpush.bf16.msra.mxu0 %v5455
        %5527 = vmatmul.bf16.gmra.mxu0 %v5258
        %v5528 = vpop.f32.mrf.mxu0
        %v5529 = vadd.f32 %v5326, %v5528
        %v5530 = vpop.f32.mrf.mxu0
        %v5531 = vadd.f32 %v5326, %v5530
        %5532 = vdwg.mxu0
        %5533 = vmatpush.bf16.msra.mxu0 %v5470
        %5534 = vmatpush.bf16.msra.mxu0 %v5469
        %5535 = vmatpush.bf16.msra.mxu0 %v5468
        %5536 = vmatpush.bf16.msra.mxu0 %v5467
        %5537 = vmatpush.bf16.msra.mxu0 %v5466
        %5538 = vmatpush.bf16.msra.mxu0 %v5465
        %5539 = vmatpush.bf16.msra.mxu0 %v5464
        %5540 = vmatpush.bf16.msra.mxu0 %v5463
        %5541 = vmatmul.bf16.gmra.mxu0 %v5259
        %v5542 = vpop.f32.mrf.mxu0
        %v5543 = vadd.f32 %v5529, %v5542
        %v5544 = vpop.f32.mrf.mxu0
        %v5545 = vadd.f32 %v5531, %v5544
        %5546 = vdwg.mxu0
        %5547 = vmatpush.bf16.msra.mxu0 %v5478
        %5548 = vmatpush.bf16.msra.mxu0 %v5477
        %5549 = vmatpush.bf16.msra.mxu0 %v5476
        %5550 = vmatpush.bf16.msra.mxu0 %v5475
        %5551 = vmatpush.bf16.msra.mxu0 %v5474
        %5552 = vmatpush.bf16.msra.mxu0 %v5473
        %5553 = vmatpush.bf16.msra.mxu0 %v5472
        %5554 = vmatpush.bf16.msra.mxu0 %v5471
        %5555 = vmatmul.bf16.gmra.mxu0 %v5260
        %v5556 = vpop.f32.mrf.mxu0
        %v5557 = vadd.f32 %v5543, %v5556
        %v5558 = vpop.f32.mrf.mxu0
        %v5559 = vadd.f32 %v5545, %v5558
        %5560 = vdwg.mxu0
        %5561 = vmatpush.bf16.msra.mxu0 %v5486
        %5562 = vmatpush.bf16.msra.mxu0 %v5485
        %5563 = vmatpush.bf16.msra.mxu0 %v5484
        %5564 = vmatpush.bf16.msra.mxu0 %v5483
        %5565 = vmatpush.bf16.msra.mxu0 %v5482
        %5566 = vmatpush.bf16.msra.mxu0 %v5481
        %5567 = vmatpush.bf16.msra.mxu0 %v5480
        %5568 = vmatpush.bf16.msra.mxu0 %v5479
        %5569 = vmatmul.bf16.gmra.mxu0 %v5261
        %v5570 = vpop.f32.mrf.mxu0
        %v5571 = vadd.f32 %v5557, %v5570
        %v5572 = vpop.f32.mrf.mxu0
        %v5573 = vadd.f32 %v5559, %v5572
        %5574 = vdwg.mxu0
        %v5575 = vmul.f32 %v5571, 0.5
        %v5576 = vmul.f32 %v5573, 0.5
        %v5577 = vmul.f32 %v5571, 0.70710677
        %v5578 = vmul.f32 %v5573, 0.70710677
        %vm5579 = vcmp.ge.f32.partialorder %v5577, 0.0
        %vm5580 = vcmp.ge.f32.partialorder %v5578, 0.0
        %v5581 = vsel %vm5579, 1.0, -1.0
        %v5582 = vsel %vm5580, 1.0, -1.0
        %v5583 = vand.u32 2147483647, %v5577
        %v5584 = vand.u32 2147483647, %v5578
        %v5585 = vmul.f32 %v5583, 0.3275911
        %v5586 = vmul.f32 %v5584, 0.3275911
        %v5587 = vadd.f32 %v5585, 1.0
        %v5588 = vadd.f32 %v5586, 1.0
        %v5589 = vrcp.pop %v5587
        %v5590 = vmul.f32 %v5587, %v5589
        %v5591 = vsub.f32 1.0, %v5590
        %v5592 = vmul.f32 %v5589, %v5591
        %v5593 = vadd.f32 %v5589, %v5592
        %vm5594 = vweird.f32 %v5587
        %vm5595 = vweird.f32 %v5589
        %vm5596 = vmor %vm5594, %vm5595
        %v5597 = vsel %vm5596, %v5589, %v5593
        %v5598 = vand.u32 2147483647, %v5587
        %vm5599 = vcmp.eq.f32.partialorder %v5598, 8.507059e+37
        %v5600 = vand.u32 %v5587, 2147483648
        %v5601 = vor.u32 1.1754944e-38, %v5600
        %v5602 = vsel %vm5599, %v5601, %v5597
        %v5603 = vmul.f32 1.0, %v5602
        %v5604 = vrcp.pop %v5588
        %v5605 = vmul.f32 %v5588, %v5604
        %v5606 = vsub.f32 1.0, %v5605
        %v5607 = vmul.f32 %v5604, %v5606
        %v5608 = vadd.f32 %v5604, %v5607
        %vm5609 = vweird.f32 %v5588
        %vm5610 = vweird.f32 %v5604
        %vm5611 = vmor %vm5609, %vm5610
        %v5612 = vsel %vm5611, %v5604, %v5608
        %v5613 = vand.u32 2147483647, %v5588
        %vm5614 = vcmp.eq.f32.partialorder %v5613, 8.507059e+37
        %v5615 = vand.u32 %v5588, 2147483648
        %v5616 = vor.u32 1.1754944e-38, %v5615
        %v5617 = vsel %vm5614, %v5616, %v5612
        %v5618 = vmul.f32 1.0, %v5617
        %v5619 = vmul.f32 %v5603, 1.0614054
        %v5620 = vmul.f32 %v5618, 1.0614054
        %v5621 = vadd.f32 %v5619, -1.4531521
        %v5622 = vadd.f32 %v5620, -1.4531521
        %v5623 = vmul.f32 %v5621, %v5603
        %v5624 = vmul.f32 %v5622, %v5618
        %v5625 = vadd.f32 %v5623, 1.4214138
        %v5626 = vadd.f32 %v5624, 1.4214138
        %v5627 = vmul.f32 %v5625, %v5603
        %v5628 = vmul.f32 %v5626, %v5618
        %v5629 = vadd.f32 %v5627, -0.28449672
        %v5630 = vadd.f32 %v5628, -0.28449672
        %v5631 = vmul.f32 %v5629, %v5603
        %v5632 = vmul.f32 %v5630, %v5618
        %v5633 = vadd.f32 %v5631, 0.2548296
        %v5634 = vadd.f32 %v5632, 0.2548296
        %v5635 = vmul.f32 %v5633, %v5603
        %v5636 = vmul.f32 %v5634, %v5618
        %v5637 = vsub.f32 0.0, %v5583
        %v5638 = vsub.f32 0.0, %v5584
        %v5639 = vmul.f32 %v5637, %v5583
        %v5640 = vmul.f32 %v5638, %v5584
        %v5641 = vmul.f32 %v5639, 1.442695
        %v5642 = vpow.pop %v5641
        %v5643 = vmul.f32 %v5640, 1.442695
        %v5644 = vpow.pop %v5643
        %v5645 = vmul.f32 %v5635, %v5642
        %v5646 = vmul.f32 %v5636, %v5644
        %v5647 = vsub.f32 1.0, %v5645
        %v5648 = vsub.f32 1.0, %v5646
        %v5649 = vmul.f32 %v5581, %v5647
        %v5650 = vmul.f32 %v5582, %v5648
        %v5651 = vadd.f32 %v5649, 1.0
        %v5652 = vadd.f32 %v5650, 1.0
        %v5653 = vmul.f32 %v5575, %v5651
        %v5654 = vmul.f32 %v5576, %v5652
        %v5655 = vadd.f32 %v4094, %v4146
        %v5656 = vadd.f32 %v4096, %v4147
        %v5657 = vadd.f32 %v5655, %v5653
        %v5658 = vadd.f32 %v5656, %v5654
        %s5659 = scalar_lea.vmem %s244, 16 [#allocation2]
        %5660 = vst.msk [vmem:[%s5659] sm:$0xff] %vm255, %v5657
        %5661 = vst.msk [vmem:[%s5659 + $0x8] sm:$0xff] %vm255, %v5658
        %s5662 = sand.u32 %s159, 1
        %s5663 = scalar_lea.sflag [#allocation3], %s5662
        %s5664 = sand.u32 %s159, 1
        %s5665 = smul.addr %s5664, 32
        %s5666 = scalar_lea.vmem [#allocation2], %s5665
        // Predicated region
        $region45: #{tpu_custom_call.1} parent=43 // pred_check
          %p5667 = pneg %p169
        $region46: #{tpu_custom_call.1} parent=43 // pred_check_branch
          %5669 = sbr.rel (%p5667) target = $region48
        $region47: #{tpu_custom_call.1} parent=43 // pred_region
          #allocation5 [shape = 'u32[6]{0}', space=smem, size = 0x18, scoped, tag = 'DMA stride descriptor']
          %5671 = vsyncadd %s5663, 0
          %s5672 = smul.addr %s20, 2
          %s5673 = smul.addr %s5672, 8
          %s5674 = scalar_lea.hbm %s6, %s5673
          %s5676 = sshll.u32 1, 14
          %s5677 = sxor.u32 4294967295, %s5676
          %s5680 = sshll.u32 7, 18
          %s5681 = sxor.u32 4294967295, %s5680
          %s5682 = sand.u32 0, %s5681
          %s5684 = sor.u32 %s5682, 0
          %s5685 = sshll.u32 %s5666, 4
          %s5686 = int_to_ptr.vmem [resolvable:$true] %s5685
          %s5687 = sshll.u32 %s5674, 4
          %s5688 = int_to_ptr.hbm [resolvable:$true] %s5687
          %5694 = sst [smem:[#allocation5]] 256
          %s5695 = scalar_lea.smem [#allocation5], 1
          %5696 = sst [smem:[%s5695]] 512
          %s5697 = scalar_lea.smem [#allocation5], 2
          %5698 = sst [smem:[%s5697]] 2
          %s5699 = scalar_lea.smem [#allocation5], 3
          %5700 = sst [smem:[%s5699]] 128
          %s5701 = scalar_lea.smem [#allocation5], 4
          %5702 = sst [smem:[%s5701]] 128
          %s5703 = scalar_lea.smem [#allocation5], 5
          %5704 = sst [smem:[%s5703]] 8
          %5706 = dma.general %s5686, 512, %s5688, %s5663, [#allocation4], [#allocation5], %s5684, 0
        $region48: #{tpu_custom_call.1} parent=43 // pred_fallthru
          _
      $region44: #{tpu_custom_call.1} parent=5 // pred_fallthru
        _
      %p5707 = scmp.le.s32.totalorder 2, %s15
      // Predicated region
      $region49: #{tpu_custom_call.1} parent=5 // pred_check
        %p5708 = pneg %p5707
      $region50: #{tpu_custom_call.1} parent=5 // pred_check_branch
        %5710 = sbr.rel (%p5708) target = $region52
      $region51: #{tpu_custom_call.1} parent=5 // pred_region
        %s5711 = ssub.s32 %s15, 2
        // Predicated region
        $region53: #{tpu_custom_call.1} parent=51 // pred_check
          %p5712 = pneg %p175
        $region54: #{tpu_custom_call.1} parent=51 // pred_check_branch
          %5714 = sbr.rel (%p5712) target = $region56
        $region55: #{tpu_custom_call.1} parent=51 // pred_region
          %s5715 = sand.u32 %s160, 1
          %s5716 = scalar_lea.sflag [#allocation3], %s5715
          %s5717 = sand.u32 %s160, 1
          %s5718 = smul.addr %s5717, 32
          %s5719 = scalar_lea.vmem [#allocation2], %s5718
          %5721 = dma.done %s5716, 512
        $region56: #{tpu_custom_call.1} parent=51 // pred_fallthru
          _
      $region52: #{tpu_custom_call.1} parent=5 // pred_fallthru
        _
    $region6: #{tpu_custom_call.1} parent=1 // loop_footer
      %s19 = sadd.s32 1, %s15
    $region7: #{tpu_custom_call.1} parent=1 // loop_footer_branch
      %14 = sbr.rel target = $region3
    $region8: #{tpu_custom_call.1} parent=1 // loop_exit
      _
    %5722 = vsyncpa [#allocation3], 1
    %s5723 = scalar_lea.sflag [#allocation3], 1
    %5724 = vsyncpa %s5723, 1

</llo_original>
